<compile_context>
chip_gen: v7x
topology: tpu7x:2x2x1
jax: 0.10.0
libtpu: 0.0.40
codegen_flags: <defaults>
</compile_context>

<pallas_src>
import jax
import jax.numpy as jnp
from jax import lax
from jax.experimental import pallas as pl
from jax.experimental.pallas import tpu as pltpu


def _interp_matrix(n_out, n_in):
    """Row matrix of F.interpolate(mode='bilinear', align_corners=True).

    Every row sums to exactly 1.0 — this is what makes it legal to apply the
    resize *before* the 1x1 conv (+bias) inside the kernel.
    """
    if n_out > 1:
        src = jnp.arange(n_out, dtype=jnp.float32) * ((n_in - 1) / (n_out - 1))
    else:
        src = jnp.zeros((n_out,), jnp.float32)
    i0 = jnp.clip(jnp.floor(src).astype(jnp.int32), 0, n_in - 1)
    i1 = jnp.clip(i0 + 1, 0, n_in - 1)
    w1 = src - i0.astype(jnp.float32)
    w0 = 1.0 - w1
    rows = jnp.arange(n_out)
    m = jnp.zeros((n_out, n_in), jnp.float32)
    m = m.at[rows, i0].add(w0)
    m = m.at[rows, i1].add(w1)
    return m


# Tap order (matches the w3 reshape in the wrapper): dy-major, dx-minor.
_OFFSETS = tuple((dy, dx) for dy in (-1, 0, 1) for dx in (-1, 0, 1))


def _make_kernel(Cin, Cmid, Cout, H, W, Hout, Wout):
    HW = H * W
    HoWo = Hout * Wout

    def kernel(x_ref, masks_ref, w3ts_ref, sh_ref, mw_ref, mh_ref, w1t_ref,
               b1_ref, o_ref, patches_ref, y3_ref, r_ref):
        x = x_ref[...]                                       # (Cin, HW) f32

        # ---- 3x3 conv taps: XLU lane-rolls + resident boundary masks --------
        # For tap shift s:  tap[:, p] = x[:, p + s]  -> jnp.roll shift = -s.
        # Wrapped lanes carry garbage but every wrapped position is killed by
        # the corresponding boundary mask (precomputed in the wrapper).
        mi = 0
        for t, (dy, dx) in enumerate(_OFFSETS):
            if dy == 0 and dx == 0:
                tap = x
            else:
                s = dy * W + dx
                tap = pltpu.roll(x, (-s) % HW, 1) * masks_ref[mi:mi + 1, :]
                mi += 1
            patches_ref[t * Cin:(t + 1) * Cin, :] = tap      # (9*Cin, HW) scratch

        # ---- conv3x3 (BN scale folded into weights) + BN shift + ReLU -------
        y = jnp.dot(w3ts_ref[...], patches_ref[...],
                    preferred_element_type=jnp.float32,
                    precision=lax.Precision.HIGHEST)         # (Cmid, HW)
        y = jnp.maximum(y + sh_ref[...], 0.0)
        # Dropout(p=0.1) is the identity in eval mode.

        # ---- separable bilinear resize (align_corners=True) -----------------
        # (Cmid, H*W) -> (Cmid, H, W) via cheap static stores into scratch.
        for h in range(H):
            y3_ref[:, h, :] = y[:, h * W:(h + 1) * W]
        y3 = y3_ref[...]                                     # (Cmid, H, W)

        # W-resize: batched (Cmid, H, W) @ (W, Wout).
        mw_b = jnp.broadcast_to(mw_ref[...], (Cmid, W, Wout))
        t3 = jnp.einsum('chw,cwq->chq', y3, mw_b,
                        preferred_element_type=jnp.float32,
                        precision=lax.Precision.HIGHEST)     # (Cmid, H, Wout)

        # H-resize: batched (Hout, H) @ (Cmid, H, Wout).
        mh_b = jnp.broadcast_to(mh_ref[...], (Cmid, Hout, H))
        r3 = jnp.einsum('cph,chq->cpq', mh_b, t3,
                        preferred_element_type=jnp.float32,
                        precision=lax.Precision.HIGHEST)     # (Cmid, Hout, Wout)

        # (Cmid, Hout, Wout) -> (Cmid, HoWo) scratch so the final store is one
        # lane-dense (Cout, HoWo) write.
        for p in range(Hout):
            r_ref[:, p * Wout:(p + 1) * Wout] = r3[:, p, :]

        # ---- 1x1 conv (+bias).  Resize/1x1 commute because interp rows sum
        # to 1 (align_corners=True), so the bias is unaffected by the resize.
        out = jnp.dot(w1t_ref[...], r_ref[...],
                      preferred_element_type=jnp.float32,
                      precision=lax.Precision.HIGHEST) + b1_ref[...]
        o_ref[...] = out.astype(o_ref.dtype)                 # (Cout, HoWo)

    return kernel


def fcn_final_block(x_nchw, params, out_size):
    w3 = params["w3"]                    # (3, 3, Cin, Cmid)  HWIO
    w1 = params["w1"]                    # (Cmid, Cout)
    b1 = params["b1"]                    # (Cout,)
    eps = 1e-5
    scale = params["gamma"] / jnp.sqrt(params["rvar"] + eps)
    shift = params["beta"] - params["rmean"] * scale

    N, Cin, H, W = x_nchw.shape
    Cmid = w3.shape[-1]
    Cout = w1.shape[-1]
    Hout, Wout = out_size
    HW, HoWo = H * W, Hout * Wout

    # Free view: NCHW is channel-major, so (N, Cin, H*W) needs no data movement.
    x_flat = x_nchw.reshape(N, Cin, HW).astype(jnp.float32)

    # Tap-major transposed conv weight with the BatchNorm scale folded in:
    # column block t = (ky*3 + kx) holds scale[:,None] * w3[ky, kx, :, :].T.
    w3t = jnp.transpose(w3.reshape(9, Cin, Cmid), (2, 0, 1)).reshape(Cmid, 9 * Cin)
    w3ts = (scale[:, None] * w3t).astype(jnp.float32)

    # Per-tap boundary masks over the flattened lane axis (resident, 8 KB).
    pos = jnp.arange(HW)
    hh, ww = pos // W, pos % W
    rows = []
    for dy, dx in _OFFSETS:
        if dy == 0 and dx == 0:
            continue
        m = jnp.ones((HW,), bool)
        if dy == -1:
            m = m & (hh >= 1)
        if dy == 1:
            m = m & (hh <= H - 2)
        if dx == -1:
            m = m & (ww >= 1)
        if dx == 1:
            m = m & (ww <= W - 2)
        rows.append(m)
    tap_masks = jnp.stack(rows).astype(jnp.float32)          # (8, HW)

    # Separable align_corners=True interpolation matrices (tiny, resident).
    mh = _interp_matrix(Hout, H)                              # (Hout, H)
    mw_t = jnp.transpose(_interp_matrix(Wout, W))             # (W, Wout)

    kernel = _make_kernel(Cin, Cmid, Cout, H, W, Hout, Wout)

    flops = 2 * N * (9 * Cin * Cmid * HW + Cmid * HW * Wout
                     + Cmid * Hout * H * Wout + Cmid * Cout * HoWo)
    bytes_accessed = 4 * (N * Cin * HW + N * Cout * HoWo + 8 * HW
                          + 9 * Cin * Cmid + Cmid + W * Wout + Hout * H
                          + Cmid * Cout + Cout)

    out_flat = pl.pallas_call(
        kernel,
        out_shape=jax.ShapeDtypeStruct((N, Cout, HoWo), jnp.float32),
        grid_spec=pltpu.PrefetchScalarGridSpec(
            num_scalar_prefetch=0,
            grid=(N,),
            in_specs=[
                pl.BlockSpec((None, Cin, HW), lambda n: (n, 0, 0)),   # x
                pl.BlockSpec((8, HW), lambda n: (0, 0)),              # tap masks
                pl.BlockSpec((Cmid, 9 * Cin), lambda n: (0, 0)),      # w3 (BN-scaled)
                pl.BlockSpec((Cmid, 1), lambda n: (0, 0)),            # BN shift
                pl.BlockSpec((W, Wout), lambda n: (0, 0)),            # W-resize matrix
                pl.BlockSpec((Hout, H), lambda n: (0, 0)),            # H-resize matrix
                pl.BlockSpec((Cout, Cmid), lambda n: (0, 0)),         # w1^T
                pl.BlockSpec((Cout, 1), lambda n: (0, 0)),            # b1
            ],
            out_specs=pl.BlockSpec((None, Cout, HoWo), lambda n: (n, 0, 0)),
            scratch_shapes=[
                pltpu.VMEM((9 * Cin, HW), jnp.float32),   # conv taps
                pltpu.VMEM((Cmid, H, W), jnp.float32),    # conv output, split layout
                pltpu.VMEM((Cmid, HoWo), jnp.float32),    # resized, flat layout
            ]),
        compiler_params=pltpu.CompilerParams(dimension_semantics=("parallel",)),
        cost_estimate=pl.CostEstimate(
            flops=flops, transcendentals=0, bytes_accessed=bytes_accessed),
    )(x_flat, tap_masks, w3ts, shift.reshape(Cmid, 1).astype(jnp.float32),
      mw_t, mh, jnp.transpose(w1).astype(jnp.float32),
      b1.reshape(Cout, 1).astype(jnp.float32))

    # (N, Cout, Hout*Wout) is NCHW already — just a free reshape.
    return out_flat.reshape(N, Cout, Hout, Wout)


# ----------------------------- pure-JAX reference -----------------------------

def fcn_final_block_ref(x_nchw, params, out_size):
    eps = 1e-5
    x = jnp.transpose(x_nchw, (0, 2, 3, 1)).astype(jnp.float32)
    y = lax.conv_general_dilated(
        x, params["w3"], (1, 1), ((1, 1), (1, 1)),
        dimension_numbers=("NHWC", "HWIO", "NHWC"),
        precision=lax.Precision.HIGHEST)
    y = (y - params["rmean"]) / jnp.sqrt(params["rvar"] + eps) * params["gamma"] + params["beta"]
    y = jnp.maximum(y, 0.0)
    z = jnp.einsum("nhwm,mo->nhwo", y, params["w1"],
                   precision=lax.Precision.HIGHEST) + params["b1"]
    Hout, Wout = out_size
    mh = _interp_matrix(Hout, x.shape[1])
    mw = _interp_matrix(Wout, x.shape[2])
    o = jnp.einsum("oh,nhwc->nowc", mh, z, precision=lax.Precision.HIGHEST)
    o = jnp.einsum("pw,nowc->nopc", mw, o, precision=lax.Precision.HIGHEST)
    return jnp.transpose(o, (0, 3, 1, 2))


if __name__ == "__main__":
    # Shapes consistent with the module: in_channels=16, bottleneck_factor=4 ->
    # mid_channels=4, out_channels=8, 16x16 input, 32x32 output, batch 2.
    N, Cin, H, W = 2, 16, 16, 16
    bottleneck_factor = 4
    Cmid = Cin // bottleneck_factor
    Cout = 8
    out_size = (32, 32)

    key = jax.random.PRNGKey(0)
    ks = jax.random.split(key, 8)
    x = jax.random.normal(ks[0], (N, Cin, H, W), jnp.float32)
    params = {
        "w3": 0.1 * jax.random.normal(ks[1], (3, 3, Cin, Cmid), jnp.float32),   # HWIO
        "gamma": 1.0 + 0.1 * jax.random.normal(ks[2], (Cmid,), jnp.float32),
        "beta": 0.1 * jax.random.normal(ks[3], (Cmid,), jnp.float32),
        "rmean": 0.1 * jax.random.normal(ks[4], (Cmid,), jnp.float32),
        "rvar": 0.5 + jnp.abs(jax.random.normal(ks[5], (Cmid,), jnp.float32)),
        "w1": 0.1 * jax.random.normal(ks[6], (Cmid, Cout), jnp.float32),
        "b1": 0.1 * jax.random.normal(ks[7], (Cout,), jnp.float32),
    }

    out = jax.block_until_ready(fcn_final_block(x, params, out_size))
    ref = jax.block_until_ready(fcn_final_block_ref(x, params, out_size))

    assert out.shape == (N, Cout) + out_size, out.shape
    max_err = float(jnp.max(jnp.abs(out - ref)))
    assert jnp.allclose(out, ref, atol=1e-3, rtol=1e-3), max_err
    print("KERNEL_OK")
</pallas_src>

<mosaic_0001>
module attributes {stable_mosaic.version = 11 : i64} {
  func.func @kernel(%arg0: i32, %arg1: memref<1x16x256xf32, #tpu.memory_space<vmem>>, %arg2: memref<8x256xf32, #tpu.memory_space<vmem>>, %arg3: memref<4x144xf32, #tpu.memory_space<vmem>>, %arg4: memref<4x1xf32, #tpu.memory_space<vmem>>, %arg5: memref<16x32xf32, #tpu.memory_space<vmem>>, %arg6: memref<32x16xf32, #tpu.memory_space<vmem>>, %arg7: memref<8x4xf32, #tpu.memory_space<vmem>>, %arg8: memref<8x1xf32, #tpu.memory_space<vmem>>, %arg9: memref<1x8x1024xf32, #tpu.memory_space<vmem>>, %arg10: memref<144x256xf32, #tpu.memory_space<vmem>>, %arg11: memref<4x16x16xf32, #tpu.memory_space<vmem>>, %arg12: memref<4x1024xf32, #tpu.memory_space<vmem>>) attributes {dimension_semantics = [#tpu.dimension_semantics<parallel>], iteration_bounds = array<i64: 2>, scalar_prefetch = 0 : i64, scratch_operands = 3 : i64, tpu.core_type = #tpu.core_type<tc>, window_params = [{transform_indices = @transform_0, window_bounds = array<i64: 1, 16, 256>}, {pipeline_mode = #tpu.pipeline_mode<synchronous>, transform_indices = @transform_1, window_bounds = array<i64: 8, 256>}, {pipeline_mode = #tpu.pipeline_mode<synchronous>, transform_indices = @transform_2, window_bounds = array<i64: 4, 144>}, {pipeline_mode = #tpu.pipeline_mode<synchronous>, transform_indices = @transform_3, window_bounds = array<i64: 4, 1>}, {pipeline_mode = #tpu.pipeline_mode<synchronous>, transform_indices = @transform_4, window_bounds = array<i64: 16, 32>}, {pipeline_mode = #tpu.pipeline_mode<synchronous>, transform_indices = @transform_5, window_bounds = array<i64: 32, 16>}, {pipeline_mode = #tpu.pipeline_mode<synchronous>, transform_indices = @transform_6, window_bounds = array<i64: 8, 4>}, {pipeline_mode = #tpu.pipeline_mode<synchronous>, transform_indices = @transform_7, window_bounds = array<i64: 8, 1>}, {transform_indices = @transform_8, window_bounds = array<i64: 1, 8, 1024>}]} {
    %c0 = arith.constant 0 : index
    %c0_0 = arith.constant 0 : index
    %c0_1 = arith.constant 0 : index
    %0 = vector.load %arg1[%c0, %c0_0, %c0_1] : memref<1x16x256xf32, #tpu.memory_space<vmem>>, vector<1x16x256xf32>
    %1 = vector.shape_cast %0 : vector<1x16x256xf32> to vector<16x256xf32>
    %c17_i32 = arith.constant 17 : i32
    %2 = tpu.dynamic_rotate %1 by %c17_i32 dim 1 : vector<16x256xf32>, i32 -> vector<16x256xf32>
    %c0_2 = arith.constant 0 : index
    %c0_3 = arith.constant 0 : index
    %3 = vector.load %arg2[%c0_2, %c0_3] : memref<8x256xf32, #tpu.memory_space<vmem>>, vector<1x256xf32>
    %4 = vector.broadcast %3 : vector<1x256xf32> to vector<16x256xf32>
    %5 = arith.mulf %2, %4 : vector<16x256xf32>
    %c0_4 = arith.constant 0 : index
    %c0_5 = arith.constant 0 : index
    %6 = vector.load %arg10[%c0_4, %c0_5] : memref<144x256xf32, #tpu.memory_space<vmem>>, vector<16x256xf32>
    tpu.vector_store %arg10[%c0_4, %c0_5], %5 {strides = array<i32>} : memref<144x256xf32, #tpu.memory_space<vmem>>, vector<16x256xf32>,
    %c16_i32 = arith.constant 16 : i32
    %7 = tpu.dynamic_rotate %1 by %c16_i32 dim 1 : vector<16x256xf32>, i32 -> vector<16x256xf32>
    %c1 = arith.constant 1 : index
    %c0_6 = arith.constant 0 : index
    %8 = vector.load %arg2[%c1, %c0_6] : memref<8x256xf32, #tpu.memory_space<vmem>>, vector<1x256xf32>
    %9 = vector.broadcast %8 : vector<1x256xf32> to vector<16x256xf32>
    %10 = arith.mulf %7, %9 : vector<16x256xf32>
    %c16 = arith.constant 16 : index
    %c0_7 = arith.constant 0 : index
    %11 = vector.load %arg10[%c16, %c0_7] : memref<144x256xf32, #tpu.memory_space<vmem>>, vector<16x256xf32>
    tpu.vector_store %arg10[%c16, %c0_7], %10 {strides = array<i32>} : memref<144x256xf32, #tpu.memory_space<vmem>>, vector<16x256xf32>,
    %c15_i32 = arith.constant 15 : i32
    %12 = tpu.dynamic_rotate %1 by %c15_i32 dim 1 : vector<16x256xf32>, i32 -> vector<16x256xf32>
    %c2 = arith.constant 2 : index
    %c0_8 = arith.constant 0 : index
    %13 = vector.load %arg2[%c2, %c0_8] : memref<8x256xf32, #tpu.memory_space<vmem>>, vector<1x256xf32>
    %14 = vector.broadcast %13 : vector<1x256xf32> to vector<16x256xf32>
    %15 = arith.mulf %12, %14 : vector<16x256xf32>
    %c32 = arith.constant 32 : index
    %c0_9 = arith.constant 0 : index
    %16 = vector.load %arg10[%c32, %c0_9] : memref<144x256xf32, #tpu.memory_space<vmem>>, vector<16x256xf32>
    tpu.vector_store %arg10[%c32, %c0_9], %15 {strides = array<i32>} : memref<144x256xf32, #tpu.memory_space<vmem>>, vector<16x256xf32>,
    %c1_i32 = arith.constant 1 : i32
    %17 = tpu.dynamic_rotate %1 by %c1_i32 dim 1 : vector<16x256xf32>, i32 -> vector<16x256xf32>
    %c3 = arith.constant 3 : index
    %c0_10 = arith.constant 0 : index
    %18 = vector.load %arg2[%c3, %c0_10] : memref<8x256xf32, #tpu.memory_space<vmem>>, vector<1x256xf32>
    %19 = vector.broadcast %18 : vector<1x256xf32> to vector<16x256xf32>
    %20 = arith.mulf %17, %19 : vector<16x256xf32>
    %c48 = arith.constant 48 : index
    %c0_11 = arith.constant 0 : index
    %21 = vector.load %arg10[%c48, %c0_11] : memref<144x256xf32, #tpu.memory_space<vmem>>, vector<16x256xf32>
    tpu.vector_store %arg10[%c48, %c0_11], %20 {strides = array<i32>} : memref<144x256xf32, #tpu.memory_space<vmem>>, vector<16x256xf32>,
    %c64 = arith.constant 64 : index
    %c0_12 = arith.constant 0 : index
    %22 = vector.load %arg10[%c64, %c0_12] : memref<144x256xf32, #tpu.memory_space<vmem>>, vector<16x256xf32>
    tpu.vector_store %arg10[%c64, %c0_12], %1 {strides = array<i32>} : memref<144x256xf32, #tpu.memory_space<vmem>>, vector<16x256xf32>,
    %c255_i32 = arith.constant 255 : i32
    %23 = tpu.dynamic_rotate %1 by %c255_i32 dim 1 : vector<16x256xf32>, i32 -> vector<16x256xf32>
    %c4 = arith.constant 4 : index
    %c0_13 = arith.constant 0 : index
    %24 = vector.load %arg2[%c4, %c0_13] : memref<8x256xf32, #tpu.memory_space<vmem>>, vector<1x256xf32>
    %25 = vector.broadcast %24 : vector<1x256xf32> to vector<16x256xf32>
    %26 = arith.mulf %23, %25 : vector<16x256xf32>
    %c80 = arith.constant 80 : index
    %c0_14 = arith.constant 0 : index
    %27 = vector.load %arg10[%c80, %c0_14] : memref<144x256xf32, #tpu.memory_space<vmem>>, vector<16x256xf32>
    tpu.vector_store %arg10[%c80, %c0_14], %26 {strides = array<i32>} : memref<144x256xf32, #tpu.memory_space<vmem>>, vector<16x256xf32>,
    %c241_i32 = arith.constant 241 : i32
    %28 = tpu.dynamic_rotate %1 by %c241_i32 dim 1 : vector<16x256xf32>, i32 -> vector<16x256xf32>
    %c5 = arith.constant 5 : index
    %c0_15 = arith.constant 0 : index
    %29 = vector.load %arg2[%c5, %c0_15] : memref<8x256xf32, #tpu.memory_space<vmem>>, vector<1x256xf32>
    %30 = vector.broadcast %29 : vector<1x256xf32> to vector<16x256xf32>
    %31 = arith.mulf %28, %30 : vector<16x256xf32>
    %c96 = arith.constant 96 : index
    %c0_16 = arith.constant 0 : index
    %32 = vector.load %arg10[%c96, %c0_16] : memref<144x256xf32, #tpu.memory_space<vmem>>, vector<16x256xf32>
    tpu.vector_store %arg10[%c96, %c0_16], %31 {strides = array<i32>} : memref<144x256xf32, #tpu.memory_space<vmem>>, vector<16x256xf32>,
    %c240_i32 = arith.constant 240 : i32
    %33 = tpu.dynamic_rotate %1 by %c240_i32 dim 1 : vector<16x256xf32>, i32 -> vector<16x256xf32>
    %c6 = arith.constant 6 : index
    %c0_17 = arith.constant 0 : index
    %34 = vector.load %arg2[%c6, %c0_17] : memref<8x256xf32, #tpu.memory_space<vmem>>, vector<1x256xf32>
    %35 = vector.broadcast %34 : vector<1x256xf32> to vector<16x256xf32>
    %36 = arith.mulf %33, %35 : vector<16x256xf32>
    %c112 = arith.constant 112 : index
    %c0_18 = arith.constant 0 : index
    %37 = vector.load %arg10[%c112, %c0_18] : memref<144x256xf32, #tpu.memory_space<vmem>>, vector<16x256xf32>
    tpu.vector_store %arg10[%c112, %c0_18], %36 {strides = array<i32>} : memref<144x256xf32, #tpu.memory_space<vmem>>, vector<16x256xf32>,
    %c239_i32 = arith.constant 239 : i32
    %38 = tpu.dynamic_rotate %1 by %c239_i32 dim 1 : vector<16x256xf32>, i32 -> vector<16x256xf32>
    %c7 = arith.constant 7 : index
    %c0_19 = arith.constant 0 : index
    %39 = vector.load %arg2[%c7, %c0_19] : memref<8x256xf32, #tpu.memory_space<vmem>>, vector<1x256xf32>
    %40 = vector.broadcast %39 : vector<1x256xf32> to vector<16x256xf32>
    %41 = arith.mulf %38, %40 : vector<16x256xf32>
    %c128 = arith.constant 128 : index
    %c0_20 = arith.constant 0 : index
    %42 = vector.load %arg10[%c128, %c0_20] : memref<144x256xf32, #tpu.memory_space<vmem>>, vector<16x256xf32>
    tpu.vector_store %arg10[%c128, %c0_20], %41 {strides = array<i32>} : memref<144x256xf32, #tpu.memory_space<vmem>>, vector<16x256xf32>,
    %c0_21 = arith.constant 0 : index
    %c0_22 = arith.constant 0 : index
    %43 = vector.load %arg3[%c0_21, %c0_22] : memref<4x144xf32, #tpu.memory_space<vmem>>, vector<4x144xf32>
    %c0_23 = arith.constant 0 : index
    %c0_24 = arith.constant 0 : index
    %44 = vector.load %arg10[%c0_23, %c0_24] : memref<144x256xf32, #tpu.memory_space<vmem>>, vector<144x256xf32>
    %cst = arith.constant dense<0.000000e+00> : vector<4x256xf32>
    %45 = tpu.matmul %43, %44, %cst {dimension_numbers = #tpu.dot_dimension_numbers<[1], [0], [0], [1], [0, 0, 1, 1], [], []>, precision = #tpu.contract_precision<fp32>} : vector<4x144xf32>, vector<144x256xf32>, vector<4x256xf32> -> vector<4x256xf32>
    %c0_25 = arith.constant 0 : index
    %c0_26 = arith.constant 0 : index
    %46 = vector.load %arg4[%c0_25, %c0_26] : memref<4x1xf32, #tpu.memory_space<vmem>>, vector<4x1xf32>
    %47 = vector.broadcast %46 : vector<4x1xf32> to vector<4x256xf32>
    %48 = arith.addf %45, %47 : vector<4x256xf32>
    %cst_27 = arith.constant 0.000000e+00 : f32
    %49 = vector.broadcast %cst_27 : f32 to vector<4x256xf32>
    %50 = arith.maximumf %48, %49 : vector<4x256xf32>
    %51 = vector.extract_strided_slice %50 {offsets = [0, 0], sizes = [4, 16], strides = [1, 1]} : vector<4x256xf32> to vector<4x16xf32>
    %c0_28 = arith.constant 0 : index
    %c0_29 = arith.constant 0 : index
    %c0_30 = arith.constant 0 : index
    %52 = vector.load %arg11[%c0_28, %c0_29, %c0_30] : memref<4x16x16xf32, #tpu.memory_space<vmem>>, vector<4x1x16xf32>
    %53 = vector.shape_cast %52 : vector<4x1x16xf32> to vector<4x16xf32>
    %54 = vector.shape_cast %51 : vector<4x16xf32> to vector<4x1x16xf32>
    tpu.vector_store %arg11[%c0_28, %c0_29, %c0_30], %54 {strides = array<i32>} : memref<4x16x16xf32, #tpu.memory_space<vmem>>, vector<4x1x16xf32>,
    %55 = vector.extract_strided_slice %50 {offsets = [0, 16], sizes = [4, 16], strides = [1, 1]} : vector<4x256xf32> to vector<4x16xf32>
    %c0_31 = arith.constant 0 : index
    %c1_32 = arith.constant 1 : index
    %c0_33 = arith.constant 0 : index
    %56 = vector.load %arg11[%c0_31, %c1_32, %c0_33] : memref<4x16x16xf32, #tpu.memory_space<vmem>>, vector<4x1x16xf32>
    %57 = vector.shape_cast %56 : vector<4x1x16xf32> to vector<4x16xf32>
    %58 = vector.shape_cast %55 : vector<4x16xf32> to vector<4x1x16xf32>
    tpu.vector_store %arg11[%c0_31, %c1_32, %c0_33], %58 {strides = array<i32>} : memref<4x16x16xf32, #tpu.memory_space<vmem>>, vector<4x1x16xf32>,
    %59 = vector.extract_strided_slice %50 {offsets = [0, 32], sizes = [4, 16], strides = [1, 1]} : vector<4x256xf32> to vector<4x16xf32>
    %c0_34 = arith.constant 0 : index
    %c2_35 = arith.constant 2 : index
    %c0_36 = arith.constant 0 : index
    %60 = vector.load %arg11[%c0_34, %c2_35, %c0_36] : memref<4x16x16xf32, #tpu.memory_space<vmem>>, vector<4x1x16xf32>
    %61 = vector.shape_cast %60 : vector<4x1x16xf32> to vector<4x16xf32>
    %62 = vector.shape_cast %59 : vector<4x16xf32> to vector<4x1x16xf32>
    tpu.vector_store %arg11[%c0_34, %c2_35, %c0_36], %62 {strides = array<i32>} : memref<4x16x16xf32, #tpu.memory_space<vmem>>, vector<4x1x16xf32>,
    %63 = vector.extract_strided_slice %50 {offsets = [0, 48], sizes = [4, 16], strides = [1, 1]} : vector<4x256xf32> to vector<4x16xf32>
    %c0_37 = arith.constant 0 : index
    %c3_38 = arith.constant 3 : index
    %c0_39 = arith.constant 0 : index
    %64 = vector.load %arg11[%c0_37, %c3_38, %c0_39] : memref<4x16x16xf32, #tpu.memory_space<vmem>>, vector<4x1x16xf32>
    %65 = vector.shape_cast %64 : vector<4x1x16xf32> to vector<4x16xf32>
    %66 = vector.shape_cast %63 : vector<4x16xf32> to vector<4x1x16xf32>
    tpu.vector_store %arg11[%c0_37, %c3_38, %c0_39], %66 {strides = array<i32>} : memref<4x16x16xf32, #tpu.memory_space<vmem>>, vector<4x1x16xf32>,
    %67 = vector.extract_strided_slice %50 {offsets = [0, 64], sizes = [4, 16], strides = [1, 1]} : vector<4x256xf32> to vector<4x16xf32>
    %c0_40 = arith.constant 0 : index
    %c4_41 = arith.constant 4 : index
    %c0_42 = arith.constant 0 : index
    %68 = vector.load %arg11[%c0_40, %c4_41, %c0_42] : memref<4x16x16xf32, #tpu.memory_space<vmem>>, vector<4x1x16xf32>
    %69 = vector.shape_cast %68 : vector<4x1x16xf32> to vector<4x16xf32>
    %70 = vector.shape_cast %67 : vector<4x16xf32> to vector<4x1x16xf32>
    tpu.vector_store %arg11[%c0_40, %c4_41, %c0_42], %70 {strides = array<i32>} : memref<4x16x16xf32, #tpu.memory_space<vmem>>, vector<4x1x16xf32>,
    %71 = vector.extract_strided_slice %50 {offsets = [0, 80], sizes = [4, 16], strides = [1, 1]} : vector<4x256xf32> to vector<4x16xf32>
    %c0_43 = arith.constant 0 : index
    %c5_44 = arith.constant 5 : index
    %c0_45 = arith.constant 0 : index
    %72 = vector.load %arg11[%c0_43, %c5_44, %c0_45] : memref<4x16x16xf32, #tpu.memory_space<vmem>>, vector<4x1x16xf32>
    %73 = vector.shape_cast %72 : vector<4x1x16xf32> to vector<4x16xf32>
    %74 = vector.shape_cast %71 : vector<4x16xf32> to vector<4x1x16xf32>
    tpu.vector_store %arg11[%c0_43, %c5_44, %c0_45], %74 {strides = array<i32>} : memref<4x16x16xf32, #tpu.memory_space<vmem>>, vector<4x1x16xf32>,
    %75 = vector.extract_strided_slice %50 {offsets = [0, 96], sizes = [4, 16], strides = [1, 1]} : vector<4x256xf32> to vector<4x16xf32>
    %c0_46 = arith.constant 0 : index
    %c6_47 = arith.constant 6 : index
    %c0_48 = arith.constant 0 : index
    %76 = vector.load %arg11[%c0_46, %c6_47, %c0_48] : memref<4x16x16xf32, #tpu.memory_space<vmem>>, vector<4x1x16xf32>
    %77 = vector.shape_cast %76 : vector<4x1x16xf32> to vector<4x16xf32>
    %78 = vector.shape_cast %75 : vector<4x16xf32> to vector<4x1x16xf32>
    tpu.vector_store %arg11[%c0_46, %c6_47, %c0_48], %78 {strides = array<i32>} : memref<4x16x16xf32, #tpu.memory_space<vmem>>, vector<4x1x16xf32>,
    %79 = vector.extract_strided_slice %50 {offsets = [0, 112], sizes = [4, 16], strides = [1, 1]} : vector<4x256xf32> to vector<4x16xf32>
    %c0_49 = arith.constant 0 : index
    %c7_50 = arith.constant 7 : index
    %c0_51 = arith.constant 0 : index
    %80 = vector.load %arg11[%c0_49, %c7_50, %c0_51] : memref<4x16x16xf32, #tpu.memory_space<vmem>>, vector<4x1x16xf32>
    %81 = vector.shape_cast %80 : vector<4x1x16xf32> to vector<4x16xf32>
    %82 = vector.shape_cast %79 : vector<4x16xf32> to vector<4x1x16xf32>
    tpu.vector_store %arg11[%c0_49, %c7_50, %c0_51], %82 {strides = array<i32>} : memref<4x16x16xf32, #tpu.memory_space<vmem>>, vector<4x1x16xf32>,
    %83 = vector.extract_strided_slice %50 {offsets = [0, 128], sizes = [4, 16], strides = [1, 1]} : vector<4x256xf32> to vector<4x16xf32>
    %c0_52 = arith.constant 0 : index
    %c8 = arith.constant 8 : index
    %c0_53 = arith.constant 0 : index
    %84 = vector.load %arg11[%c0_52, %c8, %c0_53] : memref<4x16x16xf32, #tpu.memory_space<vmem>>, vector<4x1x16xf32>
    %85 = vector.shape_cast %84 : vector<4x1x16xf32> to vector<4x16xf32>
    %86 = vector.shape_cast %83 : vector<4x16xf32> to vector<4x1x16xf32>
    tpu.vector_store %arg11[%c0_52, %c8, %c0_53], %86 {strides = array<i32>} : memref<4x16x16xf32, #tpu.memory_space<vmem>>, vector<4x1x16xf32>,
    %87 = vector.extract_strided_slice %50 {offsets = [0, 144], sizes = [4, 16], strides = [1, 1]} : vector<4x256xf32> to vector<4x16xf32>
    %c0_54 = arith.constant 0 : index
    %c9 = arith.constant 9 : index
    %c0_55 = arith.constant 0 : index
    %88 = vector.load %arg11[%c0_54, %c9, %c0_55] : memref<4x16x16xf32, #tpu.memory_space<vmem>>, vector<4x1x16xf32>
    %89 = vector.shape_cast %88 : vector<4x1x16xf32> to vector<4x16xf32>
    %90 = vector.shape_cast %87 : vector<4x16xf32> to vector<4x1x16xf32>
    tpu.vector_store %arg11[%c0_54, %c9, %c0_55], %90 {strides = array<i32>} : memref<4x16x16xf32, #tpu.memory_space<vmem>>, vector<4x1x16xf32>,
    %91 = vector.extract_strided_slice %50 {offsets = [0, 160], sizes = [4, 16], strides = [1, 1]} : vector<4x256xf32> to vector<4x16xf32>
    %c0_56 = arith.constant 0 : index
    %c10 = arith.constant 10 : index
    %c0_57 = arith.constant 0 : index
    %92 = vector.load %arg11[%c0_56, %c10, %c0_57] : memref<4x16x16xf32, #tpu.memory_space<vmem>>, vector<4x1x16xf32>
    %93 = vector.shape_cast %92 : vector<4x1x16xf32> to vector<4x16xf32>
    %94 = vector.shape_cast %91 : vector<4x16xf32> to vector<4x1x16xf32>
    tpu.vector_store %arg11[%c0_56, %c10, %c0_57], %94 {strides = array<i32>} : memref<4x16x16xf32, #tpu.memory_space<vmem>>, vector<4x1x16xf32>,
    %95 = vector.extract_strided_slice %50 {offsets = [0, 176], sizes = [4, 16], strides = [1, 1]} : vector<4x256xf32> to vector<4x16xf32>
    %c0_58 = arith.constant 0 : index
    %c11 = arith.constant 11 : index
    %c0_59 = arith.constant 0 : index
    %96 = vector.load %arg11[%c0_58, %c11, %c0_59] : memref<4x16x16xf32, #tpu.memory_space<vmem>>, vector<4x1x16xf32>
    %97 = vector.shape_cast %96 : vector<4x1x16xf32> to vector<4x16xf32>
    %98 = vector.shape_cast %95 : vector<4x16xf32> to vector<4x1x16xf32>
    tpu.vector_store %arg11[%c0_58, %c11, %c0_59], %98 {strides = array<i32>} : memref<4x16x16xf32, #tpu.memory_space<vmem>>, vector<4x1x16xf32>,
    %99 = vector.extract_strided_slice %50 {offsets = [0, 192], sizes = [4, 16], strides = [1, 1]} : vector<4x256xf32> to vector<4x16xf32>
    %c0_60 = arith.constant 0 : index
    %c12 = arith.constant 12 : index
    %c0_61 = arith.constant 0 : index
    %100 = vector.load %arg11[%c0_60, %c12, %c0_61] : memref<4x16x16xf32, #tpu.memory_space<vmem>>, vector<4x1x16xf32>
    %101 = vector.shape_cast %100 : vector<4x1x16xf32> to vector<4x16xf32>
    %102 = vector.shape_cast %99 : vector<4x16xf32> to vector<4x1x16xf32>
    tpu.vector_store %arg11[%c0_60, %c12, %c0_61], %102 {strides = array<i32>} : memref<4x16x16xf32, #tpu.memory_space<vmem>>, vector<4x1x16xf32>,
    %103 = vector.extract_strided_slice %50 {offsets = [0, 208], sizes = [4, 16], strides = [1, 1]} : vector<4x256xf32> to vector<4x16xf32>
    %c0_62 = arith.constant 0 : index
    %c13 = arith.constant 13 : index
    %c0_63 = arith.constant 0 : index
    %104 = vector.load %arg11[%c0_62, %c13, %c0_63] : memref<4x16x16xf32, #tpu.memory_space<vmem>>, vector<4x1x16xf32>
    %105 = vector.shape_cast %104 : vector<4x1x16xf32> to vector<4x16xf32>
    %106 = vector.shape_cast %103 : vector<4x16xf32> to vector<4x1x16xf32>
    tpu.vector_store %arg11[%c0_62, %c13, %c0_63], %106 {strides = array<i32>} : memref<4x16x16xf32, #tpu.memory_space<vmem>>, vector<4x1x16xf32>,
    %107 = vector.extract_strided_slice %50 {offsets = [0, 224], sizes = [4, 16], strides = [1, 1]} : vector<4x256xf32> to vector<4x16xf32>
    %c0_64 = arith.constant 0 : index
    %c14 = arith.constant 14 : index
    %c0_65 = arith.constant 0 : index
    %108 = vector.load %arg11[%c0_64, %c14, %c0_65] : memref<4x16x16xf32, #tpu.memory_space<vmem>>, vector<4x1x16xf32>
    %109 = vector.shape_cast %108 : vector<4x1x16xf32> to vector<4x16xf32>
    %110 = vector.shape_cast %107 : vector<4x16xf32> to vector<4x1x16xf32>
    tpu.vector_store %arg11[%c0_64, %c14, %c0_65], %110 {strides = array<i32>} : memref<4x16x16xf32, #tpu.memory_space<vmem>>, vector<4x1x16xf32>,
    %111 = vector.extract_strided_slice %50 {offsets = [0, 240], sizes = [4, 16], strides = [1, 1]} : vector<4x256xf32> to vector<4x16xf32>
    %c0_66 = arith.constant 0 : index
    %c15 = arith.constant 15 : index
    %c0_67 = arith.constant 0 : index
    %112 = vector.load %arg11[%c0_66, %c15, %c0_67] : memref<4x16x16xf32, #tpu.memory_space<vmem>>, vector<4x1x16xf32>
    %113 = vector.shape_cast %112 : vector<4x1x16xf32> to vector<4x16xf32>
    %114 = vector.shape_cast %111 : vector<4x16xf32> to vector<4x1x16xf32>
    tpu.vector_store %arg11[%c0_66, %c15, %c0_67], %114 {strides = array<i32>} : memref<4x16x16xf32, #tpu.memory_space<vmem>>, vector<4x1x16xf32>,
    %c0_68 = arith.constant 0 : index
    %c0_69 = arith.constant 0 : index
    %c0_70 = arith.constant 0 : index
    %115 = vector.load %arg11[%c0_68, %c0_69, %c0_70] : memref<4x16x16xf32, #tpu.memory_space<vmem>>, vector<4x16x16xf32>
    %c0_71 = arith.constant 0 : index
    %c0_72 = arith.constant 0 : index
    %116 = vector.load %arg5[%c0_71, %c0_72] : memref<16x32xf32, #tpu.memory_space<vmem>>, vector<16x32xf32>
    %117 = vector.shape_cast %116 : vector<16x32xf32> to vector<1x16x32xf32>
    %118 = vector.broadcast %117 : vector<1x16x32xf32> to vector<4x16x32xf32>
    "tpu.trace_start"() <{level = 10 : i32, message = "chw,cwq->chq"}> : () -> ()
    %cst_73 = arith.constant dense<0.000000e+00> : vector<4x16x32xf32>
    %119 = tpu.matmul %115, %118, %cst_73 {dimension_numbers = #tpu.dot_dimension_numbers<[2], [1], [1], [2], [0, 0, 0, 1, 1, 2], [0], [0]>, precision = #tpu.contract_precision<fp32>} : vector<4x16x16xf32>, vector<4x16x32xf32>, vector<4x16x32xf32> -> vector<4x16x32xf32>
    "tpu.trace_stop"() : () -> ()
    %c0_74 = arith.constant 0 : index
    %c0_75 = arith.constant 0 : index
    %120 = vector.load %arg6[%c0_74, %c0_75] : memref<32x16xf32, #tpu.memory_space<vmem>>, vector<32x16xf32>
    %121 = vector.shape_cast %120 : vector<32x16xf32> to vector<1x32x16xf32>
    %122 = vector.broadcast %121 : vector<1x32x16xf32> to vector<4x32x16xf32>
    "tpu.trace_start"() <{level = 10 : i32, message = "cph,chq->cpq"}> : () -> ()
    %cst_76 = arith.constant dense<0.000000e+00> : vector<4x32x32xf32>
    %123 = tpu.matmul %122, %119, %cst_76 {dimension_numbers = #tpu.dot_dimension_numbers<[2], [1], [1], [2], [0, 0, 0, 1, 1, 2], [0], [0]>, precision = #tpu.contract_precision<fp32>} : vector<4x32x16xf32>, vector<4x16x32xf32>, vector<4x32x32xf32> -> vector<4x32x32xf32>
    "tpu.trace_stop"() : () -> ()
    %124 = vector.extract_strided_slice %123 {offsets = [0, 0, 0], sizes = [4, 1, 32], strides = [1, 1, 1]} : vector<4x32x32xf32> to vector<4x1x32xf32>
    %125 = vector.shape_cast %124 : vector<4x1x32xf32> to vector<4x32xf32>
    %c0_77 = arith.constant 0 : index
    %c0_78 = arith.constant 0 : index
    %126 = vector.load %arg12[%c0_77, %c0_78] : memref<4x1024xf32, #tpu.memory_space<vmem>>, vector<4x32xf32>
    tpu.vector_store %arg12[%c0_77, %c0_78], %125 {strides = array<i32>} : memref<4x1024xf32, #tpu.memory_space<vmem>>, vector<4x32xf32>,
    %127 = vector.extract_strided_slice %123 {offsets = [0, 1, 0], sizes = [4, 1, 32], strides = [1, 1, 1]} : vector<4x32x32xf32> to vector<4x1x32xf32>
    %128 = vector.shape_cast %127 : vector<4x1x32xf32> to vector<4x32xf32>
    %c0_79 = arith.constant 0 : index
    %c32_80 = arith.constant 32 : index
    %129 = vector.load %arg12[%c0_79, %c32_80] : memref<4x1024xf32, #tpu.memory_space<vmem>>, vector<4x32xf32>
    tpu.vector_store %arg12[%c0_79, %c32_80], %128 {strides = array<i32>} : memref<4x1024xf32, #tpu.memory_space<vmem>>, vector<4x32xf32>,
    %130 = vector.extract_strided_slice %123 {offsets = [0, 2, 0], sizes = [4, 1, 32], strides = [1, 1, 1]} : vector<4x32x32xf32> to vector<4x1x32xf32>
    %131 = vector.shape_cast %130 : vector<4x1x32xf32> to vector<4x32xf32>
    %c0_81 = arith.constant 0 : index
    %c64_82 = arith.constant 64 : index
    %132 = vector.load %arg12[%c0_81, %c64_82] : memref<4x1024xf32, #tpu.memory_space<vmem>>, vector<4x32xf32>
    tpu.vector_store %arg12[%c0_81, %c64_82], %131 {strides = array<i32>} : memref<4x1024xf32, #tpu.memory_space<vmem>>, vector<4x32xf32>,
    %133 = vector.extract_strided_slice %123 {offsets = [0, 3, 0], sizes = [4, 1, 32], strides = [1, 1, 1]} : vector<4x32x32xf32> to vector<4x1x32xf32>
    %134 = vector.shape_cast %133 : vector<4x1x32xf32> to vector<4x32xf32>
    %c0_83 = arith.constant 0 : index
    %c96_84 = arith.constant 96 : index
    %135 = vector.load %arg12[%c0_83, %c96_84] : memref<4x1024xf32, #tpu.memory_space<vmem>>, vector<4x32xf32>
    tpu.vector_store %arg12[%c0_83, %c96_84], %134 {strides = array<i32>} : memref<4x1024xf32, #tpu.memory_space<vmem>>, vector<4x32xf32>,
    %136 = vector.extract_strided_slice %123 {offsets = [0, 4, 0], sizes = [4, 1, 32], strides = [1, 1, 1]} : vector<4x32x32xf32> to vector<4x1x32xf32>
    %137 = vector.shape_cast %136 : vector<4x1x32xf32> to vector<4x32xf32>
    %c0_85 = arith.constant 0 : index
    %c128_86 = arith.constant 128 : index
    %138 = vector.load %arg12[%c0_85, %c128_86] : memref<4x1024xf32, #tpu.memory_space<vmem>>, vector<4x32xf32>
    tpu.vector_store %arg12[%c0_85, %c128_86], %137 {strides = array<i32>} : memref<4x1024xf32, #tpu.memory_space<vmem>>, vector<4x32xf32>,
    %139 = vector.extract_strided_slice %123 {offsets = [0, 5, 0], sizes = [4, 1, 32], strides = [1, 1, 1]} : vector<4x32x32xf32> to vector<4x1x32xf32>
    %140 = vector.shape_cast %139 : vector<4x1x32xf32> to vector<4x32xf32>
    %c0_87 = arith.constant 0 : index
    %c160 = arith.constant 160 : index
    %141 = vector.load %arg12[%c0_87, %c160] : memref<4x1024xf32, #tpu.memory_space<vmem>>, vector<4x32xf32>
    tpu.vector_store %arg12[%c0_87, %c160], %140 {strides = array<i32>} : memref<4x1024xf32, #tpu.memory_space<vmem>>, vector<4x32xf32>,
    %142 = vector.extract_strided_slice %123 {offsets = [0, 6, 0], sizes = [4, 1, 32], strides = [1, 1, 1]} : vector<4x32x32xf32> to vector<4x1x32xf32>
    %143 = vector.shape_cast %142 : vector<4x1x32xf32> to vector<4x32xf32>
    %c0_88 = arith.constant 0 : index
    %c192 = arith.constant 192 : index
    %144 = vector.load %arg12[%c0_88, %c192] : memref<4x1024xf32, #tpu.memory_space<vmem>>, vector<4x32xf32>
    tpu.vector_store %arg12[%c0_88, %c192], %143 {strides = array<i32>} : memref<4x1024xf32, #tpu.memory_space<vmem>>, vector<4x32xf32>,
    %145 = vector.extract_strided_slice %123 {offsets = [0, 7, 0], sizes = [4, 1, 32], strides = [1, 1, 1]} : vector<4x32x32xf32> to vector<4x1x32xf32>
    %146 = vector.shape_cast %145 : vector<4x1x32xf32> to vector<4x32xf32>
    %c0_89 = arith.constant 0 : index
    %c224 = arith.constant 224 : index
    %147 = vector.load %arg12[%c0_89, %c224] : memref<4x1024xf32, #tpu.memory_space<vmem>>, vector<4x32xf32>
    tpu.vector_store %arg12[%c0_89, %c224], %146 {strides = array<i32>} : memref<4x1024xf32, #tpu.memory_space<vmem>>, vector<4x32xf32>,
    %148 = vector.extract_strided_slice %123 {offsets = [0, 8, 0], sizes = [4, 1, 32], strides = [1, 1, 1]} : vector<4x32x32xf32> to vector<4x1x32xf32>
    %149 = vector.shape_cast %148 : vector<4x1x32xf32> to vector<4x32xf32>
    %c0_90 = arith.constant 0 : index
    %c256 = arith.constant 256 : index
    %150 = vector.load %arg12[%c0_90, %c256] : memref<4x1024xf32, #tpu.memory_space<vmem>>, vector<4x32xf32>
    tpu.vector_store %arg12[%c0_90, %c256], %149 {strides = array<i32>} : memref<4x1024xf32, #tpu.memory_space<vmem>>, vector<4x32xf32>,
    %151 = vector.extract_strided_slice %123 {offsets = [0, 9, 0], sizes = [4, 1, 32], strides = [1, 1, 1]} : vector<4x32x32xf32> to vector<4x1x32xf32>
    %152 = vector.shape_cast %151 : vector<4x1x32xf32> to vector<4x32xf32>
    %c0_91 = arith.constant 0 : index
    %c288 = arith.constant 288 : index
    %153 = vector.load %arg12[%c0_91, %c288] : memref<4x1024xf32, #tpu.memory_space<vmem>>, vector<4x32xf32>
    tpu.vector_store %arg12[%c0_91, %c288], %152 {strides = array<i32>} : memref<4x1024xf32, #tpu.memory_space<vmem>>, vector<4x32xf32>,
    %154 = vector.extract_strided_slice %123 {offsets = [0, 10, 0], sizes = [4, 1, 32], strides = [1, 1, 1]} : vector<4x32x32xf32> to vector<4x1x32xf32>
    %155 = vector.shape_cast %154 : vector<4x1x32xf32> to vector<4x32xf32>
    %c0_92 = arith.constant 0 : index
    %c320 = arith.constant 320 : index
    %156 = vector.load %arg12[%c0_92, %c320] : memref<4x1024xf32, #tpu.memory_space<vmem>>, vector<4x32xf32>
    tpu.vector_store %arg12[%c0_92, %c320], %155 {strides = array<i32>} : memref<4x1024xf32, #tpu.memory_space<vmem>>, vector<4x32xf32>,
    %157 = vector.extract_strided_slice %123 {offsets = [0, 11, 0], sizes = [4, 1, 32], strides = [1, 1, 1]} : vector<4x32x32xf32> to vector<4x1x32xf32>
    %158 = vector.shape_cast %157 : vector<4x1x32xf32> to vector<4x32xf32>
    %c0_93 = arith.constant 0 : index
    %c352 = arith.constant 352 : index
    %159 = vector.load %arg12[%c0_93, %c352] : memref<4x1024xf32, #tpu.memory_space<vmem>>, vector<4x32xf32>
    tpu.vector_store %arg12[%c0_93, %c352], %158 {strides = array<i32>} : memref<4x1024xf32, #tpu.memory_space<vmem>>, vector<4x32xf32>,
    %160 = vector.extract_strided_slice %123 {offsets = [0, 12, 0], sizes = [4, 1, 32], strides = [1, 1, 1]} : vector<4x32x32xf32> to vector<4x1x32xf32>
    %161 = vector.shape_cast %160 : vector<4x1x32xf32> to vector<4x32xf32>
    %c0_94 = arith.constant 0 : index
    %c384 = arith.constant 384 : index
    %162 = vector.load %arg12[%c0_94, %c384] : memref<4x1024xf32, #tpu.memory_space<vmem>>, vector<4x32xf32>
    tpu.vector_store %arg12[%c0_94, %c384], %161 {strides = array<i32>} : memref<4x1024xf32, #tpu.memory_space<vmem>>, vector<4x32xf32>,
    %163 = vector.extract_strided_slice %123 {offsets = [0, 13, 0], sizes = [4, 1, 32], strides = [1, 1, 1]} : vector<4x32x32xf32> to vector<4x1x32xf32>
    %164 = vector.shape_cast %163 : vector<4x1x32xf32> to vector<4x32xf32>
    %c0_95 = arith.constant 0 : index
    %c416 = arith.constant 416 : index
    %165 = vector.load %arg12[%c0_95, %c416] : memref<4x1024xf32, #tpu.memory_space<vmem>>, vector<4x32xf32>
    tpu.vector_store %arg12[%c0_95, %c416], %164 {strides = array<i32>} : memref<4x1024xf32, #tpu.memory_space<vmem>>, vector<4x32xf32>,
    %166 = vector.extract_strided_slice %123 {offsets = [0, 14, 0], sizes = [4, 1, 32], strides = [1, 1, 1]} : vector<4x32x32xf32> to vector<4x1x32xf32>
    %167 = vector.shape_cast %166 : vector<4x1x32xf32> to vector<4x32xf32>
    %c0_96 = arith.constant 0 : index
    %c448 = arith.constant 448 : index
    %168 = vector.load %arg12[%c0_96, %c448] : memref<4x1024xf32, #tpu.memory_space<vmem>>, vector<4x32xf32>
    tpu.vector_store %arg12[%c0_96, %c448], %167 {strides = array<i32>} : memref<4x1024xf32, #tpu.memory_space<vmem>>, vector<4x32xf32>,
    %169 = vector.extract_strided_slice %123 {offsets = [0, 15, 0], sizes = [4, 1, 32], strides = [1, 1, 1]} : vector<4x32x32xf32> to vector<4x1x32xf32>
    %170 = vector.shape_cast %169 : vector<4x1x32xf32> to vector<4x32xf32>
    %c0_97 = arith.constant 0 : index
    %c480 = arith.constant 480 : index
    %171 = vector.load %arg12[%c0_97, %c480] : memref<4x1024xf32, #tpu.memory_space<vmem>>, vector<4x32xf32>
    tpu.vector_store %arg12[%c0_97, %c480], %170 {strides = array<i32>} : memref<4x1024xf32, #tpu.memory_space<vmem>>, vector<4x32xf32>,
    %172 = vector.extract_strided_slice %123 {offsets = [0, 16, 0], sizes = [4, 1, 32], strides = [1, 1, 1]} : vector<4x32x32xf32> to vector<4x1x32xf32>
    %173 = vector.shape_cast %172 : vector<4x1x32xf32> to vector<4x32xf32>
    %c0_98 = arith.constant 0 : index
    %c512 = arith.constant 512 : index
    %174 = vector.load %arg12[%c0_98, %c512] : memref<4x1024xf32, #tpu.memory_space<vmem>>, vector<4x32xf32>
    tpu.vector_store %arg12[%c0_98, %c512], %173 {strides = array<i32>} : memref<4x1024xf32, #tpu.memory_space<vmem>>, vector<4x32xf32>,
    %175 = vector.extract_strided_slice %123 {offsets = [0, 17, 0], sizes = [4, 1, 32], strides = [1, 1, 1]} : vector<4x32x32xf32> to vector<4x1x32xf32>
    %176 = vector.shape_cast %175 : vector<4x1x32xf32> to vector<4x32xf32>
    %c0_99 = arith.constant 0 : index
    %c544 = arith.constant 544 : index
    %177 = vector.load %arg12[%c0_99, %c544] : memref<4x1024xf32, #tpu.memory_space<vmem>>, vector<4x32xf32>
    tpu.vector_store %arg12[%c0_99, %c544], %176 {strides = array<i32>} : memref<4x1024xf32, #tpu.memory_space<vmem>>, vector<4x32xf32>,
    %178 = vector.extract_strided_slice %123 {offsets = [0, 18, 0], sizes = [4, 1, 32], strides = [1, 1, 1]} : vector<4x32x32xf32> to vector<4x1x32xf32>
    %179 = vector.shape_cast %178 : vector<4x1x32xf32> to vector<4x32xf32>
    %c0_100 = arith.constant 0 : index
    %c576 = arith.constant 576 : index
    %180 = vector.load %arg12[%c0_100, %c576] : memref<4x1024xf32, #tpu.memory_space<vmem>>, vector<4x32xf32>
    tpu.vector_store %arg12[%c0_100, %c576], %179 {strides = array<i32>} : memref<4x1024xf32, #tpu.memory_space<vmem>>, vector<4x32xf32>,
    %181 = vector.extract_strided_slice %123 {offsets = [0, 19, 0], sizes = [4, 1, 32], strides = [1, 1, 1]} : vector<4x32x32xf32> to vector<4x1x32xf32>
    %182 = vector.shape_cast %181 : vector<4x1x32xf32> to vector<4x32xf32>
    %c0_101 = arith.constant 0 : index
    %c608 = arith.constant 608 : index
    %183 = vector.load %arg12[%c0_101, %c608] : memref<4x1024xf32, #tpu.memory_space<vmem>>, vector<4x32xf32>
    tpu.vector_store %arg12[%c0_101, %c608], %182 {strides = array<i32>} : memref<4x1024xf32, #tpu.memory_space<vmem>>, vector<4x32xf32>,
    %184 = vector.extract_strided_slice %123 {offsets = [0, 20, 0], sizes = [4, 1, 32], strides = [1, 1, 1]} : vector<4x32x32xf32> to vector<4x1x32xf32>
    %185 = vector.shape_cast %184 : vector<4x1x32xf32> to vector<4x32xf32>
    %c0_102 = arith.constant 0 : index
    %c640 = arith.constant 640 : index
    %186 = vector.load %arg12[%c0_102, %c640] : memref<4x1024xf32, #tpu.memory_space<vmem>>, vector<4x32xf32>
    tpu.vector_store %arg12[%c0_102, %c640], %185 {strides = array<i32>} : memref<4x1024xf32, #tpu.memory_space<vmem>>, vector<4x32xf32>,
    %187 = vector.extract_strided_slice %123 {offsets = [0, 21, 0], sizes = [4, 1, 32], strides = [1, 1, 1]} : vector<4x32x32xf32> to vector<4x1x32xf32>
    %188 = vector.shape_cast %187 : vector<4x1x32xf32> to vector<4x32xf32>
    %c0_103 = arith.constant 0 : index
    %c672 = arith.constant 672 : index
    %189 = vector.load %arg12[%c0_103, %c672] : memref<4x1024xf32, #tpu.memory_space<vmem>>, vector<4x32xf32>
    tpu.vector_store %arg12[%c0_103, %c672], %188 {strides = array<i32>} : memref<4x1024xf32, #tpu.memory_space<vmem>>, vector<4x32xf32>,
    %190 = vector.extract_strided_slice %123 {offsets = [0, 22, 0], sizes = [4, 1, 32], strides = [1, 1, 1]} : vector<4x32x32xf32> to vector<4x1x32xf32>
    %191 = vector.shape_cast %190 : vector<4x1x32xf32> to vector<4x32xf32>
    %c0_104 = arith.constant 0 : index
    %c704 = arith.constant 704 : index
    %192 = vector.load %arg12[%c0_104, %c704] : memref<4x1024xf32, #tpu.memory_space<vmem>>, vector<4x32xf32>
    tpu.vector_store %arg12[%c0_104, %c704], %191 {strides = array<i32>} : memref<4x1024xf32, #tpu.memory_space<vmem>>, vector<4x32xf32>,
    %193 = vector.extract_strided_slice %123 {offsets = [0, 23, 0], sizes = [4, 1, 32], strides = [1, 1, 1]} : vector<4x32x32xf32> to vector<4x1x32xf32>
    %194 = vector.shape_cast %193 : vector<4x1x32xf32> to vector<4x32xf32>
    %c0_105 = arith.constant 0 : index
    %c736 = arith.constant 736 : index
    %195 = vector.load %arg12[%c0_105, %c736] : memref<4x1024xf32, #tpu.memory_space<vmem>>, vector<4x32xf32>
    tpu.vector_store %arg12[%c0_105, %c736], %194 {strides = array<i32>} : memref<4x1024xf32, #tpu.memory_space<vmem>>, vector<4x32xf32>,
    %196 = vector.extract_strided_slice %123 {offsets = [0, 24, 0], sizes = [4, 1, 32], strides = [1, 1, 1]} : vector<4x32x32xf32> to vector<4x1x32xf32>
    %197 = vector.shape_cast %196 : vector<4x1x32xf32> to vector<4x32xf32>
    %c0_106 = arith.constant 0 : index
    %c768 = arith.constant 768 : index
    %198 = vector.load %arg12[%c0_106, %c768] : memref<4x1024xf32, #tpu.memory_space<vmem>>, vector<4x32xf32>
    tpu.vector_store %arg12[%c0_106, %c768], %197 {strides = array<i32>} : memref<4x1024xf32, #tpu.memory_space<vmem>>, vector<4x32xf32>,
    %199 = vector.extract_strided_slice %123 {offsets = [0, 25, 0], sizes = [4, 1, 32], strides = [1, 1, 1]} : vector<4x32x32xf32> to vector<4x1x32xf32>
    %200 = vector.shape_cast %199 : vector<4x1x32xf32> to vector<4x32xf32>
    %c0_107 = arith.constant 0 : index
    %c800 = arith.constant 800 : index
    %201 = vector.load %arg12[%c0_107, %c800] : memref<4x1024xf32, #tpu.memory_space<vmem>>, vector<4x32xf32>
    tpu.vector_store %arg12[%c0_107, %c800], %200 {strides = array<i32>} : memref<4x1024xf32, #tpu.memory_space<vmem>>, vector<4x32xf32>,
    %202 = vector.extract_strided_slice %123 {offsets = [0, 26, 0], sizes = [4, 1, 32], strides = [1, 1, 1]} : vector<4x32x32xf32> to vector<4x1x32xf32>
    %203 = vector.shape_cast %202 : vector<4x1x32xf32> to vector<4x32xf32>
    %c0_108 = arith.constant 0 : index
    %c832 = arith.constant 832 : index
    %204 = vector.load %arg12[%c0_108, %c832] : memref<4x1024xf32, #tpu.memory_space<vmem>>, vector<4x32xf32>
    tpu.vector_store %arg12[%c0_108, %c832], %203 {strides = array<i32>} : memref<4x1024xf32, #tpu.memory_space<vmem>>, vector<4x32xf32>,
    %205 = vector.extract_strided_slice %123 {offsets = [0, 27, 0], sizes = [4, 1, 32], strides = [1, 1, 1]} : vector<4x32x32xf32> to vector<4x1x32xf32>
    %206 = vector.shape_cast %205 : vector<4x1x32xf32> to vector<4x32xf32>
    %c0_109 = arith.constant 0 : index
    %c864 = arith.constant 864 : index
    %207 = vector.load %arg12[%c0_109, %c864] : memref<4x1024xf32, #tpu.memory_space<vmem>>, vector<4x32xf32>
    tpu.vector_store %arg12[%c0_109, %c864], %206 {strides = array<i32>} : memref<4x1024xf32, #tpu.memory_space<vmem>>, vector<4x32xf32>,
    %208 = vector.extract_strided_slice %123 {offsets = [0, 28, 0], sizes = [4, 1, 32], strides = [1, 1, 1]} : vector<4x32x32xf32> to vector<4x1x32xf32>
    %209 = vector.shape_cast %208 : vector<4x1x32xf32> to vector<4x32xf32>
    %c0_110 = arith.constant 0 : index
    %c896 = arith.constant 896 : index
    %210 = vector.load %arg12[%c0_110, %c896] : memref<4x1024xf32, #tpu.memory_space<vmem>>, vector<4x32xf32>
    tpu.vector_store %arg12[%c0_110, %c896], %209 {strides = array<i32>} : memref<4x1024xf32, #tpu.memory_space<vmem>>, vector<4x32xf32>,
    %211 = vector.extract_strided_slice %123 {offsets = [0, 29, 0], sizes = [4, 1, 32], strides = [1, 1, 1]} : vector<4x32x32xf32> to vector<4x1x32xf32>
    %212 = vector.shape_cast %211 : vector<4x1x32xf32> to vector<4x32xf32>
    %c0_111 = arith.constant 0 : index
    %c928 = arith.constant 928 : index
    %213 = vector.load %arg12[%c0_111, %c928] : memref<4x1024xf32, #tpu.memory_space<vmem>>, vector<4x32xf32>
    tpu.vector_store %arg12[%c0_111, %c928], %212 {strides = array<i32>} : memref<4x1024xf32, #tpu.memory_space<vmem>>, vector<4x32xf32>,
    %214 = vector.extract_strided_slice %123 {offsets = [0, 30, 0], sizes = [4, 1, 32], strides = [1, 1, 1]} : vector<4x32x32xf32> to vector<4x1x32xf32>
    %215 = vector.shape_cast %214 : vector<4x1x32xf32> to vector<4x32xf32>
    %c0_112 = arith.constant 0 : index
    %c960 = arith.constant 960 : index
    %216 = vector.load %arg12[%c0_112, %c960] : memref<4x1024xf32, #tpu.memory_space<vmem>>, vector<4x32xf32>
    tpu.vector_store %arg12[%c0_112, %c960], %215 {strides = array<i32>} : memref<4x1024xf32, #tpu.memory_space<vmem>>, vector<4x32xf32>,
    %217 = vector.extract_strided_slice %123 {offsets = [0, 31, 0], sizes = [4, 1, 32], strides = [1, 1, 1]} : vector<4x32x32xf32> to vector<4x1x32xf32>
    %218 = vector.shape_cast %217 : vector<4x1x32xf32> to vector<4x32xf32>
    %c0_113 = arith.constant 0 : index
    %c992 = arith.constant 992 : index
    %219 = vector.load %arg12[%c0_113, %c992] : memref<4x1024xf32, #tpu.memory_space<vmem>>, vector<4x32xf32>
    tpu.vector_store %arg12[%c0_113, %c992], %218 {strides = array<i32>} : memref<4x1024xf32, #tpu.memory_space<vmem>>, vector<4x32xf32>,
    %c0_114 = arith.constant 0 : index
    %c0_115 = arith.constant 0 : index
    %220 = vector.load %arg7[%c0_114, %c0_115] : memref<8x4xf32, #tpu.memory_space<vmem>>, vector<8x4xf32>
    %c0_116 = arith.constant 0 : index
    %c0_117 = arith.constant 0 : index
    %221 = vector.load %arg12[%c0_116, %c0_117] : memref<4x1024xf32, #tpu.memory_space<vmem>>, vector<4x1024xf32>
    %cst_118 = arith.constant dense<0.000000e+00> : vector<8x1024xf32>
    %222 = tpu.matmul %220, %221, %cst_118 {dimension_numbers = #tpu.dot_dimension_numbers<[1], [0], [0], [1], [0, 0, 1, 1], [], []>, precision = #tpu.contract_precision<fp32>} : vector<8x4xf32>, vector<4x1024xf32>, vector<8x1024xf32> -> vector<8x1024xf32>
    %c0_119 = arith.constant 0 : index
    %c0_120 = arith.constant 0 : index
    %223 = vector.load %arg8[%c0_119, %c0_120] : memref<8x1xf32, #tpu.memory_space<vmem>>, vector<8x1xf32>
    %224 = vector.broadcast %223 : vector<8x1xf32> to vector<8x1024xf32>
    %225 = arith.addf %222, %224 : vector<8x1024xf32>
    %c0_121 = arith.constant 0 : index
    %c0_122 = arith.constant 0 : index
    %c0_123 = arith.constant 0 : index
    %226 = vector.load %arg9[%c0_121, %c0_122, %c0_123] : memref<1x8x1024xf32, #tpu.memory_space<vmem>>, vector<1x8x1024xf32>
    %227 = vector.shape_cast %226 : vector<1x8x1024xf32> to vector<8x1024xf32>
    %228 = vector.shape_cast %225 : vector<8x1024xf32> to vector<1x8x1024xf32>
    tpu.vector_store %arg9[%c0_121, %c0_122, %c0_123], %228 {strides = array<i32>} : memref<1x8x1024xf32, #tpu.memory_space<vmem>>, vector<1x8x1024xf32>,
    return
  }
  func.func @transform_0(%arg0: i32) -> (i32, i32, i32) {
    %c0_i32 = arith.constant 0 : i32
    %c0_i32_0 = arith.constant 0 : i32
    %c0_i32_1 = arith.constant 0 : i32
    return %arg0, %c0_i32, %c0_i32_0 : i32, i32, i32
  }
  func.func @transform_1(%arg0: i32) -> (i32, i32) {
    %c0_i32 = arith.constant 0 : i32
    %c0_i32_0 = arith.constant 0 : i32
    %c0_i32_1 = arith.constant 0 : i32
    return %c0_i32, %c0_i32_0 : i32, i32
  }
  func.func @transform_2(%arg0: i32) -> (i32, i32) {
    %c0_i32 = arith.constant 0 : i32
    %c0_i32_0 = arith.constant 0 : i32
    %c0_i32_1 = arith.constant 0 : i32
    return %c0_i32, %c0_i32_0 : i32, i32
  }
  func.func @transform_3(%arg0: i32) -> (i32, i32) {
    %c0_i32 = arith.constant 0 : i32
    %c0_i32_0 = arith.constant 0 : i32
    %c0_i32_1 = arith.constant 0 : i32
    return %c0_i32, %c0_i32_0 : i32, i32
  }
  func.func @transform_4(%arg0: i32) -> (i32, i32) {
    %c0_i32 = arith.constant 0 : i32
    %c0_i32_0 = arith.constant 0 : i32
    %c0_i32_1 = arith.constant 0 : i32
    return %c0_i32, %c0_i32_0 : i32, i32
  }
  func.func @transform_5(%arg0: i32) -> (i32, i32) {
    %c0_i32 = arith.constant 0 : i32
    %c0_i32_0 = arith.constant 0 : i32
    %c0_i32_1 = arith.constant 0 : i32
    return %c0_i32, %c0_i32_0 : i32, i32
  }
  func.func @transform_6(%arg0: i32) -> (i32, i32) {
    %c0_i32 = arith.constant 0 : i32
    %c0_i32_0 = arith.constant 0 : i32
    %c0_i32_1 = arith.constant 0 : i32
    return %c0_i32, %c0_i32_0 : i32, i32
  }
  func.func @transform_7(%arg0: i32) -> (i32, i32) {
    %c0_i32 = arith.constant 0 : i32
    %c0_i32_0 = arith.constant 0 : i32
    %c0_i32_1 = arith.constant 0 : i32
    return %c0_i32, %c0_i32_0 : i32, i32
  }
  func.func @transform_8(%arg0: i32) -> (i32, i32, i32) {
    %c0_i32 = arith.constant 0 : i32
    %c0_i32_0 = arith.constant 0 : i32
    %c0_i32_1 = arith.constant 0 : i32
    return %arg0, %c0_i32, %c0_i32_0 : i32, i32, i32
  }
}

</mosaic_0001>

<llo_original>
// kernel: tpu_custom_call.1
$region0: #{tpu_custom_call.1}
  #allocation0 [shape = 'u32[]', space=smem, size = 0x4, offset = 0x4, fixed_abs, tag = 'smem constant byte address 0x4 - core index']
  #allocation1 [shape = 'u32[144,128]{1,0:T(1,128)}', space=vmem, size = 0x12000, scoped, tag = 'internal scratch']
  #allocation2 [shape = 'f32[144,256]{1,0:T(8,128)}', space=vmem, size = 0x24000, scoped, tag = 'scratch operand']
  #allocation3 [shape = 'f32[4,16,16]{2,1,0:T(8,128)}', space=vmem, size = 0x8000, scoped, tag = 'scratch operand']
  #allocation4 [shape = 'f32[4,1024]{1,0:T(4,128)}', space=vmem, size = 0x4000, scoped, tag = 'scratch operand']
  %s0 = inlined_call_operand.vmem [shape: f32[2,16,256], index: 0, kind: input, shape index: {}]
  %s1 = inlined_call_operand.hbm [shape: f32[8,256], index: 1, kind: input, shape index: {}]
  %s2 = inlined_call_operand.hbm [shape: f32[4,144], index: 2, kind: input, shape index: {}]
  %s3 = inlined_call_operand.vmem [shape: f32[4,1], index: 3, kind: input, shape index: {}]
  %s4 = inlined_call_operand.hbm [shape: f32[16,32], index: 4, kind: input, shape index: {}]
  %s5 = inlined_call_operand.vmem [shape: f32[32,16], index: 5, kind: input, shape index: {}]
  %s6 = inlined_call_operand.vmem [shape: f32[8,4], index: 6, kind: input, shape index: {}]
  %s7 = inlined_call_operand.vmem [shape: f32[8,1], index: 7, kind: input, shape index: {}]
  %s8 = inlined_call_operand.hbm [shape: f32[2,8,1024], index: 8, kind: output, shape index: {}]
  %s9 = sld [smem:[#allocation0]]
  $region77: #{tpu_custom_call.1} parent=0
    _
  %s11 = ssub.s32 1, %s9
  %s12 = scalar_select 0, %s11, %s9
  $region1: #{tpu_custom_call.1} parent=0
    #allocation5 [shape = 'u8[8192]{0}', space=vmem, size = 0x2000, scoped, tag = 'input window, operand 1, single buffered']
    #allocation6 [shape = 's32[2]{0}', space=sflag, size = 0x8, scoped, tag = 'scoped memory for tpu_custom_call.1']
    #allocation7 [shape = 's32[2]{0}', space=sflag, size = 0x8, scoped, tag = 'scoped memory for tpu_custom_call.1']
    #allocation8 [shape = 'u8[4096]{0}', space=vmem, size = 0x1000, scoped, tag = 'input window, operand 2, single buffered']
    #allocation9 [shape = 's32[1]{0}', space=sflag, size = 0x4, scoped, tag = 'scoped memory for tpu_custom_call.1']
    #allocation10 [shape = 'u8[8192]{0}', space=vmem, size = 0x2000, scoped, tag = 'input window, operand 4, single buffered']
    #allocation11 [shape = 'u8[65536]{0}', space=vmem, size = 0x10000, scoped, tag = 'output window, operand 0']
    %13 = vsyncpa [#allocation6], 0
    %14 = vsyncpa [#allocation9], 0
    %15 = vsyncpa [#allocation7], 0
    %s16 = scalar_lea.sflag [#allocation7], 1
    %17 = vsyncpa %s16, 0
    loop: start=0, step=1, limit=4
    $region2: #{tpu_custom_call.1} parent=1 // loop_pre_header
      _
    $region3: #{tpu_custom_call.1} parent=1 // loop_header
      %s19 = sphi 0, %s23
      %p20 = scmp.ge.s32.totalorder %s19, 4
      %s29 = sphi 0, %s31
      %s32 = sphi 0, %s29
      %s33 = sphi 0, %s32
      %s49 = sphi 0, %s33
      %s53 = sphi 0, %s53
      %s55 = sphi 0, %s53
      %s56 = sphi 0, %s55
      %s70 = sphi 0, %s56
      %s74 = sphi 0, %s74
      %s76 = sphi 0, %s74
      %s77 = sphi 0, %s76
      %s91 = sphi 0, %s77
      %s95 = sphi 0, %s95
      %s97 = sphi 0, %s95
      %s98 = sphi 0, %s97
      %s112 = sphi 0, %s98
      %s116 = sphi 0, %s116
      %s118 = sphi 0, %s116
      %s119 = sphi 0, %s118
      %s133 = sphi 0, %s119
      %s137 = sphi 0, %s137
      %s139 = sphi 0, %s137
      %s140 = sphi 0, %s139
      %s154 = sphi 0, %s140
      %s158 = sphi 0, %s158
      %s160 = sphi 0, %s158
      %s161 = sphi 0, %s160
      %s175 = sphi 0, %s161
      %s179 = sphi 0, %s179
      %s181 = sphi 0, %s179
      %s182 = sphi 0, %s181
      %s196 = sphi 0, %s182
      %s202 = sphi 0, %s204
      %s205 = sphi 0, %s202
      %s206 = sphi 0, %s205
      %s222 = sphi 0, %s206
    $region4: #{tpu_custom_call.1} parent=1 // loop_header_branch
      %22 = sbr.rel (%p20) target = $region8
    $region5: #{tpu_custom_call.1} parent=1 // loop_body
      %s24 = ssub.s32 %s19, 1
      %s25 = ssub.s32 %s19, 2
      %s26 = sadd.s32 %s19, 1
      %s27 = ssub.s32 %s19, %s26
      %p28 = scmp.eq.s32.totalorder %s27, 0
      %s30 = sadd.s32 %s29, 1
      %s31 = scalar_select %p28, %s29, %s30
      %p34 = pneg %p28
      %p35 = scmp.eq.s32.totalorder %s19, 1
      %p36 = por %p34, %p35
      %p37 = scmp.ne.s32.totalorder %s29, %s32
      %p38 = scmp.eq.s32.totalorder %s19, 0
      %p39 = por %p37, %p38
      %p40 = scmp.ne.s32.totalorder %s29, %s32
      %p41 = scmp.eq.s32.totalorder %s24, 1
      %p42 = por %p40, %p41
      %p43 = scmp.ne.s32.totalorder %s32, %s33
      %p44 = scmp.eq.s32.totalorder %s24, 0
      %p45 = por %p43, %p44
      %p46 = scmp.ne.s32.totalorder %s32, %s33
      %p47 = scmp.eq.s32.totalorder %s25, 1
      %p48 = por %p46, %p47
      %p50 = scmp.ne.s32.totalorder %s33, %s49
      %p51 = scmp.eq.s32.totalorder %s25, 0
      %p52 = por %p50, %p51
      %s54 = sadd.s32 %s53, 1
      %p57 = scmp.eq.s32.totalorder %s19, 1
      %p58 = scmp.ne.s32.totalorder %s53, %s55
      %p59 = scmp.eq.s32.totalorder %s19, 0
      %p60 = por %p58, %p59
      %p61 = scmp.ne.s32.totalorder %s53, %s55
      %p62 = scmp.eq.s32.totalorder %s24, 1
      %p63 = por %p61, %p62
      %p64 = scmp.ne.s32.totalorder %s55, %s56
      %p65 = scmp.eq.s32.totalorder %s24, 0
      %p66 = por %p64, %p65
      %p67 = scmp.ne.s32.totalorder %s55, %s56
      %p68 = scmp.eq.s32.totalorder %s25, 1
      %p69 = por %p67, %p68
      %p71 = scmp.ne.s32.totalorder %s56, %s70
      %p72 = scmp.eq.s32.totalorder %s25, 0
      %p73 = por %p71, %p72
      %s75 = sadd.s32 %s74, 1
      %p78 = scmp.eq.s32.totalorder %s19, 1
      %p79 = scmp.ne.s32.totalorder %s74, %s76
      %p80 = scmp.eq.s32.totalorder %s19, 0
      %p81 = por %p79, %p80
      %p82 = scmp.ne.s32.totalorder %s74, %s76
      %p83 = scmp.eq.s32.totalorder %s24, 1
      %p84 = por %p82, %p83
      %p85 = scmp.ne.s32.totalorder %s76, %s77
      %p86 = scmp.eq.s32.totalorder %s24, 0
      %p87 = por %p85, %p86
      %p88 = scmp.ne.s32.totalorder %s76, %s77
      %p89 = scmp.eq.s32.totalorder %s25, 1
      %p90 = por %p88, %p89
      %p92 = scmp.ne.s32.totalorder %s77, %s91
      %p93 = scmp.eq.s32.totalorder %s25, 0
      %p94 = por %p92, %p93
      %s96 = sadd.s32 %s95, 1
      %p99 = scmp.eq.s32.totalorder %s19, 1
      %p100 = scmp.ne.s32.totalorder %s95, %s97
      %p101 = scmp.eq.s32.totalorder %s19, 0
      %p102 = por %p100, %p101
      %p103 = scmp.ne.s32.totalorder %s95, %s97
      %p104 = scmp.eq.s32.totalorder %s24, 1
      %p105 = por %p103, %p104
      %p106 = scmp.ne.s32.totalorder %s97, %s98
      %p107 = scmp.eq.s32.totalorder %s24, 0
      %p108 = por %p106, %p107
      %p109 = scmp.ne.s32.totalorder %s97, %s98
      %p110 = scmp.eq.s32.totalorder %s25, 1
      %p111 = por %p109, %p110
      %p113 = scmp.ne.s32.totalorder %s98, %s112
      %p114 = scmp.eq.s32.totalorder %s25, 0
      %p115 = por %p113, %p114
      %s117 = sadd.s32 %s116, 1
      %p120 = scmp.eq.s32.totalorder %s19, 1
      %p121 = scmp.ne.s32.totalorder %s116, %s118
      %p122 = scmp.eq.s32.totalorder %s19, 0
      %p123 = por %p121, %p122
      %p124 = scmp.ne.s32.totalorder %s116, %s118
      %p125 = scmp.eq.s32.totalorder %s24, 1
      %p126 = por %p124, %p125
      %p127 = scmp.ne.s32.totalorder %s118, %s119
      %p128 = scmp.eq.s32.totalorder %s24, 0
      %p129 = por %p127, %p128
      %p130 = scmp.ne.s32.totalorder %s118, %s119
      %p131 = scmp.eq.s32.totalorder %s25, 1
      %p132 = por %p130, %p131
      %p134 = scmp.ne.s32.totalorder %s119, %s133
      %p135 = scmp.eq.s32.totalorder %s25, 0
      %p136 = por %p134, %p135
      %s138 = sadd.s32 %s137, 1
      %p141 = scmp.eq.s32.totalorder %s19, 1
      %p142 = scmp.ne.s32.totalorder %s137, %s139
      %p143 = scmp.eq.s32.totalorder %s19, 0
      %p144 = por %p142, %p143
      %p145 = scmp.ne.s32.totalorder %s137, %s139
      %p146 = scmp.eq.s32.totalorder %s24, 1
      %p147 = por %p145, %p146
      %p148 = scmp.ne.s32.totalorder %s139, %s140
      %p149 = scmp.eq.s32.totalorder %s24, 0
      %p150 = por %p148, %p149
      %p151 = scmp.ne.s32.totalorder %s139, %s140
      %p152 = scmp.eq.s32.totalorder %s25, 1
      %p153 = por %p151, %p152
      %p155 = scmp.ne.s32.totalorder %s140, %s154
      %p156 = scmp.eq.s32.totalorder %s25, 0
      %p157 = por %p155, %p156
      %s159 = sadd.s32 %s158, 1
      %p162 = scmp.eq.s32.totalorder %s19, 1
      %p163 = scmp.ne.s32.totalorder %s158, %s160
      %p164 = scmp.eq.s32.totalorder %s19, 0
      %p165 = por %p163, %p164
      %p166 = scmp.ne.s32.totalorder %s158, %s160
      %p167 = scmp.eq.s32.totalorder %s24, 1
      %p168 = por %p166, %p167
      %p169 = scmp.ne.s32.totalorder %s160, %s161
      %p170 = scmp.eq.s32.totalorder %s24, 0
      %p171 = por %p169, %p170
      %p172 = scmp.ne.s32.totalorder %s160, %s161
      %p173 = scmp.eq.s32.totalorder %s25, 1
      %p174 = por %p172, %p173
      %p176 = scmp.ne.s32.totalorder %s161, %s175
      %p177 = scmp.eq.s32.totalorder %s25, 0
      %p178 = por %p176, %p177
      %s180 = sadd.s32 %s179, 1
      %p183 = scmp.eq.s32.totalorder %s19, 1
      %p184 = scmp.ne.s32.totalorder %s179, %s181
      %p185 = scmp.eq.s32.totalorder %s19, 0
      %p186 = por %p184, %p185
      %p187 = scmp.ne.s32.totalorder %s179, %s181
      %p188 = scmp.eq.s32.totalorder %s24, 1
      %p189 = por %p187, %p188
      %p190 = scmp.ne.s32.totalorder %s181, %s182
      %p191 = scmp.eq.s32.totalorder %s24, 0
      %p192 = por %p190, %p191
      %p193 = scmp.ne.s32.totalorder %s181, %s182
      %p194 = scmp.eq.s32.totalorder %s25, 1
      %p195 = por %p193, %p194
      %p197 = scmp.ne.s32.totalorder %s182, %s196
      %p198 = scmp.eq.s32.totalorder %s25, 0
      %p199 = por %p197, %p198
      %s200 = ssub.s32 %s19, %s26
      %p201 = scmp.eq.s32.totalorder %s200, 0
      %s203 = sadd.s32 %s202, 1
      %s204 = scalar_select %p201, %s202, %s203
      %p207 = pneg %p201
      %p208 = scmp.eq.s32.totalorder %s19, 1
      %p209 = por %p207, %p208
      %p210 = scmp.ne.s32.totalorder %s202, %s205
      %p211 = scmp.eq.s32.totalorder %s19, 0
      %p212 = por %p210, %p211
      %p213 = scmp.ne.s32.totalorder %s202, %s205
      %p214 = scmp.eq.s32.totalorder %s24, 1
      %p215 = por %p213, %p214
      %p216 = scmp.ne.s32.totalorder %s205, %s206
      %p217 = scmp.eq.s32.totalorder %s24, 0
      %p218 = por %p216, %p217
      %p219 = scmp.ne.s32.totalorder %s205, %s206
      %p220 = scmp.eq.s32.totalorder %s25, 1
      %p221 = por %p219, %p220
      %p223 = scmp.ne.s32.totalorder %s206, %s222
      %p224 = scmp.eq.s32.totalorder %s25, 0
      %p225 = por %p223, %p224
      %p226 = scmp.le.s32.totalorder 1, %s19
      %p227 = scmp.lt.s32.totalorder %s19, 3
      %p228 = pnand %p226, %p227
      %p229 = pneg %p228
      // Predicated region
      $region9: #{tpu_custom_call.1} parent=5 // pred_check
        _
      $region10: #{tpu_custom_call.1} parent=5 // pred_check_branch
        %231 = sbr.rel (%p228) target = $region12
      $region11: #{tpu_custom_call.1} parent=5 // pred_region
        %s232 = ssub.s32 %s19, 1
        // Predicated region
        $region13: #{tpu_custom_call.1} parent=11 // pred_check
          %p233 = pneg %p66
        $region14: #{tpu_custom_call.1} parent=11 // pred_check_branch
          %235 = sbr.rel (%p233) target = $region16
        $region15: #{tpu_custom_call.1} parent=11 // pred_region
          %s237 = ssub.s32 256, 256
          %238 = vsyncadd [#allocation6], %s237
          %s240 = sshll.u32 [#allocation5], 4
          %s241 = int_to_ptr.vmem [resolvable:$true] %s240
          %243 = dma.hbm_to_vmem [thread:$0]  %s1, 256, %s241, [#allocation6]
        $region16: #{tpu_custom_call.1} parent=11 // pred_fallthru
          _
        // Predicated region
        $region17: #{tpu_custom_call.1} parent=11 // pred_check
          %p244 = pneg %p87
        $region18: #{tpu_custom_call.1} parent=11 // pred_check_branch
          %246 = sbr.rel (%p244) target = $region20
        $region19: #{tpu_custom_call.1} parent=11 // pred_region
          %s248 = ssub.s32 128, 128
          %249 = vsyncadd [#allocation9], %s248
          %s251 = sshll.u32 [#allocation8], 4
          %s252 = int_to_ptr.vmem [resolvable:$true] %s251
          %254 = dma.hbm_to_vmem [thread:$0]  %s2, 128, %s252, [#allocation9]
        $region20: #{tpu_custom_call.1} parent=11 // pred_fallthru
          _
        // Predicated region
        $region21: #{tpu_custom_call.1} parent=11 // pred_check
          %p255 = pneg %p108
        $region22: #{tpu_custom_call.1} parent=11 // pred_check_branch
          %257 = sbr.rel (%p255) target = $region24
        $region23: #{tpu_custom_call.1} parent=11 // pred_region
          _
        $region24: #{tpu_custom_call.1} parent=11 // pred_fallthru
          _
        // Predicated region
        $region25: #{tpu_custom_call.1} parent=11 // pred_check
          %p258 = pneg %p129
        $region26: #{tpu_custom_call.1} parent=11 // pred_check_branch
          %260 = sbr.rel (%p258) target = $region28
        $region27: #{tpu_custom_call.1} parent=11 // pred_region
          %s262 = ssub.s32 256, 256
          %263 = vsyncadd [#allocation9], %s262
          %s264 = sshll.u32 [#allocation10], 4
          %s265 = int_to_ptr.vmem [resolvable:$true] %s264
          %270 = dma.hbm_to_vmem [thread:$0]  %s4, 256, %s265, [#allocation9], 128, 128, 8
        $region28: #{tpu_custom_call.1} parent=11 // pred_fallthru
          _
        // Predicated region
        $region29: #{tpu_custom_call.1} parent=11 // pred_check
          %p271 = pneg %p150
        $region30: #{tpu_custom_call.1} parent=11 // pred_check_branch
          %273 = sbr.rel (%p271) target = $region32
        $region31: #{tpu_custom_call.1} parent=11 // pred_region
          _
        $region32: #{tpu_custom_call.1} parent=11 // pred_fallthru
          _
        // Predicated region
        $region33: #{tpu_custom_call.1} parent=11 // pred_check
          %p274 = pneg %p171
        $region34: #{tpu_custom_call.1} parent=11 // pred_check_branch
          %276 = sbr.rel (%p274) target = $region36
        $region35: #{tpu_custom_call.1} parent=11 // pred_region
          _
        $region36: #{tpu_custom_call.1} parent=11 // pred_fallthru
          _
        // Predicated region
        $region37: #{tpu_custom_call.1} parent=11 // pred_check
          %p277 = pneg %p192
        $region38: #{tpu_custom_call.1} parent=11 // pred_check_branch
          %279 = sbr.rel (%p277) target = $region40
        $region39: #{tpu_custom_call.1} parent=11 // pred_region
          _
        $region40: #{tpu_custom_call.1} parent=11 // pred_fallthru
          _
      $region12: #{tpu_custom_call.1} parent=5 // pred_fallthru
        _
      %p280 = scmp.lt.s32.totalorder %s19, 2
      // Predicated region
      $region41: #{tpu_custom_call.1} parent=5 // pred_check
        %p281 = pneg %p280
      $region42: #{tpu_custom_call.1} parent=5 // pred_check_branch
        %283 = sbr.rel (%p281) target = $region44
      $region43: #{tpu_custom_call.1} parent=5 // pred_region
        // Predicated region
        $region45: #{tpu_custom_call.1} parent=43 // pred_check
          %p284 = pneg %p39
        $region46: #{tpu_custom_call.1} parent=43 // pred_check_branch
          %286 = sbr.rel (%p284) target = $region48
        $region47: #{tpu_custom_call.1} parent=43 // pred_region
          %p287 = scmp.lt.s32.totalorder %s19, 1
          %s288 = scalar_select %p287, %s19, 1
          %s289 = smul.addr %s288, 4
          %s290 = smul.addr %s289, 8
          %s291 = scalar_lea.vmem %s0, %s290
        $region48: #{tpu_custom_call.1} parent=43 // pred_fallthru
          _
      $region44: #{tpu_custom_call.1} parent=5 // pred_fallthru
        _
      %p292 = scmp.le.s32.totalorder 1, %s19
      %p293 = scmp.lt.s32.totalorder %s19, 3
      %p294 = pnand %p292, %p293
      %p295 = pneg %p294
      // Predicated region
      $region49: #{tpu_custom_call.1} parent=5 // pred_check
        _
      $region50: #{tpu_custom_call.1} parent=5 // pred_check_branch
        %297 = sbr.rel (%p294) target = $region52
      $region51: #{tpu_custom_call.1} parent=5 // pred_region
        %s298 = ssub.s32 %s19, 1
        // Predicated region
        $region53: #{tpu_custom_call.1} parent=51 // pred_check
          %p299 = pneg %p66
        $region54: #{tpu_custom_call.1} parent=51 // pred_check_branch
          %301 = sbr.rel (%p299) target = $region56
        $region55: #{tpu_custom_call.1} parent=51 // pred_region
          %302 = dma.done [#allocation6], 256
        $region56: #{tpu_custom_call.1} parent=51 // pred_fallthru
          _
        // Predicated region
        $region57: #{tpu_custom_call.1} parent=51 // pred_check
          %p303 = pneg %p87
        $region58: #{tpu_custom_call.1} parent=51 // pred_check_branch
          %305 = sbr.rel (%p303) target = $region60
        $region59: #{tpu_custom_call.1} parent=51 // pred_region
          %306 = dma.done [#allocation9], 128
        $region60: #{tpu_custom_call.1} parent=51 // pred_fallthru
          _
        // Predicated region
        $region61: #{tpu_custom_call.1} parent=51 // pred_check
          %p307 = pneg %p129
        $region62: #{tpu_custom_call.1} parent=51 // pred_check_branch
          %309 = sbr.rel (%p307) target = $region64
        $region63: #{tpu_custom_call.1} parent=51 // pred_region
          %310 = dma.done [#allocation9], 256
        $region64: #{tpu_custom_call.1} parent=51 // pred_fallthru
          _
        %p311 = scmp.lt.s32.totalorder %s24, 1
        %s312 = scalar_select %p311, %s24, 1
        %s313 = smul.addr %s312, 4
        %s314 = smul.addr %s313, 8
        %s315 = scalar_lea.vmem %s0, %s314
        %p316 = pneg %p45
        %p317 = pneg %p42
        %p318 = pneg %p66
        %p319 = pneg %p63
        %p320 = pneg %p87
        %p321 = pneg %p84
        %p322 = pneg %p108
        %p323 = pneg %p105
        %p324 = pneg %p129
        %p325 = pneg %p126
        %p326 = pneg %p150
        %p327 = pneg %p147
        %p328 = pneg %p171
        %p329 = pneg %p168
        %p330 = pneg %p192
        %p331 = pneg %p189
        %p332 = pneg %p218
        %p333 = pneg %p215
        %s334 = sand.u32 %s205, 1
        %s335 = scalar_lea.sflag [#allocation7], %s334
        %s336 = sand.u32 %s205, 1
        %s337 = smul.addr %s336, 64
        %s338 = scalar_lea.vmem [#allocation11], %s337
        %p339 = scmp.lt.s32.totalorder %s24, 1
        %s340 = scalar_select %p339, %s24, 1
        %s341 = smul.addr %s340, 4
        %s342 = smul.addr %s341, 8
        %s343 = scalar_lea.vmem %s0, %s342
        %v344 = vld [vmem:[%s343] sm:$0xff]
        %v345 = vld [vmem:[%s343 + $0x8] sm:$0xff]
        %v346 = vld [vmem:[%s343 + $0x10] sm:$0xff]
        %v347 = vld [vmem:[%s343 + $0x18] sm:$0xff]
        %348 = vrot.lane.b32.xlu0 %v344, 17
        %v349 = vpop.permute.xlu0 %348
        %350 = vrot.lane.b32.xlu0 %v346, 17
        %v351 = vpop.permute.xlu0 %350
        %352 = vrot.lane.b32.xlu0 %v345, 17
        %v353 = vpop.permute.xlu0 %352
        %354 = vrot.lane.b32.xlu0 %v347, 17
        %v355 = vpop.permute.xlu0 %354
        %v356 = vlaneseq
        %v357 = vand.u32 %v356, 127
        %vm358 = vcmp.lt.s32.totalorder %v357, 17
        %v359 = vsel %vm358, %v349, %v353
        %v360 = vsel %vm358, %v351, %v355
        %v361 = vsel %vm358, %v353, %v349
        %v362 = vsel %vm358, %v355, %v351
        %v363 = vld [vmem:[#allocation5] ss:$8 sm:$0x3]
        %v365 = vlaneseq
        %v366 = vshrl.u32 %v365, 7
        %v367 = vsub.s32 0, %v366
        %v368 = vrot.slane %v363, %v367
        %v369 = vlaneseq
        %v370 = vshrl.u32 %v369, 7
        %v371 = vsub.s32 1, %v370
        %v372 = vrot.slane %v363, %v371
        %v375 = vmul.f32 %v361, %v368
        %v376 = vmul.f32 %v359, %v372
        %v377 = vmul.f32 %v362, %v368
        %v378 = vmul.f32 %v360, %v372
        %379 = vst [vmem:[#allocation2] sm:$0xff] %v375
        %380 = vst [vmem:[#allocation2 + $0x8] sm:$0xff] %v376
        %381 = vst [vmem:[#allocation2 + $0x10] sm:$0xff] %v377
        %382 = vst [vmem:[#allocation2 + $0x18] sm:$0xff] %v378
        %383 = vrot.lane.b32.xlu0 %v344, 16
        %v384 = vpop.permute.xlu0 %383
        %385 = vrot.lane.b32.xlu0 %v346, 16
        %v386 = vpop.permute.xlu0 %385
        %387 = vrot.lane.b32.xlu0 %v345, 16
        %v388 = vpop.permute.xlu0 %387
        %389 = vrot.lane.b32.xlu0 %v347, 16
        %v390 = vpop.permute.xlu0 %389
        %vm391 = vcmp.lt.s32.totalorder %v357, 16
        %v392 = vsel %vm391, %v384, %v388
        %v393 = vsel %vm391, %v386, %v390
        %v394 = vsel %vm391, %v388, %v384
        %v395 = vsel %vm391, %v390, %v386
        %s396 = scalar_lea.vmem [#allocation5], 1
        %v397 = vld [vmem:[%s396] ss:$8 sm:$0x3]
        %v399 = vlaneseq
        %v400 = vshrl.u32 %v399, 7
        %v401 = vsub.s32 0, %v400
        %v402 = vrot.slane %v397, %v401
        %v403 = vlaneseq
        %v404 = vshrl.u32 %v403, 7
        %v405 = vsub.s32 1, %v404
        %v406 = vrot.slane %v397, %v405
        %v409 = vmul.f32 %v394, %v402
        %v410 = vmul.f32 %v392, %v406
        %v411 = vmul.f32 %v395, %v402
        %v412 = vmul.f32 %v393, %v406
        %413 = vst [vmem:[#allocation2 + $0x20] sm:$0xff] %v409
        %414 = vst [vmem:[#allocation2 + $0x28] sm:$0xff] %v410
        %415 = vst [vmem:[#allocation2 + $0x30] sm:$0xff] %v411
        %416 = vst [vmem:[#allocation2 + $0x38] sm:$0xff] %v412
        %417 = vrot.lane.b32.xlu0 %v344, 15
        %v418 = vpop.permute.xlu0 %417
        %419 = vrot.lane.b32.xlu0 %v346, 15
        %v420 = vpop.permute.xlu0 %419
        %421 = vrot.lane.b32.xlu0 %v345, 15
        %v422 = vpop.permute.xlu0 %421
        %423 = vrot.lane.b32.xlu0 %v347, 15
        %v424 = vpop.permute.xlu0 %423
        %vm425 = vcmp.lt.s32.totalorder %v357, 15
        %v426 = vsel %vm425, %v418, %v422
        %v427 = vsel %vm425, %v420, %v424
        %v428 = vsel %vm425, %v422, %v418
        %v429 = vsel %vm425, %v424, %v420
        %s430 = scalar_lea.vmem [#allocation5], 2
        %v431 = vld [vmem:[%s430] ss:$8 sm:$0x3]
        %v433 = vlaneseq
        %v434 = vshrl.u32 %v433, 7
        %v435 = vsub.s32 0, %v434
        %v436 = vrot.slane %v431, %v435
        %v437 = vlaneseq
        %v438 = vshrl.u32 %v437, 7
        %v439 = vsub.s32 1, %v438
        %v440 = vrot.slane %v431, %v439
        %v443 = vmul.f32 %v428, %v436
        %v444 = vmul.f32 %v426, %v440
        %v445 = vmul.f32 %v429, %v436
        %v446 = vmul.f32 %v427, %v440
        %447 = vst [vmem:[#allocation2 + $0x40] sm:$0xff] %v443
        %448 = vst [vmem:[#allocation2 + $0x48] sm:$0xff] %v444
        %449 = vst [vmem:[#allocation2 + $0x50] sm:$0xff] %v445
        %450 = vst [vmem:[#allocation2 + $0x58] sm:$0xff] %v446
        %451 = vrot.lane.b32.xlu0 %v344, 1
        %v452 = vpop.permute.xlu0 %451
        %453 = vrot.lane.b32.xlu0 %v346, 1
        %v454 = vpop.permute.xlu0 %453
        %455 = vrot.lane.b32.xlu0 %v345, 1
        %v456 = vpop.permute.xlu0 %455
        %457 = vrot.lane.b32.xlu0 %v347, 1
        %v458 = vpop.permute.xlu0 %457
        %vm459 = vcmp.lt.s32.totalorder %v357, 1
        %v460 = vsel %vm459, %v452, %v456
        %v461 = vsel %vm459, %v454, %v458
        %v462 = vsel %vm459, %v456, %v452
        %v463 = vsel %vm459, %v458, %v454
        %s464 = scalar_lea.vmem [#allocation5], 3
        %v465 = vld [vmem:[%s464] ss:$8 sm:$0x3]
        %v467 = vlaneseq
        %v468 = vshrl.u32 %v467, 7
        %v469 = vsub.s32 0, %v468
        %v470 = vrot.slane %v465, %v469
        %v471 = vlaneseq
        %v472 = vshrl.u32 %v471, 7
        %v473 = vsub.s32 1, %v472
        %v474 = vrot.slane %v465, %v473
        %v477 = vmul.f32 %v462, %v470
        %v478 = vmul.f32 %v460, %v474
        %v479 = vmul.f32 %v463, %v470
        %v480 = vmul.f32 %v461, %v474
        %481 = vst [vmem:[#allocation2 + $0x60] sm:$0xff] %v477
        %482 = vst [vmem:[#allocation2 + $0x68] sm:$0xff] %v478
        %483 = vst [vmem:[#allocation2 + $0x70] sm:$0xff] %v479
        %484 = vst [vmem:[#allocation2 + $0x78] sm:$0xff] %v480
        %485 = vst [vmem:[#allocation2 + $0x80] sm:$0xff] %v344
        %486 = vst [vmem:[#allocation2 + $0x88] sm:$0xff] %v345
        %487 = vst [vmem:[#allocation2 + $0x90] sm:$0xff] %v346
        %488 = vst [vmem:[#allocation2 + $0x98] sm:$0xff] %v347
        %489 = vrot.lane.b32.xlu0 %v344, 127
        %v490 = vpop.permute.xlu0 %489
        %491 = vrot.lane.b32.xlu0 %v346, 127
        %v492 = vpop.permute.xlu0 %491
        %493 = vrot.lane.b32.xlu0 %v345, 127
        %v494 = vpop.permute.xlu0 %493
        %495 = vrot.lane.b32.xlu0 %v347, 127
        %v496 = vpop.permute.xlu0 %495
        %vm497 = vcmp.lt.s32.totalorder %v357, 127
        %v498 = vsel %vm497, %v490, %v494
        %v499 = vsel %vm497, %v492, %v496
        %v500 = vsel %vm497, %v494, %v490
        %v501 = vsel %vm497, %v496, %v492
        %s502 = scalar_lea.vmem [#allocation5], 4
        %v503 = vld [vmem:[%s502] ss:$8 sm:$0x3]
        %v505 = vlaneseq
        %v506 = vshrl.u32 %v505, 7
        %v507 = vsub.s32 0, %v506
        %v508 = vrot.slane %v503, %v507
        %v509 = vlaneseq
        %v510 = vshrl.u32 %v509, 7
        %v511 = vsub.s32 1, %v510
        %v512 = vrot.slane %v503, %v511
        %v515 = vmul.f32 %v498, %v508
        %v516 = vmul.f32 %v500, %v512
        %v517 = vmul.f32 %v499, %v508
        %v518 = vmul.f32 %v501, %v512
        %519 = vst [vmem:[#allocation2 + $0xa0] sm:$0xff] %v515
        %520 = vst [vmem:[#allocation2 + $0xa8] sm:$0xff] %v516
        %521 = vst [vmem:[#allocation2 + $0xb0] sm:$0xff] %v517
        %522 = vst [vmem:[#allocation2 + $0xb8] sm:$0xff] %v518
        %523 = vrot.lane.b32.xlu0 %v344, 113
        %v524 = vpop.permute.xlu0 %523
        %525 = vrot.lane.b32.xlu0 %v346, 113
        %v526 = vpop.permute.xlu0 %525
        %527 = vrot.lane.b32.xlu0 %v345, 113
        %v528 = vpop.permute.xlu0 %527
        %529 = vrot.lane.b32.xlu0 %v347, 113
        %v530 = vpop.permute.xlu0 %529
        %vm531 = vcmp.lt.s32.totalorder %v357, 113
        %v532 = vsel %vm531, %v524, %v528
        %v533 = vsel %vm531, %v526, %v530
        %v534 = vsel %vm531, %v528, %v524
        %v535 = vsel %vm531, %v530, %v526
        %s536 = scalar_lea.vmem [#allocation5], 5
        %v537 = vld [vmem:[%s536] ss:$8 sm:$0x3]
        %v539 = vlaneseq
        %v540 = vshrl.u32 %v539, 7
        %v541 = vsub.s32 0, %v540
        %v542 = vrot.slane %v537, %v541
        %v543 = vlaneseq
        %v544 = vshrl.u32 %v543, 7
        %v545 = vsub.s32 1, %v544
        %v546 = vrot.slane %v537, %v545
        %v549 = vmul.f32 %v532, %v542
        %v550 = vmul.f32 %v534, %v546
        %v551 = vmul.f32 %v533, %v542
        %v552 = vmul.f32 %v535, %v546
        %553 = vst [vmem:[#allocation2 + $0xc0] sm:$0xff] %v549
        %554 = vst [vmem:[#allocation2 + $0xc8] sm:$0xff] %v550
        %555 = vst [vmem:[#allocation2 + $0xd0] sm:$0xff] %v551
        %556 = vst [vmem:[#allocation2 + $0xd8] sm:$0xff] %v552
        %557 = vrot.lane.b32.xlu0 %v344, 112
        %v558 = vpop.permute.xlu0 %557
        %559 = vrot.lane.b32.xlu0 %v346, 112
        %v560 = vpop.permute.xlu0 %559
        %561 = vrot.lane.b32.xlu0 %v345, 112
        %v562 = vpop.permute.xlu0 %561
        %563 = vrot.lane.b32.xlu0 %v347, 112
        %v564 = vpop.permute.xlu0 %563
        %vm565 = vcmp.lt.s32.totalorder %v357, 112
        %v566 = vsel %vm565, %v558, %v562
        %v567 = vsel %vm565, %v560, %v564
        %v568 = vsel %vm565, %v562, %v558
        %v569 = vsel %vm565, %v564, %v560
        %s570 = scalar_lea.vmem [#allocation5], 6
        %v571 = vld [vmem:[%s570] ss:$8 sm:$0x3]
        %v573 = vlaneseq
        %v574 = vshrl.u32 %v573, 7
        %v575 = vsub.s32 0, %v574
        %v576 = vrot.slane %v571, %v575
        %v577 = vlaneseq
        %v578 = vshrl.u32 %v577, 7
        %v579 = vsub.s32 1, %v578
        %v580 = vrot.slane %v571, %v579
        %v583 = vmul.f32 %v566, %v576
        %v584 = vmul.f32 %v568, %v580
        %v585 = vmul.f32 %v567, %v576
        %v586 = vmul.f32 %v569, %v580
        %587 = vst [vmem:[#allocation2 + $0xe0] sm:$0xff] %v583
        %588 = vst [vmem:[#allocation2 + $0xe8] sm:$0xff] %v584
        %589 = vst [vmem:[#allocation2 + $0xf0] sm:$0xff] %v585
        %590 = vst [vmem:[#allocation2 + $0xf8] sm:$0xff] %v586
        %591 = vrot.lane.b32.xlu0 %v344, 111
        %v592 = vpop.permute.xlu0 %591
        %593 = vrot.lane.b32.xlu0 %v346, 111
        %v594 = vpop.permute.xlu0 %593
        %595 = vrot.lane.b32.xlu0 %v345, 111
        %v596 = vpop.permute.xlu0 %595
        %597 = vrot.lane.b32.xlu0 %v347, 111
        %v598 = vpop.permute.xlu0 %597
        %vm599 = vcmp.lt.s32.totalorder %v357, 111
        %v600 = vsel %vm599, %v592, %v596
        %v601 = vsel %vm599, %v594, %v598
        %v602 = vsel %vm599, %v596, %v592
        %v603 = vsel %vm599, %v598, %v594
        %s604 = scalar_lea.vmem [#allocation5], 7
        %v605 = vld [vmem:[%s604] ss:$8 sm:$0x3]
        %v607 = vlaneseq
        %v608 = vshrl.u32 %v607, 7
        %v609 = vsub.s32 0, %v608
        %v610 = vrot.slane %v605, %v609
        %v611 = vlaneseq
        %v612 = vshrl.u32 %v611, 7
        %v613 = vsub.s32 1, %v612
        %v614 = vrot.slane %v605, %v613
        %v617 = vmul.f32 %v600, %v610
        %v618 = vmul.f32 %v602, %v614
        %v619 = vmul.f32 %v601, %v610
        %v620 = vmul.f32 %v603, %v614
        %621 = vst [vmem:[#allocation2 + $0x100] sm:$0xff] %v617
        %622 = vst [vmem:[#allocation2 + $0x108] sm:$0xff] %v618
        %623 = vst [vmem:[#allocation2 + $0x110] sm:$0xff] %v619
        %624 = vst [vmem:[#allocation2 + $0x118] sm:$0xff] %v620
        %v625 = vld [vmem:[#allocation8] sm:$0xff]
        %v626 = vld [vmem:[#allocation2] sm:$0xff]
        %v627 = vld [vmem:[#allocation2 + $0x8] sm:$0xff]
        %v628 = vld [vmem:[#allocation2 + $0x10] sm:$0xff]
        %v629 = vld [vmem:[#allocation2 + $0x18] sm:$0xff]
        %v630 = vld [vmem:[#allocation2 + $0x20] sm:$0xff]
        %v631 = vld [vmem:[#allocation2 + $0x28] sm:$0xff]
        %v632 = vld [vmem:[#allocation2 + $0x30] sm:$0xff]
        %v633 = vld [vmem:[#allocation2 + $0x38] sm:$0xff]
        %v634 = vld [vmem:[#allocation2 + $0x40] sm:$0xff]
        %v635 = vld [vmem:[#allocation2 + $0x48] sm:$0xff]
        %v636 = vld [vmem:[#allocation2 + $0x50] sm:$0xff]
        %v637 = vld [vmem:[#allocation2 + $0x58] sm:$0xff]
        %v638 = vld [vmem:[#allocation2 + $0x60] sm:$0xff]
        %v639 = vld [vmem:[#allocation2 + $0x68] sm:$0xff]
        %v640 = vld [vmem:[#allocation2 + $0x70] sm:$0xff]
        %v641 = vld [vmem:[#allocation2 + $0x78] sm:$0xff]
        %v642 = vld [vmem:[#allocation2 + $0x80] sm:$0xff]
        %v643 = vld [vmem:[#allocation2 + $0x88] sm:$0xff]
        %v644 = vld [vmem:[#allocation2 + $0x90] sm:$0xff]
        %v645 = vld [vmem:[#allocation2 + $0x98] sm:$0xff]
        %v646 = vld [vmem:[#allocation2 + $0xa0] sm:$0xff]
        %v647 = vld [vmem:[#allocation2 + $0xa8] sm:$0xff]
        %v648 = vld [vmem:[#allocation2 + $0xb0] sm:$0xff]
        %v649 = vld [vmem:[#allocation2 + $0xb8] sm:$0xff]
        %v650 = vld [vmem:[#allocation2 + $0xc0] sm:$0xff]
        %v651 = vld [vmem:[#allocation2 + $0xc8] sm:$0xff]
        %v652 = vld [vmem:[#allocation2 + $0xd0] sm:$0xff]
        %v653 = vld [vmem:[#allocation2 + $0xd8] sm:$0xff]
        %v654 = vld [vmem:[#allocation2 + $0xe0] sm:$0xff]
        %v655 = vld [vmem:[#allocation2 + $0xe8] sm:$0xff]
        %v656 = vld [vmem:[#allocation2 + $0xf0] sm:$0xff]
        %v657 = vld [vmem:[#allocation2 + $0xf8] sm:$0xff]
        %v658 = vld [vmem:[#allocation2 + $0x100] sm:$0xff]
        %v659 = vld [vmem:[#allocation2 + $0x108] sm:$0xff]
        %v660 = vld [vmem:[#allocation2 + $0x110] sm:$0xff]
        %v661 = vld [vmem:[#allocation2 + $0x118] sm:$0xff]
        %v662 = vld [vmem:[%s3] sm:$0xf]
        %664 = vset.pattern.permute.xlu0 0
        %665 = vperm.xlu0 %664, %v662
        %v666 = vpop.permute.xlu0 %665
        %v669 = vcombine.high %v625, %v625
        %vm670 = vcmask 130048
        %v671 = vsel %vm670, %v669, 0
        %v673 = vand.u32 %v627, 4294901760
        %674 = vmatprep.subr.mxu0 %v673
        %v675 = vand.u32 %v626, 4294901760
        %676 = vmatpush1.msra.mxu0 %v675
        %v677 = vand.u32 %v629, 4294901760
        %678 = vmatprep.subr.mxu0 %v677
        %v679 = vand.u32 %v628, 4294901760
        %680 = vmatpush1.msra.mxu0 %v679
        %v681 = vand.u32 %v631, 4294901760
        %682 = vmatprep.subr.mxu0 %v681
        %v683 = vand.u32 %v630, 4294901760
        %684 = vmatpush1.msra.mxu0 %v683
        %v685 = vand.u32 %v633, 4294901760
        %686 = vmatprep.subr.mxu0 %v685
        %v687 = vand.u32 %v632, 4294901760
        %688 = vmatpush1.msra.mxu0 %v687
        %v689 = vand.u32 %v635, 4294901760
        %690 = vmatprep.subr.mxu0 %v689
        %v691 = vand.u32 %v634, 4294901760
        %692 = vmatpush1.msra.mxu0 %v691
        %v693 = vand.u32 %v637, 4294901760
        %694 = vmatprep.subr.mxu0 %v693
        %v695 = vand.u32 %v636, 4294901760
        %696 = vmatpush1.msra.mxu0 %v695
        %v697 = vand.u32 %v639, 4294901760
        %698 = vmatprep.subr.mxu0 %v697
        %v699 = vand.u32 %v638, 4294901760
        %700 = vmatpush1.msra.mxu0 %v699
        %v701 = vand.u32 %v641, 4294901760
        %702 = vmatprep.subr.mxu0 %v701
        %v703 = vand.u32 %v640, 4294901760
        %704 = vmatpush1.msra.mxu0 %v703
        %v705 = vand.u32 %v643, 4294901760
        %706 = vmatprep.subr.mxu0 %v705
        %v707 = vand.u32 %v642, 4294901760
        %708 = vmatpush1.msra.mxu0 %v707
        %v709 = vand.u32 %v645, 4294901760
        %710 = vmatprep.subr.mxu0 %v709
        %v711 = vand.u32 %v644, 4294901760
        %712 = vmatpush1.msra.mxu0 %v711
        %v713 = vand.u32 %v647, 4294901760
        %714 = vmatprep.subr.mxu0 %v713
        %v715 = vand.u32 %v646, 4294901760
        %716 = vmatpush1.msra.mxu0 %v715
        %v717 = vand.u32 %v649, 4294901760
        %718 = vmatprep.subr.mxu0 %v717
        %v719 = vand.u32 %v648, 4294901760
        %720 = vmatpush1.msra.mxu0 %v719
        %v721 = vand.u32 %v651, 4294901760
        %722 = vmatprep.subr.mxu0 %v721
        %v723 = vand.u32 %v650, 4294901760
        %724 = vmatpush1.msra.mxu0 %v723
        %v725 = vand.u32 %v653, 4294901760
        %726 = vmatprep.subr.mxu0 %v725
        %v727 = vand.u32 %v652, 4294901760
        %728 = vmatpush1.msra.mxu0 %v727
        %v729 = vand.u32 %v655, 4294901760
        %730 = vmatprep.subr.mxu0 %v729
        %v731 = vand.u32 %v654, 4294901760
        %732 = vmatpush1.msra.mxu0 %v731
        %v733 = vand.u32 %v657, 4294901760
        %734 = vmatprep.subr.mxu0 %v733
        %v735 = vand.u32 %v656, 4294901760
        %736 = vmatpush1.msra.mxu0 %v735
        %v737 = vand.u32 %v659, 4294901760
        %738 = vmatprep.subr.mxu0 %v737
        %v739 = vand.u32 %v658, 4294901760
        %740 = vmatpush1.msra.mxu0 %v739
        %v741 = vand.u32 %v661, 4294901760
        %742 = vmatprep.subr.mxu0 %v741
        %v743 = vand.u32 %v660, 4294901760
        %744 = vmatpush1.msra.mxu0 %v743
        %745 = vmatprep.subr.mxu0 0.0
        %746 = vmatpush1.msra.mxu0 0.0
        %747 = vmatprep.subr.mxu0 0.0
        %748 = vmatpush1.msra.mxu0 0.0
        %749 = vmatprep.subr.mxu0 0.0
        %750 = vmatpush1.msra.mxu0 0.0
        %751 = vmatprep.subr.mxu0 0.0
        %752 = vmatpush1.msra.mxu0 0.0
        %753 = vmatprep.subr.mxu0 0.0
        %754 = vmatpush1.msra.mxu0 0.0
        %755 = vmatprep.subr.mxu0 0.0
        %756 = vmatpush1.msra.mxu0 0.0
        %757 = vmatprep.subr.mxu0 0.0
        %758 = vmatpush1.msra.mxu0 0.0
        %759 = vmatprep.subr.mxu0 0.0
        %760 = vmatpush1.msra.mxu0 0.0
        %761 = vmatprep.subr.mxu0 0.0
        %762 = vmatpush1.msra.mxu0 0.0
        %763 = vmatprep.subr.mxu0 0.0
        %764 = vmatpush1.msra.mxu0 0.0
        %765 = vmatprep.subr.mxu0 0.0
        %766 = vmatpush1.msra.mxu0 0.0
        %767 = vmatprep.subr.mxu0 0.0
        %768 = vmatpush1.msra.mxu0 0.0
        %769 = vmatprep.subr.mxu0 0.0
        %770 = vmatpush1.msra.mxu0 0.0
        %771 = vmatprep.subr.mxu0 0.0
        %772 = vmatpush1.msra.mxu0 0.0
        %v773 = vand.u32 %v671, 4294901760
        %v774 = vsub.f32 %v671, %v773
        %v775 = vand.u32 %v774, 4294901760
        %v776 = vsub.f32 %v774, %v775
        %v777 = vand.u32 %v776, 4294901760
        %778 = vmatprep.mubr.f32.mxu0 %v777
        %v779 = vand.u32 %v625, 4294901760
        %v780 = vsub.f32 %v625, %v779
        %v781 = vand.u32 %v780, 4294901760
        %v782 = vsub.f32 %v780, %v781
        %v783 = vand.u32 %v782, 4294901760
        %784 = vmatmul.mubr.f32.gmra.mrb[0].mxu0 %v783
        %v785 = vpop.f32.mrb[0].mxu0
        %v786 = vadd.f32 %v666, %v785
        %v787 = vpop.f32.mrb[0].mxu0
        %v788 = vadd.f32 %v666, %v787
        %789 = vdwg.mxu0
        %v790 = vand.u32 %v627, 4294901760
        %v791 = vsub.f32 %v627, %v790
        %v792 = vand.u32 %v791, 4294901760
        %v793 = vsub.f32 %v791, %v792
        %v794 = vand.u32 %v793, 4294901760
        %795 = vmatprep.subr.mxu0 %v794
        %v796 = vand.u32 %v626, 4294901760
        %v797 = vsub.f32 %v626, %v796
        %v798 = vand.u32 %v797, 4294901760
        %v799 = vsub.f32 %v797, %v798
        %v800 = vand.u32 %v799, 4294901760
        %801 = vmatpush1.msra.mxu0 %v800
        %v802 = vand.u32 %v629, 4294901760
        %v803 = vsub.f32 %v629, %v802
        %v804 = vand.u32 %v803, 4294901760
        %v805 = vsub.f32 %v803, %v804
        %v806 = vand.u32 %v805, 4294901760
        %807 = vmatprep.subr.mxu0 %v806
        %v808 = vand.u32 %v628, 4294901760
        %v809 = vsub.f32 %v628, %v808
        %v810 = vand.u32 %v809, 4294901760
        %v811 = vsub.f32 %v809, %v810
        %v812 = vand.u32 %v811, 4294901760
        %813 = vmatpush1.msra.mxu0 %v812
        %v814 = vand.u32 %v631, 4294901760
        %v815 = vsub.f32 %v631, %v814
        %v816 = vand.u32 %v815, 4294901760
        %v817 = vsub.f32 %v815, %v816
        %v818 = vand.u32 %v817, 4294901760
        %819 = vmatprep.subr.mxu0 %v818
        %v820 = vand.u32 %v630, 4294901760
        %v821 = vsub.f32 %v630, %v820
        %v822 = vand.u32 %v821, 4294901760
        %v823 = vsub.f32 %v821, %v822
        %v824 = vand.u32 %v823, 4294901760
        %825 = vmatpush1.msra.mxu0 %v824
        %v826 = vand.u32 %v633, 4294901760
        %v827 = vsub.f32 %v633, %v826
        %v828 = vand.u32 %v827, 4294901760
        %v829 = vsub.f32 %v827, %v828
        %v830 = vand.u32 %v829, 4294901760
        %831 = vmatprep.subr.mxu0 %v830
        %v832 = vand.u32 %v632, 4294901760
        %v833 = vsub.f32 %v632, %v832
        %v834 = vand.u32 %v833, 4294901760
        %v835 = vsub.f32 %v833, %v834
        %v836 = vand.u32 %v835, 4294901760
        %837 = vmatpush1.msra.mxu0 %v836
        %v838 = vand.u32 %v635, 4294901760
        %v839 = vsub.f32 %v635, %v838
        %v840 = vand.u32 %v839, 4294901760
        %v841 = vsub.f32 %v839, %v840
        %v842 = vand.u32 %v841, 4294901760
        %843 = vmatprep.subr.mxu0 %v842
        %v844 = vand.u32 %v634, 4294901760
        %v845 = vsub.f32 %v634, %v844
        %v846 = vand.u32 %v845, 4294901760
        %v847 = vsub.f32 %v845, %v846
        %v848 = vand.u32 %v847, 4294901760
        %849 = vmatpush1.msra.mxu0 %v848
        %v850 = vand.u32 %v637, 4294901760
        %v851 = vsub.f32 %v637, %v850
        %v852 = vand.u32 %v851, 4294901760
        %v853 = vsub.f32 %v851, %v852
        %v854 = vand.u32 %v853, 4294901760
        %855 = vmatprep.subr.mxu0 %v854
        %v856 = vand.u32 %v636, 4294901760
        %v857 = vsub.f32 %v636, %v856
        %v858 = vand.u32 %v857, 4294901760
        %v859 = vsub.f32 %v857, %v858
        %v860 = vand.u32 %v859, 4294901760
        %861 = vmatpush1.msra.mxu0 %v860
        %v862 = vand.u32 %v639, 4294901760
        %v863 = vsub.f32 %v639, %v862
        %v864 = vand.u32 %v863, 4294901760
        %v865 = vsub.f32 %v863, %v864
        %v866 = vand.u32 %v865, 4294901760
        %867 = vmatprep.subr.mxu0 %v866
        %v868 = vand.u32 %v638, 4294901760
        %v869 = vsub.f32 %v638, %v868
        %v870 = vand.u32 %v869, 4294901760
        %v871 = vsub.f32 %v869, %v870
        %v872 = vand.u32 %v871, 4294901760
        %873 = vmatpush1.msra.mxu0 %v872
        %v874 = vand.u32 %v641, 4294901760
        %v875 = vsub.f32 %v641, %v874
        %v876 = vand.u32 %v875, 4294901760
        %v877 = vsub.f32 %v875, %v876
        %v878 = vand.u32 %v877, 4294901760
        %879 = vmatprep.subr.mxu0 %v878
        %v880 = vand.u32 %v640, 4294901760
        %v881 = vsub.f32 %v640, %v880
        %v882 = vand.u32 %v881, 4294901760
        %v883 = vsub.f32 %v881, %v882
        %v884 = vand.u32 %v883, 4294901760
        %885 = vmatpush1.msra.mxu0 %v884
        %v886 = vand.u32 %v643, 4294901760
        %v887 = vsub.f32 %v643, %v886
        %v888 = vand.u32 %v887, 4294901760
        %v889 = vsub.f32 %v887, %v888
        %v890 = vand.u32 %v889, 4294901760
        %891 = vmatprep.subr.mxu0 %v890
        %v892 = vand.u32 %v642, 4294901760
        %v893 = vsub.f32 %v642, %v892
        %v894 = vand.u32 %v893, 4294901760
        %v895 = vsub.f32 %v893, %v894
        %v896 = vand.u32 %v895, 4294901760
        %897 = vmatpush1.msra.mxu0 %v896
        %v898 = vand.u32 %v645, 4294901760
        %v899 = vsub.f32 %v645, %v898
        %v900 = vand.u32 %v899, 4294901760
        %v901 = vsub.f32 %v899, %v900
        %v902 = vand.u32 %v901, 4294901760
        %903 = vmatprep.subr.mxu0 %v902
        %v904 = vand.u32 %v644, 4294901760
        %v905 = vsub.f32 %v644, %v904
        %v906 = vand.u32 %v905, 4294901760
        %v907 = vsub.f32 %v905, %v906
        %v908 = vand.u32 %v907, 4294901760
        %909 = vmatpush1.msra.mxu0 %v908
        %v910 = vand.u32 %v647, 4294901760
        %v911 = vsub.f32 %v647, %v910
        %v912 = vand.u32 %v911, 4294901760
        %v913 = vsub.f32 %v911, %v912
        %v914 = vand.u32 %v913, 4294901760
        %915 = vmatprep.subr.mxu0 %v914
        %v916 = vand.u32 %v646, 4294901760
        %v917 = vsub.f32 %v646, %v916
        %v918 = vand.u32 %v917, 4294901760
        %v919 = vsub.f32 %v917, %v918
        %v920 = vand.u32 %v919, 4294901760
        %921 = vmatpush1.msra.mxu0 %v920
        %v922 = vand.u32 %v649, 4294901760
        %v923 = vsub.f32 %v649, %v922
        %v924 = vand.u32 %v923, 4294901760
        %v925 = vsub.f32 %v923, %v924
        %v926 = vand.u32 %v925, 4294901760
        %927 = vmatprep.subr.mxu0 %v926
        %v928 = vand.u32 %v648, 4294901760
        %v929 = vsub.f32 %v648, %v928
        %v930 = vand.u32 %v929, 4294901760
        %v931 = vsub.f32 %v929, %v930
        %v932 = vand.u32 %v931, 4294901760
        %933 = vmatpush1.msra.mxu0 %v932
        %v934 = vand.u32 %v651, 4294901760
        %v935 = vsub.f32 %v651, %v934
        %v936 = vand.u32 %v935, 4294901760
        %v937 = vsub.f32 %v935, %v936
        %v938 = vand.u32 %v937, 4294901760
        %939 = vmatprep.subr.mxu0 %v938
        %v940 = vand.u32 %v650, 4294901760
        %v941 = vsub.f32 %v650, %v940
        %v942 = vand.u32 %v941, 4294901760
        %v943 = vsub.f32 %v941, %v942
        %v944 = vand.u32 %v943, 4294901760
        %945 = vmatpush1.msra.mxu0 %v944
        %v946 = vand.u32 %v653, 4294901760
        %v947 = vsub.f32 %v653, %v946
        %v948 = vand.u32 %v947, 4294901760
        %v949 = vsub.f32 %v947, %v948
        %v950 = vand.u32 %v949, 4294901760
        %951 = vmatprep.subr.mxu0 %v950
        %v952 = vand.u32 %v652, 4294901760
        %v953 = vsub.f32 %v652, %v952
        %v954 = vand.u32 %v953, 4294901760
        %v955 = vsub.f32 %v953, %v954
        %v956 = vand.u32 %v955, 4294901760
        %957 = vmatpush1.msra.mxu0 %v956
        %v958 = vand.u32 %v655, 4294901760
        %v959 = vsub.f32 %v655, %v958
        %v960 = vand.u32 %v959, 4294901760
        %v961 = vsub.f32 %v959, %v960
        %v962 = vand.u32 %v961, 4294901760
        %963 = vmatprep.subr.mxu0 %v962
        %v964 = vand.u32 %v654, 4294901760
        %v965 = vsub.f32 %v654, %v964
        %v966 = vand.u32 %v965, 4294901760
        %v967 = vsub.f32 %v965, %v966
        %v968 = vand.u32 %v967, 4294901760
        %969 = vmatpush1.msra.mxu0 %v968
        %v970 = vand.u32 %v657, 4294901760
        %v971 = vsub.f32 %v657, %v970
        %v972 = vand.u32 %v971, 4294901760
        %v973 = vsub.f32 %v971, %v972
        %v974 = vand.u32 %v973, 4294901760
        %975 = vmatprep.subr.mxu0 %v974
        %v976 = vand.u32 %v656, 4294901760
        %v977 = vsub.f32 %v656, %v976
        %v978 = vand.u32 %v977, 4294901760
        %v979 = vsub.f32 %v977, %v978
        %v980 = vand.u32 %v979, 4294901760
        %981 = vmatpush1.msra.mxu0 %v980
        %v982 = vand.u32 %v659, 4294901760
        %v983 = vsub.f32 %v659, %v982
        %v984 = vand.u32 %v983, 4294901760
        %v985 = vsub.f32 %v983, %v984
        %v986 = vand.u32 %v985, 4294901760
        %987 = vmatprep.subr.mxu0 %v986
        %v988 = vand.u32 %v658, 4294901760
        %v989 = vsub.f32 %v658, %v988
        %v990 = vand.u32 %v989, 4294901760
        %v991 = vsub.f32 %v989, %v990
        %v992 = vand.u32 %v991, 4294901760
        %993 = vmatpush1.msra.mxu0 %v992
        %v994 = vand.u32 %v661, 4294901760
        %v995 = vsub.f32 %v661, %v994
        %v996 = vand.u32 %v995, 4294901760
        %v997 = vsub.f32 %v995, %v996
        %v998 = vand.u32 %v997, 4294901760
        %999 = vmatprep.subr.mxu0 %v998
        %v1000 = vand.u32 %v660, 4294901760
        %v1001 = vsub.f32 %v660, %v1000
        %v1002 = vand.u32 %v1001, 4294901760
        %v1003 = vsub.f32 %v1001, %v1002
        %v1004 = vand.u32 %v1003, 4294901760
        %1005 = vmatpush1.msra.mxu0 %v1004
        %1006 = vmatprep.subr.mxu0 0.0
        %1007 = vmatpush1.msra.mxu0 0.0
        %1008 = vmatprep.subr.mxu0 0.0
        %1009 = vmatpush1.msra.mxu0 0.0
        %1010 = vmatprep.subr.mxu0 0.0
        %1011 = vmatpush1.msra.mxu0 0.0
        %1012 = vmatprep.subr.mxu0 0.0
        %1013 = vmatpush1.msra.mxu0 0.0
        %1014 = vmatprep.subr.mxu0 0.0
        %1015 = vmatpush1.msra.mxu0 0.0
        %1016 = vmatprep.subr.mxu0 0.0
        %1017 = vmatpush1.msra.mxu0 0.0
        %1018 = vmatprep.subr.mxu0 0.0
        %1019 = vmatpush1.msra.mxu0 0.0
        %1020 = vmatprep.subr.mxu0 0.0
        %1021 = vmatpush1.msra.mxu0 0.0
        %1022 = vmatprep.subr.mxu0 0.0
        %1023 = vmatpush1.msra.mxu0 0.0
        %1024 = vmatprep.subr.mxu0 0.0
        %1025 = vmatpush1.msra.mxu0 0.0
        %1026 = vmatprep.subr.mxu0 0.0
        %1027 = vmatpush1.msra.mxu0 0.0
        %1028 = vmatprep.subr.mxu0 0.0
        %1029 = vmatpush1.msra.mxu0 0.0
        %1030 = vmatprep.subr.mxu0 0.0
        %1031 = vmatpush1.msra.mxu0 0.0
        %1032 = vmatprep.subr.mxu0 0.0
        %1033 = vmatpush1.msra.mxu0 0.0
        %v1034 = vand.u32 %v671, 4294901760
        %1035 = vmatprep.mubr.f32.mxu0 %v1034
        %v1036 = vand.u32 %v625, 4294901760
        %1037 = vmatmul.mubr.f32.gmra.mrb[0].mxu0 %v1036
        %v1038 = vpop.f32.mrb[0].mxu0
        %v1039 = vadd.f32 %v786, %v1038
        %v1040 = vpop.f32.mrb[0].mxu0
        %v1041 = vadd.f32 %v788, %v1040
        %1042 = vdwg.mxu0
        %v1043 = vand.u32 %v627, 4294901760
        %v1044 = vsub.f32 %v627, %v1043
        %1045 = vmatprep.subr.mxu0 %v1044
        %v1046 = vand.u32 %v626, 4294901760
        %v1047 = vsub.f32 %v626, %v1046
        %1048 = vmatpush1.msra.mxu0 %v1047
        %v1049 = vand.u32 %v629, 4294901760
        %v1050 = vsub.f32 %v629, %v1049
        %1051 = vmatprep.subr.mxu0 %v1050
        %v1052 = vand.u32 %v628, 4294901760
        %v1053 = vsub.f32 %v628, %v1052
        %1054 = vmatpush1.msra.mxu0 %v1053
        %v1055 = vand.u32 %v631, 4294901760
        %v1056 = vsub.f32 %v631, %v1055
        %1057 = vmatprep.subr.mxu0 %v1056
        %v1058 = vand.u32 %v630, 4294901760
        %v1059 = vsub.f32 %v630, %v1058
        %1060 = vmatpush1.msra.mxu0 %v1059
        %v1061 = vand.u32 %v633, 4294901760
        %v1062 = vsub.f32 %v633, %v1061
        %1063 = vmatprep.subr.mxu0 %v1062
        %v1064 = vand.u32 %v632, 4294901760
        %v1065 = vsub.f32 %v632, %v1064
        %1066 = vmatpush1.msra.mxu0 %v1065
        %v1067 = vand.u32 %v635, 4294901760
        %v1068 = vsub.f32 %v635, %v1067
        %1069 = vmatprep.subr.mxu0 %v1068
        %v1070 = vand.u32 %v634, 4294901760
        %v1071 = vsub.f32 %v634, %v1070
        %1072 = vmatpush1.msra.mxu0 %v1071
        %v1073 = vand.u32 %v637, 4294901760
        %v1074 = vsub.f32 %v637, %v1073
        %1075 = vmatprep.subr.mxu0 %v1074
        %v1076 = vand.u32 %v636, 4294901760
        %v1077 = vsub.f32 %v636, %v1076
        %1078 = vmatpush1.msra.mxu0 %v1077
        %v1079 = vand.u32 %v639, 4294901760
        %v1080 = vsub.f32 %v639, %v1079
        %1081 = vmatprep.subr.mxu0 %v1080
        %v1082 = vand.u32 %v638, 4294901760
        %v1083 = vsub.f32 %v638, %v1082
        %1084 = vmatpush1.msra.mxu0 %v1083
        %v1085 = vand.u32 %v641, 4294901760
        %v1086 = vsub.f32 %v641, %v1085
        %1087 = vmatprep.subr.mxu0 %v1086
        %v1088 = vand.u32 %v640, 4294901760
        %v1089 = vsub.f32 %v640, %v1088
        %1090 = vmatpush1.msra.mxu0 %v1089
        %v1091 = vand.u32 %v643, 4294901760
        %v1092 = vsub.f32 %v643, %v1091
        %1093 = vmatprep.subr.mxu0 %v1092
        %v1094 = vand.u32 %v642, 4294901760
        %v1095 = vsub.f32 %v642, %v1094
        %1096 = vmatpush1.msra.mxu0 %v1095
        %v1097 = vand.u32 %v645, 4294901760
        %v1098 = vsub.f32 %v645, %v1097
        %1099 = vmatprep.subr.mxu0 %v1098
        %v1100 = vand.u32 %v644, 4294901760
        %v1101 = vsub.f32 %v644, %v1100
        %1102 = vmatpush1.msra.mxu0 %v1101
        %v1103 = vand.u32 %v647, 4294901760
        %v1104 = vsub.f32 %v647, %v1103
        %1105 = vmatprep.subr.mxu0 %v1104
        %v1106 = vand.u32 %v646, 4294901760
        %v1107 = vsub.f32 %v646, %v1106
        %1108 = vmatpush1.msra.mxu0 %v1107
        %v1109 = vand.u32 %v649, 4294901760
        %v1110 = vsub.f32 %v649, %v1109
        %1111 = vmatprep.subr.mxu0 %v1110
        %v1112 = vand.u32 %v648, 4294901760
        %v1113 = vsub.f32 %v648, %v1112
        %1114 = vmatpush1.msra.mxu0 %v1113
        %v1115 = vand.u32 %v651, 4294901760
        %v1116 = vsub.f32 %v651, %v1115
        %1117 = vmatprep.subr.mxu0 %v1116
        %v1118 = vand.u32 %v650, 4294901760
        %v1119 = vsub.f32 %v650, %v1118
        %1120 = vmatpush1.msra.mxu0 %v1119
        %v1121 = vand.u32 %v653, 4294901760
        %v1122 = vsub.f32 %v653, %v1121
        %1123 = vmatprep.subr.mxu0 %v1122
        %v1124 = vand.u32 %v652, 4294901760
        %v1125 = vsub.f32 %v652, %v1124
        %1126 = vmatpush1.msra.mxu0 %v1125
        %v1127 = vand.u32 %v655, 4294901760
        %v1128 = vsub.f32 %v655, %v1127
        %1129 = vmatprep.subr.mxu0 %v1128
        %v1130 = vand.u32 %v654, 4294901760
        %v1131 = vsub.f32 %v654, %v1130
        %1132 = vmatpush1.msra.mxu0 %v1131
        %v1133 = vand.u32 %v657, 4294901760
        %v1134 = vsub.f32 %v657, %v1133
        %1135 = vmatprep.subr.mxu0 %v1134
        %v1136 = vand.u32 %v656, 4294901760
        %v1137 = vsub.f32 %v656, %v1136
        %1138 = vmatpush1.msra.mxu0 %v1137
        %v1139 = vand.u32 %v659, 4294901760
        %v1140 = vsub.f32 %v659, %v1139
        %1141 = vmatprep.subr.mxu0 %v1140
        %v1142 = vand.u32 %v658, 4294901760
        %v1143 = vsub.f32 %v658, %v1142
        %1144 = vmatpush1.msra.mxu0 %v1143
        %v1145 = vand.u32 %v661, 4294901760
        %v1146 = vsub.f32 %v661, %v1145
        %1147 = vmatprep.subr.mxu0 %v1146
        %v1148 = vand.u32 %v660, 4294901760
        %v1149 = vsub.f32 %v660, %v1148
        %1150 = vmatpush1.msra.mxu0 %v1149
        %1151 = vmatprep.subr.mxu0 0.0
        %1152 = vmatpush1.msra.mxu0 0.0
        %1153 = vmatprep.subr.mxu0 0.0
        %1154 = vmatpush1.msra.mxu0 0.0
        %1155 = vmatprep.subr.mxu0 0.0
        %1156 = vmatpush1.msra.mxu0 0.0
        %1157 = vmatprep.subr.mxu0 0.0
        %1158 = vmatpush1.msra.mxu0 0.0
        %1159 = vmatprep.subr.mxu0 0.0
        %1160 = vmatpush1.msra.mxu0 0.0
        %1161 = vmatprep.subr.mxu0 0.0
        %1162 = vmatpush1.msra.mxu0 0.0
        %1163 = vmatprep.subr.mxu0 0.0
        %1164 = vmatpush1.msra.mxu0 0.0
        %1165 = vmatprep.subr.mxu0 0.0
        %1166 = vmatpush1.msra.mxu0 0.0
        %1167 = vmatprep.subr.mxu0 0.0
        %1168 = vmatpush1.msra.mxu0 0.0
        %1169 = vmatprep.subr.mxu0 0.0
        %1170 = vmatpush1.msra.mxu0 0.0
        %1171 = vmatprep.subr.mxu0 0.0
        %1172 = vmatpush1.msra.mxu0 0.0
        %1173 = vmatprep.subr.mxu0 0.0
        %1174 = vmatpush1.msra.mxu0 0.0
        %1175 = vmatprep.subr.mxu0 0.0
        %1176 = vmatpush1.msra.mxu0 0.0
        %1177 = vmatprep.subr.mxu0 0.0
        %1178 = vmatpush1.msra.mxu0 0.0
        %v1179 = vand.u32 %v671, 4294901760
        %v1180 = vsub.f32 %v671, %v1179
        %1181 = vmatprep.mubr.f32.mxu0 %v1180
        %v1182 = vand.u32 %v625, 4294901760
        %v1183 = vsub.f32 %v625, %v1182
        %1184 = vmatmul.mubr.f32.gmra.mrb[0].mxu0 %v1183
        %v1185 = vpop.f32.mrb[0].mxu0
        %v1186 = vadd.f32 %v1039, %v1185
        %v1187 = vpop.f32.mrb[0].mxu0
        %v1188 = vadd.f32 %v1041, %v1187
        %1189 = vdwg.mxu0
        %v1190 = vand.u32 %v627, 4294901760
        %1191 = vmatprep.subr.mxu0 %v1190
        %v1192 = vand.u32 %v626, 4294901760
        %1193 = vmatpush1.msra.mxu0 %v1192
        %v1194 = vand.u32 %v629, 4294901760
        %1195 = vmatprep.subr.mxu0 %v1194
        %v1196 = vand.u32 %v628, 4294901760
        %1197 = vmatpush1.msra.mxu0 %v1196
        %v1198 = vand.u32 %v631, 4294901760
        %1199 = vmatprep.subr.mxu0 %v1198
        %v1200 = vand.u32 %v630, 4294901760
        %1201 = vmatpush1.msra.mxu0 %v1200
        %v1202 = vand.u32 %v633, 4294901760
        %1203 = vmatprep.subr.mxu0 %v1202
        %v1204 = vand.u32 %v632, 4294901760
        %1205 = vmatpush1.msra.mxu0 %v1204
        %v1206 = vand.u32 %v635, 4294901760
        %1207 = vmatprep.subr.mxu0 %v1206
        %v1208 = vand.u32 %v634, 4294901760
        %1209 = vmatpush1.msra.mxu0 %v1208
        %v1210 = vand.u32 %v637, 4294901760
        %1211 = vmatprep.subr.mxu0 %v1210
        %v1212 = vand.u32 %v636, 4294901760
        %1213 = vmatpush1.msra.mxu0 %v1212
        %v1214 = vand.u32 %v639, 4294901760
        %1215 = vmatprep.subr.mxu0 %v1214
        %v1216 = vand.u32 %v638, 4294901760
        %1217 = vmatpush1.msra.mxu0 %v1216
        %v1218 = vand.u32 %v641, 4294901760
        %1219 = vmatprep.subr.mxu0 %v1218
        %v1220 = vand.u32 %v640, 4294901760
        %1221 = vmatpush1.msra.mxu0 %v1220
        %v1222 = vand.u32 %v643, 4294901760
        %1223 = vmatprep.subr.mxu0 %v1222
        %v1224 = vand.u32 %v642, 4294901760
        %1225 = vmatpush1.msra.mxu0 %v1224
        %v1226 = vand.u32 %v645, 4294901760
        %1227 = vmatprep.subr.mxu0 %v1226
        %v1228 = vand.u32 %v644, 4294901760
        %1229 = vmatpush1.msra.mxu0 %v1228
        %v1230 = vand.u32 %v647, 4294901760
        %1231 = vmatprep.subr.mxu0 %v1230
        %v1232 = vand.u32 %v646, 4294901760
        %1233 = vmatpush1.msra.mxu0 %v1232
        %v1234 = vand.u32 %v649, 4294901760
        %1235 = vmatprep.subr.mxu0 %v1234
        %v1236 = vand.u32 %v648, 4294901760
        %1237 = vmatpush1.msra.mxu0 %v1236
        %v1238 = vand.u32 %v651, 4294901760
        %1239 = vmatprep.subr.mxu0 %v1238
        %v1240 = vand.u32 %v650, 4294901760
        %1241 = vmatpush1.msra.mxu0 %v1240
        %v1242 = vand.u32 %v653, 4294901760
        %1243 = vmatprep.subr.mxu0 %v1242
        %v1244 = vand.u32 %v652, 4294901760
        %1245 = vmatpush1.msra.mxu0 %v1244
        %v1246 = vand.u32 %v655, 4294901760
        %1247 = vmatprep.subr.mxu0 %v1246
        %v1248 = vand.u32 %v654, 4294901760
        %1249 = vmatpush1.msra.mxu0 %v1248
        %v1250 = vand.u32 %v657, 4294901760
        %1251 = vmatprep.subr.mxu0 %v1250
        %v1252 = vand.u32 %v656, 4294901760
        %1253 = vmatpush1.msra.mxu0 %v1252
        %v1254 = vand.u32 %v659, 4294901760
        %1255 = vmatprep.subr.mxu0 %v1254
        %v1256 = vand.u32 %v658, 4294901760
        %1257 = vmatpush1.msra.mxu0 %v1256
        %v1258 = vand.u32 %v661, 4294901760
        %1259 = vmatprep.subr.mxu0 %v1258
        %v1260 = vand.u32 %v660, 4294901760
        %1261 = vmatpush1.msra.mxu0 %v1260
        %1262 = vmatprep.subr.mxu0 0.0
        %1263 = vmatpush1.msra.mxu0 0.0
        %1264 = vmatprep.subr.mxu0 0.0
        %1265 = vmatpush1.msra.mxu0 0.0
        %1266 = vmatprep.subr.mxu0 0.0
        %1267 = vmatpush1.msra.mxu0 0.0
        %1268 = vmatprep.subr.mxu0 0.0
        %1269 = vmatpush1.msra.mxu0 0.0
        %1270 = vmatprep.subr.mxu0 0.0
        %1271 = vmatpush1.msra.mxu0 0.0
        %1272 = vmatprep.subr.mxu0 0.0
        %1273 = vmatpush1.msra.mxu0 0.0
        %1274 = vmatprep.subr.mxu0 0.0
        %1275 = vmatpush1.msra.mxu0 0.0
        %1276 = vmatprep.subr.mxu0 0.0
        %1277 = vmatpush1.msra.mxu0 0.0
        %1278 = vmatprep.subr.mxu0 0.0
        %1279 = vmatpush1.msra.mxu0 0.0
        %1280 = vmatprep.subr.mxu0 0.0
        %1281 = vmatpush1.msra.mxu0 0.0
        %1282 = vmatprep.subr.mxu0 0.0
        %1283 = vmatpush1.msra.mxu0 0.0
        %1284 = vmatprep.subr.mxu0 0.0
        %1285 = vmatpush1.msra.mxu0 0.0
        %1286 = vmatprep.subr.mxu0 0.0
        %1287 = vmatpush1.msra.mxu0 0.0
        %1288 = vmatprep.subr.mxu0 0.0
        %1289 = vmatpush1.msra.mxu0 0.0
        %v1290 = vand.u32 %v671, 4294901760
        %v1291 = vsub.f32 %v671, %v1290
        %v1292 = vand.u32 %v1291, 4294901760
        %1293 = vmatprep.mubr.f32.mxu0 %v1292
        %v1294 = vand.u32 %v625, 4294901760
        %v1295 = vsub.f32 %v625, %v1294
        %v1296 = vand.u32 %v1295, 4294901760
        %1297 = vmatmul.mubr.f32.gmra.mrb[0].mxu0 %v1296
        %v1298 = vpop.f32.mrb[0].mxu0
        %v1299 = vadd.f32 %v1186, %v1298
        %v1300 = vpop.f32.mrb[0].mxu0
        %v1301 = vadd.f32 %v1188, %v1300
        %1302 = vdwg.mxu0
        %v1303 = vand.u32 %v627, 4294901760
        %v1304 = vsub.f32 %v627, %v1303
        %v1305 = vand.u32 %v1304, 4294901760
        %1306 = vmatprep.subr.mxu0 %v1305
        %v1307 = vand.u32 %v626, 4294901760
        %v1308 = vsub.f32 %v626, %v1307
        %v1309 = vand.u32 %v1308, 4294901760
        %1310 = vmatpush1.msra.mxu0 %v1309
        %v1311 = vand.u32 %v629, 4294901760
        %v1312 = vsub.f32 %v629, %v1311
        %v1313 = vand.u32 %v1312, 4294901760
        %1314 = vmatprep.subr.mxu0 %v1313
        %v1315 = vand.u32 %v628, 4294901760
        %v1316 = vsub.f32 %v628, %v1315
        %v1317 = vand.u32 %v1316, 4294901760
        %1318 = vmatpush1.msra.mxu0 %v1317
        %v1319 = vand.u32 %v631, 4294901760
        %v1320 = vsub.f32 %v631, %v1319
        %v1321 = vand.u32 %v1320, 4294901760
        %1322 = vmatprep.subr.mxu0 %v1321
        %v1323 = vand.u32 %v630, 4294901760
        %v1324 = vsub.f32 %v630, %v1323
        %v1325 = vand.u32 %v1324, 4294901760
        %1326 = vmatpush1.msra.mxu0 %v1325
        %v1327 = vand.u32 %v633, 4294901760
        %v1328 = vsub.f32 %v633, %v1327
        %v1329 = vand.u32 %v1328, 4294901760
        %1330 = vmatprep.subr.mxu0 %v1329
        %v1331 = vand.u32 %v632, 4294901760
        %v1332 = vsub.f32 %v632, %v1331
        %v1333 = vand.u32 %v1332, 4294901760
        %1334 = vmatpush1.msra.mxu0 %v1333
        %v1335 = vand.u32 %v635, 4294901760
        %v1336 = vsub.f32 %v635, %v1335
        %v1337 = vand.u32 %v1336, 4294901760
        %1338 = vmatprep.subr.mxu0 %v1337
        %v1339 = vand.u32 %v634, 4294901760
        %v1340 = vsub.f32 %v634, %v1339
        %v1341 = vand.u32 %v1340, 4294901760
        %1342 = vmatpush1.msra.mxu0 %v1341
        %v1343 = vand.u32 %v637, 4294901760
        %v1344 = vsub.f32 %v637, %v1343
        %v1345 = vand.u32 %v1344, 4294901760
        %1346 = vmatprep.subr.mxu0 %v1345
        %v1347 = vand.u32 %v636, 4294901760
        %v1348 = vsub.f32 %v636, %v1347
        %v1349 = vand.u32 %v1348, 4294901760
        %1350 = vmatpush1.msra.mxu0 %v1349
        %v1351 = vand.u32 %v639, 4294901760
        %v1352 = vsub.f32 %v639, %v1351
        %v1353 = vand.u32 %v1352, 4294901760
        %1354 = vmatprep.subr.mxu0 %v1353
        %v1355 = vand.u32 %v638, 4294901760
        %v1356 = vsub.f32 %v638, %v1355
        %v1357 = vand.u32 %v1356, 4294901760
        %1358 = vmatpush1.msra.mxu0 %v1357
        %v1359 = vand.u32 %v641, 4294901760
        %v1360 = vsub.f32 %v641, %v1359
        %v1361 = vand.u32 %v1360, 4294901760
        %1362 = vmatprep.subr.mxu0 %v1361
        %v1363 = vand.u32 %v640, 4294901760
        %v1364 = vsub.f32 %v640, %v1363
        %v1365 = vand.u32 %v1364, 4294901760
        %1366 = vmatpush1.msra.mxu0 %v1365
        %v1367 = vand.u32 %v643, 4294901760
        %v1368 = vsub.f32 %v643, %v1367
        %v1369 = vand.u32 %v1368, 4294901760
        %1370 = vmatprep.subr.mxu0 %v1369
        %v1371 = vand.u32 %v642, 4294901760
        %v1372 = vsub.f32 %v642, %v1371
        %v1373 = vand.u32 %v1372, 4294901760
        %1374 = vmatpush1.msra.mxu0 %v1373
        %v1375 = vand.u32 %v645, 4294901760
        %v1376 = vsub.f32 %v645, %v1375
        %v1377 = vand.u32 %v1376, 4294901760
        %1378 = vmatprep.subr.mxu0 %v1377
        %v1379 = vand.u32 %v644, 4294901760
        %v1380 = vsub.f32 %v644, %v1379
        %v1381 = vand.u32 %v1380, 4294901760
        %1382 = vmatpush1.msra.mxu0 %v1381
        %v1383 = vand.u32 %v647, 4294901760
        %v1384 = vsub.f32 %v647, %v1383
        %v1385 = vand.u32 %v1384, 4294901760
        %1386 = vmatprep.subr.mxu0 %v1385
        %v1387 = vand.u32 %v646, 4294901760
        %v1388 = vsub.f32 %v646, %v1387
        %v1389 = vand.u32 %v1388, 4294901760
        %1390 = vmatpush1.msra.mxu0 %v1389
        %v1391 = vand.u32 %v649, 4294901760
        %v1392 = vsub.f32 %v649, %v1391
        %v1393 = vand.u32 %v1392, 4294901760
        %1394 = vmatprep.subr.mxu0 %v1393
        %v1395 = vand.u32 %v648, 4294901760
        %v1396 = vsub.f32 %v648, %v1395
        %v1397 = vand.u32 %v1396, 4294901760
        %1398 = vmatpush1.msra.mxu0 %v1397
        %v1399 = vand.u32 %v651, 4294901760
        %v1400 = vsub.f32 %v651, %v1399
        %v1401 = vand.u32 %v1400, 4294901760
        %1402 = vmatprep.subr.mxu0 %v1401
        %v1403 = vand.u32 %v650, 4294901760
        %v1404 = vsub.f32 %v650, %v1403
        %v1405 = vand.u32 %v1404, 4294901760
        %1406 = vmatpush1.msra.mxu0 %v1405
        %v1407 = vand.u32 %v653, 4294901760
        %v1408 = vsub.f32 %v653, %v1407
        %v1409 = vand.u32 %v1408, 4294901760
        %1410 = vmatprep.subr.mxu0 %v1409
        %v1411 = vand.u32 %v652, 4294901760
        %v1412 = vsub.f32 %v652, %v1411
        %v1413 = vand.u32 %v1412, 4294901760
        %1414 = vmatpush1.msra.mxu0 %v1413
        %v1415 = vand.u32 %v655, 4294901760
        %v1416 = vsub.f32 %v655, %v1415
        %v1417 = vand.u32 %v1416, 4294901760
        %1418 = vmatprep.subr.mxu0 %v1417
        %v1419 = vand.u32 %v654, 4294901760
        %v1420 = vsub.f32 %v654, %v1419
        %v1421 = vand.u32 %v1420, 4294901760
        %1422 = vmatpush1.msra.mxu0 %v1421
        %v1423 = vand.u32 %v657, 4294901760
        %v1424 = vsub.f32 %v657, %v1423
        %v1425 = vand.u32 %v1424, 4294901760
        %1426 = vmatprep.subr.mxu0 %v1425
        %v1427 = vand.u32 %v656, 4294901760
        %v1428 = vsub.f32 %v656, %v1427
        %v1429 = vand.u32 %v1428, 4294901760
        %1430 = vmatpush1.msra.mxu0 %v1429
        %v1431 = vand.u32 %v659, 4294901760
        %v1432 = vsub.f32 %v659, %v1431
        %v1433 = vand.u32 %v1432, 4294901760
        %1434 = vmatprep.subr.mxu0 %v1433
        %v1435 = vand.u32 %v658, 4294901760
        %v1436 = vsub.f32 %v658, %v1435
        %v1437 = vand.u32 %v1436, 4294901760
        %1438 = vmatpush1.msra.mxu0 %v1437
        %v1439 = vand.u32 %v661, 4294901760
        %v1440 = vsub.f32 %v661, %v1439
        %v1441 = vand.u32 %v1440, 4294901760
        %1442 = vmatprep.subr.mxu0 %v1441
        %v1443 = vand.u32 %v660, 4294901760
        %v1444 = vsub.f32 %v660, %v1443
        %v1445 = vand.u32 %v1444, 4294901760
        %1446 = vmatpush1.msra.mxu0 %v1445
        %1447 = vmatprep.subr.mxu0 0.0
        %1448 = vmatpush1.msra.mxu0 0.0
        %1449 = vmatprep.subr.mxu0 0.0
        %1450 = vmatpush1.msra.mxu0 0.0
        %1451 = vmatprep.subr.mxu0 0.0
        %1452 = vmatpush1.msra.mxu0 0.0
        %1453 = vmatprep.subr.mxu0 0.0
        %1454 = vmatpush1.msra.mxu0 0.0
        %1455 = vmatprep.subr.mxu0 0.0
        %1456 = vmatpush1.msra.mxu0 0.0
        %1457 = vmatprep.subr.mxu0 0.0
        %1458 = vmatpush1.msra.mxu0 0.0
        %1459 = vmatprep.subr.mxu0 0.0
        %1460 = vmatpush1.msra.mxu0 0.0
        %1461 = vmatprep.subr.mxu0 0.0
        %1462 = vmatpush1.msra.mxu0 0.0
        %1463 = vmatprep.subr.mxu0 0.0
        %1464 = vmatpush1.msra.mxu0 0.0
        %1465 = vmatprep.subr.mxu0 0.0
        %1466 = vmatpush1.msra.mxu0 0.0
        %1467 = vmatprep.subr.mxu0 0.0
        %1468 = vmatpush1.msra.mxu0 0.0
        %1469 = vmatprep.subr.mxu0 0.0
        %1470 = vmatpush1.msra.mxu0 0.0
        %1471 = vmatprep.subr.mxu0 0.0
        %1472 = vmatpush1.msra.mxu0 0.0
        %1473 = vmatprep.subr.mxu0 0.0
        %1474 = vmatpush1.msra.mxu0 0.0
        %v1475 = vand.u32 %v671, 4294901760
        %1476 = vmatprep.mubr.f32.mxu0 %v1475
        %v1477 = vand.u32 %v625, 4294901760
        %1478 = vmatmul.mubr.f32.gmra.mrb[0].mxu0 %v1477
        %v1479 = vpop.f32.mrb[0].mxu0
        %v1480 = vadd.f32 %v1299, %v1479
        %v1481 = vpop.f32.mrb[0].mxu0
        %v1482 = vadd.f32 %v1301, %v1481
        %1483 = vdwg.mxu0
        %v1484 = vand.u32 %v627, 4294901760
        %1485 = vmatprep.subr.mxu0 %v1484
        %v1486 = vand.u32 %v626, 4294901760
        %1487 = vmatpush1.msra.mxu0 %v1486
        %v1488 = vand.u32 %v629, 4294901760
        %1489 = vmatprep.subr.mxu0 %v1488
        %v1490 = vand.u32 %v628, 4294901760
        %1491 = vmatpush1.msra.mxu0 %v1490
        %v1492 = vand.u32 %v631, 4294901760
        %1493 = vmatprep.subr.mxu0 %v1492
        %v1494 = vand.u32 %v630, 4294901760
        %1495 = vmatpush1.msra.mxu0 %v1494
        %v1496 = vand.u32 %v633, 4294901760
        %1497 = vmatprep.subr.mxu0 %v1496
        %v1498 = vand.u32 %v632, 4294901760
        %1499 = vmatpush1.msra.mxu0 %v1498
        %v1500 = vand.u32 %v635, 4294901760
        %1501 = vmatprep.subr.mxu0 %v1500
        %v1502 = vand.u32 %v634, 4294901760
        %1503 = vmatpush1.msra.mxu0 %v1502
        %v1504 = vand.u32 %v637, 4294901760
        %1505 = vmatprep.subr.mxu0 %v1504
        %v1506 = vand.u32 %v636, 4294901760
        %1507 = vmatpush1.msra.mxu0 %v1506
        %v1508 = vand.u32 %v639, 4294901760
        %1509 = vmatprep.subr.mxu0 %v1508
        %v1510 = vand.u32 %v638, 4294901760
        %1511 = vmatpush1.msra.mxu0 %v1510
        %v1512 = vand.u32 %v641, 4294901760
        %1513 = vmatprep.subr.mxu0 %v1512
        %v1514 = vand.u32 %v640, 4294901760
        %1515 = vmatpush1.msra.mxu0 %v1514
        %v1516 = vand.u32 %v643, 4294901760
        %1517 = vmatprep.subr.mxu0 %v1516
        %v1518 = vand.u32 %v642, 4294901760
        %1519 = vmatpush1.msra.mxu0 %v1518
        %v1520 = vand.u32 %v645, 4294901760
        %1521 = vmatprep.subr.mxu0 %v1520
        %v1522 = vand.u32 %v644, 4294901760
        %1523 = vmatpush1.msra.mxu0 %v1522
        %v1524 = vand.u32 %v647, 4294901760
        %1525 = vmatprep.subr.mxu0 %v1524
        %v1526 = vand.u32 %v646, 4294901760
        %1527 = vmatpush1.msra.mxu0 %v1526
        %v1528 = vand.u32 %v649, 4294901760
        %1529 = vmatprep.subr.mxu0 %v1528
        %v1530 = vand.u32 %v648, 4294901760
        %1531 = vmatpush1.msra.mxu0 %v1530
        %v1532 = vand.u32 %v651, 4294901760
        %1533 = vmatprep.subr.mxu0 %v1532
        %v1534 = vand.u32 %v650, 4294901760
        %1535 = vmatpush1.msra.mxu0 %v1534
        %v1536 = vand.u32 %v653, 4294901760
        %1537 = vmatprep.subr.mxu0 %v1536
        %v1538 = vand.u32 %v652, 4294901760
        %1539 = vmatpush1.msra.mxu0 %v1538
        %v1540 = vand.u32 %v655, 4294901760
        %1541 = vmatprep.subr.mxu0 %v1540
        %v1542 = vand.u32 %v654, 4294901760
        %1543 = vmatpush1.msra.mxu0 %v1542
        %v1544 = vand.u32 %v657, 4294901760
        %1545 = vmatprep.subr.mxu0 %v1544
        %v1546 = vand.u32 %v656, 4294901760
        %1547 = vmatpush1.msra.mxu0 %v1546
        %v1548 = vand.u32 %v659, 4294901760
        %1549 = vmatprep.subr.mxu0 %v1548
        %v1550 = vand.u32 %v658, 4294901760
        %1551 = vmatpush1.msra.mxu0 %v1550
        %v1552 = vand.u32 %v661, 4294901760
        %1553 = vmatprep.subr.mxu0 %v1552
        %v1554 = vand.u32 %v660, 4294901760
        %1555 = vmatpush1.msra.mxu0 %v1554
        %1556 = vmatprep.subr.mxu0 0.0
        %1557 = vmatpush1.msra.mxu0 0.0
        %1558 = vmatprep.subr.mxu0 0.0
        %1559 = vmatpush1.msra.mxu0 0.0
        %1560 = vmatprep.subr.mxu0 0.0
        %1561 = vmatpush1.msra.mxu0 0.0
        %1562 = vmatprep.subr.mxu0 0.0
        %1563 = vmatpush1.msra.mxu0 0.0
        %1564 = vmatprep.subr.mxu0 0.0
        %1565 = vmatpush1.msra.mxu0 0.0
        %1566 = vmatprep.subr.mxu0 0.0
        %1567 = vmatpush1.msra.mxu0 0.0
        %1568 = vmatprep.subr.mxu0 0.0
        %1569 = vmatpush1.msra.mxu0 0.0
        %1570 = vmatprep.subr.mxu0 0.0
        %1571 = vmatpush1.msra.mxu0 0.0
        %1572 = vmatprep.subr.mxu0 0.0
        %1573 = vmatpush1.msra.mxu0 0.0
        %1574 = vmatprep.subr.mxu0 0.0
        %1575 = vmatpush1.msra.mxu0 0.0
        %1576 = vmatprep.subr.mxu0 0.0
        %1577 = vmatpush1.msra.mxu0 0.0
        %1578 = vmatprep.subr.mxu0 0.0
        %1579 = vmatpush1.msra.mxu0 0.0
        %1580 = vmatprep.subr.mxu0 0.0
        %1581 = vmatpush1.msra.mxu0 0.0
        %1582 = vmatprep.subr.mxu0 0.0
        %1583 = vmatpush1.msra.mxu0 0.0
        %v1584 = vand.u32 %v671, 4294901760
        %1585 = vmatprep.mubr.f32.mxu0 %v1584
        %v1586 = vand.u32 %v625, 4294901760
        %1587 = vmatmul.mubr.f32.gmra.mrb[0].mxu0 %v1586
        %v1588 = vpop.f32.mrb[0].mxu0
        %v1589 = vadd.f32 %v1480, %v1588
        %v1590 = vpop.f32.mrb[0].mxu0
        %v1591 = vadd.f32 %v1482, %v1590
        %1592 = vdwg.mxu0
        %v1593 = vmax.f32 %v1589, 0.0
        %v1594 = vmax.f32 %v1591, 0.0
        %v1597 = vunpack.c.l.s4 1966171168
        %v1598 = vunpack.c.0.s8 %v1597
        %v1599 = vlaneseq
        %v1600 = vshrl.u32 %v1599, 7
        %v1601 = vsub.s32 %v1598, %v1600
        %v1602 = vrot.slane %v1593, %v1601
        %v1603 = vcombine.high %v1602, %v1602
        %v1605 = vunpack.c.l.s4 1966171168
        %v1606 = vunpack.c.0.s8 %v1605
        %v1607 = vlaneseq
        %v1608 = vshrl.u32 %v1607, 7
        %v1609 = vsub.s32 %v1606, %v1608
        %v1610 = vrot.slane %v1602, %v1609
        %v1612 = vunpack.c.l.s4 1966171168
        %v1613 = vunpack.c.0.s8 %v1612
        %v1614 = vlaneseq
        %v1615 = vshrl.u32 %v1614, 7
        %v1616 = vsub.s32 %v1613, %v1615
        %v1617 = vrot.slane %v1603, %v1616
        %v1618 = vcombine.high %v1610, %v1610
        %v1619 = vcombine.high %v1617, %v1617
        %vm1624 = vcmask 122880
        %1625 = vst.msk [vmem:[#allocation3] sm:$0x1] %vm1624, %v1610
        %1626 = vst.msk [vmem:[#allocation3 + $0x10] sm:$0x1] %vm1624, %v1617
        %1627 = vst.msk [vmem:[#allocation3 + $0x20] sm:$0x1] %vm1624, %v1618
        %1628 = vst.msk [vmem:[#allocation3 + $0x30] sm:$0x1] %vm1624, %v1619
        %v1629 = vlaneseq
        %v1630 = vshrl.u32 %v1629, 7
        %v1631 = vsub.s32 0, %v1630
        %v1632 = vrot.slane %v1610, %v1631
        %v1633 = vlaneseq
        %v1634 = vshrl.u32 %v1633, 7
        %v1635 = vsub.s32 0, %v1634
        %v1636 = vrot.slane %v1617, %v1635
        %v1637 = vlaneseq
        %v1638 = vshrl.u32 %v1637, 7
        %v1639 = vsub.s32 0, %v1638
        %v1640 = vrot.slane %v1618, %v1639
        %v1641 = vlaneseq
        %v1642 = vshrl.u32 %v1641, 7
        %v1643 = vsub.s32 0, %v1642
        %v1644 = vrot.slane %v1619, %v1643
        %1645 = vrot.lane.b32.xlu0 %v1632, 112
        %v1646 = vpop.permute.xlu0 %1645
        %1647 = vrot.lane.b32.xlu0 %v1636, 112
        %v1648 = vpop.permute.xlu0 %1647
        %1649 = vrot.lane.b32.xlu0 %v1640, 112
        %v1650 = vpop.permute.xlu0 %1649
        %1651 = vrot.lane.b32.xlu0 %v1644, 112
        %v1652 = vpop.permute.xlu0 %1651
        %1657 = vst.msk [vmem:[#allocation3 + $0x1] sm:$0x1] %vm1624, %v1646
        %1658 = vst.msk [vmem:[#allocation3 + $0x11] sm:$0x1] %vm1624, %v1648
        %1659 = vst.msk [vmem:[#allocation3 + $0x21] sm:$0x1] %vm1624, %v1650
        %1660 = vst.msk [vmem:[#allocation3 + $0x31] sm:$0x1] %vm1624, %v1652
        %1661 = vrot.lane.b32.xlu0 %v1632, 96
        %v1662 = vpop.permute.xlu0 %1661
        %1663 = vrot.lane.b32.xlu0 %v1636, 96
        %v1664 = vpop.permute.xlu0 %1663
        %1665 = vrot.lane.b32.xlu0 %v1640, 96
        %v1666 = vpop.permute.xlu0 %1665
        %1667 = vrot.lane.b32.xlu0 %v1644, 96
        %v1668 = vpop.permute.xlu0 %1667
        %1673 = vst.msk [vmem:[#allocation3 + $0x2] sm:$0x1] %vm1624, %v1662
        %1674 = vst.msk [vmem:[#allocation3 + $0x12] sm:$0x1] %vm1624, %v1664
        %1675 = vst.msk [vmem:[#allocation3 + $0x22] sm:$0x1] %vm1624, %v1666
        %1676 = vst.msk [vmem:[#allocation3 + $0x32] sm:$0x1] %vm1624, %v1668
        %1677 = vrot.lane.b32.xlu0 %v1632, 80
        %v1678 = vpop.permute.xlu0 %1677
        %1679 = vrot.lane.b32.xlu0 %v1636, 80
        %v1680 = vpop.permute.xlu0 %1679
        %1681 = vrot.lane.b32.xlu0 %v1640, 80
        %v1682 = vpop.permute.xlu0 %1681
        %1683 = vrot.lane.b32.xlu0 %v1644, 80
        %v1684 = vpop.permute.xlu0 %1683
        %1689 = vst.msk [vmem:[#allocation3 + $0x3] sm:$0x1] %vm1624, %v1678
        %1690 = vst.msk [vmem:[#allocation3 + $0x13] sm:$0x1] %vm1624, %v1680
        %1691 = vst.msk [vmem:[#allocation3 + $0x23] sm:$0x1] %vm1624, %v1682
        %1692 = vst.msk [vmem:[#allocation3 + $0x33] sm:$0x1] %vm1624, %v1684
        %1693 = vrot.lane.b32.xlu0 %v1632, 64
        %v1694 = vpop.permute.xlu0 %1693
        %1695 = vrot.lane.b32.xlu0 %v1636, 64
        %v1696 = vpop.permute.xlu0 %1695
        %1697 = vrot.lane.b32.xlu0 %v1640, 64
        %v1698 = vpop.permute.xlu0 %1697
        %1699 = vrot.lane.b32.xlu0 %v1644, 64
        %v1700 = vpop.permute.xlu0 %1699
        %1705 = vst.msk [vmem:[#allocation3 + $0x4] sm:$0x1] %vm1624, %v1694
        %1706 = vst.msk [vmem:[#allocation3 + $0x14] sm:$0x1] %vm1624, %v1696
        %1707 = vst.msk [vmem:[#allocation3 + $0x24] sm:$0x1] %vm1624, %v1698
        %1708 = vst.msk [vmem:[#allocation3 + $0x34] sm:$0x1] %vm1624, %v1700
        %1709 = vrot.lane.b32.xlu0 %v1632, 48
        %v1710 = vpop.permute.xlu0 %1709
        %1711 = vrot.lane.b32.xlu0 %v1636, 48
        %v1712 = vpop.permute.xlu0 %1711
        %1713 = vrot.lane.b32.xlu0 %v1640, 48
        %v1714 = vpop.permute.xlu0 %1713
        %1715 = vrot.lane.b32.xlu0 %v1644, 48
        %v1716 = vpop.permute.xlu0 %1715
        %1721 = vst.msk [vmem:[#allocation3 + $0x5] sm:$0x1] %vm1624, %v1710
        %1722 = vst.msk [vmem:[#allocation3 + $0x15] sm:$0x1] %vm1624, %v1712
        %1723 = vst.msk [vmem:[#allocation3 + $0x25] sm:$0x1] %vm1624, %v1714
        %1724 = vst.msk [vmem:[#allocation3 + $0x35] sm:$0x1] %vm1624, %v1716
        %1725 = vrot.lane.b32.xlu0 %v1632, 32
        %v1726 = vpop.permute.xlu0 %1725
        %1727 = vrot.lane.b32.xlu0 %v1636, 32
        %v1728 = vpop.permute.xlu0 %1727
        %1729 = vrot.lane.b32.xlu0 %v1640, 32
        %v1730 = vpop.permute.xlu0 %1729
        %1731 = vrot.lane.b32.xlu0 %v1644, 32
        %v1732 = vpop.permute.xlu0 %1731
        %1737 = vst.msk [vmem:[#allocation3 + $0x6] sm:$0x1] %vm1624, %v1726
        %1738 = vst.msk [vmem:[#allocation3 + $0x16] sm:$0x1] %vm1624, %v1728
        %1739 = vst.msk [vmem:[#allocation3 + $0x26] sm:$0x1] %vm1624, %v1730
        %1740 = vst.msk [vmem:[#allocation3 + $0x36] sm:$0x1] %vm1624, %v1732
        %1741 = vrot.lane.b32.xlu0 %v1632, 16
        %v1742 = vpop.permute.xlu0 %1741
        %1743 = vrot.lane.b32.xlu0 %v1636, 16
        %v1744 = vpop.permute.xlu0 %1743
        %1745 = vrot.lane.b32.xlu0 %v1640, 16
        %v1746 = vpop.permute.xlu0 %1745
        %1747 = vrot.lane.b32.xlu0 %v1644, 16
        %v1748 = vpop.permute.xlu0 %1747
        %1753 = vst.msk [vmem:[#allocation3 + $0x7] sm:$0x1] %vm1624, %v1742
        %1754 = vst.msk [vmem:[#allocation3 + $0x17] sm:$0x1] %vm1624, %v1744
        %1755 = vst.msk [vmem:[#allocation3 + $0x27] sm:$0x1] %vm1624, %v1746
        %1756 = vst.msk [vmem:[#allocation3 + $0x37] sm:$0x1] %vm1624, %v1748
        %v1759 = vunpack.c.l.s4 1966171168
        %v1760 = vunpack.c.0.s8 %v1759
        %v1761 = vlaneseq
        %v1762 = vshrl.u32 %v1761, 7
        %v1763 = vsub.s32 %v1760, %v1762
        %v1764 = vrot.slane %v1594, %v1763
        %v1765 = vcombine.high %v1764, %v1764
        %v1767 = vunpack.c.l.s4 1966171168
        %v1768 = vunpack.c.0.s8 %v1767
        %v1769 = vlaneseq
        %v1770 = vshrl.u32 %v1769, 7
        %v1771 = vsub.s32 %v1768, %v1770
        %v1772 = vrot.slane %v1764, %v1771
        %v1774 = vunpack.c.l.s4 1966171168
        %v1775 = vunpack.c.0.s8 %v1774
        %v1776 = vlaneseq
        %v1777 = vshrl.u32 %v1776, 7
        %v1778 = vsub.s32 %v1775, %v1777
        %v1779 = vrot.slane %v1765, %v1778
        %v1780 = vcombine.high %v1772, %v1772
        %v1781 = vcombine.high %v1779, %v1779
        %1786 = vst.msk [vmem:[#allocation3 + $0x8] sm:$0x1] %vm1624, %v1772
        %1787 = vst.msk [vmem:[#allocation3 + $0x18] sm:$0x1] %vm1624, %v1779
        %1788 = vst.msk [vmem:[#allocation3 + $0x28] sm:$0x1] %vm1624, %v1780
        %1789 = vst.msk [vmem:[#allocation3 + $0x38] sm:$0x1] %vm1624, %v1781
        %v1790 = vlaneseq
        %v1791 = vshrl.u32 %v1790, 7
        %v1792 = vsub.s32 0, %v1791
        %v1793 = vrot.slane %v1772, %v1792
        %v1794 = vlaneseq
        %v1795 = vshrl.u32 %v1794, 7
        %v1796 = vsub.s32 0, %v1795
        %v1797 = vrot.slane %v1779, %v1796
        %v1798 = vlaneseq
        %v1799 = vshrl.u32 %v1798, 7
        %v1800 = vsub.s32 0, %v1799
        %v1801 = vrot.slane %v1780, %v1800
        %v1802 = vlaneseq
        %v1803 = vshrl.u32 %v1802, 7
        %v1804 = vsub.s32 0, %v1803
        %v1805 = vrot.slane %v1781, %v1804
        %1806 = vrot.lane.b32.xlu0 %v1793, 112
        %v1807 = vpop.permute.xlu0 %1806
        %1808 = vrot.lane.b32.xlu0 %v1797, 112
        %v1809 = vpop.permute.xlu0 %1808
        %1810 = vrot.lane.b32.xlu0 %v1801, 112
        %v1811 = vpop.permute.xlu0 %1810
        %1812 = vrot.lane.b32.xlu0 %v1805, 112
        %v1813 = vpop.permute.xlu0 %1812
        %1818 = vst.msk [vmem:[#allocation3 + $0x9] sm:$0x1] %vm1624, %v1807
        %1819 = vst.msk [vmem:[#allocation3 + $0x19] sm:$0x1] %vm1624, %v1809
        %1820 = vst.msk [vmem:[#allocation3 + $0x29] sm:$0x1] %vm1624, %v1811
        %1821 = vst.msk [vmem:[#allocation3 + $0x39] sm:$0x1] %vm1624, %v1813
        %1822 = vrot.lane.b32.xlu0 %v1793, 96
        %v1823 = vpop.permute.xlu0 %1822
        %1824 = vrot.lane.b32.xlu0 %v1797, 96
        %v1825 = vpop.permute.xlu0 %1824
        %1826 = vrot.lane.b32.xlu0 %v1801, 96
        %v1827 = vpop.permute.xlu0 %1826
        %1828 = vrot.lane.b32.xlu0 %v1805, 96
        %v1829 = vpop.permute.xlu0 %1828
        %1834 = vst.msk [vmem:[#allocation3 + $0xa] sm:$0x1] %vm1624, %v1823
        %1835 = vst.msk [vmem:[#allocation3 + $0x1a] sm:$0x1] %vm1624, %v1825
        %1836 = vst.msk [vmem:[#allocation3 + $0x2a] sm:$0x1] %vm1624, %v1827
        %1837 = vst.msk [vmem:[#allocation3 + $0x3a] sm:$0x1] %vm1624, %v1829
        %1838 = vrot.lane.b32.xlu0 %v1793, 80
        %v1839 = vpop.permute.xlu0 %1838
        %1840 = vrot.lane.b32.xlu0 %v1797, 80
        %v1841 = vpop.permute.xlu0 %1840
        %1842 = vrot.lane.b32.xlu0 %v1801, 80
        %v1843 = vpop.permute.xlu0 %1842
        %1844 = vrot.lane.b32.xlu0 %v1805, 80
        %v1845 = vpop.permute.xlu0 %1844
        %1850 = vst.msk [vmem:[#allocation3 + $0xb] sm:$0x1] %vm1624, %v1839
        %1851 = vst.msk [vmem:[#allocation3 + $0x1b] sm:$0x1] %vm1624, %v1841
        %1852 = vst.msk [vmem:[#allocation3 + $0x2b] sm:$0x1] %vm1624, %v1843
        %1853 = vst.msk [vmem:[#allocation3 + $0x3b] sm:$0x1] %vm1624, %v1845
        %1854 = vrot.lane.b32.xlu0 %v1793, 64
        %v1855 = vpop.permute.xlu0 %1854
        %1856 = vrot.lane.b32.xlu0 %v1797, 64
        %v1857 = vpop.permute.xlu0 %1856
        %1858 = vrot.lane.b32.xlu0 %v1801, 64
        %v1859 = vpop.permute.xlu0 %1858
        %1860 = vrot.lane.b32.xlu0 %v1805, 64
        %v1861 = vpop.permute.xlu0 %1860
        %1866 = vst.msk [vmem:[#allocation3 + $0xc] sm:$0x1] %vm1624, %v1855
        %1867 = vst.msk [vmem:[#allocation3 + $0x1c] sm:$0x1] %vm1624, %v1857
        %1868 = vst.msk [vmem:[#allocation3 + $0x2c] sm:$0x1] %vm1624, %v1859
        %1869 = vst.msk [vmem:[#allocation3 + $0x3c] sm:$0x1] %vm1624, %v1861
        %1870 = vrot.lane.b32.xlu0 %v1793, 48
        %v1871 = vpop.permute.xlu0 %1870
        %1872 = vrot.lane.b32.xlu0 %v1797, 48
        %v1873 = vpop.permute.xlu0 %1872
        %1874 = vrot.lane.b32.xlu0 %v1801, 48
        %v1875 = vpop.permute.xlu0 %1874
        %1876 = vrot.lane.b32.xlu0 %v1805, 48
        %v1877 = vpop.permute.xlu0 %1876
        %1882 = vst.msk [vmem:[#allocation3 + $0xd] sm:$0x1] %vm1624, %v1871
        %1883 = vst.msk [vmem:[#allocation3 + $0x1d] sm:$0x1] %vm1624, %v1873
        %1884 = vst.msk [vmem:[#allocation3 + $0x2d] sm:$0x1] %vm1624, %v1875
        %1885 = vst.msk [vmem:[#allocation3 + $0x3d] sm:$0x1] %vm1624, %v1877
        %1886 = vrot.lane.b32.xlu0 %v1793, 32
        %v1887 = vpop.permute.xlu0 %1886
        %1888 = vrot.lane.b32.xlu0 %v1797, 32
        %v1889 = vpop.permute.xlu0 %1888
        %1890 = vrot.lane.b32.xlu0 %v1801, 32
        %v1891 = vpop.permute.xlu0 %1890
        %1892 = vrot.lane.b32.xlu0 %v1805, 32
        %v1893 = vpop.permute.xlu0 %1892
        %1898 = vst.msk [vmem:[#allocation3 + $0xe] sm:$0x1] %vm1624, %v1887
        %1899 = vst.msk [vmem:[#allocation3 + $0x1e] sm:$0x1] %vm1624, %v1889
        %1900 = vst.msk [vmem:[#allocation3 + $0x2e] sm:$0x1] %vm1624, %v1891
        %1901 = vst.msk [vmem:[#allocation3 + $0x3e] sm:$0x1] %vm1624, %v1893
        %1902 = vrot.lane.b32.xlu0 %v1793, 16
        %v1903 = vpop.permute.xlu0 %1902
        %1904 = vrot.lane.b32.xlu0 %v1797, 16
        %v1905 = vpop.permute.xlu0 %1904
        %1906 = vrot.lane.b32.xlu0 %v1801, 16
        %v1907 = vpop.permute.xlu0 %1906
        %1908 = vrot.lane.b32.xlu0 %v1805, 16
        %v1909 = vpop.permute.xlu0 %1908
        %1914 = vst.msk [vmem:[#allocation3 + $0xf] sm:$0x1] %vm1624, %v1903
        %1915 = vst.msk [vmem:[#allocation3 + $0x1f] sm:$0x1] %vm1624, %v1905
        %1916 = vst.msk [vmem:[#allocation3 + $0x2f] sm:$0x1] %vm1624, %v1907
        %1917 = vst.msk [vmem:[#allocation3 + $0x3f] sm:$0x1] %vm1624, %v1909
        %v1918 = vld [vmem:[#allocation3] sm:$0xff]
        %v1919 = vld [vmem:[#allocation3 + $0x8] sm:$0xff]
        %v1920 = vld [vmem:[#allocation3 + $0x10] sm:$0xff]
        %v1921 = vld [vmem:[#allocation3 + $0x18] sm:$0xff]
        %v1922 = vld [vmem:[#allocation3 + $0x20] sm:$0xff]
        %v1923 = vld [vmem:[#allocation3 + $0x28] sm:$0xff]
        %v1924 = vld [vmem:[#allocation3 + $0x30] sm:$0xff]
        %v1925 = vld [vmem:[#allocation3 + $0x38] sm:$0xff]
        %v1926 = vld [vmem:[#allocation10] sm:$0xff]
        %v1927 = vld [vmem:[#allocation10 + $0x8] sm:$0xff]
        %v1929 = vsel %vm670, %v1918, 0
        %v1932 = vsel %vm670, %v1919, 0
        %1934 = vmatprep.subr.mxu0 0.0
        %v1935 = vand.u32 %v1926, 4294901760
        %1936 = vmatpush1.msra.mxu0 %v1935
        %1937 = vmatprep.subr.mxu0 0.0
        %v1938 = vand.u32 %v1927, 4294901760
        %1939 = vmatpush1.msra.mxu0 %v1938
        %1940 = vmatprep.subr.mxu0 0.0
        %1941 = vmatpush1.msra.mxu0 0.0
        %1942 = vmatprep.subr.mxu0 0.0
        %1943 = vmatpush1.msra.mxu0 0.0
        %1944 = vmatprep.subr.mxu0 0.0
        %1945 = vmatpush1.msra.mxu0 0.0
        %1946 = vmatprep.subr.mxu0 0.0
        %1947 = vmatpush1.msra.mxu0 0.0
        %1948 = vmatprep.subr.mxu0 0.0
        %1949 = vmatpush1.msra.mxu0 0.0
        %1950 = vmatprep.subr.mxu0 0.0
        %1951 = vmatpush1.msra.mxu0 0.0
        %1952 = vmatprep.subr.mxu0 0.0
        %1953 = vmatpush1.msra.mxu0 0.0
        %1954 = vmatprep.subr.mxu0 0.0
        %1955 = vmatpush1.msra.mxu0 0.0
        %1956 = vmatprep.subr.mxu0 0.0
        %1957 = vmatpush1.msra.mxu0 0.0
        %1958 = vmatprep.subr.mxu0 0.0
        %1959 = vmatpush1.msra.mxu0 0.0
        %1960 = vmatprep.subr.mxu0 0.0
        %1961 = vmatpush1.msra.mxu0 0.0
        %1962 = vmatprep.subr.mxu0 0.0
        %1963 = vmatpush1.msra.mxu0 0.0
        %1964 = vmatprep.subr.mxu0 0.0
        %1965 = vmatpush1.msra.mxu0 0.0
        %1966 = vmatprep.subr.mxu0 0.0
        %1967 = vmatpush1.msra.mxu0 0.0
        %1968 = vmatprep.subr.mxu0 0.0
        %1969 = vmatpush1.msra.mxu0 0.0
        %1970 = vmatprep.subr.mxu0 0.0
        %1971 = vmatpush1.msra.mxu0 0.0
        %1972 = vmatprep.subr.mxu0 0.0
        %1973 = vmatpush1.msra.mxu0 0.0
        %1974 = vmatprep.subr.mxu0 0.0
        %1975 = vmatpush1.msra.mxu0 0.0
        %1976 = vmatprep.subr.mxu0 0.0
        %1977 = vmatpush1.msra.mxu0 0.0
        %1978 = vmatprep.subr.mxu0 0.0
        %1979 = vmatpush1.msra.mxu0 0.0
        %1980 = vmatprep.subr.mxu0 0.0
        %1981 = vmatpush1.msra.mxu0 0.0
        %1982 = vmatprep.subr.mxu0 0.0
        %1983 = vmatpush1.msra.mxu0 0.0
        %1984 = vmatprep.subr.mxu0 0.0
        %1985 = vmatpush1.msra.mxu0 0.0
        %1986 = vmatprep.subr.mxu0 0.0
        %1987 = vmatpush1.msra.mxu0 0.0
        %1988 = vmatprep.subr.mxu0 0.0
        %1989 = vmatpush1.msra.mxu0 0.0
        %1990 = vmatprep.subr.mxu0 0.0
        %1991 = vmatpush1.msra.mxu0 0.0
        %1992 = vmatprep.subr.mxu0 0.0
        %1993 = vmatpush1.msra.mxu0 0.0
        %1994 = vmatprep.subr.mxu0 0.0
        %1995 = vmatpush1.msra.mxu0 0.0
        %1996 = vmatprep.subr.mxu0 0.0
        %1997 = vmatpush1.msra.mxu0 0.0
        %1998 = vmatprep.subr.mxu0 0.0
        %1999 = vmatpush1.msra.mxu0 0.0
        %2000 = vmatprep.mubr.f32.mxu0 0.0
        %v2001 = vand.u32 %v1929, 4294901760
        %v2002 = vsub.f32 %v1929, %v2001
        %v2003 = vand.u32 %v2002, 4294901760
        %v2004 = vsub.f32 %v2002, %v2003
        %v2005 = vand.u32 %v2004, 4294901760
        %2006 = vmatmul.mubr.f32.gmra.mrb[0].mxu0 %v2005
        %v2007 = vpop.f32.mrb[0].mxu0
        %v2008 = vadd.f32 0.0, %v2007
        %v2009 = vpop.f32.mrb[0].mxu0
        %2010 = vmatprep.mubr.f32.mxu0 0.0
        %v2011 = vand.u32 %v1932, 4294901760
        %v2012 = vsub.f32 %v1932, %v2011
        %v2013 = vand.u32 %v2012, 4294901760
        %v2014 = vsub.f32 %v2012, %v2013
        %v2015 = vand.u32 %v2014, 4294901760
        %2016 = vmatmul.mubr.f32.gmra.mrb[0].mxu0 %v2015
        %v2017 = vpop.f32.mrb[0].mxu0
        %v2018 = vadd.f32 0.0, %v2017
        %v2019 = vpop.f32.mrb[0].mxu0
        %2020 = vdwg.mxu0
        %2021 = vmatprep.subr.mxu0 0.0
        %v2022 = vand.u32 %v1926, 4294901760
        %v2023 = vsub.f32 %v1926, %v2022
        %v2024 = vand.u32 %v2023, 4294901760
        %v2025 = vsub.f32 %v2023, %v2024
        %v2026 = vand.u32 %v2025, 4294901760
        %2027 = vmatpush1.msra.mxu0 %v2026
        %2028 = vmatprep.subr.mxu0 0.0
        %v2029 = vand.u32 %v1927, 4294901760
        %v2030 = vsub.f32 %v1927, %v2029
        %v2031 = vand.u32 %v2030, 4294901760
        %v2032 = vsub.f32 %v2030, %v2031
        %v2033 = vand.u32 %v2032, 4294901760
        %2034 = vmatpush1.msra.mxu0 %v2033
        %2035 = vmatprep.subr.mxu0 0.0
        %2036 = vmatpush1.msra.mxu0 0.0
        %2037 = vmatprep.subr.mxu0 0.0
        %2038 = vmatpush1.msra.mxu0 0.0
        %2039 = vmatprep.subr.mxu0 0.0
        %2040 = vmatpush1.msra.mxu0 0.0
        %2041 = vmatprep.subr.mxu0 0.0
        %2042 = vmatpush1.msra.mxu0 0.0
        %2043 = vmatprep.subr.mxu0 0.0
        %2044 = vmatpush1.msra.mxu0 0.0
        %2045 = vmatprep.subr.mxu0 0.0
        %2046 = vmatpush1.msra.mxu0 0.0
        %2047 = vmatprep.subr.mxu0 0.0
        %2048 = vmatpush1.msra.mxu0 0.0
        %2049 = vmatprep.subr.mxu0 0.0
        %2050 = vmatpush1.msra.mxu0 0.0
        %2051 = vmatprep.subr.mxu0 0.0
        %2052 = vmatpush1.msra.mxu0 0.0
        %2053 = vmatprep.subr.mxu0 0.0
        %2054 = vmatpush1.msra.mxu0 0.0
        %2055 = vmatprep.subr.mxu0 0.0
        %2056 = vmatpush1.msra.mxu0 0.0
        %2057 = vmatprep.subr.mxu0 0.0
        %2058 = vmatpush1.msra.mxu0 0.0
        %2059 = vmatprep.subr.mxu0 0.0
        %2060 = vmatpush1.msra.mxu0 0.0
        %2061 = vmatprep.subr.mxu0 0.0
        %2062 = vmatpush1.msra.mxu0 0.0
        %2063 = vmatprep.subr.mxu0 0.0
        %2064 = vmatpush1.msra.mxu0 0.0
        %2065 = vmatprep.subr.mxu0 0.0
        %2066 = vmatpush1.msra.mxu0 0.0
        %2067 = vmatprep.subr.mxu0 0.0
        %2068 = vmatpush1.msra.mxu0 0.0
        %2069 = vmatprep.subr.mxu0 0.0
        %2070 = vmatpush1.msra.mxu0 0.0
        %2071 = vmatprep.subr.mxu0 0.0
        %2072 = vmatpush1.msra.mxu0 0.0
        %2073 = vmatprep.subr.mxu0 0.0
        %2074 = vmatpush1.msra.mxu0 0.0
        %2075 = vmatprep.subr.mxu0 0.0
        %2076 = vmatpush1.msra.mxu0 0.0
        %2077 = vmatprep.subr.mxu0 0.0
        %2078 = vmatpush1.msra.mxu0 0.0
        %2079 = vmatprep.subr.mxu0 0.0
        %2080 = vmatpush1.msra.mxu0 0.0
        %2081 = vmatprep.subr.mxu0 0.0
        %2082 = vmatpush1.msra.mxu0 0.0
        %2083 = vmatprep.subr.mxu0 0.0
        %2084 = vmatpush1.msra.mxu0 0.0
        %2085 = vmatprep.subr.mxu0 0.0
        %2086 = vmatpush1.msra.mxu0 0.0
        %2087 = vmatprep.subr.mxu0 0.0
        %2088 = vmatpush1.msra.mxu0 0.0
        %2089 = vmatprep.subr.mxu0 0.0
        %2090 = vmatpush1.msra.mxu0 0.0
        %2091 = vmatprep.subr.mxu0 0.0
        %2092 = vmatpush1.msra.mxu0 0.0
        %2093 = vmatprep.subr.mxu0 0.0
        %2094 = vmatpush1.msra.mxu0 0.0
        %2095 = vmatprep.mubr.f32.mxu0 0.0
        %v2096 = vand.u32 %v1929, 4294901760
        %2097 = vmatmul.mubr.f32.gmra.mrb[0].mxu0 %v2096
        %v2098 = vpop.f32.mrb[0].mxu0
        %v2099 = vadd.f32 %v2008, %v2098
        %v2100 = vpop.f32.mrb[0].mxu0
        %2101 = vmatprep.mubr.f32.mxu0 0.0
        %v2102 = vand.u32 %v1932, 4294901760
        %2103 = vmatmul.mubr.f32.gmra.mrb[0].mxu0 %v2102
        %v2104 = vpop.f32.mrb[0].mxu0
        %v2105 = vadd.f32 %v2018, %v2104
        %v2106 = vpop.f32.mrb[0].mxu0
        %2107 = vdwg.mxu0
        %2108 = vmatprep.subr.mxu0 0.0
        %v2109 = vand.u32 %v1926, 4294901760
        %v2110 = vsub.f32 %v1926, %v2109
        %2111 = vmatpush1.msra.mxu0 %v2110
        %2112 = vmatprep.subr.mxu0 0.0
        %v2113 = vand.u32 %v1927, 4294901760
        %v2114 = vsub.f32 %v1927, %v2113
        %2115 = vmatpush1.msra.mxu0 %v2114
        %2116 = vmatprep.subr.mxu0 0.0
        %2117 = vmatpush1.msra.mxu0 0.0
        %2118 = vmatprep.subr.mxu0 0.0
        %2119 = vmatpush1.msra.mxu0 0.0
        %2120 = vmatprep.subr.mxu0 0.0
        %2121 = vmatpush1.msra.mxu0 0.0
        %2122 = vmatprep.subr.mxu0 0.0
        %2123 = vmatpush1.msra.mxu0 0.0
        %2124 = vmatprep.subr.mxu0 0.0
        %2125 = vmatpush1.msra.mxu0 0.0
        %2126 = vmatprep.subr.mxu0 0.0
        %2127 = vmatpush1.msra.mxu0 0.0
        %2128 = vmatprep.subr.mxu0 0.0
        %2129 = vmatpush1.msra.mxu0 0.0
        %2130 = vmatprep.subr.mxu0 0.0
        %2131 = vmatpush1.msra.mxu0 0.0
        %2132 = vmatprep.subr.mxu0 0.0
        %2133 = vmatpush1.msra.mxu0 0.0
        %2134 = vmatprep.subr.mxu0 0.0
        %2135 = vmatpush1.msra.mxu0 0.0
        %2136 = vmatprep.subr.mxu0 0.0
        %2137 = vmatpush1.msra.mxu0 0.0
        %2138 = vmatprep.subr.mxu0 0.0
        %2139 = vmatpush1.msra.mxu0 0.0
        %2140 = vmatprep.subr.mxu0 0.0
        %2141 = vmatpush1.msra.mxu0 0.0
        %2142 = vmatprep.subr.mxu0 0.0
        %2143 = vmatpush1.msra.mxu0 0.0
        %2144 = vmatprep.subr.mxu0 0.0
        %2145 = vmatpush1.msra.mxu0 0.0
        %2146 = vmatprep.subr.mxu0 0.0
        %2147 = vmatpush1.msra.mxu0 0.0
        %2148 = vmatprep.subr.mxu0 0.0
        %2149 = vmatpush1.msra.mxu0 0.0
        %2150 = vmatprep.subr.mxu0 0.0
        %2151 = vmatpush1.msra.mxu0 0.0
        %2152 = vmatprep.subr.mxu0 0.0
        %2153 = vmatpush1.msra.mxu0 0.0
        %2154 = vmatprep.subr.mxu0 0.0
        %2155 = vmatpush1.msra.mxu0 0.0
        %2156 = vmatprep.subr.mxu0 0.0
        %2157 = vmatpush1.msra.mxu0 0.0
        %2158 = vmatprep.subr.mxu0 0.0
        %2159 = vmatpush1.msra.mxu0 0.0
        %2160 = vmatprep.subr.mxu0 0.0
        %2161 = vmatpush1.msra.mxu0 0.0
        %2162 = vmatprep.subr.mxu0 0.0
        %2163 = vmatpush1.msra.mxu0 0.0
        %2164 = vmatprep.subr.mxu0 0.0
        %2165 = vmatpush1.msra.mxu0 0.0
        %2166 = vmatprep.subr.mxu0 0.0
        %2167 = vmatpush1.msra.mxu0 0.0
        %2168 = vmatprep.subr.mxu0 0.0
        %2169 = vmatpush1.msra.mxu0 0.0
        %2170 = vmatprep.subr.mxu0 0.0
        %2171 = vmatpush1.msra.mxu0 0.0
        %2172 = vmatprep.subr.mxu0 0.0
        %2173 = vmatpush1.msra.mxu0 0.0
        %2174 = vmatprep.subr.mxu0 0.0
        %2175 = vmatpush1.msra.mxu0 0.0
        %2176 = vmatprep.mubr.f32.mxu0 0.0
        %v2177 = vand.u32 %v1929, 4294901760
        %v2178 = vsub.f32 %v1929, %v2177
        %2179 = vmatmul.mubr.f32.gmra.mrb[0].mxu0 %v2178
        %v2180 = vpop.f32.mrb[0].mxu0
        %v2181 = vadd.f32 %v2099, %v2180
        %v2182 = vpop.f32.mrb[0].mxu0
        %2183 = vmatprep.mubr.f32.mxu0 0.0
        %v2184 = vand.u32 %v1932, 4294901760
        %v2185 = vsub.f32 %v1932, %v2184
        %2186 = vmatmul.mubr.f32.gmra.mrb[0].mxu0 %v2185
        %v2187 = vpop.f32.mrb[0].mxu0
        %v2188 = vadd.f32 %v2105, %v2187
        %v2189 = vpop.f32.mrb[0].mxu0
        %2190 = vdwg.mxu0
        %2191 = vmatprep.subr.mxu0 0.0
        %v2192 = vand.u32 %v1926, 4294901760
        %2193 = vmatpush1.msra.mxu0 %v2192
        %2194 = vmatprep.subr.mxu0 0.0
        %v2195 = vand.u32 %v1927, 4294901760
        %2196 = vmatpush1.msra.mxu0 %v2195
        %2197 = vmatprep.subr.mxu0 0.0
        %2198 = vmatpush1.msra.mxu0 0.0
        %2199 = vmatprep.subr.mxu0 0.0
        %2200 = vmatpush1.msra.mxu0 0.0
        %2201 = vmatprep.subr.mxu0 0.0
        %2202 = vmatpush1.msra.mxu0 0.0
        %2203 = vmatprep.subr.mxu0 0.0
        %2204 = vmatpush1.msra.mxu0 0.0
        %2205 = vmatprep.subr.mxu0 0.0
        %2206 = vmatpush1.msra.mxu0 0.0
        %2207 = vmatprep.subr.mxu0 0.0
        %2208 = vmatpush1.msra.mxu0 0.0
        %2209 = vmatprep.subr.mxu0 0.0
        %2210 = vmatpush1.msra.mxu0 0.0
        %2211 = vmatprep.subr.mxu0 0.0
        %2212 = vmatpush1.msra.mxu0 0.0
        %2213 = vmatprep.subr.mxu0 0.0
        %2214 = vmatpush1.msra.mxu0 0.0
        %2215 = vmatprep.subr.mxu0 0.0
        %2216 = vmatpush1.msra.mxu0 0.0
        %2217 = vmatprep.subr.mxu0 0.0
        %2218 = vmatpush1.msra.mxu0 0.0
        %2219 = vmatprep.subr.mxu0 0.0
        %2220 = vmatpush1.msra.mxu0 0.0
        %2221 = vmatprep.subr.mxu0 0.0
        %2222 = vmatpush1.msra.mxu0 0.0
        %2223 = vmatprep.subr.mxu0 0.0
        %2224 = vmatpush1.msra.mxu0 0.0
        %2225 = vmatprep.subr.mxu0 0.0
        %2226 = vmatpush1.msra.mxu0 0.0
        %2227 = vmatprep.subr.mxu0 0.0
        %2228 = vmatpush1.msra.mxu0 0.0
        %2229 = vmatprep.subr.mxu0 0.0
        %2230 = vmatpush1.msra.mxu0 0.0
        %2231 = vmatprep.subr.mxu0 0.0
        %2232 = vmatpush1.msra.mxu0 0.0
        %2233 = vmatprep.subr.mxu0 0.0
        %2234 = vmatpush1.msra.mxu0 0.0
        %2235 = vmatprep.subr.mxu0 0.0
        %2236 = vmatpush1.msra.mxu0 0.0
        %2237 = vmatprep.subr.mxu0 0.0
        %2238 = vmatpush1.msra.mxu0 0.0
        %2239 = vmatprep.subr.mxu0 0.0
        %2240 = vmatpush1.msra.mxu0 0.0
        %2241 = vmatprep.subr.mxu0 0.0
        %2242 = vmatpush1.msra.mxu0 0.0
        %2243 = vmatprep.subr.mxu0 0.0
        %2244 = vmatpush1.msra.mxu0 0.0
        %2245 = vmatprep.subr.mxu0 0.0
        %2246 = vmatpush1.msra.mxu0 0.0
        %2247 = vmatprep.subr.mxu0 0.0
        %2248 = vmatpush1.msra.mxu0 0.0
        %2249 = vmatprep.subr.mxu0 0.0
        %2250 = vmatpush1.msra.mxu0 0.0
        %2251 = vmatprep.subr.mxu0 0.0
        %2252 = vmatpush1.msra.mxu0 0.0
        %2253 = vmatprep.subr.mxu0 0.0
        %2254 = vmatpush1.msra.mxu0 0.0
        %2255 = vmatprep.subr.mxu0 0.0
        %2256 = vmatpush1.msra.mxu0 0.0
        %2257 = vmatprep.mubr.f32.mxu0 0.0
        %v2258 = vand.u32 %v1929, 4294901760
        %v2259 = vsub.f32 %v1929, %v2258
        %v2260 = vand.u32 %v2259, 4294901760
        %2261 = vmatmul.mubr.f32.gmra.mrb[0].mxu0 %v2260
        %v2262 = vpop.f32.mrb[0].mxu0
        %v2263 = vadd.f32 %v2181, %v2262
        %v2264 = vpop.f32.mrb[0].mxu0
        %2265 = vmatprep.mubr.f32.mxu0 0.0
        %v2266 = vand.u32 %v1932, 4294901760
        %v2267 = vsub.f32 %v1932, %v2266
        %v2268 = vand.u32 %v2267, 4294901760
        %2269 = vmatmul.mubr.f32.gmra.mrb[0].mxu0 %v2268
        %v2270 = vpop.f32.mrb[0].mxu0
        %v2271 = vadd.f32 %v2188, %v2270
        %v2272 = vpop.f32.mrb[0].mxu0
        %2273 = vdwg.mxu0
        %2274 = vmatprep.subr.mxu0 0.0
        %v2275 = vand.u32 %v1926, 4294901760
        %v2276 = vsub.f32 %v1926, %v2275
        %v2277 = vand.u32 %v2276, 4294901760
        %2278 = vmatpush1.msra.mxu0 %v2277
        %2279 = vmatprep.subr.mxu0 0.0
        %v2280 = vand.u32 %v1927, 4294901760
        %v2281 = vsub.f32 %v1927, %v2280
        %v2282 = vand.u32 %v2281, 4294901760
        %2283 = vmatpush1.msra.mxu0 %v2282
        %2284 = vmatprep.subr.mxu0 0.0
        %2285 = vmatpush1.msra.mxu0 0.0
        %2286 = vmatprep.subr.mxu0 0.0
        %2287 = vmatpush1.msra.mxu0 0.0
        %2288 = vmatprep.subr.mxu0 0.0
        %2289 = vmatpush1.msra.mxu0 0.0
        %2290 = vmatprep.subr.mxu0 0.0
        %2291 = vmatpush1.msra.mxu0 0.0
        %2292 = vmatprep.subr.mxu0 0.0
        %2293 = vmatpush1.msra.mxu0 0.0
        %2294 = vmatprep.subr.mxu0 0.0
        %2295 = vmatpush1.msra.mxu0 0.0
        %2296 = vmatprep.subr.mxu0 0.0
        %2297 = vmatpush1.msra.mxu0 0.0
        %2298 = vmatprep.subr.mxu0 0.0
        %2299 = vmatpush1.msra.mxu0 0.0
        %2300 = vmatprep.subr.mxu0 0.0
        %2301 = vmatpush1.msra.mxu0 0.0
        %2302 = vmatprep.subr.mxu0 0.0
        %2303 = vmatpush1.msra.mxu0 0.0
        %2304 = vmatprep.subr.mxu0 0.0
        %2305 = vmatpush1.msra.mxu0 0.0
        %2306 = vmatprep.subr.mxu0 0.0
        %2307 = vmatpush1.msra.mxu0 0.0
        %2308 = vmatprep.subr.mxu0 0.0
        %2309 = vmatpush1.msra.mxu0 0.0
        %2310 = vmatprep.subr.mxu0 0.0
        %2311 = vmatpush1.msra.mxu0 0.0
        %2312 = vmatprep.subr.mxu0 0.0
        %2313 = vmatpush1.msra.mxu0 0.0
        %2314 = vmatprep.subr.mxu0 0.0
        %2315 = vmatpush1.msra.mxu0 0.0
        %2316 = vmatprep.subr.mxu0 0.0
        %2317 = vmatpush1.msra.mxu0 0.0
        %2318 = vmatprep.subr.mxu0 0.0
        %2319 = vmatpush1.msra.mxu0 0.0
        %2320 = vmatprep.subr.mxu0 0.0
        %2321 = vmatpush1.msra.mxu0 0.0
        %2322 = vmatprep.subr.mxu0 0.0
        %2323 = vmatpush1.msra.mxu0 0.0
        %2324 = vmatprep.subr.mxu0 0.0
        %2325 = vmatpush1.msra.mxu0 0.0
        %2326 = vmatprep.subr.mxu0 0.0
        %2327 = vmatpush1.msra.mxu0 0.0
        %2328 = vmatprep.subr.mxu0 0.0
        %2329 = vmatpush1.msra.mxu0 0.0
        %2330 = vmatprep.subr.mxu0 0.0
        %2331 = vmatpush1.msra.mxu0 0.0
        %2332 = vmatprep.subr.mxu0 0.0
        %2333 = vmatpush1.msra.mxu0 0.0
        %2334 = vmatprep.subr.mxu0 0.0
        %2335 = vmatpush1.msra.mxu0 0.0
        %2336 = vmatprep.subr.mxu0 0.0
        %2337 = vmatpush1.msra.mxu0 0.0
        %2338 = vmatprep.subr.mxu0 0.0
        %2339 = vmatpush1.msra.mxu0 0.0
        %2340 = vmatprep.subr.mxu0 0.0
        %2341 = vmatpush1.msra.mxu0 0.0
        %2342 = vmatprep.subr.mxu0 0.0
        %2343 = vmatpush1.msra.mxu0 0.0
        %2344 = vmatprep.mubr.f32.mxu0 0.0
        %v2345 = vand.u32 %v1929, 4294901760
        %2346 = vmatmul.mubr.f32.gmra.mrb[0].mxu0 %v2345
        %v2347 = vpop.f32.mrb[0].mxu0
        %v2348 = vadd.f32 %v2263, %v2347
        %v2349 = vpop.f32.mrb[0].mxu0
        %2350 = vmatprep.mubr.f32.mxu0 0.0
        %v2351 = vand.u32 %v1932, 4294901760
        %2352 = vmatmul.mubr.f32.gmra.mrb[0].mxu0 %v2351
        %v2353 = vpop.f32.mrb[0].mxu0
        %v2354 = vadd.f32 %v2271, %v2353
        %v2355 = vpop.f32.mrb[0].mxu0
        %2356 = vdwg.mxu0
        %2357 = vmatprep.subr.mxu0 0.0
        %v2358 = vand.u32 %v1926, 4294901760
        %2359 = vmatpush1.msra.mxu0 %v2358
        %2360 = vmatprep.subr.mxu0 0.0
        %v2361 = vand.u32 %v1927, 4294901760
        %2362 = vmatpush1.msra.mxu0 %v2361
        %2363 = vmatprep.subr.mxu0 0.0
        %2364 = vmatpush1.msra.mxu0 0.0
        %2365 = vmatprep.subr.mxu0 0.0
        %2366 = vmatpush1.msra.mxu0 0.0
        %2367 = vmatprep.subr.mxu0 0.0
        %2368 = vmatpush1.msra.mxu0 0.0
        %2369 = vmatprep.subr.mxu0 0.0
        %2370 = vmatpush1.msra.mxu0 0.0
        %2371 = vmatprep.subr.mxu0 0.0
        %2372 = vmatpush1.msra.mxu0 0.0
        %2373 = vmatprep.subr.mxu0 0.0
        %2374 = vmatpush1.msra.mxu0 0.0
        %2375 = vmatprep.subr.mxu0 0.0
        %2376 = vmatpush1.msra.mxu0 0.0
        %2377 = vmatprep.subr.mxu0 0.0
        %2378 = vmatpush1.msra.mxu0 0.0
        %2379 = vmatprep.subr.mxu0 0.0
        %2380 = vmatpush1.msra.mxu0 0.0
        %2381 = vmatprep.subr.mxu0 0.0
        %2382 = vmatpush1.msra.mxu0 0.0
        %2383 = vmatprep.subr.mxu0 0.0
        %2384 = vmatpush1.msra.mxu0 0.0
        %2385 = vmatprep.subr.mxu0 0.0
        %2386 = vmatpush1.msra.mxu0 0.0
        %2387 = vmatprep.subr.mxu0 0.0
        %2388 = vmatpush1.msra.mxu0 0.0
        %2389 = vmatprep.subr.mxu0 0.0
        %2390 = vmatpush1.msra.mxu0 0.0
        %2391 = vmatprep.subr.mxu0 0.0
        %2392 = vmatpush1.msra.mxu0 0.0
        %2393 = vmatprep.subr.mxu0 0.0
        %2394 = vmatpush1.msra.mxu0 0.0
        %2395 = vmatprep.subr.mxu0 0.0
        %2396 = vmatpush1.msra.mxu0 0.0
        %2397 = vmatprep.subr.mxu0 0.0
        %2398 = vmatpush1.msra.mxu0 0.0
        %2399 = vmatprep.subr.mxu0 0.0
        %2400 = vmatpush1.msra.mxu0 0.0
        %2401 = vmatprep.subr.mxu0 0.0
        %2402 = vmatpush1.msra.mxu0 0.0
        %2403 = vmatprep.subr.mxu0 0.0
        %2404 = vmatpush1.msra.mxu0 0.0
        %2405 = vmatprep.subr.mxu0 0.0
        %2406 = vmatpush1.msra.mxu0 0.0
        %2407 = vmatprep.subr.mxu0 0.0
        %2408 = vmatpush1.msra.mxu0 0.0
        %2409 = vmatprep.subr.mxu0 0.0
        %2410 = vmatpush1.msra.mxu0 0.0
        %2411 = vmatprep.subr.mxu0 0.0
        %2412 = vmatpush1.msra.mxu0 0.0
        %2413 = vmatprep.subr.mxu0 0.0
        %2414 = vmatpush1.msra.mxu0 0.0
        %2415 = vmatprep.subr.mxu0 0.0
        %2416 = vmatpush1.msra.mxu0 0.0
        %2417 = vmatprep.subr.mxu0 0.0
        %2418 = vmatpush1.msra.mxu0 0.0
        %2419 = vmatprep.subr.mxu0 0.0
        %2420 = vmatpush1.msra.mxu0 0.0
        %2421 = vmatprep.subr.mxu0 0.0
        %2422 = vmatpush1.msra.mxu0 0.0
        %2423 = vmatprep.mubr.f32.mxu0 0.0
        %v2424 = vand.u32 %v1929, 4294901760
        %2425 = vmatmul.mubr.f32.gmra.mrb[0].mxu0 %v2424
        %v2426 = vpop.f32.mrb[0].mxu0
        %v2427 = vadd.f32 %v2348, %v2426
        %v2428 = vpop.f32.mrb[0].mxu0
        %2429 = vmatprep.mubr.f32.mxu0 0.0
        %v2430 = vand.u32 %v1932, 4294901760
        %2431 = vmatmul.mubr.f32.gmra.mrb[0].mxu0 %v2430
        %v2432 = vpop.f32.mrb[0].mxu0
        %v2433 = vadd.f32 %v2354, %v2432
        %v2434 = vpop.f32.mrb[0].mxu0
        %2435 = vdwg.mxu0
        %v2437 = vsel %vm670, %v1920, 0
        %v2440 = vsel %vm670, %v1921, 0
        %2442 = vmatprep.subr.mxu0 0.0
        %v2443 = vand.u32 %v1926, 4294901760
        %2444 = vmatpush1.msra.mxu0 %v2443
        %2445 = vmatprep.subr.mxu0 0.0
        %v2446 = vand.u32 %v1927, 4294901760
        %2447 = vmatpush1.msra.mxu0 %v2446
        %2448 = vmatprep.subr.mxu0 0.0
        %2449 = vmatpush1.msra.mxu0 0.0
        %2450 = vmatprep.subr.mxu0 0.0
        %2451 = vmatpush1.msra.mxu0 0.0
        %2452 = vmatprep.subr.mxu0 0.0
        %2453 = vmatpush1.msra.mxu0 0.0
        %2454 = vmatprep.subr.mxu0 0.0
        %2455 = vmatpush1.msra.mxu0 0.0
        %2456 = vmatprep.subr.mxu0 0.0
        %2457 = vmatpush1.msra.mxu0 0.0
        %2458 = vmatprep.subr.mxu0 0.0
        %2459 = vmatpush1.msra.mxu0 0.0
        %2460 = vmatprep.subr.mxu0 0.0
        %2461 = vmatpush1.msra.mxu0 0.0
        %2462 = vmatprep.subr.mxu0 0.0
        %2463 = vmatpush1.msra.mxu0 0.0
        %2464 = vmatprep.subr.mxu0 0.0
        %2465 = vmatpush1.msra.mxu0 0.0
        %2466 = vmatprep.subr.mxu0 0.0
        %2467 = vmatpush1.msra.mxu0 0.0
        %2468 = vmatprep.subr.mxu0 0.0
        %2469 = vmatpush1.msra.mxu0 0.0
        %2470 = vmatprep.subr.mxu0 0.0
        %2471 = vmatpush1.msra.mxu0 0.0
        %2472 = vmatprep.subr.mxu0 0.0
        %2473 = vmatpush1.msra.mxu0 0.0
        %2474 = vmatprep.subr.mxu0 0.0
        %2475 = vmatpush1.msra.mxu0 0.0
        %2476 = vmatprep.subr.mxu0 0.0
        %2477 = vmatpush1.msra.mxu0 0.0
        %2478 = vmatprep.subr.mxu0 0.0
        %2479 = vmatpush1.msra.mxu0 0.0
        %2480 = vmatprep.subr.mxu0 0.0
        %2481 = vmatpush1.msra.mxu0 0.0
        %2482 = vmatprep.subr.mxu0 0.0
        %2483 = vmatpush1.msra.mxu0 0.0
        %2484 = vmatprep.subr.mxu0 0.0
        %2485 = vmatpush1.msra.mxu0 0.0
        %2486 = vmatprep.subr.mxu0 0.0
        %2487 = vmatpush1.msra.mxu0 0.0
        %2488 = vmatprep.subr.mxu0 0.0
        %2489 = vmatpush1.msra.mxu0 0.0
        %2490 = vmatprep.subr.mxu0 0.0
        %2491 = vmatpush1.msra.mxu0 0.0
        %2492 = vmatprep.subr.mxu0 0.0
        %2493 = vmatpush1.msra.mxu0 0.0
        %2494 = vmatprep.subr.mxu0 0.0
        %2495 = vmatpush1.msra.mxu0 0.0
        %2496 = vmatprep.subr.mxu0 0.0
        %2497 = vmatpush1.msra.mxu0 0.0
        %2498 = vmatprep.subr.mxu0 0.0
        %2499 = vmatpush1.msra.mxu0 0.0
        %2500 = vmatprep.subr.mxu0 0.0
        %2501 = vmatpush1.msra.mxu0 0.0
        %2502 = vmatprep.subr.mxu0 0.0
        %2503 = vmatpush1.msra.mxu0 0.0
        %2504 = vmatprep.subr.mxu0 0.0
        %2505 = vmatpush1.msra.mxu0 0.0
        %2506 = vmatprep.subr.mxu0 0.0
        %2507 = vmatpush1.msra.mxu0 0.0
        %2508 = vmatprep.mubr.f32.mxu0 0.0
        %v2509 = vand.u32 %v2437, 4294901760
        %v2510 = vsub.f32 %v2437, %v2509
        %v2511 = vand.u32 %v2510, 4294901760
        %v2512 = vsub.f32 %v2510, %v2511
        %v2513 = vand.u32 %v2512, 4294901760
        %2514 = vmatmul.mubr.f32.gmra.mrb[0].mxu0 %v2513
        %v2515 = vpop.f32.mrb[0].mxu0
        %v2516 = vadd.f32 0.0, %v2515
        %v2517 = vpop.f32.mrb[0].mxu0
        %2518 = vmatprep.mubr.f32.mxu0 0.0
        %v2519 = vand.u32 %v2440, 4294901760
        %v2520 = vsub.f32 %v2440, %v2519
        %v2521 = vand.u32 %v2520, 4294901760
        %v2522 = vsub.f32 %v2520, %v2521
        %v2523 = vand.u32 %v2522, 4294901760
        %2524 = vmatmul.mubr.f32.gmra.mrb[0].mxu0 %v2523
        %v2525 = vpop.f32.mrb[0].mxu0
        %v2526 = vadd.f32 0.0, %v2525
        %v2527 = vpop.f32.mrb[0].mxu0
        %2528 = vdwg.mxu0
        %2529 = vmatprep.subr.mxu0 0.0
        %v2530 = vand.u32 %v1926, 4294901760
        %v2531 = vsub.f32 %v1926, %v2530
        %v2532 = vand.u32 %v2531, 4294901760
        %v2533 = vsub.f32 %v2531, %v2532
        %v2534 = vand.u32 %v2533, 4294901760
        %2535 = vmatpush1.msra.mxu0 %v2534
        %2536 = vmatprep.subr.mxu0 0.0
        %v2537 = vand.u32 %v1927, 4294901760
        %v2538 = vsub.f32 %v1927, %v2537
        %v2539 = vand.u32 %v2538, 4294901760
        %v2540 = vsub.f32 %v2538, %v2539
        %v2541 = vand.u32 %v2540, 4294901760
        %2542 = vmatpush1.msra.mxu0 %v2541
        %2543 = vmatprep.subr.mxu0 0.0
        %2544 = vmatpush1.msra.mxu0 0.0
        %2545 = vmatprep.subr.mxu0 0.0
        %2546 = vmatpush1.msra.mxu0 0.0
        %2547 = vmatprep.subr.mxu0 0.0
        %2548 = vmatpush1.msra.mxu0 0.0
        %2549 = vmatprep.subr.mxu0 0.0
        %2550 = vmatpush1.msra.mxu0 0.0
        %2551 = vmatprep.subr.mxu0 0.0
        %2552 = vmatpush1.msra.mxu0 0.0
        %2553 = vmatprep.subr.mxu0 0.0
        %2554 = vmatpush1.msra.mxu0 0.0
        %2555 = vmatprep.subr.mxu0 0.0
        %2556 = vmatpush1.msra.mxu0 0.0
        %2557 = vmatprep.subr.mxu0 0.0
        %2558 = vmatpush1.msra.mxu0 0.0
        %2559 = vmatprep.subr.mxu0 0.0
        %2560 = vmatpush1.msra.mxu0 0.0
        %2561 = vmatprep.subr.mxu0 0.0
        %2562 = vmatpush1.msra.mxu0 0.0
        %2563 = vmatprep.subr.mxu0 0.0
        %2564 = vmatpush1.msra.mxu0 0.0
        %2565 = vmatprep.subr.mxu0 0.0
        %2566 = vmatpush1.msra.mxu0 0.0
        %2567 = vmatprep.subr.mxu0 0.0
        %2568 = vmatpush1.msra.mxu0 0.0
        %2569 = vmatprep.subr.mxu0 0.0
        %2570 = vmatpush1.msra.mxu0 0.0
        %2571 = vmatprep.subr.mxu0 0.0
        %2572 = vmatpush1.msra.mxu0 0.0
        %2573 = vmatprep.subr.mxu0 0.0
        %2574 = vmatpush1.msra.mxu0 0.0
        %2575 = vmatprep.subr.mxu0 0.0
        %2576 = vmatpush1.msra.mxu0 0.0
        %2577 = vmatprep.subr.mxu0 0.0
        %2578 = vmatpush1.msra.mxu0 0.0
        %2579 = vmatprep.subr.mxu0 0.0
        %2580 = vmatpush1.msra.mxu0 0.0
        %2581 = vmatprep.subr.mxu0 0.0
        %2582 = vmatpush1.msra.mxu0 0.0
        %2583 = vmatprep.subr.mxu0 0.0
        %2584 = vmatpush1.msra.mxu0 0.0
        %2585 = vmatprep.subr.mxu0 0.0
        %2586 = vmatpush1.msra.mxu0 0.0
        %2587 = vmatprep.subr.mxu0 0.0
        %2588 = vmatpush1.msra.mxu0 0.0
        %2589 = vmatprep.subr.mxu0 0.0
        %2590 = vmatpush1.msra.mxu0 0.0
        %2591 = vmatprep.subr.mxu0 0.0
        %2592 = vmatpush1.msra.mxu0 0.0
        %2593 = vmatprep.subr.mxu0 0.0
        %2594 = vmatpush1.msra.mxu0 0.0
        %2595 = vmatprep.subr.mxu0 0.0
        %2596 = vmatpush1.msra.mxu0 0.0
        %2597 = vmatprep.subr.mxu0 0.0
        %2598 = vmatpush1.msra.mxu0 0.0
        %2599 = vmatprep.subr.mxu0 0.0
        %2600 = vmatpush1.msra.mxu0 0.0
        %2601 = vmatprep.subr.mxu0 0.0
        %2602 = vmatpush1.msra.mxu0 0.0
        %2603 = vmatprep.mubr.f32.mxu0 0.0
        %v2604 = vand.u32 %v2437, 4294901760
        %2605 = vmatmul.mubr.f32.gmra.mrb[0].mxu0 %v2604
        %v2606 = vpop.f32.mrb[0].mxu0
        %v2607 = vadd.f32 %v2516, %v2606
        %v2608 = vpop.f32.mrb[0].mxu0
        %2609 = vmatprep.mubr.f32.mxu0 0.0
        %v2610 = vand.u32 %v2440, 4294901760
        %2611 = vmatmul.mubr.f32.gmra.mrb[0].mxu0 %v2610
        %v2612 = vpop.f32.mrb[0].mxu0
        %v2613 = vadd.f32 %v2526, %v2612
        %v2614 = vpop.f32.mrb[0].mxu0
        %2615 = vdwg.mxu0
        %2616 = vmatprep.subr.mxu0 0.0
        %v2617 = vand.u32 %v1926, 4294901760
        %v2618 = vsub.f32 %v1926, %v2617
        %2619 = vmatpush1.msra.mxu0 %v2618
        %2620 = vmatprep.subr.mxu0 0.0
        %v2621 = vand.u32 %v1927, 4294901760
        %v2622 = vsub.f32 %v1927, %v2621
        %2623 = vmatpush1.msra.mxu0 %v2622
        %2624 = vmatprep.subr.mxu0 0.0
        %2625 = vmatpush1.msra.mxu0 0.0
        %2626 = vmatprep.subr.mxu0 0.0
        %2627 = vmatpush1.msra.mxu0 0.0
        %2628 = vmatprep.subr.mxu0 0.0
        %2629 = vmatpush1.msra.mxu0 0.0
        %2630 = vmatprep.subr.mxu0 0.0
        %2631 = vmatpush1.msra.mxu0 0.0
        %2632 = vmatprep.subr.mxu0 0.0
        %2633 = vmatpush1.msra.mxu0 0.0
        %2634 = vmatprep.subr.mxu0 0.0
        %2635 = vmatpush1.msra.mxu0 0.0
        %2636 = vmatprep.subr.mxu0 0.0
        %2637 = vmatpush1.msra.mxu0 0.0
        %2638 = vmatprep.subr.mxu0 0.0
        %2639 = vmatpush1.msra.mxu0 0.0
        %2640 = vmatprep.subr.mxu0 0.0
        %2641 = vmatpush1.msra.mxu0 0.0
        %2642 = vmatprep.subr.mxu0 0.0
        %2643 = vmatpush1.msra.mxu0 0.0
        %2644 = vmatprep.subr.mxu0 0.0
        %2645 = vmatpush1.msra.mxu0 0.0
        %2646 = vmatprep.subr.mxu0 0.0
        %2647 = vmatpush1.msra.mxu0 0.0
        %2648 = vmatprep.subr.mxu0 0.0
        %2649 = vmatpush1.msra.mxu0 0.0
        %2650 = vmatprep.subr.mxu0 0.0
        %2651 = vmatpush1.msra.mxu0 0.0
        %2652 = vmatprep.subr.mxu0 0.0
        %2653 = vmatpush1.msra.mxu0 0.0
        %2654 = vmatprep.subr.mxu0 0.0
        %2655 = vmatpush1.msra.mxu0 0.0
        %2656 = vmatprep.subr.mxu0 0.0
        %2657 = vmatpush1.msra.mxu0 0.0
        %2658 = vmatprep.subr.mxu0 0.0
        %2659 = vmatpush1.msra.mxu0 0.0
        %2660 = vmatprep.subr.mxu0 0.0
        %2661 = vmatpush1.msra.mxu0 0.0
        %2662 = vmatprep.subr.mxu0 0.0
        %2663 = vmatpush1.msra.mxu0 0.0
        %2664 = vmatprep.subr.mxu0 0.0
        %2665 = vmatpush1.msra.mxu0 0.0
        %2666 = vmatprep.subr.mxu0 0.0
        %2667 = vmatpush1.msra.mxu0 0.0
        %2668 = vmatprep.subr.mxu0 0.0
        %2669 = vmatpush1.msra.mxu0 0.0
        %2670 = vmatprep.subr.mxu0 0.0
        %2671 = vmatpush1.msra.mxu0 0.0
        %2672 = vmatprep.subr.mxu0 0.0
        %2673 = vmatpush1.msra.mxu0 0.0
        %2674 = vmatprep.subr.mxu0 0.0
        %2675 = vmatpush1.msra.mxu0 0.0
        %2676 = vmatprep.subr.mxu0 0.0
        %2677 = vmatpush1.msra.mxu0 0.0
        %2678 = vmatprep.subr.mxu0 0.0
        %2679 = vmatpush1.msra.mxu0 0.0
        %2680 = vmatprep.subr.mxu0 0.0
        %2681 = vmatpush1.msra.mxu0 0.0
        %2682 = vmatprep.subr.mxu0 0.0
        %2683 = vmatpush1.msra.mxu0 0.0
        %2684 = vmatprep.mubr.f32.mxu0 0.0
        %v2685 = vand.u32 %v2437, 4294901760
        %v2686 = vsub.f32 %v2437, %v2685
        %2687 = vmatmul.mubr.f32.gmra.mrb[0].mxu0 %v2686
        %v2688 = vpop.f32.mrb[0].mxu0
        %v2689 = vadd.f32 %v2607, %v2688
        %v2690 = vpop.f32.mrb[0].mxu0
        %2691 = vmatprep.mubr.f32.mxu0 0.0
        %v2692 = vand.u32 %v2440, 4294901760
        %v2693 = vsub.f32 %v2440, %v2692
        %2694 = vmatmul.mubr.f32.gmra.mrb[0].mxu0 %v2693
        %v2695 = vpop.f32.mrb[0].mxu0
        %v2696 = vadd.f32 %v2613, %v2695
        %v2697 = vpop.f32.mrb[0].mxu0
        %2698 = vdwg.mxu0
        %2699 = vmatprep.subr.mxu0 0.0
        %v2700 = vand.u32 %v1926, 4294901760
        %2701 = vmatpush1.msra.mxu0 %v2700
        %2702 = vmatprep.subr.mxu0 0.0
        %v2703 = vand.u32 %v1927, 4294901760
        %2704 = vmatpush1.msra.mxu0 %v2703
        %2705 = vmatprep.subr.mxu0 0.0
        %2706 = vmatpush1.msra.mxu0 0.0
        %2707 = vmatprep.subr.mxu0 0.0
        %2708 = vmatpush1.msra.mxu0 0.0
        %2709 = vmatprep.subr.mxu0 0.0
        %2710 = vmatpush1.msra.mxu0 0.0
        %2711 = vmatprep.subr.mxu0 0.0
        %2712 = vmatpush1.msra.mxu0 0.0
        %2713 = vmatprep.subr.mxu0 0.0
        %2714 = vmatpush1.msra.mxu0 0.0
        %2715 = vmatprep.subr.mxu0 0.0
        %2716 = vmatpush1.msra.mxu0 0.0
        %2717 = vmatprep.subr.mxu0 0.0
        %2718 = vmatpush1.msra.mxu0 0.0
        %2719 = vmatprep.subr.mxu0 0.0
        %2720 = vmatpush1.msra.mxu0 0.0
        %2721 = vmatprep.subr.mxu0 0.0
        %2722 = vmatpush1.msra.mxu0 0.0
        %2723 = vmatprep.subr.mxu0 0.0
        %2724 = vmatpush1.msra.mxu0 0.0
        %2725 = vmatprep.subr.mxu0 0.0
        %2726 = vmatpush1.msra.mxu0 0.0
        %2727 = vmatprep.subr.mxu0 0.0
        %2728 = vmatpush1.msra.mxu0 0.0
        %2729 = vmatprep.subr.mxu0 0.0
        %2730 = vmatpush1.msra.mxu0 0.0
        %2731 = vmatprep.subr.mxu0 0.0
        %2732 = vmatpush1.msra.mxu0 0.0
        %2733 = vmatprep.subr.mxu0 0.0
        %2734 = vmatpush1.msra.mxu0 0.0
        %2735 = vmatprep.subr.mxu0 0.0
        %2736 = vmatpush1.msra.mxu0 0.0
        %2737 = vmatprep.subr.mxu0 0.0
        %2738 = vmatpush1.msra.mxu0 0.0
        %2739 = vmatprep.subr.mxu0 0.0
        %2740 = vmatpush1.msra.mxu0 0.0
        %2741 = vmatprep.subr.mxu0 0.0
        %2742 = vmatpush1.msra.mxu0 0.0
        %2743 = vmatprep.subr.mxu0 0.0
        %2744 = vmatpush1.msra.mxu0 0.0
        %2745 = vmatprep.subr.mxu0 0.0
        %2746 = vmatpush1.msra.mxu0 0.0
        %2747 = vmatprep.subr.mxu0 0.0
        %2748 = vmatpush1.msra.mxu0 0.0
        %2749 = vmatprep.subr.mxu0 0.0
        %2750 = vmatpush1.msra.mxu0 0.0
        %2751 = vmatprep.subr.mxu0 0.0
        %2752 = vmatpush1.msra.mxu0 0.0
        %2753 = vmatprep.subr.mxu0 0.0
        %2754 = vmatpush1.msra.mxu0 0.0
        %2755 = vmatprep.subr.mxu0 0.0
        %2756 = vmatpush1.msra.mxu0 0.0
        %2757 = vmatprep.subr.mxu0 0.0
        %2758 = vmatpush1.msra.mxu0 0.0
        %2759 = vmatprep.subr.mxu0 0.0
        %2760 = vmatpush1.msra.mxu0 0.0
        %2761 = vmatprep.subr.mxu0 0.0
        %2762 = vmatpush1.msra.mxu0 0.0
        %2763 = vmatprep.subr.mxu0 0.0
        %2764 = vmatpush1.msra.mxu0 0.0
        %2765 = vmatprep.mubr.f32.mxu0 0.0
        %v2766 = vand.u32 %v2437, 4294901760
        %v2767 = vsub.f32 %v2437, %v2766
        %v2768 = vand.u32 %v2767, 4294901760
        %2769 = vmatmul.mubr.f32.gmra.mrb[0].mxu0 %v2768
        %v2770 = vpop.f32.mrb[0].mxu0
        %v2771 = vadd.f32 %v2689, %v2770
        %v2772 = vpop.f32.mrb[0].mxu0
        %2773 = vmatprep.mubr.f32.mxu0 0.0
        %v2774 = vand.u32 %v2440, 4294901760
        %v2775 = vsub.f32 %v2440, %v2774
        %v2776 = vand.u32 %v2775, 4294901760
        %2777 = vmatmul.mubr.f32.gmra.mrb[0].mxu0 %v2776
        %v2778 = vpop.f32.mrb[0].mxu0
        %v2779 = vadd.f32 %v2696, %v2778
        %v2780 = vpop.f32.mrb[0].mxu0
        %2781 = vdwg.mxu0
        %2782 = vmatprep.subr.mxu0 0.0
        %v2783 = vand.u32 %v1926, 4294901760
        %v2784 = vsub.f32 %v1926, %v2783
        %v2785 = vand.u32 %v2784, 4294901760
        %2786 = vmatpush1.msra.mxu0 %v2785
        %2787 = vmatprep.subr.mxu0 0.0
        %v2788 = vand.u32 %v1927, 4294901760
        %v2789 = vsub.f32 %v1927, %v2788
        %v2790 = vand.u32 %v2789, 4294901760
        %2791 = vmatpush1.msra.mxu0 %v2790
        %2792 = vmatprep.subr.mxu0 0.0
        %2793 = vmatpush1.msra.mxu0 0.0
        %2794 = vmatprep.subr.mxu0 0.0
        %2795 = vmatpush1.msra.mxu0 0.0
        %2796 = vmatprep.subr.mxu0 0.0
        %2797 = vmatpush1.msra.mxu0 0.0
        %2798 = vmatprep.subr.mxu0 0.0
        %2799 = vmatpush1.msra.mxu0 0.0
        %2800 = vmatprep.subr.mxu0 0.0
        %2801 = vmatpush1.msra.mxu0 0.0
        %2802 = vmatprep.subr.mxu0 0.0
        %2803 = vmatpush1.msra.mxu0 0.0
        %2804 = vmatprep.subr.mxu0 0.0
        %2805 = vmatpush1.msra.mxu0 0.0
        %2806 = vmatprep.subr.mxu0 0.0
        %2807 = vmatpush1.msra.mxu0 0.0
        %2808 = vmatprep.subr.mxu0 0.0
        %2809 = vmatpush1.msra.mxu0 0.0
        %2810 = vmatprep.subr.mxu0 0.0
        %2811 = vmatpush1.msra.mxu0 0.0
        %2812 = vmatprep.subr.mxu0 0.0
        %2813 = vmatpush1.msra.mxu0 0.0
        %2814 = vmatprep.subr.mxu0 0.0
        %2815 = vmatpush1.msra.mxu0 0.0
        %2816 = vmatprep.subr.mxu0 0.0
        %2817 = vmatpush1.msra.mxu0 0.0
        %2818 = vmatprep.subr.mxu0 0.0
        %2819 = vmatpush1.msra.mxu0 0.0
        %2820 = vmatprep.subr.mxu0 0.0
        %2821 = vmatpush1.msra.mxu0 0.0
        %2822 = vmatprep.subr.mxu0 0.0
        %2823 = vmatpush1.msra.mxu0 0.0
        %2824 = vmatprep.subr.mxu0 0.0
        %2825 = vmatpush1.msra.mxu0 0.0
        %2826 = vmatprep.subr.mxu0 0.0
        %2827 = vmatpush1.msra.mxu0 0.0
        %2828 = vmatprep.subr.mxu0 0.0
        %2829 = vmatpush1.msra.mxu0 0.0
        %2830 = vmatprep.subr.mxu0 0.0
        %2831 = vmatpush1.msra.mxu0 0.0
        %2832 = vmatprep.subr.mxu0 0.0
        %2833 = vmatpush1.msra.mxu0 0.0
        %2834 = vmatprep.subr.mxu0 0.0
        %2835 = vmatpush1.msra.mxu0 0.0
        %2836 = vmatprep.subr.mxu0 0.0
        %2837 = vmatpush1.msra.mxu0 0.0
        %2838 = vmatprep.subr.mxu0 0.0
        %2839 = vmatpush1.msra.mxu0 0.0
        %2840 = vmatprep.subr.mxu0 0.0
        %2841 = vmatpush1.msra.mxu0 0.0
        %2842 = vmatprep.subr.mxu0 0.0
        %2843 = vmatpush1.msra.mxu0 0.0
        %2844 = vmatprep.subr.mxu0 0.0
        %2845 = vmatpush1.msra.mxu0 0.0
        %2846 = vmatprep.subr.mxu0 0.0
        %2847 = vmatpush1.msra.mxu0 0.0
        %2848 = vmatprep.subr.mxu0 0.0
        %2849 = vmatpush1.msra.mxu0 0.0
        %2850 = vmatprep.subr.mxu0 0.0
        %2851 = vmatpush1.msra.mxu0 0.0
        %2852 = vmatprep.mubr.f32.mxu0 0.0
        %v2853 = vand.u32 %v2437, 4294901760
        %2854 = vmatmul.mubr.f32.gmra.mrb[0].mxu0 %v2853
        %v2855 = vpop.f32.mrb[0].mxu0
        %v2856 = vadd.f32 %v2771, %v2855
        %v2857 = vpop.f32.mrb[0].mxu0
        %2858 = vmatprep.mubr.f32.mxu0 0.0
        %v2859 = vand.u32 %v2440, 4294901760
        %2860 = vmatmul.mubr.f32.gmra.mrb[0].mxu0 %v2859
        %v2861 = vpop.f32.mrb[0].mxu0
        %v2862 = vadd.f32 %v2779, %v2861
        %v2863 = vpop.f32.mrb[0].mxu0
        %2864 = vdwg.mxu0
        %2865 = vmatprep.subr.mxu0 0.0
        %v2866 = vand.u32 %v1926, 4294901760
        %2867 = vmatpush1.msra.mxu0 %v2866
        %2868 = vmatprep.subr.mxu0 0.0
        %v2869 = vand.u32 %v1927, 4294901760
        %2870 = vmatpush1.msra.mxu0 %v2869
        %2871 = vmatprep.subr.mxu0 0.0
        %2872 = vmatpush1.msra.mxu0 0.0
        %2873 = vmatprep.subr.mxu0 0.0
        %2874 = vmatpush1.msra.mxu0 0.0
        %2875 = vmatprep.subr.mxu0 0.0
        %2876 = vmatpush1.msra.mxu0 0.0
        %2877 = vmatprep.subr.mxu0 0.0
        %2878 = vmatpush1.msra.mxu0 0.0
        %2879 = vmatprep.subr.mxu0 0.0
        %2880 = vmatpush1.msra.mxu0 0.0
        %2881 = vmatprep.subr.mxu0 0.0
        %2882 = vmatpush1.msra.mxu0 0.0
        %2883 = vmatprep.subr.mxu0 0.0
        %2884 = vmatpush1.msra.mxu0 0.0
        %2885 = vmatprep.subr.mxu0 0.0
        %2886 = vmatpush1.msra.mxu0 0.0
        %2887 = vmatprep.subr.mxu0 0.0
        %2888 = vmatpush1.msra.mxu0 0.0
        %2889 = vmatprep.subr.mxu0 0.0
        %2890 = vmatpush1.msra.mxu0 0.0
        %2891 = vmatprep.subr.mxu0 0.0
        %2892 = vmatpush1.msra.mxu0 0.0
        %2893 = vmatprep.subr.mxu0 0.0
        %2894 = vmatpush1.msra.mxu0 0.0
        %2895 = vmatprep.subr.mxu0 0.0
        %2896 = vmatpush1.msra.mxu0 0.0
        %2897 = vmatprep.subr.mxu0 0.0
        %2898 = vmatpush1.msra.mxu0 0.0
        %2899 = vmatprep.subr.mxu0 0.0
        %2900 = vmatpush1.msra.mxu0 0.0
        %2901 = vmatprep.subr.mxu0 0.0
        %2902 = vmatpush1.msra.mxu0 0.0
        %2903 = vmatprep.subr.mxu0 0.0
        %2904 = vmatpush1.msra.mxu0 0.0
        %2905 = vmatprep.subr.mxu0 0.0
        %2906 = vmatpush1.msra.mxu0 0.0
        %2907 = vmatprep.subr.mxu0 0.0
        %2908 = vmatpush1.msra.mxu0 0.0
        %2909 = vmatprep.subr.mxu0 0.0
        %2910 = vmatpush1.msra.mxu0 0.0
        %2911 = vmatprep.subr.mxu0 0.0
        %2912 = vmatpush1.msra.mxu0 0.0
        %2913 = vmatprep.subr.mxu0 0.0
        %2914 = vmatpush1.msra.mxu0 0.0
        %2915 = vmatprep.subr.mxu0 0.0
        %2916 = vmatpush1.msra.mxu0 0.0
        %2917 = vmatprep.subr.mxu0 0.0
        %2918 = vmatpush1.msra.mxu0 0.0
        %2919 = vmatprep.subr.mxu0 0.0
        %2920 = vmatpush1.msra.mxu0 0.0
        %2921 = vmatprep.subr.mxu0 0.0
        %2922 = vmatpush1.msra.mxu0 0.0
        %2923 = vmatprep.subr.mxu0 0.0
        %2924 = vmatpush1.msra.mxu0 0.0
        %2925 = vmatprep.subr.mxu0 0.0
        %2926 = vmatpush1.msra.mxu0 0.0
        %2927 = vmatprep.subr.mxu0 0.0
        %2928 = vmatpush1.msra.mxu0 0.0
        %2929 = vmatprep.subr.mxu0 0.0
        %2930 = vmatpush1.msra.mxu0 0.0
        %2931 = vmatprep.mubr.f32.mxu0 0.0
        %v2932 = vand.u32 %v2437, 4294901760
        %2933 = vmatmul.mubr.f32.gmra.mrb[0].mxu0 %v2932
        %v2934 = vpop.f32.mrb[0].mxu0
        %v2935 = vadd.f32 %v2856, %v2934
        %v2936 = vpop.f32.mrb[0].mxu0
        %2937 = vmatprep.mubr.f32.mxu0 0.0
        %v2938 = vand.u32 %v2440, 4294901760
        %2939 = vmatmul.mubr.f32.gmra.mrb[0].mxu0 %v2938
        %v2940 = vpop.f32.mrb[0].mxu0
        %v2941 = vadd.f32 %v2862, %v2940
        %v2942 = vpop.f32.mrb[0].mxu0
        %2943 = vdwg.mxu0
        %v2945 = vsel %vm670, %v1922, 0
        %v2948 = vsel %vm670, %v1923, 0
        %2950 = vmatprep.subr.mxu0 0.0
        %v2951 = vand.u32 %v1926, 4294901760
        %2952 = vmatpush1.msra.mxu0 %v2951
        %2953 = vmatprep.subr.mxu0 0.0
        %v2954 = vand.u32 %v1927, 4294901760
        %2955 = vmatpush1.msra.mxu0 %v2954
        %2956 = vmatprep.subr.mxu0 0.0
        %2957 = vmatpush1.msra.mxu0 0.0
        %2958 = vmatprep.subr.mxu0 0.0
        %2959 = vmatpush1.msra.mxu0 0.0
        %2960 = vmatprep.subr.mxu0 0.0
        %2961 = vmatpush1.msra.mxu0 0.0
        %2962 = vmatprep.subr.mxu0 0.0
        %2963 = vmatpush1.msra.mxu0 0.0
        %2964 = vmatprep.subr.mxu0 0.0
        %2965 = vmatpush1.msra.mxu0 0.0
        %2966 = vmatprep.subr.mxu0 0.0
        %2967 = vmatpush1.msra.mxu0 0.0
        %2968 = vmatprep.subr.mxu0 0.0
        %2969 = vmatpush1.msra.mxu0 0.0
        %2970 = vmatprep.subr.mxu0 0.0
        %2971 = vmatpush1.msra.mxu0 0.0
        %2972 = vmatprep.subr.mxu0 0.0
        %2973 = vmatpush1.msra.mxu0 0.0
        %2974 = vmatprep.subr.mxu0 0.0
        %2975 = vmatpush1.msra.mxu0 0.0
        %2976 = vmatprep.subr.mxu0 0.0
        %2977 = vmatpush1.msra.mxu0 0.0
        %2978 = vmatprep.subr.mxu0 0.0
        %2979 = vmatpush1.msra.mxu0 0.0
        %2980 = vmatprep.subr.mxu0 0.0
        %2981 = vmatpush1.msra.mxu0 0.0
        %2982 = vmatprep.subr.mxu0 0.0
        %2983 = vmatpush1.msra.mxu0 0.0
        %2984 = vmatprep.subr.mxu0 0.0
        %2985 = vmatpush1.msra.mxu0 0.0
        %2986 = vmatprep.subr.mxu0 0.0
        %2987 = vmatpush1.msra.mxu0 0.0
        %2988 = vmatprep.subr.mxu0 0.0
        %2989 = vmatpush1.msra.mxu0 0.0
        %2990 = vmatprep.subr.mxu0 0.0
        %2991 = vmatpush1.msra.mxu0 0.0
        %2992 = vmatprep.subr.mxu0 0.0
        %2993 = vmatpush1.msra.mxu0 0.0
        %2994 = vmatprep.subr.mxu0 0.0
        %2995 = vmatpush1.msra.mxu0 0.0
        %2996 = vmatprep.subr.mxu0 0.0
        %2997 = vmatpush1.msra.mxu0 0.0
        %2998 = vmatprep.subr.mxu0 0.0
        %2999 = vmatpush1.msra.mxu0 0.0
        %3000 = vmatprep.subr.mxu0 0.0
        %3001 = vmatpush1.msra.mxu0 0.0
        %3002 = vmatprep.subr.mxu0 0.0
        %3003 = vmatpush1.msra.mxu0 0.0
        %3004 = vmatprep.subr.mxu0 0.0
        %3005 = vmatpush1.msra.mxu0 0.0
        %3006 = vmatprep.subr.mxu0 0.0
        %3007 = vmatpush1.msra.mxu0 0.0
        %3008 = vmatprep.subr.mxu0 0.0
        %3009 = vmatpush1.msra.mxu0 0.0
        %3010 = vmatprep.subr.mxu0 0.0
        %3011 = vmatpush1.msra.mxu0 0.0
        %3012 = vmatprep.subr.mxu0 0.0
        %3013 = vmatpush1.msra.mxu0 0.0
        %3014 = vmatprep.subr.mxu0 0.0
        %3015 = vmatpush1.msra.mxu0 0.0
        %3016 = vmatprep.mubr.f32.mxu0 0.0
        %v3017 = vand.u32 %v2945, 4294901760
        %v3018 = vsub.f32 %v2945, %v3017
        %v3019 = vand.u32 %v3018, 4294901760
        %v3020 = vsub.f32 %v3018, %v3019
        %v3021 = vand.u32 %v3020, 4294901760
        %3022 = vmatmul.mubr.f32.gmra.mrb[0].mxu0 %v3021
        %v3023 = vpop.f32.mrb[0].mxu0
        %v3024 = vadd.f32 0.0, %v3023
        %v3025 = vpop.f32.mrb[0].mxu0
        %3026 = vmatprep.mubr.f32.mxu0 0.0
        %v3027 = vand.u32 %v2948, 4294901760
        %v3028 = vsub.f32 %v2948, %v3027
        %v3029 = vand.u32 %v3028, 4294901760
        %v3030 = vsub.f32 %v3028, %v3029
        %v3031 = vand.u32 %v3030, 4294901760
        %3032 = vmatmul.mubr.f32.gmra.mrb[0].mxu0 %v3031
        %v3033 = vpop.f32.mrb[0].mxu0
        %v3034 = vadd.f32 0.0, %v3033
        %v3035 = vpop.f32.mrb[0].mxu0
        %3036 = vdwg.mxu0
        %3037 = vmatprep.subr.mxu0 0.0
        %v3038 = vand.u32 %v1926, 4294901760
        %v3039 = vsub.f32 %v1926, %v3038
        %v3040 = vand.u32 %v3039, 4294901760
        %v3041 = vsub.f32 %v3039, %v3040
        %v3042 = vand.u32 %v3041, 4294901760
        %3043 = vmatpush1.msra.mxu0 %v3042
        %3044 = vmatprep.subr.mxu0 0.0
        %v3045 = vand.u32 %v1927, 4294901760
        %v3046 = vsub.f32 %v1927, %v3045
        %v3047 = vand.u32 %v3046, 4294901760
        %v3048 = vsub.f32 %v3046, %v3047
        %v3049 = vand.u32 %v3048, 4294901760
        %3050 = vmatpush1.msra.mxu0 %v3049
        %3051 = vmatprep.subr.mxu0 0.0
        %3052 = vmatpush1.msra.mxu0 0.0
        %3053 = vmatprep.subr.mxu0 0.0
        %3054 = vmatpush1.msra.mxu0 0.0
        %3055 = vmatprep.subr.mxu0 0.0
        %3056 = vmatpush1.msra.mxu0 0.0
        %3057 = vmatprep.subr.mxu0 0.0
        %3058 = vmatpush1.msra.mxu0 0.0
        %3059 = vmatprep.subr.mxu0 0.0
        %3060 = vmatpush1.msra.mxu0 0.0
        %3061 = vmatprep.subr.mxu0 0.0
        %3062 = vmatpush1.msra.mxu0 0.0
        %3063 = vmatprep.subr.mxu0 0.0
        %3064 = vmatpush1.msra.mxu0 0.0
        %3065 = vmatprep.subr.mxu0 0.0
        %3066 = vmatpush1.msra.mxu0 0.0
        %3067 = vmatprep.subr.mxu0 0.0
        %3068 = vmatpush1.msra.mxu0 0.0
        %3069 = vmatprep.subr.mxu0 0.0
        %3070 = vmatpush1.msra.mxu0 0.0
        %3071 = vmatprep.subr.mxu0 0.0
        %3072 = vmatpush1.msra.mxu0 0.0
        %3073 = vmatprep.subr.mxu0 0.0
        %3074 = vmatpush1.msra.mxu0 0.0
        %3075 = vmatprep.subr.mxu0 0.0
        %3076 = vmatpush1.msra.mxu0 0.0
        %3077 = vmatprep.subr.mxu0 0.0
        %3078 = vmatpush1.msra.mxu0 0.0
        %3079 = vmatprep.subr.mxu0 0.0
        %3080 = vmatpush1.msra.mxu0 0.0
        %3081 = vmatprep.subr.mxu0 0.0
        %3082 = vmatpush1.msra.mxu0 0.0
        %3083 = vmatprep.subr.mxu0 0.0
        %3084 = vmatpush1.msra.mxu0 0.0
        %3085 = vmatprep.subr.mxu0 0.0
        %3086 = vmatpush1.msra.mxu0 0.0
        %3087 = vmatprep.subr.mxu0 0.0
        %3088 = vmatpush1.msra.mxu0 0.0
        %3089 = vmatprep.subr.mxu0 0.0
        %3090 = vmatpush1.msra.mxu0 0.0
        %3091 = vmatprep.subr.mxu0 0.0
        %3092 = vmatpush1.msra.mxu0 0.0
        %3093 = vmatprep.subr.mxu0 0.0
        %3094 = vmatpush1.msra.mxu0 0.0
        %3095 = vmatprep.subr.mxu0 0.0
        %3096 = vmatpush1.msra.mxu0 0.0
        %3097 = vmatprep.subr.mxu0 0.0
        %3098 = vmatpush1.msra.mxu0 0.0
        %3099 = vmatprep.subr.mxu0 0.0
        %3100 = vmatpush1.msra.mxu0 0.0
        %3101 = vmatprep.subr.mxu0 0.0
        %3102 = vmatpush1.msra.mxu0 0.0
        %3103 = vmatprep.subr.mxu0 0.0
        %3104 = vmatpush1.msra.mxu0 0.0
        %3105 = vmatprep.subr.mxu0 0.0
        %3106 = vmatpush1.msra.mxu0 0.0
        %3107 = vmatprep.subr.mxu0 0.0
        %3108 = vmatpush1.msra.mxu0 0.0
        %3109 = vmatprep.subr.mxu0 0.0
        %3110 = vmatpush1.msra.mxu0 0.0
        %3111 = vmatprep.mubr.f32.mxu0 0.0
        %v3112 = vand.u32 %v2945, 4294901760
        %3113 = vmatmul.mubr.f32.gmra.mrb[0].mxu0 %v3112
        %v3114 = vpop.f32.mrb[0].mxu0
        %v3115 = vadd.f32 %v3024, %v3114
        %v3116 = vpop.f32.mrb[0].mxu0
        %3117 = vmatprep.mubr.f32.mxu0 0.0
        %v3118 = vand.u32 %v2948, 4294901760
        %3119 = vmatmul.mubr.f32.gmra.mrb[0].mxu0 %v3118
        %v3120 = vpop.f32.mrb[0].mxu0
        %v3121 = vadd.f32 %v3034, %v3120
        %v3122 = vpop.f32.mrb[0].mxu0
        %3123 = vdwg.mxu0
        %3124 = vmatprep.subr.mxu0 0.0
        %v3125 = vand.u32 %v1926, 4294901760
        %v3126 = vsub.f32 %v1926, %v3125
        %3127 = vmatpush1.msra.mxu0 %v3126
        %3128 = vmatprep.subr.mxu0 0.0
        %v3129 = vand.u32 %v1927, 4294901760
        %v3130 = vsub.f32 %v1927, %v3129
        %3131 = vmatpush1.msra.mxu0 %v3130
        %3132 = vmatprep.subr.mxu0 0.0
        %3133 = vmatpush1.msra.mxu0 0.0
        %3134 = vmatprep.subr.mxu0 0.0
        %3135 = vmatpush1.msra.mxu0 0.0
        %3136 = vmatprep.subr.mxu0 0.0
        %3137 = vmatpush1.msra.mxu0 0.0
        %3138 = vmatprep.subr.mxu0 0.0
        %3139 = vmatpush1.msra.mxu0 0.0
        %3140 = vmatprep.subr.mxu0 0.0
        %3141 = vmatpush1.msra.mxu0 0.0
        %3142 = vmatprep.subr.mxu0 0.0
        %3143 = vmatpush1.msra.mxu0 0.0
        %3144 = vmatprep.subr.mxu0 0.0
        %3145 = vmatpush1.msra.mxu0 0.0
        %3146 = vmatprep.subr.mxu0 0.0
        %3147 = vmatpush1.msra.mxu0 0.0
        %3148 = vmatprep.subr.mxu0 0.0
        %3149 = vmatpush1.msra.mxu0 0.0
        %3150 = vmatprep.subr.mxu0 0.0
        %3151 = vmatpush1.msra.mxu0 0.0
        %3152 = vmatprep.subr.mxu0 0.0
        %3153 = vmatpush1.msra.mxu0 0.0
        %3154 = vmatprep.subr.mxu0 0.0
        %3155 = vmatpush1.msra.mxu0 0.0
        %3156 = vmatprep.subr.mxu0 0.0
        %3157 = vmatpush1.msra.mxu0 0.0
        %3158 = vmatprep.subr.mxu0 0.0
        %3159 = vmatpush1.msra.mxu0 0.0
        %3160 = vmatprep.subr.mxu0 0.0
        %3161 = vmatpush1.msra.mxu0 0.0
        %3162 = vmatprep.subr.mxu0 0.0
        %3163 = vmatpush1.msra.mxu0 0.0
        %3164 = vmatprep.subr.mxu0 0.0
        %3165 = vmatpush1.msra.mxu0 0.0
        %3166 = vmatprep.subr.mxu0 0.0
        %3167 = vmatpush1.msra.mxu0 0.0
        %3168 = vmatprep.subr.mxu0 0.0
        %3169 = vmatpush1.msra.mxu0 0.0
        %3170 = vmatprep.subr.mxu0 0.0
        %3171 = vmatpush1.msra.mxu0 0.0
        %3172 = vmatprep.subr.mxu0 0.0
        %3173 = vmatpush1.msra.mxu0 0.0
        %3174 = vmatprep.subr.mxu0 0.0
        %3175 = vmatpush1.msra.mxu0 0.0
        %3176 = vmatprep.subr.mxu0 0.0
        %3177 = vmatpush1.msra.mxu0 0.0
        %3178 = vmatprep.subr.mxu0 0.0
        %3179 = vmatpush1.msra.mxu0 0.0
        %3180 = vmatprep.subr.mxu0 0.0
        %3181 = vmatpush1.msra.mxu0 0.0
        %3182 = vmatprep.subr.mxu0 0.0
        %3183 = vmatpush1.msra.mxu0 0.0
        %3184 = vmatprep.subr.mxu0 0.0
        %3185 = vmatpush1.msra.mxu0 0.0
        %3186 = vmatprep.subr.mxu0 0.0
        %3187 = vmatpush1.msra.mxu0 0.0
        %3188 = vmatprep.subr.mxu0 0.0
        %3189 = vmatpush1.msra.mxu0 0.0
        %3190 = vmatprep.subr.mxu0 0.0
        %3191 = vmatpush1.msra.mxu0 0.0
        %3192 = vmatprep.mubr.f32.mxu0 0.0
        %v3193 = vand.u32 %v2945, 4294901760
        %v3194 = vsub.f32 %v2945, %v3193
        %3195 = vmatmul.mubr.f32.gmra.mrb[0].mxu0 %v3194
        %v3196 = vpop.f32.mrb[0].mxu0
        %v3197 = vadd.f32 %v3115, %v3196
        %v3198 = vpop.f32.mrb[0].mxu0
        %3199 = vmatprep.mubr.f32.mxu0 0.0
        %v3200 = vand.u32 %v2948, 4294901760
        %v3201 = vsub.f32 %v2948, %v3200
        %3202 = vmatmul.mubr.f32.gmra.mrb[0].mxu0 %v3201
        %v3203 = vpop.f32.mrb[0].mxu0
        %v3204 = vadd.f32 %v3121, %v3203
        %v3205 = vpop.f32.mrb[0].mxu0
        %3206 = vdwg.mxu0
        %3207 = vmatprep.subr.mxu0 0.0
        %v3208 = vand.u32 %v1926, 4294901760
        %3209 = vmatpush1.msra.mxu0 %v3208
        %3210 = vmatprep.subr.mxu0 0.0
        %v3211 = vand.u32 %v1927, 4294901760
        %3212 = vmatpush1.msra.mxu0 %v3211
        %3213 = vmatprep.subr.mxu0 0.0
        %3214 = vmatpush1.msra.mxu0 0.0
        %3215 = vmatprep.subr.mxu0 0.0
        %3216 = vmatpush1.msra.mxu0 0.0
        %3217 = vmatprep.subr.mxu0 0.0
        %3218 = vmatpush1.msra.mxu0 0.0
        %3219 = vmatprep.subr.mxu0 0.0
        %3220 = vmatpush1.msra.mxu0 0.0
        %3221 = vmatprep.subr.mxu0 0.0
        %3222 = vmatpush1.msra.mxu0 0.0
        %3223 = vmatprep.subr.mxu0 0.0
        %3224 = vmatpush1.msra.mxu0 0.0
        %3225 = vmatprep.subr.mxu0 0.0
        %3226 = vmatpush1.msra.mxu0 0.0
        %3227 = vmatprep.subr.mxu0 0.0
        %3228 = vmatpush1.msra.mxu0 0.0
        %3229 = vmatprep.subr.mxu0 0.0
        %3230 = vmatpush1.msra.mxu0 0.0
        %3231 = vmatprep.subr.mxu0 0.0
        %3232 = vmatpush1.msra.mxu0 0.0
        %3233 = vmatprep.subr.mxu0 0.0
        %3234 = vmatpush1.msra.mxu0 0.0
        %3235 = vmatprep.subr.mxu0 0.0
        %3236 = vmatpush1.msra.mxu0 0.0
        %3237 = vmatprep.subr.mxu0 0.0
        %3238 = vmatpush1.msra.mxu0 0.0
        %3239 = vmatprep.subr.mxu0 0.0
        %3240 = vmatpush1.msra.mxu0 0.0
        %3241 = vmatprep.subr.mxu0 0.0
        %3242 = vmatpush1.msra.mxu0 0.0
        %3243 = vmatprep.subr.mxu0 0.0
        %3244 = vmatpush1.msra.mxu0 0.0
        %3245 = vmatprep.subr.mxu0 0.0
        %3246 = vmatpush1.msra.mxu0 0.0
        %3247 = vmatprep.subr.mxu0 0.0
        %3248 = vmatpush1.msra.mxu0 0.0
        %3249 = vmatprep.subr.mxu0 0.0
        %3250 = vmatpush1.msra.mxu0 0.0
        %3251 = vmatprep.subr.mxu0 0.0
        %3252 = vmatpush1.msra.mxu0 0.0
        %3253 = vmatprep.subr.mxu0 0.0
        %3254 = vmatpush1.msra.mxu0 0.0
        %3255 = vmatprep.subr.mxu0 0.0
        %3256 = vmatpush1.msra.mxu0 0.0
        %3257 = vmatprep.subr.mxu0 0.0
        %3258 = vmatpush1.msra.mxu0 0.0
        %3259 = vmatprep.subr.mxu0 0.0
        %3260 = vmatpush1.msra.mxu0 0.0
        %3261 = vmatprep.subr.mxu0 0.0
        %3262 = vmatpush1.msra.mxu0 0.0
        %3263 = vmatprep.subr.mxu0 0.0
        %3264 = vmatpush1.msra.mxu0 0.0
        %3265 = vmatprep.subr.mxu0 0.0
        %3266 = vmatpush1.msra.mxu0 0.0
        %3267 = vmatprep.subr.mxu0 0.0
        %3268 = vmatpush1.msra.mxu0 0.0
        %3269 = vmatprep.subr.mxu0 0.0
        %3270 = vmatpush1.msra.mxu0 0.0
        %3271 = vmatprep.subr.mxu0 0.0
        %3272 = vmatpush1.msra.mxu0 0.0
        %3273 = vmatprep.mubr.f32.mxu0 0.0
        %v3274 = vand.u32 %v2945, 4294901760
        %v3275 = vsub.f32 %v2945, %v3274
        %v3276 = vand.u32 %v3275, 4294901760
        %3277 = vmatmul.mubr.f32.gmra.mrb[0].mxu0 %v3276
        %v3278 = vpop.f32.mrb[0].mxu0
        %v3279 = vadd.f32 %v3197, %v3278
        %v3280 = vpop.f32.mrb[0].mxu0
        %3281 = vmatprep.mubr.f32.mxu0 0.0
        %v3282 = vand.u32 %v2948, 4294901760
        %v3283 = vsub.f32 %v2948, %v3282
        %v3284 = vand.u32 %v3283, 4294901760
        %3285 = vmatmul.mubr.f32.gmra.mrb[0].mxu0 %v3284
        %v3286 = vpop.f32.mrb[0].mxu0
        %v3287 = vadd.f32 %v3204, %v3286
        %v3288 = vpop.f32.mrb[0].mxu0
        %3289 = vdwg.mxu0
        %3290 = vmatprep.subr.mxu0 0.0
        %v3291 = vand.u32 %v1926, 4294901760
        %v3292 = vsub.f32 %v1926, %v3291
        %v3293 = vand.u32 %v3292, 4294901760
        %3294 = vmatpush1.msra.mxu0 %v3293
        %3295 = vmatprep.subr.mxu0 0.0
        %v3296 = vand.u32 %v1927, 4294901760
        %v3297 = vsub.f32 %v1927, %v3296
        %v3298 = vand.u32 %v3297, 4294901760
        %3299 = vmatpush1.msra.mxu0 %v3298
        %3300 = vmatprep.subr.mxu0 0.0
        %3301 = vmatpush1.msra.mxu0 0.0
        %3302 = vmatprep.subr.mxu0 0.0
        %3303 = vmatpush1.msra.mxu0 0.0
        %3304 = vmatprep.subr.mxu0 0.0
        %3305 = vmatpush1.msra.mxu0 0.0
        %3306 = vmatprep.subr.mxu0 0.0
        %3307 = vmatpush1.msra.mxu0 0.0
        %3308 = vmatprep.subr.mxu0 0.0
        %3309 = vmatpush1.msra.mxu0 0.0
        %3310 = vmatprep.subr.mxu0 0.0
        %3311 = vmatpush1.msra.mxu0 0.0
        %3312 = vmatprep.subr.mxu0 0.0
        %3313 = vmatpush1.msra.mxu0 0.0
        %3314 = vmatprep.subr.mxu0 0.0
        %3315 = vmatpush1.msra.mxu0 0.0
        %3316 = vmatprep.subr.mxu0 0.0
        %3317 = vmatpush1.msra.mxu0 0.0
        %3318 = vmatprep.subr.mxu0 0.0
        %3319 = vmatpush1.msra.mxu0 0.0
        %3320 = vmatprep.subr.mxu0 0.0
        %3321 = vmatpush1.msra.mxu0 0.0
        %3322 = vmatprep.subr.mxu0 0.0
        %3323 = vmatpush1.msra.mxu0 0.0
        %3324 = vmatprep.subr.mxu0 0.0
        %3325 = vmatpush1.msra.mxu0 0.0
        %3326 = vmatprep.subr.mxu0 0.0
        %3327 = vmatpush1.msra.mxu0 0.0
        %3328 = vmatprep.subr.mxu0 0.0
        %3329 = vmatpush1.msra.mxu0 0.0
        %3330 = vmatprep.subr.mxu0 0.0
        %3331 = vmatpush1.msra.mxu0 0.0
        %3332 = vmatprep.subr.mxu0 0.0
        %3333 = vmatpush1.msra.mxu0 0.0
        %3334 = vmatprep.subr.mxu0 0.0
        %3335 = vmatpush1.msra.mxu0 0.0
        %3336 = vmatprep.subr.mxu0 0.0
        %3337 = vmatpush1.msra.mxu0 0.0
        %3338 = vmatprep.subr.mxu0 0.0
        %3339 = vmatpush1.msra.mxu0 0.0
        %3340 = vmatprep.subr.mxu0 0.0
        %3341 = vmatpush1.msra.mxu0 0.0
        %3342 = vmatprep.subr.mxu0 0.0
        %3343 = vmatpush1.msra.mxu0 0.0
        %3344 = vmatprep.subr.mxu0 0.0
        %3345 = vmatpush1.msra.mxu0 0.0
        %3346 = vmatprep.subr.mxu0 0.0
        %3347 = vmatpush1.msra.mxu0 0.0
        %3348 = vmatprep.subr.mxu0 0.0
        %3349 = vmatpush1.msra.mxu0 0.0
        %3350 = vmatprep.subr.mxu0 0.0
        %3351 = vmatpush1.msra.mxu0 0.0
        %3352 = vmatprep.subr.mxu0 0.0
        %3353 = vmatpush1.msra.mxu0 0.0
        %3354 = vmatprep.subr.mxu0 0.0
        %3355 = vmatpush1.msra.mxu0 0.0
        %3356 = vmatprep.subr.mxu0 0.0
        %3357 = vmatpush1.msra.mxu0 0.0
        %3358 = vmatprep.subr.mxu0 0.0
        %3359 = vmatpush1.msra.mxu0 0.0
        %3360 = vmatprep.mubr.f32.mxu0 0.0
        %v3361 = vand.u32 %v2945, 4294901760
        %3362 = vmatmul.mubr.f32.gmra.mrb[0].mxu0 %v3361
        %v3363 = vpop.f32.mrb[0].mxu0
        %v3364 = vadd.f32 %v3279, %v3363
        %v3365 = vpop.f32.mrb[0].mxu0
        %3366 = vmatprep.mubr.f32.mxu0 0.0
        %v3367 = vand.u32 %v2948, 4294901760
        %3368 = vmatmul.mubr.f32.gmra.mrb[0].mxu0 %v3367
        %v3369 = vpop.f32.mrb[0].mxu0
        %v3370 = vadd.f32 %v3287, %v3369
        %v3371 = vpop.f32.mrb[0].mxu0
        %3372 = vdwg.mxu0
        %3373 = vmatprep.subr.mxu0 0.0
        %v3374 = vand.u32 %v1926, 4294901760
        %3375 = vmatpush1.msra.mxu0 %v3374
        %3376 = vmatprep.subr.mxu0 0.0
        %v3377 = vand.u32 %v1927, 4294901760
        %3378 = vmatpush1.msra.mxu0 %v3377
        %3379 = vmatprep.subr.mxu0 0.0
        %3380 = vmatpush1.msra.mxu0 0.0
        %3381 = vmatprep.subr.mxu0 0.0
        %3382 = vmatpush1.msra.mxu0 0.0
        %3383 = vmatprep.subr.mxu0 0.0
        %3384 = vmatpush1.msra.mxu0 0.0
        %3385 = vmatprep.subr.mxu0 0.0
        %3386 = vmatpush1.msra.mxu0 0.0
        %3387 = vmatprep.subr.mxu0 0.0
        %3388 = vmatpush1.msra.mxu0 0.0
        %3389 = vmatprep.subr.mxu0 0.0
        %3390 = vmatpush1.msra.mxu0 0.0
        %3391 = vmatprep.subr.mxu0 0.0
        %3392 = vmatpush1.msra.mxu0 0.0
        %3393 = vmatprep.subr.mxu0 0.0
        %3394 = vmatpush1.msra.mxu0 0.0
        %3395 = vmatprep.subr.mxu0 0.0
        %3396 = vmatpush1.msra.mxu0 0.0
        %3397 = vmatprep.subr.mxu0 0.0
        %3398 = vmatpush1.msra.mxu0 0.0
        %3399 = vmatprep.subr.mxu0 0.0
        %3400 = vmatpush1.msra.mxu0 0.0
        %3401 = vmatprep.subr.mxu0 0.0
        %3402 = vmatpush1.msra.mxu0 0.0
        %3403 = vmatprep.subr.mxu0 0.0
        %3404 = vmatpush1.msra.mxu0 0.0
        %3405 = vmatprep.subr.mxu0 0.0
        %3406 = vmatpush1.msra.mxu0 0.0
        %3407 = vmatprep.subr.mxu0 0.0
        %3408 = vmatpush1.msra.mxu0 0.0
        %3409 = vmatprep.subr.mxu0 0.0
        %3410 = vmatpush1.msra.mxu0 0.0
        %3411 = vmatprep.subr.mxu0 0.0
        %3412 = vmatpush1.msra.mxu0 0.0
        %3413 = vmatprep.subr.mxu0 0.0
        %3414 = vmatpush1.msra.mxu0 0.0
        %3415 = vmatprep.subr.mxu0 0.0
        %3416 = vmatpush1.msra.mxu0 0.0
        %3417 = vmatprep.subr.mxu0 0.0
        %3418 = vmatpush1.msra.mxu0 0.0
        %3419 = vmatprep.subr.mxu0 0.0
        %3420 = vmatpush1.msra.mxu0 0.0
        %3421 = vmatprep.subr.mxu0 0.0
        %3422 = vmatpush1.msra.mxu0 0.0
        %3423 = vmatprep.subr.mxu0 0.0
        %3424 = vmatpush1.msra.mxu0 0.0
        %3425 = vmatprep.subr.mxu0 0.0
        %3426 = vmatpush1.msra.mxu0 0.0
        %3427 = vmatprep.subr.mxu0 0.0
        %3428 = vmatpush1.msra.mxu0 0.0
        %3429 = vmatprep.subr.mxu0 0.0
        %3430 = vmatpush1.msra.mxu0 0.0
        %3431 = vmatprep.subr.mxu0 0.0
        %3432 = vmatpush1.msra.mxu0 0.0
        %3433 = vmatprep.subr.mxu0 0.0
        %3434 = vmatpush1.msra.mxu0 0.0
        %3435 = vmatprep.subr.mxu0 0.0
        %3436 = vmatpush1.msra.mxu0 0.0
        %3437 = vmatprep.subr.mxu0 0.0
        %3438 = vmatpush1.msra.mxu0 0.0
        %3439 = vmatprep.mubr.f32.mxu0 0.0
        %v3440 = vand.u32 %v2945, 4294901760
        %3441 = vmatmul.mubr.f32.gmra.mrb[0].mxu0 %v3440
        %v3442 = vpop.f32.mrb[0].mxu0
        %v3443 = vadd.f32 %v3364, %v3442
        %v3444 = vpop.f32.mrb[0].mxu0
        %3445 = vmatprep.mubr.f32.mxu0 0.0
        %v3446 = vand.u32 %v2948, 4294901760
        %3447 = vmatmul.mubr.f32.gmra.mrb[0].mxu0 %v3446
        %v3448 = vpop.f32.mrb[0].mxu0
        %v3449 = vadd.f32 %v3370, %v3448
        %v3450 = vpop.f32.mrb[0].mxu0
        %3451 = vdwg.mxu0
        %v3453 = vsel %vm670, %v1924, 0
        %v3456 = vsel %vm670, %v1925, 0
        %3458 = vmatprep.subr.mxu0 0.0
        %v3459 = vand.u32 %v1926, 4294901760
        %3460 = vmatpush1.msra.mxu0 %v3459
        %3461 = vmatprep.subr.mxu0 0.0
        %v3462 = vand.u32 %v1927, 4294901760
        %3463 = vmatpush1.msra.mxu0 %v3462
        %3464 = vmatprep.subr.mxu0 0.0
        %3465 = vmatpush1.msra.mxu0 0.0
        %3466 = vmatprep.subr.mxu0 0.0
        %3467 = vmatpush1.msra.mxu0 0.0
        %3468 = vmatprep.subr.mxu0 0.0
        %3469 = vmatpush1.msra.mxu0 0.0
        %3470 = vmatprep.subr.mxu0 0.0
        %3471 = vmatpush1.msra.mxu0 0.0
        %3472 = vmatprep.subr.mxu0 0.0
        %3473 = vmatpush1.msra.mxu0 0.0
        %3474 = vmatprep.subr.mxu0 0.0
        %3475 = vmatpush1.msra.mxu0 0.0
        %3476 = vmatprep.subr.mxu0 0.0
        %3477 = vmatpush1.msra.mxu0 0.0
        %3478 = vmatprep.subr.mxu0 0.0
        %3479 = vmatpush1.msra.mxu0 0.0
        %3480 = vmatprep.subr.mxu0 0.0
        %3481 = vmatpush1.msra.mxu0 0.0
        %3482 = vmatprep.subr.mxu0 0.0
        %3483 = vmatpush1.msra.mxu0 0.0
        %3484 = vmatprep.subr.mxu0 0.0
        %3485 = vmatpush1.msra.mxu0 0.0
        %3486 = vmatprep.subr.mxu0 0.0
        %3487 = vmatpush1.msra.mxu0 0.0
        %3488 = vmatprep.subr.mxu0 0.0
        %3489 = vmatpush1.msra.mxu0 0.0
        %3490 = vmatprep.subr.mxu0 0.0
        %3491 = vmatpush1.msra.mxu0 0.0
        %3492 = vmatprep.subr.mxu0 0.0
        %3493 = vmatpush1.msra.mxu0 0.0
        %3494 = vmatprep.subr.mxu0 0.0
        %3495 = vmatpush1.msra.mxu0 0.0
        %3496 = vmatprep.subr.mxu0 0.0
        %3497 = vmatpush1.msra.mxu0 0.0
        %3498 = vmatprep.subr.mxu0 0.0
        %3499 = vmatpush1.msra.mxu0 0.0
        %3500 = vmatprep.subr.mxu0 0.0
        %3501 = vmatpush1.msra.mxu0 0.0
        %3502 = vmatprep.subr.mxu0 0.0
        %3503 = vmatpush1.msra.mxu0 0.0
        %3504 = vmatprep.subr.mxu0 0.0
        %3505 = vmatpush1.msra.mxu0 0.0
        %3506 = vmatprep.subr.mxu0 0.0
        %3507 = vmatpush1.msra.mxu0 0.0
        %3508 = vmatprep.subr.mxu0 0.0
        %3509 = vmatpush1.msra.mxu0 0.0
        %3510 = vmatprep.subr.mxu0 0.0
        %3511 = vmatpush1.msra.mxu0 0.0
        %3512 = vmatprep.subr.mxu0 0.0
        %3513 = vmatpush1.msra.mxu0 0.0
        %3514 = vmatprep.subr.mxu0 0.0
        %3515 = vmatpush1.msra.mxu0 0.0
        %3516 = vmatprep.subr.mxu0 0.0
        %3517 = vmatpush1.msra.mxu0 0.0
        %3518 = vmatprep.subr.mxu0 0.0
        %3519 = vmatpush1.msra.mxu0 0.0
        %3520 = vmatprep.subr.mxu0 0.0
        %3521 = vmatpush1.msra.mxu0 0.0
        %3522 = vmatprep.subr.mxu0 0.0
        %3523 = vmatpush1.msra.mxu0 0.0
        %3524 = vmatprep.mubr.f32.mxu0 0.0
        %v3525 = vand.u32 %v3453, 4294901760
        %v3526 = vsub.f32 %v3453, %v3525
        %v3527 = vand.u32 %v3526, 4294901760
        %v3528 = vsub.f32 %v3526, %v3527
        %v3529 = vand.u32 %v3528, 4294901760
        %3530 = vmatmul.mubr.f32.gmra.mrb[0].mxu0 %v3529
        %v3531 = vpop.f32.mrb[0].mxu0
        %v3532 = vadd.f32 0.0, %v3531
        %v3533 = vpop.f32.mrb[0].mxu0
        %3534 = vmatprep.mubr.f32.mxu0 0.0
        %v3535 = vand.u32 %v3456, 4294901760
        %v3536 = vsub.f32 %v3456, %v3535
        %v3537 = vand.u32 %v3536, 4294901760
        %v3538 = vsub.f32 %v3536, %v3537
        %v3539 = vand.u32 %v3538, 4294901760
        %3540 = vmatmul.mubr.f32.gmra.mrb[0].mxu0 %v3539
        %v3541 = vpop.f32.mrb[0].mxu0
        %v3542 = vadd.f32 0.0, %v3541
        %v3543 = vpop.f32.mrb[0].mxu0
        %3544 = vdwg.mxu0
        %3545 = vmatprep.subr.mxu0 0.0
        %v3546 = vand.u32 %v1926, 4294901760
        %v3547 = vsub.f32 %v1926, %v3546
        %v3548 = vand.u32 %v3547, 4294901760
        %v3549 = vsub.f32 %v3547, %v3548
        %v3550 = vand.u32 %v3549, 4294901760
        %3551 = vmatpush1.msra.mxu0 %v3550
        %3552 = vmatprep.subr.mxu0 0.0
        %v3553 = vand.u32 %v1927, 4294901760
        %v3554 = vsub.f32 %v1927, %v3553
        %v3555 = vand.u32 %v3554, 4294901760
        %v3556 = vsub.f32 %v3554, %v3555
        %v3557 = vand.u32 %v3556, 4294901760
        %3558 = vmatpush1.msra.mxu0 %v3557
        %3559 = vmatprep.subr.mxu0 0.0
        %3560 = vmatpush1.msra.mxu0 0.0
        %3561 = vmatprep.subr.mxu0 0.0
        %3562 = vmatpush1.msra.mxu0 0.0
        %3563 = vmatprep.subr.mxu0 0.0
        %3564 = vmatpush1.msra.mxu0 0.0
        %3565 = vmatprep.subr.mxu0 0.0
        %3566 = vmatpush1.msra.mxu0 0.0
        %3567 = vmatprep.subr.mxu0 0.0
        %3568 = vmatpush1.msra.mxu0 0.0
        %3569 = vmatprep.subr.mxu0 0.0
        %3570 = vmatpush1.msra.mxu0 0.0
        %3571 = vmatprep.subr.mxu0 0.0
        %3572 = vmatpush1.msra.mxu0 0.0
        %3573 = vmatprep.subr.mxu0 0.0
        %3574 = vmatpush1.msra.mxu0 0.0
        %3575 = vmatprep.subr.mxu0 0.0
        %3576 = vmatpush1.msra.mxu0 0.0
        %3577 = vmatprep.subr.mxu0 0.0
        %3578 = vmatpush1.msra.mxu0 0.0
        %3579 = vmatprep.subr.mxu0 0.0
        %3580 = vmatpush1.msra.mxu0 0.0
        %3581 = vmatprep.subr.mxu0 0.0
        %3582 = vmatpush1.msra.mxu0 0.0
        %3583 = vmatprep.subr.mxu0 0.0
        %3584 = vmatpush1.msra.mxu0 0.0
        %3585 = vmatprep.subr.mxu0 0.0
        %3586 = vmatpush1.msra.mxu0 0.0
        %3587 = vmatprep.subr.mxu0 0.0
        %3588 = vmatpush1.msra.mxu0 0.0
        %3589 = vmatprep.subr.mxu0 0.0
        %3590 = vmatpush1.msra.mxu0 0.0
        %3591 = vmatprep.subr.mxu0 0.0
        %3592 = vmatpush1.msra.mxu0 0.0
        %3593 = vmatprep.subr.mxu0 0.0
        %3594 = vmatpush1.msra.mxu0 0.0
        %3595 = vmatprep.subr.mxu0 0.0
        %3596 = vmatpush1.msra.mxu0 0.0
        %3597 = vmatprep.subr.mxu0 0.0
        %3598 = vmatpush1.msra.mxu0 0.0
        %3599 = vmatprep.subr.mxu0 0.0
        %3600 = vmatpush1.msra.mxu0 0.0
        %3601 = vmatprep.subr.mxu0 0.0
        %3602 = vmatpush1.msra.mxu0 0.0
        %3603 = vmatprep.subr.mxu0 0.0
        %3604 = vmatpush1.msra.mxu0 0.0
        %3605 = vmatprep.subr.mxu0 0.0
        %3606 = vmatpush1.msra.mxu0 0.0
        %3607 = vmatprep.subr.mxu0 0.0
        %3608 = vmatpush1.msra.mxu0 0.0
        %3609 = vmatprep.subr.mxu0 0.0
        %3610 = vmatpush1.msra.mxu0 0.0
        %3611 = vmatprep.subr.mxu0 0.0
        %3612 = vmatpush1.msra.mxu0 0.0
        %3613 = vmatprep.subr.mxu0 0.0
        %3614 = vmatpush1.msra.mxu0 0.0
        %3615 = vmatprep.subr.mxu0 0.0
        %3616 = vmatpush1.msra.mxu0 0.0
        %3617 = vmatprep.subr.mxu0 0.0
        %3618 = vmatpush1.msra.mxu0 0.0
        %3619 = vmatprep.mubr.f32.mxu0 0.0
        %v3620 = vand.u32 %v3453, 4294901760
        %3621 = vmatmul.mubr.f32.gmra.mrb[0].mxu0 %v3620
        %v3622 = vpop.f32.mrb[0].mxu0
        %v3623 = vadd.f32 %v3532, %v3622
        %v3624 = vpop.f32.mrb[0].mxu0
        %3625 = vmatprep.mubr.f32.mxu0 0.0
        %v3626 = vand.u32 %v3456, 4294901760
        %3627 = vmatmul.mubr.f32.gmra.mrb[0].mxu0 %v3626
        %v3628 = vpop.f32.mrb[0].mxu0
        %v3629 = vadd.f32 %v3542, %v3628
        %v3630 = vpop.f32.mrb[0].mxu0
        %3631 = vdwg.mxu0
        %3632 = vmatprep.subr.mxu0 0.0
        %v3633 = vand.u32 %v1926, 4294901760
        %v3634 = vsub.f32 %v1926, %v3633
        %3635 = vmatpush1.msra.mxu0 %v3634
        %3636 = vmatprep.subr.mxu0 0.0
        %v3637 = vand.u32 %v1927, 4294901760
        %v3638 = vsub.f32 %v1927, %v3637
        %3639 = vmatpush1.msra.mxu0 %v3638
        %3640 = vmatprep.subr.mxu0 0.0
        %3641 = vmatpush1.msra.mxu0 0.0
        %3642 = vmatprep.subr.mxu0 0.0
        %3643 = vmatpush1.msra.mxu0 0.0
        %3644 = vmatprep.subr.mxu0 0.0
        %3645 = vmatpush1.msra.mxu0 0.0
        %3646 = vmatprep.subr.mxu0 0.0
        %3647 = vmatpush1.msra.mxu0 0.0
        %3648 = vmatprep.subr.mxu0 0.0
        %3649 = vmatpush1.msra.mxu0 0.0
        %3650 = vmatprep.subr.mxu0 0.0
        %3651 = vmatpush1.msra.mxu0 0.0
        %3652 = vmatprep.subr.mxu0 0.0
        %3653 = vmatpush1.msra.mxu0 0.0
        %3654 = vmatprep.subr.mxu0 0.0
        %3655 = vmatpush1.msra.mxu0 0.0
        %3656 = vmatprep.subr.mxu0 0.0
        %3657 = vmatpush1.msra.mxu0 0.0
        %3658 = vmatprep.subr.mxu0 0.0
        %3659 = vmatpush1.msra.mxu0 0.0
        %3660 = vmatprep.subr.mxu0 0.0
        %3661 = vmatpush1.msra.mxu0 0.0
        %3662 = vmatprep.subr.mxu0 0.0
        %3663 = vmatpush1.msra.mxu0 0.0
        %3664 = vmatprep.subr.mxu0 0.0
        %3665 = vmatpush1.msra.mxu0 0.0
        %3666 = vmatprep.subr.mxu0 0.0
        %3667 = vmatpush1.msra.mxu0 0.0
        %3668 = vmatprep.subr.mxu0 0.0
        %3669 = vmatpush1.msra.mxu0 0.0
        %3670 = vmatprep.subr.mxu0 0.0
        %3671 = vmatpush1.msra.mxu0 0.0
        %3672 = vmatprep.subr.mxu0 0.0
        %3673 = vmatpush1.msra.mxu0 0.0
        %3674 = vmatprep.subr.mxu0 0.0
        %3675 = vmatpush1.msra.mxu0 0.0
        %3676 = vmatprep.subr.mxu0 0.0
        %3677 = vmatpush1.msra.mxu0 0.0
        %3678 = vmatprep.subr.mxu0 0.0
        %3679 = vmatpush1.msra.mxu0 0.0
        %3680 = vmatprep.subr.mxu0 0.0
        %3681 = vmatpush1.msra.mxu0 0.0
        %3682 = vmatprep.subr.mxu0 0.0
        %3683 = vmatpush1.msra.mxu0 0.0
        %3684 = vmatprep.subr.mxu0 0.0
        %3685 = vmatpush1.msra.mxu0 0.0
        %3686 = vmatprep.subr.mxu0 0.0
        %3687 = vmatpush1.msra.mxu0 0.0
        %3688 = vmatprep.subr.mxu0 0.0
        %3689 = vmatpush1.msra.mxu0 0.0
        %3690 = vmatprep.subr.mxu0 0.0
        %3691 = vmatpush1.msra.mxu0 0.0
        %3692 = vmatprep.subr.mxu0 0.0
        %3693 = vmatpush1.msra.mxu0 0.0
        %3694 = vmatprep.subr.mxu0 0.0
        %3695 = vmatpush1.msra.mxu0 0.0
        %3696 = vmatprep.subr.mxu0 0.0
        %3697 = vmatpush1.msra.mxu0 0.0
        %3698 = vmatprep.subr.mxu0 0.0
        %3699 = vmatpush1.msra.mxu0 0.0
        %3700 = vmatprep.mubr.f32.mxu0 0.0
        %v3701 = vand.u32 %v3453, 4294901760
        %v3702 = vsub.f32 %v3453, %v3701
        %3703 = vmatmul.mubr.f32.gmra.mrb[0].mxu0 %v3702
        %v3704 = vpop.f32.mrb[0].mxu0
        %v3705 = vadd.f32 %v3623, %v3704
        %v3706 = vpop.f32.mrb[0].mxu0
        %3707 = vmatprep.mubr.f32.mxu0 0.0
        %v3708 = vand.u32 %v3456, 4294901760
        %v3709 = vsub.f32 %v3456, %v3708
        %3710 = vmatmul.mubr.f32.gmra.mrb[0].mxu0 %v3709
        %v3711 = vpop.f32.mrb[0].mxu0
        %v3712 = vadd.f32 %v3629, %v3711
        %v3713 = vpop.f32.mrb[0].mxu0
        %3714 = vdwg.mxu0
        %3715 = vmatprep.subr.mxu0 0.0
        %v3716 = vand.u32 %v1926, 4294901760
        %3717 = vmatpush1.msra.mxu0 %v3716
        %3718 = vmatprep.subr.mxu0 0.0
        %v3719 = vand.u32 %v1927, 4294901760
        %3720 = vmatpush1.msra.mxu0 %v3719
        %3721 = vmatprep.subr.mxu0 0.0
        %3722 = vmatpush1.msra.mxu0 0.0
        %3723 = vmatprep.subr.mxu0 0.0
        %3724 = vmatpush1.msra.mxu0 0.0
        %3725 = vmatprep.subr.mxu0 0.0
        %3726 = vmatpush1.msra.mxu0 0.0
        %3727 = vmatprep.subr.mxu0 0.0
        %3728 = vmatpush1.msra.mxu0 0.0
        %3729 = vmatprep.subr.mxu0 0.0
        %3730 = vmatpush1.msra.mxu0 0.0
        %3731 = vmatprep.subr.mxu0 0.0
        %3732 = vmatpush1.msra.mxu0 0.0
        %3733 = vmatprep.subr.mxu0 0.0
        %3734 = vmatpush1.msra.mxu0 0.0
        %3735 = vmatprep.subr.mxu0 0.0
        %3736 = vmatpush1.msra.mxu0 0.0
        %3737 = vmatprep.subr.mxu0 0.0
        %3738 = vmatpush1.msra.mxu0 0.0
        %3739 = vmatprep.subr.mxu0 0.0
        %3740 = vmatpush1.msra.mxu0 0.0
        %3741 = vmatprep.subr.mxu0 0.0
        %3742 = vmatpush1.msra.mxu0 0.0
        %3743 = vmatprep.subr.mxu0 0.0
        %3744 = vmatpush1.msra.mxu0 0.0
        %3745 = vmatprep.subr.mxu0 0.0
        %3746 = vmatpush1.msra.mxu0 0.0
        %3747 = vmatprep.subr.mxu0 0.0
        %3748 = vmatpush1.msra.mxu0 0.0
        %3749 = vmatprep.subr.mxu0 0.0
        %3750 = vmatpush1.msra.mxu0 0.0
        %3751 = vmatprep.subr.mxu0 0.0
        %3752 = vmatpush1.msra.mxu0 0.0
        %3753 = vmatprep.subr.mxu0 0.0
        %3754 = vmatpush1.msra.mxu0 0.0
        %3755 = vmatprep.subr.mxu0 0.0
        %3756 = vmatpush1.msra.mxu0 0.0
        %3757 = vmatprep.subr.mxu0 0.0
        %3758 = vmatpush1.msra.mxu0 0.0
        %3759 = vmatprep.subr.mxu0 0.0
        %3760 = vmatpush1.msra.mxu0 0.0
        %3761 = vmatprep.subr.mxu0 0.0
        %3762 = vmatpush1.msra.mxu0 0.0
        %3763 = vmatprep.subr.mxu0 0.0
        %3764 = vmatpush1.msra.mxu0 0.0
        %3765 = vmatprep.subr.mxu0 0.0
        %3766 = vmatpush1.msra.mxu0 0.0
        %3767 = vmatprep.subr.mxu0 0.0
        %3768 = vmatpush1.msra.mxu0 0.0
        %3769 = vmatprep.subr.mxu0 0.0
        %3770 = vmatpush1.msra.mxu0 0.0
        %3771 = vmatprep.subr.mxu0 0.0
        %3772 = vmatpush1.msra.mxu0 0.0
        %3773 = vmatprep.subr.mxu0 0.0
        %3774 = vmatpush1.msra.mxu0 0.0
        %3775 = vmatprep.subr.mxu0 0.0
        %3776 = vmatpush1.msra.mxu0 0.0
        %3777 = vmatprep.subr.mxu0 0.0
        %3778 = vmatpush1.msra.mxu0 0.0
        %3779 = vmatprep.subr.mxu0 0.0
        %3780 = vmatpush1.msra.mxu0 0.0
        %3781 = vmatprep.mubr.f32.mxu0 0.0
        %v3782 = vand.u32 %v3453, 4294901760
        %v3783 = vsub.f32 %v3453, %v3782
        %v3784 = vand.u32 %v3783, 4294901760
        %3785 = vmatmul.mubr.f32.gmra.mrb[0].mxu0 %v3784
        %v3786 = vpop.f32.mrb[0].mxu0
        %v3787 = vadd.f32 %v3705, %v3786
        %v3788 = vpop.f32.mrb[0].mxu0
        %3789 = vmatprep.mubr.f32.mxu0 0.0
        %v3790 = vand.u32 %v3456, 4294901760
        %v3791 = vsub.f32 %v3456, %v3790
        %v3792 = vand.u32 %v3791, 4294901760
        %3793 = vmatmul.mubr.f32.gmra.mrb[0].mxu0 %v3792
        %v3794 = vpop.f32.mrb[0].mxu0
        %v3795 = vadd.f32 %v3712, %v3794
        %v3796 = vpop.f32.mrb[0].mxu0
        %3797 = vdwg.mxu0
        %3798 = vmatprep.subr.mxu0 0.0
        %v3799 = vand.u32 %v1926, 4294901760
        %v3800 = vsub.f32 %v1926, %v3799
        %v3801 = vand.u32 %v3800, 4294901760
        %3802 = vmatpush1.msra.mxu0 %v3801
        %3803 = vmatprep.subr.mxu0 0.0
        %v3804 = vand.u32 %v1927, 4294901760
        %v3805 = vsub.f32 %v1927, %v3804
        %v3806 = vand.u32 %v3805, 4294901760
        %3807 = vmatpush1.msra.mxu0 %v3806
        %3808 = vmatprep.subr.mxu0 0.0
        %3809 = vmatpush1.msra.mxu0 0.0
        %3810 = vmatprep.subr.mxu0 0.0
        %3811 = vmatpush1.msra.mxu0 0.0
        %3812 = vmatprep.subr.mxu0 0.0
        %3813 = vmatpush1.msra.mxu0 0.0
        %3814 = vmatprep.subr.mxu0 0.0
        %3815 = vmatpush1.msra.mxu0 0.0
        %3816 = vmatprep.subr.mxu0 0.0
        %3817 = vmatpush1.msra.mxu0 0.0
        %3818 = vmatprep.subr.mxu0 0.0
        %3819 = vmatpush1.msra.mxu0 0.0
        %3820 = vmatprep.subr.mxu0 0.0
        %3821 = vmatpush1.msra.mxu0 0.0
        %3822 = vmatprep.subr.mxu0 0.0
        %3823 = vmatpush1.msra.mxu0 0.0
        %3824 = vmatprep.subr.mxu0 0.0
        %3825 = vmatpush1.msra.mxu0 0.0
        %3826 = vmatprep.subr.mxu0 0.0
        %3827 = vmatpush1.msra.mxu0 0.0
        %3828 = vmatprep.subr.mxu0 0.0
        %3829 = vmatpush1.msra.mxu0 0.0
        %3830 = vmatprep.subr.mxu0 0.0
        %3831 = vmatpush1.msra.mxu0 0.0
        %3832 = vmatprep.subr.mxu0 0.0
        %3833 = vmatpush1.msra.mxu0 0.0
        %3834 = vmatprep.subr.mxu0 0.0
        %3835 = vmatpush1.msra.mxu0 0.0
        %3836 = vmatprep.subr.mxu0 0.0
        %3837 = vmatpush1.msra.mxu0 0.0
        %3838 = vmatprep.subr.mxu0 0.0
        %3839 = vmatpush1.msra.mxu0 0.0
        %3840 = vmatprep.subr.mxu0 0.0
        %3841 = vmatpush1.msra.mxu0 0.0
        %3842 = vmatprep.subr.mxu0 0.0
        %3843 = vmatpush1.msra.mxu0 0.0
        %3844 = vmatprep.subr.mxu0 0.0
        %3845 = vmatpush1.msra.mxu0 0.0
        %3846 = vmatprep.subr.mxu0 0.0
        %3847 = vmatpush1.msra.mxu0 0.0
        %3848 = vmatprep.subr.mxu0 0.0
        %3849 = vmatpush1.msra.mxu0 0.0
        %3850 = vmatprep.subr.mxu0 0.0
        %3851 = vmatpush1.msra.mxu0 0.0
        %3852 = vmatprep.subr.mxu0 0.0
        %3853 = vmatpush1.msra.mxu0 0.0
        %3854 = vmatprep.subr.mxu0 0.0
        %3855 = vmatpush1.msra.mxu0 0.0
        %3856 = vmatprep.subr.mxu0 0.0
        %3857 = vmatpush1.msra.mxu0 0.0
        %3858 = vmatprep.subr.mxu0 0.0
        %3859 = vmatpush1.msra.mxu0 0.0
        %3860 = vmatprep.subr.mxu0 0.0
        %3861 = vmatpush1.msra.mxu0 0.0
        %3862 = vmatprep.subr.mxu0 0.0
        %3863 = vmatpush1.msra.mxu0 0.0
        %3864 = vmatprep.subr.mxu0 0.0
        %3865 = vmatpush1.msra.mxu0 0.0
        %3866 = vmatprep.subr.mxu0 0.0
        %3867 = vmatpush1.msra.mxu0 0.0
        %3868 = vmatprep.mubr.f32.mxu0 0.0
        %v3869 = vand.u32 %v3453, 4294901760
        %3870 = vmatmul.mubr.f32.gmra.mrb[0].mxu0 %v3869
        %v3871 = vpop.f32.mrb[0].mxu0
        %v3872 = vadd.f32 %v3787, %v3871
        %v3873 = vpop.f32.mrb[0].mxu0
        %3874 = vmatprep.mubr.f32.mxu0 0.0
        %v3875 = vand.u32 %v3456, 4294901760
        %3876 = vmatmul.mubr.f32.gmra.mrb[0].mxu0 %v3875
        %v3877 = vpop.f32.mrb[0].mxu0
        %v3878 = vadd.f32 %v3795, %v3877
        %v3879 = vpop.f32.mrb[0].mxu0
        %3880 = vdwg.mxu0
        %3881 = vmatprep.subr.mxu0 0.0
        %v3882 = vand.u32 %v1926, 4294901760
        %3883 = vmatpush1.msra.mxu0 %v3882
        %3884 = vmatprep.subr.mxu0 0.0
        %v3885 = vand.u32 %v1927, 4294901760
        %3886 = vmatpush1.msra.mxu0 %v3885
        %3887 = vmatprep.subr.mxu0 0.0
        %3888 = vmatpush1.msra.mxu0 0.0
        %3889 = vmatprep.subr.mxu0 0.0
        %3890 = vmatpush1.msra.mxu0 0.0
        %3891 = vmatprep.subr.mxu0 0.0
        %3892 = vmatpush1.msra.mxu0 0.0
        %3893 = vmatprep.subr.mxu0 0.0
        %3894 = vmatpush1.msra.mxu0 0.0
        %3895 = vmatprep.subr.mxu0 0.0
        %3896 = vmatpush1.msra.mxu0 0.0
        %3897 = vmatprep.subr.mxu0 0.0
        %3898 = vmatpush1.msra.mxu0 0.0
        %3899 = vmatprep.subr.mxu0 0.0
        %3900 = vmatpush1.msra.mxu0 0.0
        %3901 = vmatprep.subr.mxu0 0.0
        %3902 = vmatpush1.msra.mxu0 0.0
        %3903 = vmatprep.subr.mxu0 0.0
        %3904 = vmatpush1.msra.mxu0 0.0
        %3905 = vmatprep.subr.mxu0 0.0
        %3906 = vmatpush1.msra.mxu0 0.0
        %3907 = vmatprep.subr.mxu0 0.0
        %3908 = vmatpush1.msra.mxu0 0.0
        %3909 = vmatprep.subr.mxu0 0.0
        %3910 = vmatpush1.msra.mxu0 0.0
        %3911 = vmatprep.subr.mxu0 0.0
        %3912 = vmatpush1.msra.mxu0 0.0
        %3913 = vmatprep.subr.mxu0 0.0
        %3914 = vmatpush1.msra.mxu0 0.0
        %3915 = vmatprep.subr.mxu0 0.0
        %3916 = vmatpush1.msra.mxu0 0.0
        %3917 = vmatprep.subr.mxu0 0.0
        %3918 = vmatpush1.msra.mxu0 0.0
        %3919 = vmatprep.subr.mxu0 0.0
        %3920 = vmatpush1.msra.mxu0 0.0
        %3921 = vmatprep.subr.mxu0 0.0
        %3922 = vmatpush1.msra.mxu0 0.0
        %3923 = vmatprep.subr.mxu0 0.0
        %3924 = vmatpush1.msra.mxu0 0.0
        %3925 = vmatprep.subr.mxu0 0.0
        %3926 = vmatpush1.msra.mxu0 0.0
        %3927 = vmatprep.subr.mxu0 0.0
        %3928 = vmatpush1.msra.mxu0 0.0
        %3929 = vmatprep.subr.mxu0 0.0
        %3930 = vmatpush1.msra.mxu0 0.0
        %3931 = vmatprep.subr.mxu0 0.0
        %3932 = vmatpush1.msra.mxu0 0.0
        %3933 = vmatprep.subr.mxu0 0.0
        %3934 = vmatpush1.msra.mxu0 0.0
        %3935 = vmatprep.subr.mxu0 0.0
        %3936 = vmatpush1.msra.mxu0 0.0
        %3937 = vmatprep.subr.mxu0 0.0
        %3938 = vmatpush1.msra.mxu0 0.0
        %3939 = vmatprep.subr.mxu0 0.0
        %3940 = vmatpush1.msra.mxu0 0.0
        %3941 = vmatprep.subr.mxu0 0.0
        %3942 = vmatpush1.msra.mxu0 0.0
        %3943 = vmatprep.subr.mxu0 0.0
        %3944 = vmatpush1.msra.mxu0 0.0
        %3945 = vmatprep.subr.mxu0 0.0
        %3946 = vmatpush1.msra.mxu0 0.0
        %3947 = vmatprep.mubr.f32.mxu0 0.0
        %v3948 = vand.u32 %v3453, 4294901760
        %3949 = vmatmul.mubr.f32.gmra.mrb[0].mxu0 %v3948
        %v3950 = vpop.f32.mrb[0].mxu0
        %v3951 = vadd.f32 %v3872, %v3950
        %v3952 = vpop.f32.mrb[0].mxu0
        %3953 = vmatprep.mubr.f32.mxu0 0.0
        %v3954 = vand.u32 %v3456, 4294901760
        %3955 = vmatmul.mubr.f32.gmra.mrb[0].mxu0 %v3954
        %v3956 = vpop.f32.mrb[0].mxu0
        %v3957 = vadd.f32 %v3878, %v3956
        %v3958 = vpop.f32.mrb[0].mxu0
        %3959 = vdwg.mxu0
        %v3960 = vld [vmem:[%s5] sm:$0xff]
        %v3961 = vld [vmem:[%s5 + $0x8] sm:$0xff]
        %v3962 = vld [vmem:[%s5 + $0x10] sm:$0xff]
        %v3963 = vld [vmem:[%s5 + $0x18] sm:$0xff]
        %v3965 = vsel %vm670, %v3960, 0
        %v3968 = vsel %vm670, %v3961, 0
        %v3971 = vsel %vm670, %v3962, 0
        %v3974 = vsel %vm670, %v3963, 0
        %3976 = vmatprep.subr.mxu0 0.0
        %v3977 = vand.u32 %v2427, 4294901760
        %3978 = vmatpush1.msra.mxu0 %v3977
        %3979 = vmatprep.subr.mxu0 0.0
        %v3980 = vand.u32 %v2433, 4294901760
        %3981 = vmatpush1.msra.mxu0 %v3980
        %3982 = vmatprep.subr.mxu0 0.0
        %3983 = vmatpush1.msra.mxu0 0.0
        %3984 = vmatprep.subr.mxu0 0.0
        %3985 = vmatpush1.msra.mxu0 0.0
        %3986 = vmatprep.subr.mxu0 0.0
        %3987 = vmatpush1.msra.mxu0 0.0
        %3988 = vmatprep.subr.mxu0 0.0
        %3989 = vmatpush1.msra.mxu0 0.0
        %3990 = vmatprep.subr.mxu0 0.0
        %3991 = vmatpush1.msra.mxu0 0.0
        %3992 = vmatprep.subr.mxu0 0.0
        %3993 = vmatpush1.msra.mxu0 0.0
        %3994 = vmatprep.subr.mxu0 0.0
        %3995 = vmatpush1.msra.mxu0 0.0
        %3996 = vmatprep.subr.mxu0 0.0
        %3997 = vmatpush1.msra.mxu0 0.0
        %3998 = vmatprep.subr.mxu0 0.0
        %3999 = vmatpush1.msra.mxu0 0.0
        %4000 = vmatprep.subr.mxu0 0.0
        %4001 = vmatpush1.msra.mxu0 0.0
        %4002 = vmatprep.subr.mxu0 0.0
        %4003 = vmatpush1.msra.mxu0 0.0
        %4004 = vmatprep.subr.mxu0 0.0
        %4005 = vmatpush1.msra.mxu0 0.0
        %4006 = vmatprep.subr.mxu0 0.0
        %4007 = vmatpush1.msra.mxu0 0.0
        %4008 = vmatprep.subr.mxu0 0.0
        %4009 = vmatpush1.msra.mxu0 0.0
        %4010 = vmatprep.subr.mxu0 0.0
        %4011 = vmatpush1.msra.mxu0 0.0
        %4012 = vmatprep.subr.mxu0 0.0
        %4013 = vmatpush1.msra.mxu0 0.0
        %4014 = vmatprep.subr.mxu0 0.0
        %4015 = vmatpush1.msra.mxu0 0.0
        %4016 = vmatprep.subr.mxu0 0.0
        %4017 = vmatpush1.msra.mxu0 0.0
        %4018 = vmatprep.subr.mxu0 0.0
        %4019 = vmatpush1.msra.mxu0 0.0
        %4020 = vmatprep.subr.mxu0 0.0
        %4021 = vmatpush1.msra.mxu0 0.0
        %4022 = vmatprep.subr.mxu0 0.0
        %4023 = vmatpush1.msra.mxu0 0.0
        %4024 = vmatprep.subr.mxu0 0.0
        %4025 = vmatpush1.msra.mxu0 0.0
        %4026 = vmatprep.subr.mxu0 0.0
        %4027 = vmatpush1.msra.mxu0 0.0
        %4028 = vmatprep.subr.mxu0 0.0
        %4029 = vmatpush1.msra.mxu0 0.0
        %4030 = vmatprep.subr.mxu0 0.0
        %4031 = vmatpush1.msra.mxu0 0.0
        %4032 = vmatprep.subr.mxu0 0.0
        %4033 = vmatpush1.msra.mxu0 0.0
        %4034 = vmatprep.subr.mxu0 0.0
        %4035 = vmatpush1.msra.mxu0 0.0
        %4036 = vmatprep.subr.mxu0 0.0
        %4037 = vmatpush1.msra.mxu0 0.0
        %4038 = vmatprep.subr.mxu0 0.0
        %4039 = vmatpush1.msra.mxu0 0.0
        %4040 = vmatprep.subr.mxu0 0.0
        %4041 = vmatpush1.msra.mxu0 0.0
        %4042 = vmatprep.mubr.f32.mxu0 0.0
        %v4043 = vand.u32 %v3965, 4294901760
        %v4044 = vsub.f32 %v3965, %v4043
        %v4045 = vand.u32 %v4044, 4294901760
        %v4046 = vsub.f32 %v4044, %v4045
        %v4047 = vand.u32 %v4046, 4294901760
        %4048 = vmatmul.mubr.f32.gmra.mrb[0].mxu0 %v4047
        %v4049 = vpop.f32.mrb[0].mxu0
        %v4050 = vadd.f32 0.0, %v4049
        %v4051 = vpop.f32.mrb[0].mxu0
        %4052 = vmatprep.mubr.f32.mxu0 0.0
        %v4053 = vand.u32 %v3968, 4294901760
        %v4054 = vsub.f32 %v3968, %v4053
        %v4055 = vand.u32 %v4054, 4294901760
        %v4056 = vsub.f32 %v4054, %v4055
        %v4057 = vand.u32 %v4056, 4294901760
        %4058 = vmatmul.mubr.f32.gmra.mrb[0].mxu0 %v4057
        %v4059 = vpop.f32.mrb[0].mxu0
        %v4060 = vadd.f32 0.0, %v4059
        %v4061 = vpop.f32.mrb[0].mxu0
        %4062 = vmatprep.mubr.f32.mxu0 0.0
        %v4063 = vand.u32 %v3971, 4294901760
        %v4064 = vsub.f32 %v3971, %v4063
        %v4065 = vand.u32 %v4064, 4294901760
        %v4066 = vsub.f32 %v4064, %v4065
        %v4067 = vand.u32 %v4066, 4294901760
        %4068 = vmatmul.mubr.f32.gmra.mrb[0].mxu0 %v4067
        %v4069 = vpop.f32.mrb[0].mxu0
        %v4070 = vadd.f32 0.0, %v4069
        %v4071 = vpop.f32.mrb[0].mxu0
        %4072 = vmatprep.mubr.f32.mxu0 0.0
        %v4073 = vand.u32 %v3974, 4294901760
        %v4074 = vsub.f32 %v3974, %v4073
        %v4075 = vand.u32 %v4074, 4294901760
        %v4076 = vsub.f32 %v4074, %v4075
        %v4077 = vand.u32 %v4076, 4294901760
        %4078 = vmatmul.mubr.f32.gmra.mrb[0].mxu0 %v4077
        %v4079 = vpop.f32.mrb[0].mxu0
        %v4080 = vadd.f32 0.0, %v4079
        %v4081 = vpop.f32.mrb[0].mxu0
        %4082 = vdwg.mxu0
        %4083 = vmatprep.subr.mxu0 0.0
        %v4084 = vand.u32 %v2427, 4294901760
        %v4085 = vsub.f32 %v2427, %v4084
        %v4086 = vand.u32 %v4085, 4294901760
        %v4087 = vsub.f32 %v4085, %v4086
        %v4088 = vand.u32 %v4087, 4294901760
        %4089 = vmatpush1.msra.mxu0 %v4088
        %4090 = vmatprep.subr.mxu0 0.0
        %v4091 = vand.u32 %v2433, 4294901760
        %v4092 = vsub.f32 %v2433, %v4091
        %v4093 = vand.u32 %v4092, 4294901760
        %v4094 = vsub.f32 %v4092, %v4093
        %v4095 = vand.u32 %v4094, 4294901760
        %4096 = vmatpush1.msra.mxu0 %v4095
        %4097 = vmatprep.subr.mxu0 0.0
        %4098 = vmatpush1.msra.mxu0 0.0
        %4099 = vmatprep.subr.mxu0 0.0
        %4100 = vmatpush1.msra.mxu0 0.0
        %4101 = vmatprep.subr.mxu0 0.0
        %4102 = vmatpush1.msra.mxu0 0.0
        %4103 = vmatprep.subr.mxu0 0.0
        %4104 = vmatpush1.msra.mxu0 0.0
        %4105 = vmatprep.subr.mxu0 0.0
        %4106 = vmatpush1.msra.mxu0 0.0
        %4107 = vmatprep.subr.mxu0 0.0
        %4108 = vmatpush1.msra.mxu0 0.0
        %4109 = vmatprep.subr.mxu0 0.0
        %4110 = vmatpush1.msra.mxu0 0.0
        %4111 = vmatprep.subr.mxu0 0.0
        %4112 = vmatpush1.msra.mxu0 0.0
        %4113 = vmatprep.subr.mxu0 0.0
        %4114 = vmatpush1.msra.mxu0 0.0
        %4115 = vmatprep.subr.mxu0 0.0
        %4116 = vmatpush1.msra.mxu0 0.0
        %4117 = vmatprep.subr.mxu0 0.0
        %4118 = vmatpush1.msra.mxu0 0.0
        %4119 = vmatprep.subr.mxu0 0.0
        %4120 = vmatpush1.msra.mxu0 0.0
        %4121 = vmatprep.subr.mxu0 0.0
        %4122 = vmatpush1.msra.mxu0 0.0
        %4123 = vmatprep.subr.mxu0 0.0
        %4124 = vmatpush1.msra.mxu0 0.0
        %4125 = vmatprep.subr.mxu0 0.0
        %4126 = vmatpush1.msra.mxu0 0.0
        %4127 = vmatprep.subr.mxu0 0.0
        %4128 = vmatpush1.msra.mxu0 0.0
        %4129 = vmatprep.subr.mxu0 0.0
        %4130 = vmatpush1.msra.mxu0 0.0
        %4131 = vmatprep.subr.mxu0 0.0
        %4132 = vmatpush1.msra.mxu0 0.0
        %4133 = vmatprep.subr.mxu0 0.0
        %4134 = vmatpush1.msra.mxu0 0.0
        %4135 = vmatprep.subr.mxu0 0.0
        %4136 = vmatpush1.msra.mxu0 0.0
        %4137 = vmatprep.subr.mxu0 0.0
        %4138 = vmatpush1.msra.mxu0 0.0
        %4139 = vmatprep.subr.mxu0 0.0
        %4140 = vmatpush1.msra.mxu0 0.0
        %4141 = vmatprep.subr.mxu0 0.0
        %4142 = vmatpush1.msra.mxu0 0.0
        %4143 = vmatprep.subr.mxu0 0.0
        %4144 = vmatpush1.msra.mxu0 0.0
        %4145 = vmatprep.subr.mxu0 0.0
        %4146 = vmatpush1.msra.mxu0 0.0
        %4147 = vmatprep.subr.mxu0 0.0
        %4148 = vmatpush1.msra.mxu0 0.0
        %4149 = vmatprep.subr.mxu0 0.0
        %4150 = vmatpush1.msra.mxu0 0.0
        %4151 = vmatprep.subr.mxu0 0.0
        %4152 = vmatpush1.msra.mxu0 0.0
        %4153 = vmatprep.subr.mxu0 0.0
        %4154 = vmatpush1.msra.mxu0 0.0
        %4155 = vmatprep.subr.mxu0 0.0
        %4156 = vmatpush1.msra.mxu0 0.0
        %4157 = vmatprep.mubr.f32.mxu0 0.0
        %v4158 = vand.u32 %v3965, 4294901760
        %4159 = vmatmul.mubr.f32.gmra.mrb[0].mxu0 %v4158
        %v4160 = vpop.f32.mrb[0].mxu0
        %v4161 = vadd.f32 %v4050, %v4160
        %v4162 = vpop.f32.mrb[0].mxu0
        %4163 = vmatprep.mubr.f32.mxu0 0.0
        %v4164 = vand.u32 %v3968, 4294901760
        %4165 = vmatmul.mubr.f32.gmra.mrb[0].mxu0 %v4164
        %v4166 = vpop.f32.mrb[0].mxu0
        %v4167 = vadd.f32 %v4060, %v4166
        %v4168 = vpop.f32.mrb[0].mxu0
        %4169 = vmatprep.mubr.f32.mxu0 0.0
        %v4170 = vand.u32 %v3971, 4294901760
        %4171 = vmatmul.mubr.f32.gmra.mrb[0].mxu0 %v4170
        %v4172 = vpop.f32.mrb[0].mxu0
        %v4173 = vadd.f32 %v4070, %v4172
        %v4174 = vpop.f32.mrb[0].mxu0
        %4175 = vmatprep.mubr.f32.mxu0 0.0
        %v4176 = vand.u32 %v3974, 4294901760
        %4177 = vmatmul.mubr.f32.gmra.mrb[0].mxu0 %v4176
        %v4178 = vpop.f32.mrb[0].mxu0
        %v4179 = vadd.f32 %v4080, %v4178
        %v4180 = vpop.f32.mrb[0].mxu0
        %4181 = vdwg.mxu0
        %4182 = vmatprep.subr.mxu0 0.0
        %v4183 = vand.u32 %v2427, 4294901760
        %v4184 = vsub.f32 %v2427, %v4183
        %4185 = vmatpush1.msra.mxu0 %v4184
        %4186 = vmatprep.subr.mxu0 0.0
        %v4187 = vand.u32 %v2433, 4294901760
        %v4188 = vsub.f32 %v2433, %v4187
        %4189 = vmatpush1.msra.mxu0 %v4188
        %4190 = vmatprep.subr.mxu0 0.0
        %4191 = vmatpush1.msra.mxu0 0.0
        %4192 = vmatprep.subr.mxu0 0.0
        %4193 = vmatpush1.msra.mxu0 0.0
        %4194 = vmatprep.subr.mxu0 0.0
        %4195 = vmatpush1.msra.mxu0 0.0
        %4196 = vmatprep.subr.mxu0 0.0
        %4197 = vmatpush1.msra.mxu0 0.0
        %4198 = vmatprep.subr.mxu0 0.0
        %4199 = vmatpush1.msra.mxu0 0.0
        %4200 = vmatprep.subr.mxu0 0.0
        %4201 = vmatpush1.msra.mxu0 0.0
        %4202 = vmatprep.subr.mxu0 0.0
        %4203 = vmatpush1.msra.mxu0 0.0
        %4204 = vmatprep.subr.mxu0 0.0
        %4205 = vmatpush1.msra.mxu0 0.0
        %4206 = vmatprep.subr.mxu0 0.0
        %4207 = vmatpush1.msra.mxu0 0.0
        %4208 = vmatprep.subr.mxu0 0.0
        %4209 = vmatpush1.msra.mxu0 0.0
        %4210 = vmatprep.subr.mxu0 0.0
        %4211 = vmatpush1.msra.mxu0 0.0
        %4212 = vmatprep.subr.mxu0 0.0
        %4213 = vmatpush1.msra.mxu0 0.0
        %4214 = vmatprep.subr.mxu0 0.0
        %4215 = vmatpush1.msra.mxu0 0.0
        %4216 = vmatprep.subr.mxu0 0.0
        %4217 = vmatpush1.msra.mxu0 0.0
        %4218 = vmatprep.subr.mxu0 0.0
        %4219 = vmatpush1.msra.mxu0 0.0
        %4220 = vmatprep.subr.mxu0 0.0
        %4221 = vmatpush1.msra.mxu0 0.0
        %4222 = vmatprep.subr.mxu0 0.0
        %4223 = vmatpush1.msra.mxu0 0.0
        %4224 = vmatprep.subr.mxu0 0.0
        %4225 = vmatpush1.msra.mxu0 0.0
        %4226 = vmatprep.subr.mxu0 0.0
        %4227 = vmatpush1.msra.mxu0 0.0
        %4228 = vmatprep.subr.mxu0 0.0
        %4229 = vmatpush1.msra.mxu0 0.0
        %4230 = vmatprep.subr.mxu0 0.0
        %4231 = vmatpush1.msra.mxu0 0.0
        %4232 = vmatprep.subr.mxu0 0.0
        %4233 = vmatpush1.msra.mxu0 0.0
        %4234 = vmatprep.subr.mxu0 0.0
        %4235 = vmatpush1.msra.mxu0 0.0
        %4236 = vmatprep.subr.mxu0 0.0
        %4237 = vmatpush1.msra.mxu0 0.0
        %4238 = vmatprep.subr.mxu0 0.0
        %4239 = vmatpush1.msra.mxu0 0.0
        %4240 = vmatprep.subr.mxu0 0.0
        %4241 = vmatpush1.msra.mxu0 0.0
        %4242 = vmatprep.subr.mxu0 0.0
        %4243 = vmatpush1.msra.mxu0 0.0
        %4244 = vmatprep.subr.mxu0 0.0
        %4245 = vmatpush1.msra.mxu0 0.0
        %4246 = vmatprep.subr.mxu0 0.0
        %4247 = vmatpush1.msra.mxu0 0.0
        %4248 = vmatprep.subr.mxu0 0.0
        %4249 = vmatpush1.msra.mxu0 0.0
        %4250 = vmatprep.mubr.f32.mxu0 0.0
        %v4251 = vand.u32 %v3965, 4294901760
        %v4252 = vsub.f32 %v3965, %v4251
        %4253 = vmatmul.mubr.f32.gmra.mrb[0].mxu0 %v4252
        %v4254 = vpop.f32.mrb[0].mxu0
        %v4255 = vadd.f32 %v4161, %v4254
        %v4256 = vpop.f32.mrb[0].mxu0
        %4257 = vmatprep.mubr.f32.mxu0 0.0
        %v4258 = vand.u32 %v3968, 4294901760
        %v4259 = vsub.f32 %v3968, %v4258
        %4260 = vmatmul.mubr.f32.gmra.mrb[0].mxu0 %v4259
        %v4261 = vpop.f32.mrb[0].mxu0
        %v4262 = vadd.f32 %v4167, %v4261
        %v4263 = vpop.f32.mrb[0].mxu0
        %4264 = vmatprep.mubr.f32.mxu0 0.0
        %v4265 = vand.u32 %v3971, 4294901760
        %v4266 = vsub.f32 %v3971, %v4265
        %4267 = vmatmul.mubr.f32.gmra.mrb[0].mxu0 %v4266
        %v4268 = vpop.f32.mrb[0].mxu0
        %v4269 = vadd.f32 %v4173, %v4268
        %v4270 = vpop.f32.mrb[0].mxu0
        %4271 = vmatprep.mubr.f32.mxu0 0.0
        %v4272 = vand.u32 %v3974, 4294901760
        %v4273 = vsub.f32 %v3974, %v4272
        %4274 = vmatmul.mubr.f32.gmra.mrb[0].mxu0 %v4273
        %v4275 = vpop.f32.mrb[0].mxu0
        %v4276 = vadd.f32 %v4179, %v4275
        %v4277 = vpop.f32.mrb[0].mxu0
        %4278 = vdwg.mxu0
        %4279 = vmatprep.subr.mxu0 0.0
        %v4280 = vand.u32 %v2427, 4294901760
        %4281 = vmatpush1.msra.mxu0 %v4280
        %4282 = vmatprep.subr.mxu0 0.0
        %v4283 = vand.u32 %v2433, 4294901760
        %4284 = vmatpush1.msra.mxu0 %v4283
        %4285 = vmatprep.subr.mxu0 0.0
        %4286 = vmatpush1.msra.mxu0 0.0
        %4287 = vmatprep.subr.mxu0 0.0
        %4288 = vmatpush1.msra.mxu0 0.0
        %4289 = vmatprep.subr.mxu0 0.0
        %4290 = vmatpush1.msra.mxu0 0.0
        %4291 = vmatprep.subr.mxu0 0.0
        %4292 = vmatpush1.msra.mxu0 0.0
        %4293 = vmatprep.subr.mxu0 0.0
        %4294 = vmatpush1.msra.mxu0 0.0
        %4295 = vmatprep.subr.mxu0 0.0
        %4296 = vmatpush1.msra.mxu0 0.0
        %4297 = vmatprep.subr.mxu0 0.0
        %4298 = vmatpush1.msra.mxu0 0.0
        %4299 = vmatprep.subr.mxu0 0.0
        %4300 = vmatpush1.msra.mxu0 0.0
        %4301 = vmatprep.subr.mxu0 0.0
        %4302 = vmatpush1.msra.mxu0 0.0
        %4303 = vmatprep.subr.mxu0 0.0
        %4304 = vmatpush1.msra.mxu0 0.0
        %4305 = vmatprep.subr.mxu0 0.0
        %4306 = vmatpush1.msra.mxu0 0.0
        %4307 = vmatprep.subr.mxu0 0.0
        %4308 = vmatpush1.msra.mxu0 0.0
        %4309 = vmatprep.subr.mxu0 0.0
        %4310 = vmatpush1.msra.mxu0 0.0
        %4311 = vmatprep.subr.mxu0 0.0
        %4312 = vmatpush1.msra.mxu0 0.0
        %4313 = vmatprep.subr.mxu0 0.0
        %4314 = vmatpush1.msra.mxu0 0.0
        %4315 = vmatprep.subr.mxu0 0.0
        %4316 = vmatpush1.msra.mxu0 0.0
        %4317 = vmatprep.subr.mxu0 0.0
        %4318 = vmatpush1.msra.mxu0 0.0
        %4319 = vmatprep.subr.mxu0 0.0
        %4320 = vmatpush1.msra.mxu0 0.0
        %4321 = vmatprep.subr.mxu0 0.0
        %4322 = vmatpush1.msra.mxu0 0.0
        %4323 = vmatprep.subr.mxu0 0.0
        %4324 = vmatpush1.msra.mxu0 0.0
        %4325 = vmatprep.subr.mxu0 0.0
        %4326 = vmatpush1.msra.mxu0 0.0
        %4327 = vmatprep.subr.mxu0 0.0
        %4328 = vmatpush1.msra.mxu0 0.0
        %4329 = vmatprep.subr.mxu0 0.0
        %4330 = vmatpush1.msra.mxu0 0.0
        %4331 = vmatprep.subr.mxu0 0.0
        %4332 = vmatpush1.msra.mxu0 0.0
        %4333 = vmatprep.subr.mxu0 0.0
        %4334 = vmatpush1.msra.mxu0 0.0
        %4335 = vmatprep.subr.mxu0 0.0
        %4336 = vmatpush1.msra.mxu0 0.0
        %4337 = vmatprep.subr.mxu0 0.0
        %4338 = vmatpush1.msra.mxu0 0.0
        %4339 = vmatprep.subr.mxu0 0.0
        %4340 = vmatpush1.msra.mxu0 0.0
        %4341 = vmatprep.subr.mxu0 0.0
        %4342 = vmatpush1.msra.mxu0 0.0
        %4343 = vmatprep.subr.mxu0 0.0
        %4344 = vmatpush1.msra.mxu0 0.0
        %4345 = vmatprep.mubr.f32.mxu0 0.0
        %v4346 = vand.u32 %v3965, 4294901760
        %v4347 = vsub.f32 %v3965, %v4346
        %v4348 = vand.u32 %v4347, 4294901760
        %4349 = vmatmul.mubr.f32.gmra.mrb[0].mxu0 %v4348
        %v4350 = vpop.f32.mrb[0].mxu0
        %v4351 = vadd.f32 %v4255, %v4350
        %v4352 = vpop.f32.mrb[0].mxu0
        %4353 = vmatprep.mubr.f32.mxu0 0.0
        %v4354 = vand.u32 %v3968, 4294901760
        %v4355 = vsub.f32 %v3968, %v4354
        %v4356 = vand.u32 %v4355, 4294901760
        %4357 = vmatmul.mubr.f32.gmra.mrb[0].mxu0 %v4356
        %v4358 = vpop.f32.mrb[0].mxu0
        %v4359 = vadd.f32 %v4262, %v4358
        %v4360 = vpop.f32.mrb[0].mxu0
        %4361 = vmatprep.mubr.f32.mxu0 0.0
        %v4362 = vand.u32 %v3971, 4294901760
        %v4363 = vsub.f32 %v3971, %v4362
        %v4364 = vand.u32 %v4363, 4294901760
        %4365 = vmatmul.mubr.f32.gmra.mrb[0].mxu0 %v4364
        %v4366 = vpop.f32.mrb[0].mxu0
        %v4367 = vadd.f32 %v4269, %v4366
        %v4368 = vpop.f32.mrb[0].mxu0
        %4369 = vmatprep.mubr.f32.mxu0 0.0
        %v4370 = vand.u32 %v3974, 4294901760
        %v4371 = vsub.f32 %v3974, %v4370
        %v4372 = vand.u32 %v4371, 4294901760
        %4373 = vmatmul.mubr.f32.gmra.mrb[0].mxu0 %v4372
        %v4374 = vpop.f32.mrb[0].mxu0
        %v4375 = vadd.f32 %v4276, %v4374
        %v4376 = vpop.f32.mrb[0].mxu0
        %4377 = vdwg.mxu0
        %4378 = vmatprep.subr.mxu0 0.0
        %v4379 = vand.u32 %v2427, 4294901760
        %v4380 = vsub.f32 %v2427, %v4379
        %v4381 = vand.u32 %v4380, 4294901760
        %4382 = vmatpush1.msra.mxu0 %v4381
        %4383 = vmatprep.subr.mxu0 0.0
        %v4384 = vand.u32 %v2433, 4294901760
        %v4385 = vsub.f32 %v2433, %v4384
        %v4386 = vand.u32 %v4385, 4294901760
        %4387 = vmatpush1.msra.mxu0 %v4386
        %4388 = vmatprep.subr.mxu0 0.0
        %4389 = vmatpush1.msra.mxu0 0.0
        %4390 = vmatprep.subr.mxu0 0.0
        %4391 = vmatpush1.msra.mxu0 0.0
        %4392 = vmatprep.subr.mxu0 0.0
        %4393 = vmatpush1.msra.mxu0 0.0
        %4394 = vmatprep.subr.mxu0 0.0
        %4395 = vmatpush1.msra.mxu0 0.0
        %4396 = vmatprep.subr.mxu0 0.0
        %4397 = vmatpush1.msra.mxu0 0.0
        %4398 = vmatprep.subr.mxu0 0.0
        %4399 = vmatpush1.msra.mxu0 0.0
        %4400 = vmatprep.subr.mxu0 0.0
        %4401 = vmatpush1.msra.mxu0 0.0
        %4402 = vmatprep.subr.mxu0 0.0
        %4403 = vmatpush1.msra.mxu0 0.0
        %4404 = vmatprep.subr.mxu0 0.0
        %4405 = vmatpush1.msra.mxu0 0.0
        %4406 = vmatprep.subr.mxu0 0.0
        %4407 = vmatpush1.msra.mxu0 0.0
        %4408 = vmatprep.subr.mxu0 0.0
        %4409 = vmatpush1.msra.mxu0 0.0
        %4410 = vmatprep.subr.mxu0 0.0
        %4411 = vmatpush1.msra.mxu0 0.0
        %4412 = vmatprep.subr.mxu0 0.0
        %4413 = vmatpush1.msra.mxu0 0.0
        %4414 = vmatprep.subr.mxu0 0.0
        %4415 = vmatpush1.msra.mxu0 0.0
        %4416 = vmatprep.subr.mxu0 0.0
        %4417 = vmatpush1.msra.mxu0 0.0
        %4418 = vmatprep.subr.mxu0 0.0
        %4419 = vmatpush1.msra.mxu0 0.0
        %4420 = vmatprep.subr.mxu0 0.0
        %4421 = vmatpush1.msra.mxu0 0.0
        %4422 = vmatprep.subr.mxu0 0.0
        %4423 = vmatpush1.msra.mxu0 0.0
        %4424 = vmatprep.subr.mxu0 0.0
        %4425 = vmatpush1.msra.mxu0 0.0
        %4426 = vmatprep.subr.mxu0 0.0
        %4427 = vmatpush1.msra.mxu0 0.0
        %4428 = vmatprep.subr.mxu0 0.0
        %4429 = vmatpush1.msra.mxu0 0.0
        %4430 = vmatprep.subr.mxu0 0.0
        %4431 = vmatpush1.msra.mxu0 0.0
        %4432 = vmatprep.subr.mxu0 0.0
        %4433 = vmatpush1.msra.mxu0 0.0
        %4434 = vmatprep.subr.mxu0 0.0
        %4435 = vmatpush1.msra.mxu0 0.0
        %4436 = vmatprep.subr.mxu0 0.0
        %4437 = vmatpush1.msra.mxu0 0.0
        %4438 = vmatprep.subr.mxu0 0.0
        %4439 = vmatpush1.msra.mxu0 0.0
        %4440 = vmatprep.subr.mxu0 0.0
        %4441 = vmatpush1.msra.mxu0 0.0
        %4442 = vmatprep.subr.mxu0 0.0
        %4443 = vmatpush1.msra.mxu0 0.0
        %4444 = vmatprep.subr.mxu0 0.0
        %4445 = vmatpush1.msra.mxu0 0.0
        %4446 = vmatprep.subr.mxu0 0.0
        %4447 = vmatpush1.msra.mxu0 0.0
        %4448 = vmatprep.mubr.f32.mxu0 0.0
        %v4449 = vand.u32 %v3965, 4294901760
        %4450 = vmatmul.mubr.f32.gmra.mrb[0].mxu0 %v4449
        %v4451 = vpop.f32.mrb[0].mxu0
        %v4452 = vadd.f32 %v4351, %v4451
        %v4453 = vpop.f32.mrb[0].mxu0
        %4454 = vmatprep.mubr.f32.mxu0 0.0
        %v4455 = vand.u32 %v3968, 4294901760
        %4456 = vmatmul.mubr.f32.gmra.mrb[0].mxu0 %v4455
        %v4457 = vpop.f32.mrb[0].mxu0
        %v4458 = vadd.f32 %v4359, %v4457
        %v4459 = vpop.f32.mrb[0].mxu0
        %4460 = vmatprep.mubr.f32.mxu0 0.0
        %v4461 = vand.u32 %v3971, 4294901760
        %4462 = vmatmul.mubr.f32.gmra.mrb[0].mxu0 %v4461
        %v4463 = vpop.f32.mrb[0].mxu0
        %v4464 = vadd.f32 %v4367, %v4463
        %v4465 = vpop.f32.mrb[0].mxu0
        %4466 = vmatprep.mubr.f32.mxu0 0.0
        %v4467 = vand.u32 %v3974, 4294901760
        %4468 = vmatmul.mubr.f32.gmra.mrb[0].mxu0 %v4467
        %v4469 = vpop.f32.mrb[0].mxu0
        %v4470 = vadd.f32 %v4375, %v4469
        %v4471 = vpop.f32.mrb[0].mxu0
        %4472 = vdwg.mxu0
        %4473 = vmatprep.subr.mxu0 0.0
        %v4474 = vand.u32 %v2427, 4294901760
        %4475 = vmatpush1.msra.mxu0 %v4474
        %4476 = vmatprep.subr.mxu0 0.0
        %v4477 = vand.u32 %v2433, 4294901760
        %4478 = vmatpush1.msra.mxu0 %v4477
        %4479 = vmatprep.subr.mxu0 0.0
        %4480 = vmatpush1.msra.mxu0 0.0
        %4481 = vmatprep.subr.mxu0 0.0
        %4482 = vmatpush1.msra.mxu0 0.0
        %4483 = vmatprep.subr.mxu0 0.0
        %4484 = vmatpush1.msra.mxu0 0.0
        %4485 = vmatprep.subr.mxu0 0.0
        %4486 = vmatpush1.msra.mxu0 0.0
        %4487 = vmatprep.subr.mxu0 0.0
        %4488 = vmatpush1.msra.mxu0 0.0
        %4489 = vmatprep.subr.mxu0 0.0
        %4490 = vmatpush1.msra.mxu0 0.0
        %4491 = vmatprep.subr.mxu0 0.0
        %4492 = vmatpush1.msra.mxu0 0.0
        %4493 = vmatprep.subr.mxu0 0.0
        %4494 = vmatpush1.msra.mxu0 0.0
        %4495 = vmatprep.subr.mxu0 0.0
        %4496 = vmatpush1.msra.mxu0 0.0
        %4497 = vmatprep.subr.mxu0 0.0
        %4498 = vmatpush1.msra.mxu0 0.0
        %4499 = vmatprep.subr.mxu0 0.0
        %4500 = vmatpush1.msra.mxu0 0.0
        %4501 = vmatprep.subr.mxu0 0.0
        %4502 = vmatpush1.msra.mxu0 0.0
        %4503 = vmatprep.subr.mxu0 0.0
        %4504 = vmatpush1.msra.mxu0 0.0
        %4505 = vmatprep.subr.mxu0 0.0
        %4506 = vmatpush1.msra.mxu0 0.0
        %4507 = vmatprep.subr.mxu0 0.0
        %4508 = vmatpush1.msra.mxu0 0.0
        %4509 = vmatprep.subr.mxu0 0.0
        %4510 = vmatpush1.msra.mxu0 0.0
        %4511 = vmatprep.subr.mxu0 0.0
        %4512 = vmatpush1.msra.mxu0 0.0
        %4513 = vmatprep.subr.mxu0 0.0
        %4514 = vmatpush1.msra.mxu0 0.0
        %4515 = vmatprep.subr.mxu0 0.0
        %4516 = vmatpush1.msra.mxu0 0.0
        %4517 = vmatprep.subr.mxu0 0.0
        %4518 = vmatpush1.msra.mxu0 0.0
        %4519 = vmatprep.subr.mxu0 0.0
        %4520 = vmatpush1.msra.mxu0 0.0
        %4521 = vmatprep.subr.mxu0 0.0
        %4522 = vmatpush1.msra.mxu0 0.0
        %4523 = vmatprep.subr.mxu0 0.0
        %4524 = vmatpush1.msra.mxu0 0.0
        %4525 = vmatprep.subr.mxu0 0.0
        %4526 = vmatpush1.msra.mxu0 0.0
        %4527 = vmatprep.subr.mxu0 0.0
        %4528 = vmatpush1.msra.mxu0 0.0
        %4529 = vmatprep.subr.mxu0 0.0
        %4530 = vmatpush1.msra.mxu0 0.0
        %4531 = vmatprep.subr.mxu0 0.0
        %4532 = vmatpush1.msra.mxu0 0.0
        %4533 = vmatprep.subr.mxu0 0.0
        %4534 = vmatpush1.msra.mxu0 0.0
        %4535 = vmatprep.subr.mxu0 0.0
        %4536 = vmatpush1.msra.mxu0 0.0
        %4537 = vmatprep.subr.mxu0 0.0
        %4538 = vmatpush1.msra.mxu0 0.0
        %4539 = vmatprep.mubr.f32.mxu0 0.0
        %v4540 = vand.u32 %v3965, 4294901760
        %4541 = vmatmul.mubr.f32.gmra.mrb[0].mxu0 %v4540
        %v4542 = vpop.f32.mrb[0].mxu0
        %v4543 = vadd.f32 %v4452, %v4542
        %v4544 = vpop.f32.mrb[0].mxu0
        %4545 = vmatprep.mubr.f32.mxu0 0.0
        %v4546 = vand.u32 %v3968, 4294901760
        %4547 = vmatmul.mubr.f32.gmra.mrb[0].mxu0 %v4546
        %v4548 = vpop.f32.mrb[0].mxu0
        %v4549 = vadd.f32 %v4458, %v4548
        %v4550 = vpop.f32.mrb[0].mxu0
        %4551 = vmatprep.mubr.f32.mxu0 0.0
        %v4552 = vand.u32 %v3971, 4294901760
        %4553 = vmatmul.mubr.f32.gmra.mrb[0].mxu0 %v4552
        %v4554 = vpop.f32.mrb[0].mxu0
        %v4555 = vadd.f32 %v4464, %v4554
        %v4556 = vpop.f32.mrb[0].mxu0
        %4557 = vmatprep.mubr.f32.mxu0 0.0
        %v4558 = vand.u32 %v3974, 4294901760
        %4559 = vmatmul.mubr.f32.gmra.mrb[0].mxu0 %v4558
        %v4560 = vpop.f32.mrb[0].mxu0
        %v4561 = vadd.f32 %v4470, %v4560
        %v4562 = vpop.f32.mrb[0].mxu0
        %4563 = vdwg.mxu0
        %4564 = vmatprep.subr.mxu0 0.0
        %v4565 = vand.u32 %v2935, 4294901760
        %4566 = vmatpush1.msra.mxu0 %v4565
        %4567 = vmatprep.subr.mxu0 0.0
        %v4568 = vand.u32 %v2941, 4294901760
        %4569 = vmatpush1.msra.mxu0 %v4568
        %4570 = vmatprep.subr.mxu0 0.0
        %4571 = vmatpush1.msra.mxu0 0.0
        %4572 = vmatprep.subr.mxu0 0.0
        %4573 = vmatpush1.msra.mxu0 0.0
        %4574 = vmatprep.subr.mxu0 0.0
        %4575 = vmatpush1.msra.mxu0 0.0
        %4576 = vmatprep.subr.mxu0 0.0
        %4577 = vmatpush1.msra.mxu0 0.0
        %4578 = vmatprep.subr.mxu0 0.0
        %4579 = vmatpush1.msra.mxu0 0.0
        %4580 = vmatprep.subr.mxu0 0.0
        %4581 = vmatpush1.msra.mxu0 0.0
        %4582 = vmatprep.subr.mxu0 0.0
        %4583 = vmatpush1.msra.mxu0 0.0
        %4584 = vmatprep.subr.mxu0 0.0
        %4585 = vmatpush1.msra.mxu0 0.0
        %4586 = vmatprep.subr.mxu0 0.0
        %4587 = vmatpush1.msra.mxu0 0.0
        %4588 = vmatprep.subr.mxu0 0.0
        %4589 = vmatpush1.msra.mxu0 0.0
        %4590 = vmatprep.subr.mxu0 0.0
        %4591 = vmatpush1.msra.mxu0 0.0
        %4592 = vmatprep.subr.mxu0 0.0
        %4593 = vmatpush1.msra.mxu0 0.0
        %4594 = vmatprep.subr.mxu0 0.0
        %4595 = vmatpush1.msra.mxu0 0.0
        %4596 = vmatprep.subr.mxu0 0.0
        %4597 = vmatpush1.msra.mxu0 0.0
        %4598 = vmatprep.subr.mxu0 0.0
        %4599 = vmatpush1.msra.mxu0 0.0
        %4600 = vmatprep.subr.mxu0 0.0
        %4601 = vmatpush1.msra.mxu0 0.0
        %4602 = vmatprep.subr.mxu0 0.0
        %4603 = vmatpush1.msra.mxu0 0.0
        %4604 = vmatprep.subr.mxu0 0.0
        %4605 = vmatpush1.msra.mxu0 0.0
        %4606 = vmatprep.subr.mxu0 0.0
        %4607 = vmatpush1.msra.mxu0 0.0
        %4608 = vmatprep.subr.mxu0 0.0
        %4609 = vmatpush1.msra.mxu0 0.0
        %4610 = vmatprep.subr.mxu0 0.0
        %4611 = vmatpush1.msra.mxu0 0.0
        %4612 = vmatprep.subr.mxu0 0.0
        %4613 = vmatpush1.msra.mxu0 0.0
        %4614 = vmatprep.subr.mxu0 0.0
        %4615 = vmatpush1.msra.mxu0 0.0
        %4616 = vmatprep.subr.mxu0 0.0
        %4617 = vmatpush1.msra.mxu0 0.0
        %4618 = vmatprep.subr.mxu0 0.0
        %4619 = vmatpush1.msra.mxu0 0.0
        %4620 = vmatprep.subr.mxu0 0.0
        %4621 = vmatpush1.msra.mxu0 0.0
        %4622 = vmatprep.subr.mxu0 0.0
        %4623 = vmatpush1.msra.mxu0 0.0
        %4624 = vmatprep.subr.mxu0 0.0
        %4625 = vmatpush1.msra.mxu0 0.0
        %4626 = vmatprep.subr.mxu0 0.0
        %4627 = vmatpush1.msra.mxu0 0.0
        %4628 = vmatprep.subr.mxu0 0.0
        %4629 = vmatpush1.msra.mxu0 0.0
        %4630 = vmatprep.mubr.f32.mxu0 0.0
        %v4631 = vand.u32 %v3965, 4294901760
        %v4632 = vsub.f32 %v3965, %v4631
        %v4633 = vand.u32 %v4632, 4294901760
        %v4634 = vsub.f32 %v4632, %v4633
        %v4635 = vand.u32 %v4634, 4294901760
        %4636 = vmatmul.mubr.f32.gmra.mrb[0].mxu0 %v4635
        %v4637 = vpop.f32.mrb[0].mxu0
        %v4638 = vadd.f32 0.0, %v4637
        %v4639 = vpop.f32.mrb[0].mxu0
        %4640 = vmatprep.mubr.f32.mxu0 0.0
        %v4641 = vand.u32 %v3968, 4294901760
        %v4642 = vsub.f32 %v3968, %v4641
        %v4643 = vand.u32 %v4642, 4294901760
        %v4644 = vsub.f32 %v4642, %v4643
        %v4645 = vand.u32 %v4644, 4294901760
        %4646 = vmatmul.mubr.f32.gmra.mrb[0].mxu0 %v4645
        %v4647 = vpop.f32.mrb[0].mxu0
        %v4648 = vadd.f32 0.0, %v4647
        %v4649 = vpop.f32.mrb[0].mxu0
        %4650 = vmatprep.mubr.f32.mxu0 0.0
        %v4651 = vand.u32 %v3971, 4294901760
        %v4652 = vsub.f32 %v3971, %v4651
        %v4653 = vand.u32 %v4652, 4294901760
        %v4654 = vsub.f32 %v4652, %v4653
        %v4655 = vand.u32 %v4654, 4294901760
        %4656 = vmatmul.mubr.f32.gmra.mrb[0].mxu0 %v4655
        %v4657 = vpop.f32.mrb[0].mxu0
        %v4658 = vadd.f32 0.0, %v4657
        %v4659 = vpop.f32.mrb[0].mxu0
        %4660 = vmatprep.mubr.f32.mxu0 0.0
        %v4661 = vand.u32 %v3974, 4294901760
        %v4662 = vsub.f32 %v3974, %v4661
        %v4663 = vand.u32 %v4662, 4294901760
        %v4664 = vsub.f32 %v4662, %v4663
        %v4665 = vand.u32 %v4664, 4294901760
        %4666 = vmatmul.mubr.f32.gmra.mrb[0].mxu0 %v4665
        %v4667 = vpop.f32.mrb[0].mxu0
        %v4668 = vadd.f32 0.0, %v4667
        %v4669 = vpop.f32.mrb[0].mxu0
        %4670 = vdwg.mxu0
        %4671 = vmatprep.subr.mxu0 0.0
        %v4672 = vand.u32 %v2935, 4294901760
        %v4673 = vsub.f32 %v2935, %v4672
        %v4674 = vand.u32 %v4673, 4294901760
        %v4675 = vsub.f32 %v4673, %v4674
        %v4676 = vand.u32 %v4675, 4294901760
        %4677 = vmatpush1.msra.mxu0 %v4676
        %4678 = vmatprep.subr.mxu0 0.0
        %v4679 = vand.u32 %v2941, 4294901760
        %v4680 = vsub.f32 %v2941, %v4679
        %v4681 = vand.u32 %v4680, 4294901760
        %v4682 = vsub.f32 %v4680, %v4681
        %v4683 = vand.u32 %v4682, 4294901760
        %4684 = vmatpush1.msra.mxu0 %v4683
        %4685 = vmatprep.subr.mxu0 0.0
        %4686 = vmatpush1.msra.mxu0 0.0
        %4687 = vmatprep.subr.mxu0 0.0
        %4688 = vmatpush1.msra.mxu0 0.0
        %4689 = vmatprep.subr.mxu0 0.0
        %4690 = vmatpush1.msra.mxu0 0.0
        %4691 = vmatprep.subr.mxu0 0.0
        %4692 = vmatpush1.msra.mxu0 0.0
        %4693 = vmatprep.subr.mxu0 0.0
        %4694 = vmatpush1.msra.mxu0 0.0
        %4695 = vmatprep.subr.mxu0 0.0
        %4696 = vmatpush1.msra.mxu0 0.0
        %4697 = vmatprep.subr.mxu0 0.0
        %4698 = vmatpush1.msra.mxu0 0.0
        %4699 = vmatprep.subr.mxu0 0.0
        %4700 = vmatpush1.msra.mxu0 0.0
        %4701 = vmatprep.subr.mxu0 0.0
        %4702 = vmatpush1.msra.mxu0 0.0
        %4703 = vmatprep.subr.mxu0 0.0
        %4704 = vmatpush1.msra.mxu0 0.0
        %4705 = vmatprep.subr.mxu0 0.0
        %4706 = vmatpush1.msra.mxu0 0.0
        %4707 = vmatprep.subr.mxu0 0.0
        %4708 = vmatpush1.msra.mxu0 0.0
        %4709 = vmatprep.subr.mxu0 0.0
        %4710 = vmatpush1.msra.mxu0 0.0
        %4711 = vmatprep.subr.mxu0 0.0
        %4712 = vmatpush1.msra.mxu0 0.0
        %4713 = vmatprep.subr.mxu0 0.0
        %4714 = vmatpush1.msra.mxu0 0.0
        %4715 = vmatprep.subr.mxu0 0.0
        %4716 = vmatpush1.msra.mxu0 0.0
        %4717 = vmatprep.subr.mxu0 0.0
        %4718 = vmatpush1.msra.mxu0 0.0
        %4719 = vmatprep.subr.mxu0 0.0
        %4720 = vmatpush1.msra.mxu0 0.0
        %4721 = vmatprep.subr.mxu0 0.0
        %4722 = vmatpush1.msra.mxu0 0.0
        %4723 = vmatprep.subr.mxu0 0.0
        %4724 = vmatpush1.msra.mxu0 0.0
        %4725 = vmatprep.subr.mxu0 0.0
        %4726 = vmatpush1.msra.mxu0 0.0
        %4727 = vmatprep.subr.mxu0 0.0
        %4728 = vmatpush1.msra.mxu0 0.0
        %4729 = vmatprep.subr.mxu0 0.0
        %4730 = vmatpush1.msra.mxu0 0.0
        %4731 = vmatprep.subr.mxu0 0.0
        %4732 = vmatpush1.msra.mxu0 0.0
        %4733 = vmatprep.subr.mxu0 0.0
        %4734 = vmatpush1.msra.mxu0 0.0
        %4735 = vmatprep.subr.mxu0 0.0
        %4736 = vmatpush1.msra.mxu0 0.0
        %4737 = vmatprep.subr.mxu0 0.0
        %4738 = vmatpush1.msra.mxu0 0.0
        %4739 = vmatprep.subr.mxu0 0.0
        %4740 = vmatpush1.msra.mxu0 0.0
        %4741 = vmatprep.subr.mxu0 0.0
        %4742 = vmatpush1.msra.mxu0 0.0
        %4743 = vmatprep.subr.mxu0 0.0
        %4744 = vmatpush1.msra.mxu0 0.0
        %4745 = vmatprep.mubr.f32.mxu0 0.0
        %v4746 = vand.u32 %v3965, 4294901760
        %4747 = vmatmul.mubr.f32.gmra.mrb[0].mxu0 %v4746
        %v4748 = vpop.f32.mrb[0].mxu0
        %v4749 = vadd.f32 %v4638, %v4748
        %v4750 = vpop.f32.mrb[0].mxu0
        %4751 = vmatprep.mubr.f32.mxu0 0.0
        %v4752 = vand.u32 %v3968, 4294901760
        %4753 = vmatmul.mubr.f32.gmra.mrb[0].mxu0 %v4752
        %v4754 = vpop.f32.mrb[0].mxu0
        %v4755 = vadd.f32 %v4648, %v4754
        %v4756 = vpop.f32.mrb[0].mxu0
        %4757 = vmatprep.mubr.f32.mxu0 0.0
        %v4758 = vand.u32 %v3971, 4294901760
        %4759 = vmatmul.mubr.f32.gmra.mrb[0].mxu0 %v4758
        %v4760 = vpop.f32.mrb[0].mxu0
        %v4761 = vadd.f32 %v4658, %v4760
        %v4762 = vpop.f32.mrb[0].mxu0
        %4763 = vmatprep.mubr.f32.mxu0 0.0
        %v4764 = vand.u32 %v3974, 4294901760
        %4765 = vmatmul.mubr.f32.gmra.mrb[0].mxu0 %v4764
        %v4766 = vpop.f32.mrb[0].mxu0
        %v4767 = vadd.f32 %v4668, %v4766
        %v4768 = vpop.f32.mrb[0].mxu0
        %4769 = vdwg.mxu0
        %4770 = vmatprep.subr.mxu0 0.0
        %v4771 = vand.u32 %v2935, 4294901760
        %v4772 = vsub.f32 %v2935, %v4771
        %4773 = vmatpush1.msra.mxu0 %v4772
        %4774 = vmatprep.subr.mxu0 0.0
        %v4775 = vand.u32 %v2941, 4294901760
        %v4776 = vsub.f32 %v2941, %v4775
        %4777 = vmatpush1.msra.mxu0 %v4776
        %4778 = vmatprep.subr.mxu0 0.0
        %4779 = vmatpush1.msra.mxu0 0.0
        %4780 = vmatprep.subr.mxu0 0.0
        %4781 = vmatpush1.msra.mxu0 0.0
        %4782 = vmatprep.subr.mxu0 0.0
        %4783 = vmatpush1.msra.mxu0 0.0
        %4784 = vmatprep.subr.mxu0 0.0
        %4785 = vmatpush1.msra.mxu0 0.0
        %4786 = vmatprep.subr.mxu0 0.0
        %4787 = vmatpush1.msra.mxu0 0.0
        %4788 = vmatprep.subr.mxu0 0.0
        %4789 = vmatpush1.msra.mxu0 0.0
        %4790 = vmatprep.subr.mxu0 0.0
        %4791 = vmatpush1.msra.mxu0 0.0
        %4792 = vmatprep.subr.mxu0 0.0
        %4793 = vmatpush1.msra.mxu0 0.0
        %4794 = vmatprep.subr.mxu0 0.0
        %4795 = vmatpush1.msra.mxu0 0.0
        %4796 = vmatprep.subr.mxu0 0.0
        %4797 = vmatpush1.msra.mxu0 0.0
        %4798 = vmatprep.subr.mxu0 0.0
        %4799 = vmatpush1.msra.mxu0 0.0
        %4800 = vmatprep.subr.mxu0 0.0
        %4801 = vmatpush1.msra.mxu0 0.0
        %4802 = vmatprep.subr.mxu0 0.0
        %4803 = vmatpush1.msra.mxu0 0.0
        %4804 = vmatprep.subr.mxu0 0.0
        %4805 = vmatpush1.msra.mxu0 0.0
        %4806 = vmatprep.subr.mxu0 0.0
        %4807 = vmatpush1.msra.mxu0 0.0
        %4808 = vmatprep.subr.mxu0 0.0
        %4809 = vmatpush1.msra.mxu0 0.0
        %4810 = vmatprep.subr.mxu0 0.0
        %4811 = vmatpush1.msra.mxu0 0.0
        %4812 = vmatprep.subr.mxu0 0.0
        %4813 = vmatpush1.msra.mxu0 0.0
        %4814 = vmatprep.subr.mxu0 0.0
        %4815 = vmatpush1.msra.mxu0 0.0
        %4816 = vmatprep.subr.mxu0 0.0
        %4817 = vmatpush1.msra.mxu0 0.0
        %4818 = vmatprep.subr.mxu0 0.0
        %4819 = vmatpush1.msra.mxu0 0.0
        %4820 = vmatprep.subr.mxu0 0.0
        %4821 = vmatpush1.msra.mxu0 0.0
        %4822 = vmatprep.subr.mxu0 0.0
        %4823 = vmatpush1.msra.mxu0 0.0
        %4824 = vmatprep.subr.mxu0 0.0
        %4825 = vmatpush1.msra.mxu0 0.0
        %4826 = vmatprep.subr.mxu0 0.0
        %4827 = vmatpush1.msra.mxu0 0.0
        %4828 = vmatprep.subr.mxu0 0.0
        %4829 = vmatpush1.msra.mxu0 0.0
        %4830 = vmatprep.subr.mxu0 0.0
        %4831 = vmatpush1.msra.mxu0 0.0
        %4832 = vmatprep.subr.mxu0 0.0
        %4833 = vmatpush1.msra.mxu0 0.0
        %4834 = vmatprep.subr.mxu0 0.0
        %4835 = vmatpush1.msra.mxu0 0.0
        %4836 = vmatprep.subr.mxu0 0.0
        %4837 = vmatpush1.msra.mxu0 0.0
        %4838 = vmatprep.mubr.f32.mxu0 0.0
        %v4839 = vand.u32 %v3965, 4294901760
        %v4840 = vsub.f32 %v3965, %v4839
        %4841 = vmatmul.mubr.f32.gmra.mrb[0].mxu0 %v4840
        %v4842 = vpop.f32.mrb[0].mxu0
        %v4843 = vadd.f32 %v4749, %v4842
        %v4844 = vpop.f32.mrb[0].mxu0
        %4845 = vmatprep.mubr.f32.mxu0 0.0
        %v4846 = vand.u32 %v3968, 4294901760
        %v4847 = vsub.f32 %v3968, %v4846
        %4848 = vmatmul.mubr.f32.gmra.mrb[0].mxu0 %v4847
        %v4849 = vpop.f32.mrb[0].mxu0
        %v4850 = vadd.f32 %v4755, %v4849
        %v4851 = vpop.f32.mrb[0].mxu0
        %4852 = vmatprep.mubr.f32.mxu0 0.0
        %v4853 = vand.u32 %v3971, 4294901760
        %v4854 = vsub.f32 %v3971, %v4853
        %4855 = vmatmul.mubr.f32.gmra.mrb[0].mxu0 %v4854
        %v4856 = vpop.f32.mrb[0].mxu0
        %v4857 = vadd.f32 %v4761, %v4856
        %v4858 = vpop.f32.mrb[0].mxu0
        %4859 = vmatprep.mubr.f32.mxu0 0.0
        %v4860 = vand.u32 %v3974, 4294901760
        %v4861 = vsub.f32 %v3974, %v4860
        %4862 = vmatmul.mubr.f32.gmra.mrb[0].mxu0 %v4861
        %v4863 = vpop.f32.mrb[0].mxu0
        %v4864 = vadd.f32 %v4767, %v4863
        %v4865 = vpop.f32.mrb[0].mxu0
        %4866 = vdwg.mxu0
        %4867 = vmatprep.subr.mxu0 0.0
        %v4868 = vand.u32 %v2935, 4294901760
        %4869 = vmatpush1.msra.mxu0 %v4868
        %4870 = vmatprep.subr.mxu0 0.0
        %v4871 = vand.u32 %v2941, 4294901760
        %4872 = vmatpush1.msra.mxu0 %v4871
        %4873 = vmatprep.subr.mxu0 0.0
        %4874 = vmatpush1.msra.mxu0 0.0
        %4875 = vmatprep.subr.mxu0 0.0
        %4876 = vmatpush1.msra.mxu0 0.0
        %4877 = vmatprep.subr.mxu0 0.0
        %4878 = vmatpush1.msra.mxu0 0.0
        %4879 = vmatprep.subr.mxu0 0.0
        %4880 = vmatpush1.msra.mxu0 0.0
        %4881 = vmatprep.subr.mxu0 0.0
        %4882 = vmatpush1.msra.mxu0 0.0
        %4883 = vmatprep.subr.mxu0 0.0
        %4884 = vmatpush1.msra.mxu0 0.0
        %4885 = vmatprep.subr.mxu0 0.0
        %4886 = vmatpush1.msra.mxu0 0.0
        %4887 = vmatprep.subr.mxu0 0.0
        %4888 = vmatpush1.msra.mxu0 0.0
        %4889 = vmatprep.subr.mxu0 0.0
        %4890 = vmatpush1.msra.mxu0 0.0
        %4891 = vmatprep.subr.mxu0 0.0
        %4892 = vmatpush1.msra.mxu0 0.0
        %4893 = vmatprep.subr.mxu0 0.0
        %4894 = vmatpush1.msra.mxu0 0.0
        %4895 = vmatprep.subr.mxu0 0.0
        %4896 = vmatpush1.msra.mxu0 0.0
        %4897 = vmatprep.subr.mxu0 0.0
        %4898 = vmatpush1.msra.mxu0 0.0
        %4899 = vmatprep.subr.mxu0 0.0
        %4900 = vmatpush1.msra.mxu0 0.0
        %4901 = vmatprep.subr.mxu0 0.0
        %4902 = vmatpush1.msra.mxu0 0.0
        %4903 = vmatprep.subr.mxu0 0.0
        %4904 = vmatpush1.msra.mxu0 0.0
        %4905 = vmatprep.subr.mxu0 0.0
        %4906 = vmatpush1.msra.mxu0 0.0
        %4907 = vmatprep.subr.mxu0 0.0
        %4908 = vmatpush1.msra.mxu0 0.0
        %4909 = vmatprep.subr.mxu0 0.0
        %4910 = vmatpush1.msra.mxu0 0.0
        %4911 = vmatprep.subr.mxu0 0.0
        %4912 = vmatpush1.msra.mxu0 0.0
        %4913 = vmatprep.subr.mxu0 0.0
        %4914 = vmatpush1.msra.mxu0 0.0
        %4915 = vmatprep.subr.mxu0 0.0
        %4916 = vmatpush1.msra.mxu0 0.0
        %4917 = vmatprep.subr.mxu0 0.0
        %4918 = vmatpush1.msra.mxu0 0.0
        %4919 = vmatprep.subr.mxu0 0.0
        %4920 = vmatpush1.msra.mxu0 0.0
        %4921 = vmatprep.subr.mxu0 0.0
        %4922 = vmatpush1.msra.mxu0 0.0
        %4923 = vmatprep.subr.mxu0 0.0
        %4924 = vmatpush1.msra.mxu0 0.0
        %4925 = vmatprep.subr.mxu0 0.0
        %4926 = vmatpush1.msra.mxu0 0.0
        %4927 = vmatprep.subr.mxu0 0.0
        %4928 = vmatpush1.msra.mxu0 0.0
        %4929 = vmatprep.subr.mxu0 0.0
        %4930 = vmatpush1.msra.mxu0 0.0
        %4931 = vmatprep.subr.mxu0 0.0
        %4932 = vmatpush1.msra.mxu0 0.0
        %4933 = vmatprep.mubr.f32.mxu0 0.0
        %v4934 = vand.u32 %v3965, 4294901760
        %v4935 = vsub.f32 %v3965, %v4934
        %v4936 = vand.u32 %v4935, 4294901760
        %4937 = vmatmul.mubr.f32.gmra.mrb[0].mxu0 %v4936
        %v4938 = vpop.f32.mrb[0].mxu0
        %v4939 = vadd.f32 %v4843, %v4938
        %v4940 = vpop.f32.mrb[0].mxu0
        %4941 = vmatprep.mubr.f32.mxu0 0.0
        %v4942 = vand.u32 %v3968, 4294901760
        %v4943 = vsub.f32 %v3968, %v4942
        %v4944 = vand.u32 %v4943, 4294901760
        %4945 = vmatmul.mubr.f32.gmra.mrb[0].mxu0 %v4944
        %v4946 = vpop.f32.mrb[0].mxu0
        %v4947 = vadd.f32 %v4850, %v4946
        %v4948 = vpop.f32.mrb[0].mxu0
        %4949 = vmatprep.mubr.f32.mxu0 0.0
        %v4950 = vand.u32 %v3971, 4294901760
        %v4951 = vsub.f32 %v3971, %v4950
        %v4952 = vand.u32 %v4951, 4294901760
        %4953 = vmatmul.mubr.f32.gmra.mrb[0].mxu0 %v4952
        %v4954 = vpop.f32.mrb[0].mxu0
        %v4955 = vadd.f32 %v4857, %v4954
        %v4956 = vpop.f32.mrb[0].mxu0
        %4957 = vmatprep.mubr.f32.mxu0 0.0
        %v4958 = vand.u32 %v3974, 4294901760
        %v4959 = vsub.f32 %v3974, %v4958
        %v4960 = vand.u32 %v4959, 4294901760
        %4961 = vmatmul.mubr.f32.gmra.mrb[0].mxu0 %v4960
        %v4962 = vpop.f32.mrb[0].mxu0
        %v4963 = vadd.f32 %v4864, %v4962
        %v4964 = vpop.f32.mrb[0].mxu0
        %4965 = vdwg.mxu0
        %4966 = vmatprep.subr.mxu0 0.0
        %v4967 = vand.u32 %v2935, 4294901760
        %v4968 = vsub.f32 %v2935, %v4967
        %v4969 = vand.u32 %v4968, 4294901760
        %4970 = vmatpush1.msra.mxu0 %v4969
        %4971 = vmatprep.subr.mxu0 0.0
        %v4972 = vand.u32 %v2941, 4294901760
        %v4973 = vsub.f32 %v2941, %v4972
        %v4974 = vand.u32 %v4973, 4294901760
        %4975 = vmatpush1.msra.mxu0 %v4974
        %4976 = vmatprep.subr.mxu0 0.0
        %4977 = vmatpush1.msra.mxu0 0.0
        %4978 = vmatprep.subr.mxu0 0.0
        %4979 = vmatpush1.msra.mxu0 0.0
        %4980 = vmatprep.subr.mxu0 0.0
        %4981 = vmatpush1.msra.mxu0 0.0
        %4982 = vmatprep.subr.mxu0 0.0
        %4983 = vmatpush1.msra.mxu0 0.0
        %4984 = vmatprep.subr.mxu0 0.0
        %4985 = vmatpush1.msra.mxu0 0.0
        %4986 = vmatprep.subr.mxu0 0.0
        %4987 = vmatpush1.msra.mxu0 0.0
        %4988 = vmatprep.subr.mxu0 0.0
        %4989 = vmatpush1.msra.mxu0 0.0
        %4990 = vmatprep.subr.mxu0 0.0
        %4991 = vmatpush1.msra.mxu0 0.0
        %4992 = vmatprep.subr.mxu0 0.0
        %4993 = vmatpush1.msra.mxu0 0.0
        %4994 = vmatprep.subr.mxu0 0.0
        %4995 = vmatpush1.msra.mxu0 0.0
        %4996 = vmatprep.subr.mxu0 0.0
        %4997 = vmatpush1.msra.mxu0 0.0
        %4998 = vmatprep.subr.mxu0 0.0
        %4999 = vmatpush1.msra.mxu0 0.0
        %5000 = vmatprep.subr.mxu0 0.0
        %5001 = vmatpush1.msra.mxu0 0.0
        %5002 = vmatprep.subr.mxu0 0.0
        %5003 = vmatpush1.msra.mxu0 0.0
        %5004 = vmatprep.subr.mxu0 0.0
        %5005 = vmatpush1.msra.mxu0 0.0
        %5006 = vmatprep.subr.mxu0 0.0
        %5007 = vmatpush1.msra.mxu0 0.0
        %5008 = vmatprep.subr.mxu0 0.0
        %5009 = vmatpush1.msra.mxu0 0.0
        %5010 = vmatprep.subr.mxu0 0.0
        %5011 = vmatpush1.msra.mxu0 0.0
        %5012 = vmatprep.subr.mxu0 0.0
        %5013 = vmatpush1.msra.mxu0 0.0
        %5014 = vmatprep.subr.mxu0 0.0
        %5015 = vmatpush1.msra.mxu0 0.0
        %5016 = vmatprep.subr.mxu0 0.0
        %5017 = vmatpush1.msra.mxu0 0.0
        %5018 = vmatprep.subr.mxu0 0.0
        %5019 = vmatpush1.msra.mxu0 0.0
        %5020 = vmatprep.subr.mxu0 0.0
        %5021 = vmatpush1.msra.mxu0 0.0
        %5022 = vmatprep.subr.mxu0 0.0
        %5023 = vmatpush1.msra.mxu0 0.0
        %5024 = vmatprep.subr.mxu0 0.0
        %5025 = vmatpush1.msra.mxu0 0.0
        %5026 = vmatprep.subr.mxu0 0.0
        %5027 = vmatpush1.msra.mxu0 0.0
        %5028 = vmatprep.subr.mxu0 0.0
        %5029 = vmatpush1.msra.mxu0 0.0
        %5030 = vmatprep.subr.mxu0 0.0
        %5031 = vmatpush1.msra.mxu0 0.0
        %5032 = vmatprep.subr.mxu0 0.0
        %5033 = vmatpush1.msra.mxu0 0.0
        %5034 = vmatprep.subr.mxu0 0.0
        %5035 = vmatpush1.msra.mxu0 0.0
        %5036 = vmatprep.mubr.f32.mxu0 0.0
        %v5037 = vand.u32 %v3965, 4294901760
        %5038 = vmatmul.mubr.f32.gmra.mrb[0].mxu0 %v5037
        %v5039 = vpop.f32.mrb[0].mxu0
        %v5040 = vadd.f32 %v4939, %v5039
        %v5041 = vpop.f32.mrb[0].mxu0
        %5042 = vmatprep.mubr.f32.mxu0 0.0
        %v5043 = vand.u32 %v3968, 4294901760
        %5044 = vmatmul.mubr.f32.gmra.mrb[0].mxu0 %v5043
        %v5045 = vpop.f32.mrb[0].mxu0
        %v5046 = vadd.f32 %v4947, %v5045
        %v5047 = vpop.f32.mrb[0].mxu0
        %5048 = vmatprep.mubr.f32.mxu0 0.0
        %v5049 = vand.u32 %v3971, 4294901760
        %5050 = vmatmul.mubr.f32.gmra.mrb[0].mxu0 %v5049
        %v5051 = vpop.f32.mrb[0].mxu0
        %v5052 = vadd.f32 %v4955, %v5051
        %v5053 = vpop.f32.mrb[0].mxu0
        %5054 = vmatprep.mubr.f32.mxu0 0.0
        %v5055 = vand.u32 %v3974, 4294901760
        %5056 = vmatmul.mubr.f32.gmra.mrb[0].mxu0 %v5055
        %v5057 = vpop.f32.mrb[0].mxu0
        %v5058 = vadd.f32 %v4963, %v5057
        %v5059 = vpop.f32.mrb[0].mxu0
        %5060 = vdwg.mxu0
        %5061 = vmatprep.subr.mxu0 0.0
        %v5062 = vand.u32 %v2935, 4294901760
        %5063 = vmatpush1.msra.mxu0 %v5062
        %5064 = vmatprep.subr.mxu0 0.0
        %v5065 = vand.u32 %v2941, 4294901760
        %5066 = vmatpush1.msra.mxu0 %v5065
        %5067 = vmatprep.subr.mxu0 0.0
        %5068 = vmatpush1.msra.mxu0 0.0
        %5069 = vmatprep.subr.mxu0 0.0
        %5070 = vmatpush1.msra.mxu0 0.0
        %5071 = vmatprep.subr.mxu0 0.0
        %5072 = vmatpush1.msra.mxu0 0.0
        %5073 = vmatprep.subr.mxu0 0.0
        %5074 = vmatpush1.msra.mxu0 0.0
        %5075 = vmatprep.subr.mxu0 0.0
        %5076 = vmatpush1.msra.mxu0 0.0
        %5077 = vmatprep.subr.mxu0 0.0
        %5078 = vmatpush1.msra.mxu0 0.0
        %5079 = vmatprep.subr.mxu0 0.0
        %5080 = vmatpush1.msra.mxu0 0.0
        %5081 = vmatprep.subr.mxu0 0.0
        %5082 = vmatpush1.msra.mxu0 0.0
        %5083 = vmatprep.subr.mxu0 0.0
        %5084 = vmatpush1.msra.mxu0 0.0
        %5085 = vmatprep.subr.mxu0 0.0
        %5086 = vmatpush1.msra.mxu0 0.0
        %5087 = vmatprep.subr.mxu0 0.0
        %5088 = vmatpush1.msra.mxu0 0.0
        %5089 = vmatprep.subr.mxu0 0.0
        %5090 = vmatpush1.msra.mxu0 0.0
        %5091 = vmatprep.subr.mxu0 0.0
        %5092 = vmatpush1.msra.mxu0 0.0
        %5093 = vmatprep.subr.mxu0 0.0
        %5094 = vmatpush1.msra.mxu0 0.0
        %5095 = vmatprep.subr.mxu0 0.0
        %5096 = vmatpush1.msra.mxu0 0.0
        %5097 = vmatprep.subr.mxu0 0.0
        %5098 = vmatpush1.msra.mxu0 0.0
        %5099 = vmatprep.subr.mxu0 0.0
        %5100 = vmatpush1.msra.mxu0 0.0
        %5101 = vmatprep.subr.mxu0 0.0
        %5102 = vmatpush1.msra.mxu0 0.0
        %5103 = vmatprep.subr.mxu0 0.0
        %5104 = vmatpush1.msra.mxu0 0.0
        %5105 = vmatprep.subr.mxu0 0.0
        %5106 = vmatpush1.msra.mxu0 0.0
        %5107 = vmatprep.subr.mxu0 0.0
        %5108 = vmatpush1.msra.mxu0 0.0
        %5109 = vmatprep.subr.mxu0 0.0
        %5110 = vmatpush1.msra.mxu0 0.0
        %5111 = vmatprep.subr.mxu0 0.0
        %5112 = vmatpush1.msra.mxu0 0.0
        %5113 = vmatprep.subr.mxu0 0.0
        %5114 = vmatpush1.msra.mxu0 0.0
        %5115 = vmatprep.subr.mxu0 0.0
        %5116 = vmatpush1.msra.mxu0 0.0
        %5117 = vmatprep.subr.mxu0 0.0
        %5118 = vmatpush1.msra.mxu0 0.0
        %5119 = vmatprep.subr.mxu0 0.0
        %5120 = vmatpush1.msra.mxu0 0.0
        %5121 = vmatprep.subr.mxu0 0.0
        %5122 = vmatpush1.msra.mxu0 0.0
        %5123 = vmatprep.subr.mxu0 0.0
        %5124 = vmatpush1.msra.mxu0 0.0
        %5125 = vmatprep.subr.mxu0 0.0
        %5126 = vmatpush1.msra.mxu0 0.0
        %5127 = vmatprep.mubr.f32.mxu0 0.0
        %v5128 = vand.u32 %v3965, 4294901760
        %5129 = vmatmul.mubr.f32.gmra.mrb[0].mxu0 %v5128
        %v5130 = vpop.f32.mrb[0].mxu0
        %v5131 = vadd.f32 %v5040, %v5130
        %v5132 = vpop.f32.mrb[0].mxu0
        %5133 = vmatprep.mubr.f32.mxu0 0.0
        %v5134 = vand.u32 %v3968, 4294901760
        %5135 = vmatmul.mubr.f32.gmra.mrb[0].mxu0 %v5134
        %v5136 = vpop.f32.mrb[0].mxu0
        %v5137 = vadd.f32 %v5046, %v5136
        %v5138 = vpop.f32.mrb[0].mxu0
        %5139 = vmatprep.mubr.f32.mxu0 0.0
        %v5140 = vand.u32 %v3971, 4294901760
        %5141 = vmatmul.mubr.f32.gmra.mrb[0].mxu0 %v5140
        %v5142 = vpop.f32.mrb[0].mxu0
        %v5143 = vadd.f32 %v5052, %v5142
        %v5144 = vpop.f32.mrb[0].mxu0
        %5145 = vmatprep.mubr.f32.mxu0 0.0
        %v5146 = vand.u32 %v3974, 4294901760
        %5147 = vmatmul.mubr.f32.gmra.mrb[0].mxu0 %v5146
        %v5148 = vpop.f32.mrb[0].mxu0
        %v5149 = vadd.f32 %v5058, %v5148
        %v5150 = vpop.f32.mrb[0].mxu0
        %5151 = vdwg.mxu0
        %5152 = vmatprep.subr.mxu0 0.0
        %v5153 = vand.u32 %v3443, 4294901760
        %5154 = vmatpush1.msra.mxu0 %v5153
        %5155 = vmatprep.subr.mxu0 0.0
        %v5156 = vand.u32 %v3449, 4294901760
        %5157 = vmatpush1.msra.mxu0 %v5156
        %5158 = vmatprep.subr.mxu0 0.0
        %5159 = vmatpush1.msra.mxu0 0.0
        %5160 = vmatprep.subr.mxu0 0.0
        %5161 = vmatpush1.msra.mxu0 0.0
        %5162 = vmatprep.subr.mxu0 0.0
        %5163 = vmatpush1.msra.mxu0 0.0
        %5164 = vmatprep.subr.mxu0 0.0
        %5165 = vmatpush1.msra.mxu0 0.0
        %5166 = vmatprep.subr.mxu0 0.0
        %5167 = vmatpush1.msra.mxu0 0.0
        %5168 = vmatprep.subr.mxu0 0.0
        %5169 = vmatpush1.msra.mxu0 0.0
        %5170 = vmatprep.subr.mxu0 0.0
        %5171 = vmatpush1.msra.mxu0 0.0
        %5172 = vmatprep.subr.mxu0 0.0
        %5173 = vmatpush1.msra.mxu0 0.0
        %5174 = vmatprep.subr.mxu0 0.0
        %5175 = vmatpush1.msra.mxu0 0.0
        %5176 = vmatprep.subr.mxu0 0.0
        %5177 = vmatpush1.msra.mxu0 0.0
        %5178 = vmatprep.subr.mxu0 0.0
        %5179 = vmatpush1.msra.mxu0 0.0
        %5180 = vmatprep.subr.mxu0 0.0
        %5181 = vmatpush1.msra.mxu0 0.0
        %5182 = vmatprep.subr.mxu0 0.0
        %5183 = vmatpush1.msra.mxu0 0.0
        %5184 = vmatprep.subr.mxu0 0.0
        %5185 = vmatpush1.msra.mxu0 0.0
        %5186 = vmatprep.subr.mxu0 0.0
        %5187 = vmatpush1.msra.mxu0 0.0
        %5188 = vmatprep.subr.mxu0 0.0
        %5189 = vmatpush1.msra.mxu0 0.0
        %5190 = vmatprep.subr.mxu0 0.0
        %5191 = vmatpush1.msra.mxu0 0.0
        %5192 = vmatprep.subr.mxu0 0.0
        %5193 = vmatpush1.msra.mxu0 0.0
        %5194 = vmatprep.subr.mxu0 0.0
        %5195 = vmatpush1.msra.mxu0 0.0
        %5196 = vmatprep.subr.mxu0 0.0
        %5197 = vmatpush1.msra.mxu0 0.0
        %5198 = vmatprep.subr.mxu0 0.0
        %5199 = vmatpush1.msra.mxu0 0.0
        %5200 = vmatprep.subr.mxu0 0.0
        %5201 = vmatpush1.msra.mxu0 0.0
        %5202 = vmatprep.subr.mxu0 0.0
        %5203 = vmatpush1.msra.mxu0 0.0
        %5204 = vmatprep.subr.mxu0 0.0
        %5205 = vmatpush1.msra.mxu0 0.0
        %5206 = vmatprep.subr.mxu0 0.0
        %5207 = vmatpush1.msra.mxu0 0.0
        %5208 = vmatprep.subr.mxu0 0.0
        %5209 = vmatpush1.msra.mxu0 0.0
        %5210 = vmatprep.subr.mxu0 0.0
        %5211 = vmatpush1.msra.mxu0 0.0
        %5212 = vmatprep.subr.mxu0 0.0
        %5213 = vmatpush1.msra.mxu0 0.0
        %5214 = vmatprep.subr.mxu0 0.0
        %5215 = vmatpush1.msra.mxu0 0.0
        %5216 = vmatprep.subr.mxu0 0.0
        %5217 = vmatpush1.msra.mxu0 0.0
        %5218 = vmatprep.mubr.f32.mxu0 0.0
        %v5219 = vand.u32 %v3965, 4294901760
        %v5220 = vsub.f32 %v3965, %v5219
        %v5221 = vand.u32 %v5220, 4294901760
        %v5222 = vsub.f32 %v5220, %v5221
        %v5223 = vand.u32 %v5222, 4294901760
        %5224 = vmatmul.mubr.f32.gmra.mrb[0].mxu0 %v5223
        %v5225 = vpop.f32.mrb[0].mxu0
        %v5226 = vadd.f32 0.0, %v5225
        %v5227 = vpop.f32.mrb[0].mxu0
        %5228 = vmatprep.mubr.f32.mxu0 0.0
        %v5229 = vand.u32 %v3968, 4294901760
        %v5230 = vsub.f32 %v3968, %v5229
        %v5231 = vand.u32 %v5230, 4294901760
        %v5232 = vsub.f32 %v5230, %v5231
        %v5233 = vand.u32 %v5232, 4294901760
        %5234 = vmatmul.mubr.f32.gmra.mrb[0].mxu0 %v5233
        %v5235 = vpop.f32.mrb[0].mxu0
        %v5236 = vadd.f32 0.0, %v5235
        %v5237 = vpop.f32.mrb[0].mxu0
        %5238 = vmatprep.mubr.f32.mxu0 0.0
        %v5239 = vand.u32 %v3971, 4294901760
        %v5240 = vsub.f32 %v3971, %v5239
        %v5241 = vand.u32 %v5240, 4294901760
        %v5242 = vsub.f32 %v5240, %v5241
        %v5243 = vand.u32 %v5242, 4294901760
        %5244 = vmatmul.mubr.f32.gmra.mrb[0].mxu0 %v5243
        %v5245 = vpop.f32.mrb[0].mxu0
        %v5246 = vadd.f32 0.0, %v5245
        %v5247 = vpop.f32.mrb[0].mxu0
        %5248 = vmatprep.mubr.f32.mxu0 0.0
        %v5249 = vand.u32 %v3974, 4294901760
        %v5250 = vsub.f32 %v3974, %v5249
        %v5251 = vand.u32 %v5250, 4294901760
        %v5252 = vsub.f32 %v5250, %v5251
        %v5253 = vand.u32 %v5252, 4294901760
        %5254 = vmatmul.mubr.f32.gmra.mrb[0].mxu0 %v5253
        %v5255 = vpop.f32.mrb[0].mxu0
        %v5256 = vadd.f32 0.0, %v5255
        %v5257 = vpop.f32.mrb[0].mxu0
        %5258 = vdwg.mxu0
        %5259 = vmatprep.subr.mxu0 0.0
        %v5260 = vand.u32 %v3443, 4294901760
        %v5261 = vsub.f32 %v3443, %v5260
        %v5262 = vand.u32 %v5261, 4294901760
        %v5263 = vsub.f32 %v5261, %v5262
        %v5264 = vand.u32 %v5263, 4294901760
        %5265 = vmatpush1.msra.mxu0 %v5264
        %5266 = vmatprep.subr.mxu0 0.0
        %v5267 = vand.u32 %v3449, 4294901760
        %v5268 = vsub.f32 %v3449, %v5267
        %v5269 = vand.u32 %v5268, 4294901760
        %v5270 = vsub.f32 %v5268, %v5269
        %v5271 = vand.u32 %v5270, 4294901760
        %5272 = vmatpush1.msra.mxu0 %v5271
        %5273 = vmatprep.subr.mxu0 0.0
        %5274 = vmatpush1.msra.mxu0 0.0
        %5275 = vmatprep.subr.mxu0 0.0
        %5276 = vmatpush1.msra.mxu0 0.0
        %5277 = vmatprep.subr.mxu0 0.0
        %5278 = vmatpush1.msra.mxu0 0.0
        %5279 = vmatprep.subr.mxu0 0.0
        %5280 = vmatpush1.msra.mxu0 0.0
        %5281 = vmatprep.subr.mxu0 0.0
        %5282 = vmatpush1.msra.mxu0 0.0
        %5283 = vmatprep.subr.mxu0 0.0
        %5284 = vmatpush1.msra.mxu0 0.0
        %5285 = vmatprep.subr.mxu0 0.0
        %5286 = vmatpush1.msra.mxu0 0.0
        %5287 = vmatprep.subr.mxu0 0.0
        %5288 = vmatpush1.msra.mxu0 0.0
        %5289 = vmatprep.subr.mxu0 0.0
        %5290 = vmatpush1.msra.mxu0 0.0
        %5291 = vmatprep.subr.mxu0 0.0
        %5292 = vmatpush1.msra.mxu0 0.0
        %5293 = vmatprep.subr.mxu0 0.0
        %5294 = vmatpush1.msra.mxu0 0.0
        %5295 = vmatprep.subr.mxu0 0.0
        %5296 = vmatpush1.msra.mxu0 0.0
        %5297 = vmatprep.subr.mxu0 0.0
        %5298 = vmatpush1.msra.mxu0 0.0
        %5299 = vmatprep.subr.mxu0 0.0
        %5300 = vmatpush1.msra.mxu0 0.0
        %5301 = vmatprep.subr.mxu0 0.0
        %5302 = vmatpush1.msra.mxu0 0.0
        %5303 = vmatprep.subr.mxu0 0.0
        %5304 = vmatpush1.msra.mxu0 0.0
        %5305 = vmatprep.subr.mxu0 0.0
        %5306 = vmatpush1.msra.mxu0 0.0
        %5307 = vmatprep.subr.mxu0 0.0
        %5308 = vmatpush1.msra.mxu0 0.0
        %5309 = vmatprep.subr.mxu0 0.0
        %5310 = vmatpush1.msra.mxu0 0.0
        %5311 = vmatprep.subr.mxu0 0.0
        %5312 = vmatpush1.msra.mxu0 0.0
        %5313 = vmatprep.subr.mxu0 0.0
        %5314 = vmatpush1.msra.mxu0 0.0
        %5315 = vmatprep.subr.mxu0 0.0
        %5316 = vmatpush1.msra.mxu0 0.0
        %5317 = vmatprep.subr.mxu0 0.0
        %5318 = vmatpush1.msra.mxu0 0.0
        %5319 = vmatprep.subr.mxu0 0.0
        %5320 = vmatpush1.msra.mxu0 0.0
        %5321 = vmatprep.subr.mxu0 0.0
        %5322 = vmatpush1.msra.mxu0 0.0
        %5323 = vmatprep.subr.mxu0 0.0
        %5324 = vmatpush1.msra.mxu0 0.0
        %5325 = vmatprep.subr.mxu0 0.0
        %5326 = vmatpush1.msra.mxu0 0.0
        %5327 = vmatprep.subr.mxu0 0.0
        %5328 = vmatpush1.msra.mxu0 0.0
        %5329 = vmatprep.subr.mxu0 0.0
        %5330 = vmatpush1.msra.mxu0 0.0
        %5331 = vmatprep.subr.mxu0 0.0
        %5332 = vmatpush1.msra.mxu0 0.0
        %5333 = vmatprep.mubr.f32.mxu0 0.0
        %v5334 = vand.u32 %v3965, 4294901760
        %5335 = vmatmul.mubr.f32.gmra.mrb[0].mxu0 %v5334
        %v5336 = vpop.f32.mrb[0].mxu0
        %v5337 = vadd.f32 %v5226, %v5336
        %v5338 = vpop.f32.mrb[0].mxu0
        %5339 = vmatprep.mubr.f32.mxu0 0.0
        %v5340 = vand.u32 %v3968, 4294901760
        %5341 = vmatmul.mubr.f32.gmra.mrb[0].mxu0 %v5340
        %v5342 = vpop.f32.mrb[0].mxu0
        %v5343 = vadd.f32 %v5236, %v5342
        %v5344 = vpop.f32.mrb[0].mxu0
        %5345 = vmatprep.mubr.f32.mxu0 0.0
        %v5346 = vand.u32 %v3971, 4294901760
        %5347 = vmatmul.mubr.f32.gmra.mrb[0].mxu0 %v5346
        %v5348 = vpop.f32.mrb[0].mxu0
        %v5349 = vadd.f32 %v5246, %v5348
        %v5350 = vpop.f32.mrb[0].mxu0
        %5351 = vmatprep.mubr.f32.mxu0 0.0
        %v5352 = vand.u32 %v3974, 4294901760
        %5353 = vmatmul.mubr.f32.gmra.mrb[0].mxu0 %v5352
        %v5354 = vpop.f32.mrb[0].mxu0
        %v5355 = vadd.f32 %v5256, %v5354
        %v5356 = vpop.f32.mrb[0].mxu0
        %5357 = vdwg.mxu0
        %5358 = vmatprep.subr.mxu0 0.0
        %v5359 = vand.u32 %v3443, 4294901760
        %v5360 = vsub.f32 %v3443, %v5359
        %5361 = vmatpush1.msra.mxu0 %v5360
        %5362 = vmatprep.subr.mxu0 0.0
        %v5363 = vand.u32 %v3449, 4294901760
        %v5364 = vsub.f32 %v3449, %v5363
        %5365 = vmatpush1.msra.mxu0 %v5364
        %5366 = vmatprep.subr.mxu0 0.0
        %5367 = vmatpush1.msra.mxu0 0.0
        %5368 = vmatprep.subr.mxu0 0.0
        %5369 = vmatpush1.msra.mxu0 0.0
        %5370 = vmatprep.subr.mxu0 0.0
        %5371 = vmatpush1.msra.mxu0 0.0
        %5372 = vmatprep.subr.mxu0 0.0
        %5373 = vmatpush1.msra.mxu0 0.0
        %5374 = vmatprep.subr.mxu0 0.0
        %5375 = vmatpush1.msra.mxu0 0.0
        %5376 = vmatprep.subr.mxu0 0.0
        %5377 = vmatpush1.msra.mxu0 0.0
        %5378 = vmatprep.subr.mxu0 0.0
        %5379 = vmatpush1.msra.mxu0 0.0
        %5380 = vmatprep.subr.mxu0 0.0
        %5381 = vmatpush1.msra.mxu0 0.0
        %5382 = vmatprep.subr.mxu0 0.0
        %5383 = vmatpush1.msra.mxu0 0.0
        %5384 = vmatprep.subr.mxu0 0.0
        %5385 = vmatpush1.msra.mxu0 0.0
        %5386 = vmatprep.subr.mxu0 0.0
        %5387 = vmatpush1.msra.mxu0 0.0
        %5388 = vmatprep.subr.mxu0 0.0
        %5389 = vmatpush1.msra.mxu0 0.0
        %5390 = vmatprep.subr.mxu0 0.0
        %5391 = vmatpush1.msra.mxu0 0.0
        %5392 = vmatprep.subr.mxu0 0.0
        %5393 = vmatpush1.msra.mxu0 0.0
        %5394 = vmatprep.subr.mxu0 0.0
        %5395 = vmatpush1.msra.mxu0 0.0
        %5396 = vmatprep.subr.mxu0 0.0
        %5397 = vmatpush1.msra.mxu0 0.0
        %5398 = vmatprep.subr.mxu0 0.0
        %5399 = vmatpush1.msra.mxu0 0.0
        %5400 = vmatprep.subr.mxu0 0.0
        %5401 = vmatpush1.msra.mxu0 0.0
        %5402 = vmatprep.subr.mxu0 0.0
        %5403 = vmatpush1.msra.mxu0 0.0
        %5404 = vmatprep.subr.mxu0 0.0
        %5405 = vmatpush1.msra.mxu0 0.0
        %5406 = vmatprep.subr.mxu0 0.0
        %5407 = vmatpush1.msra.mxu0 0.0
        %5408 = vmatprep.subr.mxu0 0.0
        %5409 = vmatpush1.msra.mxu0 0.0
        %5410 = vmatprep.subr.mxu0 0.0
        %5411 = vmatpush1.msra.mxu0 0.0
        %5412 = vmatprep.subr.mxu0 0.0
        %5413 = vmatpush1.msra.mxu0 0.0
        %5414 = vmatprep.subr.mxu0 0.0
        %5415 = vmatpush1.msra.mxu0 0.0
        %5416 = vmatprep.subr.mxu0 0.0
        %5417 = vmatpush1.msra.mxu0 0.0
        %5418 = vmatprep.subr.mxu0 0.0
        %5419 = vmatpush1.msra.mxu0 0.0
        %5420 = vmatprep.subr.mxu0 0.0
        %5421 = vmatpush1.msra.mxu0 0.0
        %5422 = vmatprep.subr.mxu0 0.0
        %5423 = vmatpush1.msra.mxu0 0.0
        %5424 = vmatprep.subr.mxu0 0.0
        %5425 = vmatpush1.msra.mxu0 0.0
        %5426 = vmatprep.mubr.f32.mxu0 0.0
        %v5427 = vand.u32 %v3965, 4294901760
        %v5428 = vsub.f32 %v3965, %v5427
        %5429 = vmatmul.mubr.f32.gmra.mrb[0].mxu0 %v5428
        %v5430 = vpop.f32.mrb[0].mxu0
        %v5431 = vadd.f32 %v5337, %v5430
        %v5432 = vpop.f32.mrb[0].mxu0
        %5433 = vmatprep.mubr.f32.mxu0 0.0
        %v5434 = vand.u32 %v3968, 4294901760
        %v5435 = vsub.f32 %v3968, %v5434
        %5436 = vmatmul.mubr.f32.gmra.mrb[0].mxu0 %v5435
        %v5437 = vpop.f32.mrb[0].mxu0
        %v5438 = vadd.f32 %v5343, %v5437
        %v5439 = vpop.f32.mrb[0].mxu0
        %5440 = vmatprep.mubr.f32.mxu0 0.0
        %v5441 = vand.u32 %v3971, 4294901760
        %v5442 = vsub.f32 %v3971, %v5441
        %5443 = vmatmul.mubr.f32.gmra.mrb[0].mxu0 %v5442
        %v5444 = vpop.f32.mrb[0].mxu0
        %v5445 = vadd.f32 %v5349, %v5444
        %v5446 = vpop.f32.mrb[0].mxu0
        %5447 = vmatprep.mubr.f32.mxu0 0.0
        %v5448 = vand.u32 %v3974, 4294901760
        %v5449 = vsub.f32 %v3974, %v5448
        %5450 = vmatmul.mubr.f32.gmra.mrb[0].mxu0 %v5449
        %v5451 = vpop.f32.mrb[0].mxu0
        %v5452 = vadd.f32 %v5355, %v5451
        %v5453 = vpop.f32.mrb[0].mxu0
        %5454 = vdwg.mxu0
        %5455 = vmatprep.subr.mxu0 0.0
        %v5456 = vand.u32 %v3443, 4294901760
        %5457 = vmatpush1.msra.mxu0 %v5456
        %5458 = vmatprep.subr.mxu0 0.0
        %v5459 = vand.u32 %v3449, 4294901760
        %5460 = vmatpush1.msra.mxu0 %v5459
        %5461 = vmatprep.subr.mxu0 0.0
        %5462 = vmatpush1.msra.mxu0 0.0
        %5463 = vmatprep.subr.mxu0 0.0
        %5464 = vmatpush1.msra.mxu0 0.0
        %5465 = vmatprep.subr.mxu0 0.0
        %5466 = vmatpush1.msra.mxu0 0.0
        %5467 = vmatprep.subr.mxu0 0.0
        %5468 = vmatpush1.msra.mxu0 0.0
        %5469 = vmatprep.subr.mxu0 0.0
        %5470 = vmatpush1.msra.mxu0 0.0
        %5471 = vmatprep.subr.mxu0 0.0
        %5472 = vmatpush1.msra.mxu0 0.0
        %5473 = vmatprep.subr.mxu0 0.0
        %5474 = vmatpush1.msra.mxu0 0.0
        %5475 = vmatprep.subr.mxu0 0.0
        %5476 = vmatpush1.msra.mxu0 0.0
        %5477 = vmatprep.subr.mxu0 0.0
        %5478 = vmatpush1.msra.mxu0 0.0
        %5479 = vmatprep.subr.mxu0 0.0
        %5480 = vmatpush1.msra.mxu0 0.0
        %5481 = vmatprep.subr.mxu0 0.0
        %5482 = vmatpush1.msra.mxu0 0.0
        %5483 = vmatprep.subr.mxu0 0.0
        %5484 = vmatpush1.msra.mxu0 0.0
        %5485 = vmatprep.subr.mxu0 0.0
        %5486 = vmatpush1.msra.mxu0 0.0
        %5487 = vmatprep.subr.mxu0 0.0
        %5488 = vmatpush1.msra.mxu0 0.0
        %5489 = vmatprep.subr.mxu0 0.0
        %5490 = vmatpush1.msra.mxu0 0.0
        %5491 = vmatprep.subr.mxu0 0.0
        %5492 = vmatpush1.msra.mxu0 0.0
        %5493 = vmatprep.subr.mxu0 0.0
        %5494 = vmatpush1.msra.mxu0 0.0
        %5495 = vmatprep.subr.mxu0 0.0
        %5496 = vmatpush1.msra.mxu0 0.0
        %5497 = vmatprep.subr.mxu0 0.0
        %5498 = vmatpush1.msra.mxu0 0.0
        %5499 = vmatprep.subr.mxu0 0.0
        %5500 = vmatpush1.msra.mxu0 0.0
        %5501 = vmatprep.subr.mxu0 0.0
        %5502 = vmatpush1.msra.mxu0 0.0
        %5503 = vmatprep.subr.mxu0 0.0
        %5504 = vmatpush1.msra.mxu0 0.0
        %5505 = vmatprep.subr.mxu0 0.0
        %5506 = vmatpush1.msra.mxu0 0.0
        %5507 = vmatprep.subr.mxu0 0.0
        %5508 = vmatpush1.msra.mxu0 0.0
        %5509 = vmatprep.subr.mxu0 0.0
        %5510 = vmatpush1.msra.mxu0 0.0
        %5511 = vmatprep.subr.mxu0 0.0
        %5512 = vmatpush1.msra.mxu0 0.0
        %5513 = vmatprep.subr.mxu0 0.0
        %5514 = vmatpush1.msra.mxu0 0.0
        %5515 = vmatprep.subr.mxu0 0.0
        %5516 = vmatpush1.msra.mxu0 0.0
        %5517 = vmatprep.subr.mxu0 0.0
        %5518 = vmatpush1.msra.mxu0 0.0
        %5519 = vmatprep.subr.mxu0 0.0
        %5520 = vmatpush1.msra.mxu0 0.0
        %5521 = vmatprep.mubr.f32.mxu0 0.0
        %v5522 = vand.u32 %v3965, 4294901760
        %v5523 = vsub.f32 %v3965, %v5522
        %v5524 = vand.u32 %v5523, 4294901760
        %5525 = vmatmul.mubr.f32.gmra.mrb[0].mxu0 %v5524
        %v5526 = vpop.f32.mrb[0].mxu0
        %v5527 = vadd.f32 %v5431, %v5526
        %v5528 = vpop.f32.mrb[0].mxu0
        %5529 = vmatprep.mubr.f32.mxu0 0.0
        %v5530 = vand.u32 %v3968, 4294901760
        %v5531 = vsub.f32 %v3968, %v5530
        %v5532 = vand.u32 %v5531, 4294901760
        %5533 = vmatmul.mubr.f32.gmra.mrb[0].mxu0 %v5532
        %v5534 = vpop.f32.mrb[0].mxu0
        %v5535 = vadd.f32 %v5438, %v5534
        %v5536 = vpop.f32.mrb[0].mxu0
        %5537 = vmatprep.mubr.f32.mxu0 0.0
        %v5538 = vand.u32 %v3971, 4294901760
        %v5539 = vsub.f32 %v3971, %v5538
        %v5540 = vand.u32 %v5539, 4294901760
        %5541 = vmatmul.mubr.f32.gmra.mrb[0].mxu0 %v5540
        %v5542 = vpop.f32.mrb[0].mxu0
        %v5543 = vadd.f32 %v5445, %v5542
        %v5544 = vpop.f32.mrb[0].mxu0
        %5545 = vmatprep.mubr.f32.mxu0 0.0
        %v5546 = vand.u32 %v3974, 4294901760
        %v5547 = vsub.f32 %v3974, %v5546
        %v5548 = vand.u32 %v5547, 4294901760
        %5549 = vmatmul.mubr.f32.gmra.mrb[0].mxu0 %v5548
        %v5550 = vpop.f32.mrb[0].mxu0
        %v5551 = vadd.f32 %v5452, %v5550
        %v5552 = vpop.f32.mrb[0].mxu0
        %5553 = vdwg.mxu0
        %5554 = vmatprep.subr.mxu0 0.0
        %v5555 = vand.u32 %v3443, 4294901760
        %v5556 = vsub.f32 %v3443, %v5555
        %v5557 = vand.u32 %v5556, 4294901760
        %5558 = vmatpush1.msra.mxu0 %v5557
        %5559 = vmatprep.subr.mxu0 0.0
        %v5560 = vand.u32 %v3449, 4294901760
        %v5561 = vsub.f32 %v3449, %v5560
        %v5562 = vand.u32 %v5561, 4294901760
        %5563 = vmatpush1.msra.mxu0 %v5562
        %5564 = vmatprep.subr.mxu0 0.0
        %5565 = vmatpush1.msra.mxu0 0.0
        %5566 = vmatprep.subr.mxu0 0.0
        %5567 = vmatpush1.msra.mxu0 0.0
        %5568 = vmatprep.subr.mxu0 0.0
        %5569 = vmatpush1.msra.mxu0 0.0
        %5570 = vmatprep.subr.mxu0 0.0
        %5571 = vmatpush1.msra.mxu0 0.0
        %5572 = vmatprep.subr.mxu0 0.0
        %5573 = vmatpush1.msra.mxu0 0.0
        %5574 = vmatprep.subr.mxu0 0.0
        %5575 = vmatpush1.msra.mxu0 0.0
        %5576 = vmatprep.subr.mxu0 0.0
        %5577 = vmatpush1.msra.mxu0 0.0
        %5578 = vmatprep.subr.mxu0 0.0
        %5579 = vmatpush1.msra.mxu0 0.0
        %5580 = vmatprep.subr.mxu0 0.0
        %5581 = vmatpush1.msra.mxu0 0.0
        %5582 = vmatprep.subr.mxu0 0.0
        %5583 = vmatpush1.msra.mxu0 0.0
        %5584 = vmatprep.subr.mxu0 0.0
        %5585 = vmatpush1.msra.mxu0 0.0
        %5586 = vmatprep.subr.mxu0 0.0
        %5587 = vmatpush1.msra.mxu0 0.0
        %5588 = vmatprep.subr.mxu0 0.0
        %5589 = vmatpush1.msra.mxu0 0.0
        %5590 = vmatprep.subr.mxu0 0.0
        %5591 = vmatpush1.msra.mxu0 0.0
        %5592 = vmatprep.subr.mxu0 0.0
        %5593 = vmatpush1.msra.mxu0 0.0
        %5594 = vmatprep.subr.mxu0 0.0
        %5595 = vmatpush1.msra.mxu0 0.0
        %5596 = vmatprep.subr.mxu0 0.0
        %5597 = vmatpush1.msra.mxu0 0.0
        %5598 = vmatprep.subr.mxu0 0.0
        %5599 = vmatpush1.msra.mxu0 0.0
        %5600 = vmatprep.subr.mxu0 0.0
        %5601 = vmatpush1.msra.mxu0 0.0
        %5602 = vmatprep.subr.mxu0 0.0
        %5603 = vmatpush1.msra.mxu0 0.0
        %5604 = vmatprep.subr.mxu0 0.0
        %5605 = vmatpush1.msra.mxu0 0.0
        %5606 = vmatprep.subr.mxu0 0.0
        %5607 = vmatpush1.msra.mxu0 0.0
        %5608 = vmatprep.subr.mxu0 0.0
        %5609 = vmatpush1.msra.mxu0 0.0
        %5610 = vmatprep.subr.mxu0 0.0
        %5611 = vmatpush1.msra.mxu0 0.0
        %5612 = vmatprep.subr.mxu0 0.0
        %5613 = vmatpush1.msra.mxu0 0.0
        %5614 = vmatprep.subr.mxu0 0.0
        %5615 = vmatpush1.msra.mxu0 0.0
        %5616 = vmatprep.subr.mxu0 0.0
        %5617 = vmatpush1.msra.mxu0 0.0
        %5618 = vmatprep.subr.mxu0 0.0
        %5619 = vmatpush1.msra.mxu0 0.0
        %5620 = vmatprep.subr.mxu0 0.0
        %5621 = vmatpush1.msra.mxu0 0.0
        %5622 = vmatprep.subr.mxu0 0.0
        %5623 = vmatpush1.msra.mxu0 0.0
        %5624 = vmatprep.mubr.f32.mxu0 0.0
        %v5625 = vand.u32 %v3965, 4294901760
        %5626 = vmatmul.mubr.f32.gmra.mrb[0].mxu0 %v5625
        %v5627 = vpop.f32.mrb[0].mxu0
        %v5628 = vadd.f32 %v5527, %v5627
        %v5629 = vpop.f32.mrb[0].mxu0
        %5630 = vmatprep.mubr.f32.mxu0 0.0
        %v5631 = vand.u32 %v3968, 4294901760
        %5632 = vmatmul.mubr.f32.gmra.mrb[0].mxu0 %v5631
        %v5633 = vpop.f32.mrb[0].mxu0
        %v5634 = vadd.f32 %v5535, %v5633
        %v5635 = vpop.f32.mrb[0].mxu0
        %5636 = vmatprep.mubr.f32.mxu0 0.0
        %v5637 = vand.u32 %v3971, 4294901760
        %5638 = vmatmul.mubr.f32.gmra.mrb[0].mxu0 %v5637
        %v5639 = vpop.f32.mrb[0].mxu0
        %v5640 = vadd.f32 %v5543, %v5639
        %v5641 = vpop.f32.mrb[0].mxu0
        %5642 = vmatprep.mubr.f32.mxu0 0.0
        %v5643 = vand.u32 %v3974, 4294901760
        %5644 = vmatmul.mubr.f32.gmra.mrb[0].mxu0 %v5643
        %v5645 = vpop.f32.mrb[0].mxu0
        %v5646 = vadd.f32 %v5551, %v5645
        %v5647 = vpop.f32.mrb[0].mxu0
        %5648 = vdwg.mxu0
        %5649 = vmatprep.subr.mxu0 0.0
        %v5650 = vand.u32 %v3443, 4294901760
        %5651 = vmatpush1.msra.mxu0 %v5650
        %5652 = vmatprep.subr.mxu0 0.0
        %v5653 = vand.u32 %v3449, 4294901760
        %5654 = vmatpush1.msra.mxu0 %v5653
        %5655 = vmatprep.subr.mxu0 0.0
        %5656 = vmatpush1.msra.mxu0 0.0
        %5657 = vmatprep.subr.mxu0 0.0
        %5658 = vmatpush1.msra.mxu0 0.0
        %5659 = vmatprep.subr.mxu0 0.0
        %5660 = vmatpush1.msra.mxu0 0.0
        %5661 = vmatprep.subr.mxu0 0.0
        %5662 = vmatpush1.msra.mxu0 0.0
        %5663 = vmatprep.subr.mxu0 0.0
        %5664 = vmatpush1.msra.mxu0 0.0
        %5665 = vmatprep.subr.mxu0 0.0
        %5666 = vmatpush1.msra.mxu0 0.0
        %5667 = vmatprep.subr.mxu0 0.0
        %5668 = vmatpush1.msra.mxu0 0.0
        %5669 = vmatprep.subr.mxu0 0.0
        %5670 = vmatpush1.msra.mxu0 0.0
        %5671 = vmatprep.subr.mxu0 0.0
        %5672 = vmatpush1.msra.mxu0 0.0
        %5673 = vmatprep.subr.mxu0 0.0
        %5674 = vmatpush1.msra.mxu0 0.0
        %5675 = vmatprep.subr.mxu0 0.0
        %5676 = vmatpush1.msra.mxu0 0.0
        %5677 = vmatprep.subr.mxu0 0.0
        %5678 = vmatpush1.msra.mxu0 0.0
        %5679 = vmatprep.subr.mxu0 0.0
        %5680 = vmatpush1.msra.mxu0 0.0
        %5681 = vmatprep.subr.mxu0 0.0
        %5682 = vmatpush1.msra.mxu0 0.0
        %5683 = vmatprep.subr.mxu0 0.0
        %5684 = vmatpush1.msra.mxu0 0.0
        %5685 = vmatprep.subr.mxu0 0.0
        %5686 = vmatpush1.msra.mxu0 0.0
        %5687 = vmatprep.subr.mxu0 0.0
        %5688 = vmatpush1.msra.mxu0 0.0
        %5689 = vmatprep.subr.mxu0 0.0
        %5690 = vmatpush1.msra.mxu0 0.0
        %5691 = vmatprep.subr.mxu0 0.0
        %5692 = vmatpush1.msra.mxu0 0.0
        %5693 = vmatprep.subr.mxu0 0.0
        %5694 = vmatpush1.msra.mxu0 0.0
        %5695 = vmatprep.subr.mxu0 0.0
        %5696 = vmatpush1.msra.mxu0 0.0
        %5697 = vmatprep.subr.mxu0 0.0
        %5698 = vmatpush1.msra.mxu0 0.0
        %5699 = vmatprep.subr.mxu0 0.0
        %5700 = vmatpush1.msra.mxu0 0.0
        %5701 = vmatprep.subr.mxu0 0.0
        %5702 = vmatpush1.msra.mxu0 0.0
        %5703 = vmatprep.subr.mxu0 0.0
        %5704 = vmatpush1.msra.mxu0 0.0
        %5705 = vmatprep.subr.mxu0 0.0
        %5706 = vmatpush1.msra.mxu0 0.0
        %5707 = vmatprep.subr.mxu0 0.0
        %5708 = vmatpush1.msra.mxu0 0.0
        %5709 = vmatprep.subr.mxu0 0.0
        %5710 = vmatpush1.msra.mxu0 0.0
        %5711 = vmatprep.subr.mxu0 0.0
        %5712 = vmatpush1.msra.mxu0 0.0
        %5713 = vmatprep.subr.mxu0 0.0
        %5714 = vmatpush1.msra.mxu0 0.0
        %5715 = vmatprep.mubr.f32.mxu0 0.0
        %v5716 = vand.u32 %v3965, 4294901760
        %5717 = vmatmul.mubr.f32.gmra.mrb[0].mxu0 %v5716
        %v5718 = vpop.f32.mrb[0].mxu0
        %v5719 = vadd.f32 %v5628, %v5718
        %v5720 = vpop.f32.mrb[0].mxu0
        %5721 = vmatprep.mubr.f32.mxu0 0.0
        %v5722 = vand.u32 %v3968, 4294901760
        %5723 = vmatmul.mubr.f32.gmra.mrb[0].mxu0 %v5722
        %v5724 = vpop.f32.mrb[0].mxu0
        %v5725 = vadd.f32 %v5634, %v5724
        %v5726 = vpop.f32.mrb[0].mxu0
        %5727 = vmatprep.mubr.f32.mxu0 0.0
        %v5728 = vand.u32 %v3971, 4294901760
        %5729 = vmatmul.mubr.f32.gmra.mrb[0].mxu0 %v5728
        %v5730 = vpop.f32.mrb[0].mxu0
        %v5731 = vadd.f32 %v5640, %v5730
        %v5732 = vpop.f32.mrb[0].mxu0
        %5733 = vmatprep.mubr.f32.mxu0 0.0
        %v5734 = vand.u32 %v3974, 4294901760
        %5735 = vmatmul.mubr.f32.gmra.mrb[0].mxu0 %v5734
        %v5736 = vpop.f32.mrb[0].mxu0
        %v5737 = vadd.f32 %v5646, %v5736
        %v5738 = vpop.f32.mrb[0].mxu0
        %5739 = vdwg.mxu0
        %5740 = vmatprep.subr.mxu0 0.0
        %v5741 = vand.u32 %v3951, 4294901760
        %5742 = vmatpush1.msra.mxu0 %v5741
        %5743 = vmatprep.subr.mxu0 0.0
        %v5744 = vand.u32 %v3957, 4294901760
        %5745 = vmatpush1.msra.mxu0 %v5744
        %5746 = vmatprep.subr.mxu0 0.0
        %5747 = vmatpush1.msra.mxu0 0.0
        %5748 = vmatprep.subr.mxu0 0.0
        %5749 = vmatpush1.msra.mxu0 0.0
        %5750 = vmatprep.subr.mxu0 0.0
        %5751 = vmatpush1.msra.mxu0 0.0
        %5752 = vmatprep.subr.mxu0 0.0
        %5753 = vmatpush1.msra.mxu0 0.0
        %5754 = vmatprep.subr.mxu0 0.0
        %5755 = vmatpush1.msra.mxu0 0.0
        %5756 = vmatprep.subr.mxu0 0.0
        %5757 = vmatpush1.msra.mxu0 0.0
        %5758 = vmatprep.subr.mxu0 0.0
        %5759 = vmatpush1.msra.mxu0 0.0
        %5760 = vmatprep.subr.mxu0 0.0
        %5761 = vmatpush1.msra.mxu0 0.0
        %5762 = vmatprep.subr.mxu0 0.0
        %5763 = vmatpush1.msra.mxu0 0.0
        %5764 = vmatprep.subr.mxu0 0.0
        %5765 = vmatpush1.msra.mxu0 0.0
        %5766 = vmatprep.subr.mxu0 0.0
        %5767 = vmatpush1.msra.mxu0 0.0
        %5768 = vmatprep.subr.mxu0 0.0
        %5769 = vmatpush1.msra.mxu0 0.0
        %5770 = vmatprep.subr.mxu0 0.0
        %5771 = vmatpush1.msra.mxu0 0.0
        %5772 = vmatprep.subr.mxu0 0.0
        %5773 = vmatpush1.msra.mxu0 0.0
        %5774 = vmatprep.subr.mxu0 0.0
        %5775 = vmatpush1.msra.mxu0 0.0
        %5776 = vmatprep.subr.mxu0 0.0
        %5777 = vmatpush1.msra.mxu0 0.0
        %5778 = vmatprep.subr.mxu0 0.0
        %5779 = vmatpush1.msra.mxu0 0.0
        %5780 = vmatprep.subr.mxu0 0.0
        %5781 = vmatpush1.msra.mxu0 0.0
        %5782 = vmatprep.subr.mxu0 0.0
        %5783 = vmatpush1.msra.mxu0 0.0
        %5784 = vmatprep.subr.mxu0 0.0
        %5785 = vmatpush1.msra.mxu0 0.0
        %5786 = vmatprep.subr.mxu0 0.0
        %5787 = vmatpush1.msra.mxu0 0.0
        %5788 = vmatprep.subr.mxu0 0.0
        %5789 = vmatpush1.msra.mxu0 0.0
        %5790 = vmatprep.subr.mxu0 0.0
        %5791 = vmatpush1.msra.mxu0 0.0
        %5792 = vmatprep.subr.mxu0 0.0
        %5793 = vmatpush1.msra.mxu0 0.0
        %5794 = vmatprep.subr.mxu0 0.0
        %5795 = vmatpush1.msra.mxu0 0.0
        %5796 = vmatprep.subr.mxu0 0.0
        %5797 = vmatpush1.msra.mxu0 0.0
        %5798 = vmatprep.subr.mxu0 0.0
        %5799 = vmatpush1.msra.mxu0 0.0
        %5800 = vmatprep.subr.mxu0 0.0
        %5801 = vmatpush1.msra.mxu0 0.0
        %5802 = vmatprep.subr.mxu0 0.0
        %5803 = vmatpush1.msra.mxu0 0.0
        %5804 = vmatprep.subr.mxu0 0.0
        %5805 = vmatpush1.msra.mxu0 0.0
        %5806 = vmatprep.mubr.f32.mxu0 0.0
        %v5807 = vand.u32 %v3965, 4294901760
        %v5808 = vsub.f32 %v3965, %v5807
        %v5809 = vand.u32 %v5808, 4294901760
        %v5810 = vsub.f32 %v5808, %v5809
        %v5811 = vand.u32 %v5810, 4294901760
        %5812 = vmatmul.mubr.f32.gmra.mrb[0].mxu0 %v5811
        %v5813 = vpop.f32.mrb[0].mxu0
        %v5814 = vadd.f32 0.0, %v5813
        %v5815 = vpop.f32.mrb[0].mxu0
        %5816 = vmatprep.mubr.f32.mxu0 0.0
        %v5817 = vand.u32 %v3968, 4294901760
        %v5818 = vsub.f32 %v3968, %v5817
        %v5819 = vand.u32 %v5818, 4294901760
        %v5820 = vsub.f32 %v5818, %v5819
        %v5821 = vand.u32 %v5820, 4294901760
        %5822 = vmatmul.mubr.f32.gmra.mrb[0].mxu0 %v5821
        %v5823 = vpop.f32.mrb[0].mxu0
        %v5824 = vadd.f32 0.0, %v5823
        %v5825 = vpop.f32.mrb[0].mxu0
        %5826 = vmatprep.mubr.f32.mxu0 0.0
        %v5827 = vand.u32 %v3971, 4294901760
        %v5828 = vsub.f32 %v3971, %v5827
        %v5829 = vand.u32 %v5828, 4294901760
        %v5830 = vsub.f32 %v5828, %v5829
        %v5831 = vand.u32 %v5830, 4294901760
        %5832 = vmatmul.mubr.f32.gmra.mrb[0].mxu0 %v5831
        %v5833 = vpop.f32.mrb[0].mxu0
        %v5834 = vadd.f32 0.0, %v5833
        %v5835 = vpop.f32.mrb[0].mxu0
        %5836 = vmatprep.mubr.f32.mxu0 0.0
        %v5837 = vand.u32 %v3974, 4294901760
        %v5838 = vsub.f32 %v3974, %v5837
        %v5839 = vand.u32 %v5838, 4294901760
        %v5840 = vsub.f32 %v5838, %v5839
        %v5841 = vand.u32 %v5840, 4294901760
        %5842 = vmatmul.mubr.f32.gmra.mrb[0].mxu0 %v5841
        %v5843 = vpop.f32.mrb[0].mxu0
        %v5844 = vadd.f32 0.0, %v5843
        %v5845 = vpop.f32.mrb[0].mxu0
        %5846 = vdwg.mxu0
        %5847 = vmatprep.subr.mxu0 0.0
        %v5848 = vand.u32 %v3951, 4294901760
        %v5849 = vsub.f32 %v3951, %v5848
        %v5850 = vand.u32 %v5849, 4294901760
        %v5851 = vsub.f32 %v5849, %v5850
        %v5852 = vand.u32 %v5851, 4294901760
        %5853 = vmatpush1.msra.mxu0 %v5852
        %5854 = vmatprep.subr.mxu0 0.0
        %v5855 = vand.u32 %v3957, 4294901760
        %v5856 = vsub.f32 %v3957, %v5855
        %v5857 = vand.u32 %v5856, 4294901760
        %v5858 = vsub.f32 %v5856, %v5857
        %v5859 = vand.u32 %v5858, 4294901760
        %5860 = vmatpush1.msra.mxu0 %v5859
        %5861 = vmatprep.subr.mxu0 0.0
        %5862 = vmatpush1.msra.mxu0 0.0
        %5863 = vmatprep.subr.mxu0 0.0
        %5864 = vmatpush1.msra.mxu0 0.0
        %5865 = vmatprep.subr.mxu0 0.0
        %5866 = vmatpush1.msra.mxu0 0.0
        %5867 = vmatprep.subr.mxu0 0.0
        %5868 = vmatpush1.msra.mxu0 0.0
        %5869 = vmatprep.subr.mxu0 0.0
        %5870 = vmatpush1.msra.mxu0 0.0
        %5871 = vmatprep.subr.mxu0 0.0
        %5872 = vmatpush1.msra.mxu0 0.0
        %5873 = vmatprep.subr.mxu0 0.0
        %5874 = vmatpush1.msra.mxu0 0.0
        %5875 = vmatprep.subr.mxu0 0.0
        %5876 = vmatpush1.msra.mxu0 0.0
        %5877 = vmatprep.subr.mxu0 0.0
        %5878 = vmatpush1.msra.mxu0 0.0
        %5879 = vmatprep.subr.mxu0 0.0
        %5880 = vmatpush1.msra.mxu0 0.0
        %5881 = vmatprep.subr.mxu0 0.0
        %5882 = vmatpush1.msra.mxu0 0.0
        %5883 = vmatprep.subr.mxu0 0.0
        %5884 = vmatpush1.msra.mxu0 0.0
        %5885 = vmatprep.subr.mxu0 0.0
        %5886 = vmatpush1.msra.mxu0 0.0
        %5887 = vmatprep.subr.mxu0 0.0
        %5888 = vmatpush1.msra.mxu0 0.0
        %5889 = vmatprep.subr.mxu0 0.0
        %5890 = vmatpush1.msra.mxu0 0.0
        %5891 = vmatprep.subr.mxu0 0.0
        %5892 = vmatpush1.msra.mxu0 0.0
        %5893 = vmatprep.subr.mxu0 0.0
        %5894 = vmatpush1.msra.mxu0 0.0
        %5895 = vmatprep.subr.mxu0 0.0
        %5896 = vmatpush1.msra.mxu0 0.0
        %5897 = vmatprep.subr.mxu0 0.0
        %5898 = vmatpush1.msra.mxu0 0.0
        %5899 = vmatprep.subr.mxu0 0.0
        %5900 = vmatpush1.msra.mxu0 0.0
        %5901 = vmatprep.subr.mxu0 0.0
        %5902 = vmatpush1.msra.mxu0 0.0
        %5903 = vmatprep.subr.mxu0 0.0
        %5904 = vmatpush1.msra.mxu0 0.0
        %5905 = vmatprep.subr.mxu0 0.0
        %5906 = vmatpush1.msra.mxu0 0.0
        %5907 = vmatprep.subr.mxu0 0.0
        %5908 = vmatpush1.msra.mxu0 0.0
        %5909 = vmatprep.subr.mxu0 0.0
        %5910 = vmatpush1.msra.mxu0 0.0
        %5911 = vmatprep.subr.mxu0 0.0
        %5912 = vmatpush1.msra.mxu0 0.0
        %5913 = vmatprep.subr.mxu0 0.0
        %5914 = vmatpush1.msra.mxu0 0.0
        %5915 = vmatprep.subr.mxu0 0.0
        %5916 = vmatpush1.msra.mxu0 0.0
        %5917 = vmatprep.subr.mxu0 0.0
        %5918 = vmatpush1.msra.mxu0 0.0
        %5919 = vmatprep.subr.mxu0 0.0
        %5920 = vmatpush1.msra.mxu0 0.0
        %5921 = vmatprep.mubr.f32.mxu0 0.0
        %v5922 = vand.u32 %v3965, 4294901760
        %5923 = vmatmul.mubr.f32.gmra.mrb[0].mxu0 %v5922
        %v5924 = vpop.f32.mrb[0].mxu0
        %v5925 = vadd.f32 %v5814, %v5924
        %v5926 = vpop.f32.mrb[0].mxu0
        %5927 = vmatprep.mubr.f32.mxu0 0.0
        %v5928 = vand.u32 %v3968, 4294901760
        %5929 = vmatmul.mubr.f32.gmra.mrb[0].mxu0 %v5928
        %v5930 = vpop.f32.mrb[0].mxu0
        %v5931 = vadd.f32 %v5824, %v5930
        %v5932 = vpop.f32.mrb[0].mxu0
        %5933 = vmatprep.mubr.f32.mxu0 0.0
        %v5934 = vand.u32 %v3971, 4294901760
        %5935 = vmatmul.mubr.f32.gmra.mrb[0].mxu0 %v5934
        %v5936 = vpop.f32.mrb[0].mxu0
        %v5937 = vadd.f32 %v5834, %v5936
        %v5938 = vpop.f32.mrb[0].mxu0
        %5939 = vmatprep.mubr.f32.mxu0 0.0
        %v5940 = vand.u32 %v3974, 4294901760
        %5941 = vmatmul.mubr.f32.gmra.mrb[0].mxu0 %v5940
        %v5942 = vpop.f32.mrb[0].mxu0
        %v5943 = vadd.f32 %v5844, %v5942
        %v5944 = vpop.f32.mrb[0].mxu0
        %5945 = vdwg.mxu0
        %5946 = vmatprep.subr.mxu0 0.0
        %v5947 = vand.u32 %v3951, 4294901760
        %v5948 = vsub.f32 %v3951, %v5947
        %5949 = vmatpush1.msra.mxu0 %v5948
        %5950 = vmatprep.subr.mxu0 0.0
        %v5951 = vand.u32 %v3957, 4294901760
        %v5952 = vsub.f32 %v3957, %v5951
        %5953 = vmatpush1.msra.mxu0 %v5952
        %5954 = vmatprep.subr.mxu0 0.0
        %5955 = vmatpush1.msra.mxu0 0.0
        %5956 = vmatprep.subr.mxu0 0.0
        %5957 = vmatpush1.msra.mxu0 0.0
        %5958 = vmatprep.subr.mxu0 0.0
        %5959 = vmatpush1.msra.mxu0 0.0
        %5960 = vmatprep.subr.mxu0 0.0
        %5961 = vmatpush1.msra.mxu0 0.0
        %5962 = vmatprep.subr.mxu0 0.0
        %5963 = vmatpush1.msra.mxu0 0.0
        %5964 = vmatprep.subr.mxu0 0.0
        %5965 = vmatpush1.msra.mxu0 0.0
        %5966 = vmatprep.subr.mxu0 0.0
        %5967 = vmatpush1.msra.mxu0 0.0
        %5968 = vmatprep.subr.mxu0 0.0
        %5969 = vmatpush1.msra.mxu0 0.0
        %5970 = vmatprep.subr.mxu0 0.0
        %5971 = vmatpush1.msra.mxu0 0.0
        %5972 = vmatprep.subr.mxu0 0.0
        %5973 = vmatpush1.msra.mxu0 0.0
        %5974 = vmatprep.subr.mxu0 0.0
        %5975 = vmatpush1.msra.mxu0 0.0
        %5976 = vmatprep.subr.mxu0 0.0
        %5977 = vmatpush1.msra.mxu0 0.0
        %5978 = vmatprep.subr.mxu0 0.0
        %5979 = vmatpush1.msra.mxu0 0.0
        %5980 = vmatprep.subr.mxu0 0.0
        %5981 = vmatpush1.msra.mxu0 0.0
        %5982 = vmatprep.subr.mxu0 0.0
        %5983 = vmatpush1.msra.mxu0 0.0
        %5984 = vmatprep.subr.mxu0 0.0
        %5985 = vmatpush1.msra.mxu0 0.0
        %5986 = vmatprep.subr.mxu0 0.0
        %5987 = vmatpush1.msra.mxu0 0.0
        %5988 = vmatprep.subr.mxu0 0.0
        %5989 = vmatpush1.msra.mxu0 0.0
        %5990 = vmatprep.subr.mxu0 0.0
        %5991 = vmatpush1.msra.mxu0 0.0
        %5992 = vmatprep.subr.mxu0 0.0
        %5993 = vmatpush1.msra.mxu0 0.0
        %5994 = vmatprep.subr.mxu0 0.0
        %5995 = vmatpush1.msra.mxu0 0.0
        %5996 = vmatprep.subr.mxu0 0.0
        %5997 = vmatpush1.msra.mxu0 0.0
        %5998 = vmatprep.subr.mxu0 0.0
        %5999 = vmatpush1.msra.mxu0 0.0
        %6000 = vmatprep.subr.mxu0 0.0
        %6001 = vmatpush1.msra.mxu0 0.0
        %6002 = vmatprep.subr.mxu0 0.0
        %6003 = vmatpush1.msra.mxu0 0.0
        %6004 = vmatprep.subr.mxu0 0.0
        %6005 = vmatpush1.msra.mxu0 0.0
        %6006 = vmatprep.subr.mxu0 0.0
        %6007 = vmatpush1.msra.mxu0 0.0
        %6008 = vmatprep.subr.mxu0 0.0
        %6009 = vmatpush1.msra.mxu0 0.0
        %6010 = vmatprep.subr.mxu0 0.0
        %6011 = vmatpush1.msra.mxu0 0.0
        %6012 = vmatprep.subr.mxu0 0.0
        %6013 = vmatpush1.msra.mxu0 0.0
        %6014 = vmatprep.mubr.f32.mxu0 0.0
        %v6015 = vand.u32 %v3965, 4294901760
        %v6016 = vsub.f32 %v3965, %v6015
        %6017 = vmatmul.mubr.f32.gmra.mrb[0].mxu0 %v6016
        %v6018 = vpop.f32.mrb[0].mxu0
        %v6019 = vadd.f32 %v5925, %v6018
        %v6020 = vpop.f32.mrb[0].mxu0
        %6021 = vmatprep.mubr.f32.mxu0 0.0
        %v6022 = vand.u32 %v3968, 4294901760
        %v6023 = vsub.f32 %v3968, %v6022
        %6024 = vmatmul.mubr.f32.gmra.mrb[0].mxu0 %v6023
        %v6025 = vpop.f32.mrb[0].mxu0
        %v6026 = vadd.f32 %v5931, %v6025
        %v6027 = vpop.f32.mrb[0].mxu0
        %6028 = vmatprep.mubr.f32.mxu0 0.0
        %v6029 = vand.u32 %v3971, 4294901760
        %v6030 = vsub.f32 %v3971, %v6029
        %6031 = vmatmul.mubr.f32.gmra.mrb[0].mxu0 %v6030
        %v6032 = vpop.f32.mrb[0].mxu0
        %v6033 = vadd.f32 %v5937, %v6032
        %v6034 = vpop.f32.mrb[0].mxu0
        %6035 = vmatprep.mubr.f32.mxu0 0.0
        %v6036 = vand.u32 %v3974, 4294901760
        %v6037 = vsub.f32 %v3974, %v6036
        %6038 = vmatmul.mubr.f32.gmra.mrb[0].mxu0 %v6037
        %v6039 = vpop.f32.mrb[0].mxu0
        %v6040 = vadd.f32 %v5943, %v6039
        %v6041 = vpop.f32.mrb[0].mxu0
        %6042 = vdwg.mxu0
        %6043 = vmatprep.subr.mxu0 0.0
        %v6044 = vand.u32 %v3951, 4294901760
        %6045 = vmatpush1.msra.mxu0 %v6044
        %6046 = vmatprep.subr.mxu0 0.0
        %v6047 = vand.u32 %v3957, 4294901760
        %6048 = vmatpush1.msra.mxu0 %v6047
        %6049 = vmatprep.subr.mxu0 0.0
        %6050 = vmatpush1.msra.mxu0 0.0
        %6051 = vmatprep.subr.mxu0 0.0
        %6052 = vmatpush1.msra.mxu0 0.0
        %6053 = vmatprep.subr.mxu0 0.0
        %6054 = vmatpush1.msra.mxu0 0.0
        %6055 = vmatprep.subr.mxu0 0.0
        %6056 = vmatpush1.msra.mxu0 0.0
        %6057 = vmatprep.subr.mxu0 0.0
        %6058 = vmatpush1.msra.mxu0 0.0
        %6059 = vmatprep.subr.mxu0 0.0
        %6060 = vmatpush1.msra.mxu0 0.0
        %6061 = vmatprep.subr.mxu0 0.0
        %6062 = vmatpush1.msra.mxu0 0.0
        %6063 = vmatprep.subr.mxu0 0.0
        %6064 = vmatpush1.msra.mxu0 0.0
        %6065 = vmatprep.subr.mxu0 0.0
        %6066 = vmatpush1.msra.mxu0 0.0
        %6067 = vmatprep.subr.mxu0 0.0
        %6068 = vmatpush1.msra.mxu0 0.0
        %6069 = vmatprep.subr.mxu0 0.0
        %6070 = vmatpush1.msra.mxu0 0.0
        %6071 = vmatprep.subr.mxu0 0.0
        %6072 = vmatpush1.msra.mxu0 0.0
        %6073 = vmatprep.subr.mxu0 0.0
        %6074 = vmatpush1.msra.mxu0 0.0
        %6075 = vmatprep.subr.mxu0 0.0
        %6076 = vmatpush1.msra.mxu0 0.0
        %6077 = vmatprep.subr.mxu0 0.0
        %6078 = vmatpush1.msra.mxu0 0.0
        %6079 = vmatprep.subr.mxu0 0.0
        %6080 = vmatpush1.msra.mxu0 0.0
        %6081 = vmatprep.subr.mxu0 0.0
        %6082 = vmatpush1.msra.mxu0 0.0
        %6083 = vmatprep.subr.mxu0 0.0
        %6084 = vmatpush1.msra.mxu0 0.0
        %6085 = vmatprep.subr.mxu0 0.0
        %6086 = vmatpush1.msra.mxu0 0.0
        %6087 = vmatprep.subr.mxu0 0.0
        %6088 = vmatpush1.msra.mxu0 0.0
        %6089 = vmatprep.subr.mxu0 0.0
        %6090 = vmatpush1.msra.mxu0 0.0
        %6091 = vmatprep.subr.mxu0 0.0
        %6092 = vmatpush1.msra.mxu0 0.0
        %6093 = vmatprep.subr.mxu0 0.0
        %6094 = vmatpush1.msra.mxu0 0.0
        %6095 = vmatprep.subr.mxu0 0.0
        %6096 = vmatpush1.msra.mxu0 0.0
        %6097 = vmatprep.subr.mxu0 0.0
        %6098 = vmatpush1.msra.mxu0 0.0
        %6099 = vmatprep.subr.mxu0 0.0
        %6100 = vmatpush1.msra.mxu0 0.0
        %6101 = vmatprep.subr.mxu0 0.0
        %6102 = vmatpush1.msra.mxu0 0.0
        %6103 = vmatprep.subr.mxu0 0.0
        %6104 = vmatpush1.msra.mxu0 0.0
        %6105 = vmatprep.subr.mxu0 0.0
        %6106 = vmatpush1.msra.mxu0 0.0
        %6107 = vmatprep.subr.mxu0 0.0
        %6108 = vmatpush1.msra.mxu0 0.0
        %6109 = vmatprep.mubr.f32.mxu0 0.0
        %v6110 = vand.u32 %v3965, 4294901760
        %v6111 = vsub.f32 %v3965, %v6110
        %v6112 = vand.u32 %v6111, 4294901760
        %6113 = vmatmul.mubr.f32.gmra.mrb[0].mxu0 %v6112
        %v6114 = vpop.f32.mrb[0].mxu0
        %v6115 = vadd.f32 %v6019, %v6114
        %v6116 = vpop.f32.mrb[0].mxu0
        %6117 = vmatprep.mubr.f32.mxu0 0.0
        %v6118 = vand.u32 %v3968, 4294901760
        %v6119 = vsub.f32 %v3968, %v6118
        %v6120 = vand.u32 %v6119, 4294901760
        %6121 = vmatmul.mubr.f32.gmra.mrb[0].mxu0 %v6120
        %v6122 = vpop.f32.mrb[0].mxu0
        %v6123 = vadd.f32 %v6026, %v6122
        %v6124 = vpop.f32.mrb[0].mxu0
        %6125 = vmatprep.mubr.f32.mxu0 0.0
        %v6126 = vand.u32 %v3971, 4294901760
        %v6127 = vsub.f32 %v3971, %v6126
        %v6128 = vand.u32 %v6127, 4294901760
        %6129 = vmatmul.mubr.f32.gmra.mrb[0].mxu0 %v6128
        %v6130 = vpop.f32.mrb[0].mxu0
        %v6131 = vadd.f32 %v6033, %v6130
        %v6132 = vpop.f32.mrb[0].mxu0
        %6133 = vmatprep.mubr.f32.mxu0 0.0
        %v6134 = vand.u32 %v3974, 4294901760
        %v6135 = vsub.f32 %v3974, %v6134
        %v6136 = vand.u32 %v6135, 4294901760
        %6137 = vmatmul.mubr.f32.gmra.mrb[0].mxu0 %v6136
        %v6138 = vpop.f32.mrb[0].mxu0
        %v6139 = vadd.f32 %v6040, %v6138
        %v6140 = vpop.f32.mrb[0].mxu0
        %6141 = vdwg.mxu0
        %6142 = vmatprep.subr.mxu0 0.0
        %v6143 = vand.u32 %v3951, 4294901760
        %v6144 = vsub.f32 %v3951, %v6143
        %v6145 = vand.u32 %v6144, 4294901760
        %6146 = vmatpush1.msra.mxu0 %v6145
        %6147 = vmatprep.subr.mxu0 0.0
        %v6148 = vand.u32 %v3957, 4294901760
        %v6149 = vsub.f32 %v3957, %v6148
        %v6150 = vand.u32 %v6149, 4294901760
        %6151 = vmatpush1.msra.mxu0 %v6150
        %6152 = vmatprep.subr.mxu0 0.0
        %6153 = vmatpush1.msra.mxu0 0.0
        %6154 = vmatprep.subr.mxu0 0.0
        %6155 = vmatpush1.msra.mxu0 0.0
        %6156 = vmatprep.subr.mxu0 0.0
        %6157 = vmatpush1.msra.mxu0 0.0
        %6158 = vmatprep.subr.mxu0 0.0
        %6159 = vmatpush1.msra.mxu0 0.0
        %6160 = vmatprep.subr.mxu0 0.0
        %6161 = vmatpush1.msra.mxu0 0.0
        %6162 = vmatprep.subr.mxu0 0.0
        %6163 = vmatpush1.msra.mxu0 0.0
        %6164 = vmatprep.subr.mxu0 0.0
        %6165 = vmatpush1.msra.mxu0 0.0
        %6166 = vmatprep.subr.mxu0 0.0
        %6167 = vmatpush1.msra.mxu0 0.0
        %6168 = vmatprep.subr.mxu0 0.0
        %6169 = vmatpush1.msra.mxu0 0.0
        %6170 = vmatprep.subr.mxu0 0.0
        %6171 = vmatpush1.msra.mxu0 0.0
        %6172 = vmatprep.subr.mxu0 0.0
        %6173 = vmatpush1.msra.mxu0 0.0
        %6174 = vmatprep.subr.mxu0 0.0
        %6175 = vmatpush1.msra.mxu0 0.0
        %6176 = vmatprep.subr.mxu0 0.0
        %6177 = vmatpush1.msra.mxu0 0.0
        %6178 = vmatprep.subr.mxu0 0.0
        %6179 = vmatpush1.msra.mxu0 0.0
        %6180 = vmatprep.subr.mxu0 0.0
        %6181 = vmatpush1.msra.mxu0 0.0
        %6182 = vmatprep.subr.mxu0 0.0
        %6183 = vmatpush1.msra.mxu0 0.0
        %6184 = vmatprep.subr.mxu0 0.0
        %6185 = vmatpush1.msra.mxu0 0.0
        %6186 = vmatprep.subr.mxu0 0.0
        %6187 = vmatpush1.msra.mxu0 0.0
        %6188 = vmatprep.subr.mxu0 0.0
        %6189 = vmatpush1.msra.mxu0 0.0
        %6190 = vmatprep.subr.mxu0 0.0
        %6191 = vmatpush1.msra.mxu0 0.0
        %6192 = vmatprep.subr.mxu0 0.0
        %6193 = vmatpush1.msra.mxu0 0.0
        %6194 = vmatprep.subr.mxu0 0.0
        %6195 = vmatpush1.msra.mxu0 0.0
        %6196 = vmatprep.subr.mxu0 0.0
        %6197 = vmatpush1.msra.mxu0 0.0
        %6198 = vmatprep.subr.mxu0 0.0
        %6199 = vmatpush1.msra.mxu0 0.0
        %6200 = vmatprep.subr.mxu0 0.0
        %6201 = vmatpush1.msra.mxu0 0.0
        %6202 = vmatprep.subr.mxu0 0.0
        %6203 = vmatpush1.msra.mxu0 0.0
        %6204 = vmatprep.subr.mxu0 0.0
        %6205 = vmatpush1.msra.mxu0 0.0
        %6206 = vmatprep.subr.mxu0 0.0
        %6207 = vmatpush1.msra.mxu0 0.0
        %6208 = vmatprep.subr.mxu0 0.0
        %6209 = vmatpush1.msra.mxu0 0.0
        %6210 = vmatprep.subr.mxu0 0.0
        %6211 = vmatpush1.msra.mxu0 0.0
        %6212 = vmatprep.mubr.f32.mxu0 0.0
        %v6213 = vand.u32 %v3965, 4294901760
        %6214 = vmatmul.mubr.f32.gmra.mrb[0].mxu0 %v6213
        %v6215 = vpop.f32.mrb[0].mxu0
        %v6216 = vadd.f32 %v6115, %v6215
        %v6217 = vpop.f32.mrb[0].mxu0
        %6218 = vmatprep.mubr.f32.mxu0 0.0
        %v6219 = vand.u32 %v3968, 4294901760
        %6220 = vmatmul.mubr.f32.gmra.mrb[0].mxu0 %v6219
        %v6221 = vpop.f32.mrb[0].mxu0
        %v6222 = vadd.f32 %v6123, %v6221
        %v6223 = vpop.f32.mrb[0].mxu0
        %6224 = vmatprep.mubr.f32.mxu0 0.0
        %v6225 = vand.u32 %v3971, 4294901760
        %6226 = vmatmul.mubr.f32.gmra.mrb[0].mxu0 %v6225
        %v6227 = vpop.f32.mrb[0].mxu0
        %v6228 = vadd.f32 %v6131, %v6227
        %v6229 = vpop.f32.mrb[0].mxu0
        %6230 = vmatprep.mubr.f32.mxu0 0.0
        %v6231 = vand.u32 %v3974, 4294901760
        %6232 = vmatmul.mubr.f32.gmra.mrb[0].mxu0 %v6231
        %v6233 = vpop.f32.mrb[0].mxu0
        %v6234 = vadd.f32 %v6139, %v6233
        %v6235 = vpop.f32.mrb[0].mxu0
        %6236 = vdwg.mxu0
        %6237 = vmatprep.subr.mxu0 0.0
        %v6238 = vand.u32 %v3951, 4294901760
        %6239 = vmatpush1.msra.mxu0 %v6238
        %6240 = vmatprep.subr.mxu0 0.0
        %v6241 = vand.u32 %v3957, 4294901760
        %6242 = vmatpush1.msra.mxu0 %v6241
        %6243 = vmatprep.subr.mxu0 0.0
        %6244 = vmatpush1.msra.mxu0 0.0
        %6245 = vmatprep.subr.mxu0 0.0
        %6246 = vmatpush1.msra.mxu0 0.0
        %6247 = vmatprep.subr.mxu0 0.0
        %6248 = vmatpush1.msra.mxu0 0.0
        %6249 = vmatprep.subr.mxu0 0.0
        %6250 = vmatpush1.msra.mxu0 0.0
        %6251 = vmatprep.subr.mxu0 0.0
        %6252 = vmatpush1.msra.mxu0 0.0
        %6253 = vmatprep.subr.mxu0 0.0
        %6254 = vmatpush1.msra.mxu0 0.0
        %6255 = vmatprep.subr.mxu0 0.0
        %6256 = vmatpush1.msra.mxu0 0.0
        %6257 = vmatprep.subr.mxu0 0.0
        %6258 = vmatpush1.msra.mxu0 0.0
        %6259 = vmatprep.subr.mxu0 0.0
        %6260 = vmatpush1.msra.mxu0 0.0
        %6261 = vmatprep.subr.mxu0 0.0
        %6262 = vmatpush1.msra.mxu0 0.0
        %6263 = vmatprep.subr.mxu0 0.0
        %6264 = vmatpush1.msra.mxu0 0.0
        %6265 = vmatprep.subr.mxu0 0.0
        %6266 = vmatpush1.msra.mxu0 0.0
        %6267 = vmatprep.subr.mxu0 0.0
        %6268 = vmatpush1.msra.mxu0 0.0
        %6269 = vmatprep.subr.mxu0 0.0
        %6270 = vmatpush1.msra.mxu0 0.0
        %6271 = vmatprep.subr.mxu0 0.0
        %6272 = vmatpush1.msra.mxu0 0.0
        %6273 = vmatprep.subr.mxu0 0.0
        %6274 = vmatpush1.msra.mxu0 0.0
        %6275 = vmatprep.subr.mxu0 0.0
        %6276 = vmatpush1.msra.mxu0 0.0
        %6277 = vmatprep.subr.mxu0 0.0
        %6278 = vmatpush1.msra.mxu0 0.0
        %6279 = vmatprep.subr.mxu0 0.0
        %6280 = vmatpush1.msra.mxu0 0.0
        %6281 = vmatprep.subr.mxu0 0.0
        %6282 = vmatpush1.msra.mxu0 0.0
        %6283 = vmatprep.subr.mxu0 0.0
        %6284 = vmatpush1.msra.mxu0 0.0
        %6285 = vmatprep.subr.mxu0 0.0
        %6286 = vmatpush1.msra.mxu0 0.0
        %6287 = vmatprep.subr.mxu0 0.0
        %6288 = vmatpush1.msra.mxu0 0.0
        %6289 = vmatprep.subr.mxu0 0.0
        %6290 = vmatpush1.msra.mxu0 0.0
        %6291 = vmatprep.subr.mxu0 0.0
        %6292 = vmatpush1.msra.mxu0 0.0
        %6293 = vmatprep.subr.mxu0 0.0
        %6294 = vmatpush1.msra.mxu0 0.0
        %6295 = vmatprep.subr.mxu0 0.0
        %6296 = vmatpush1.msra.mxu0 0.0
        %6297 = vmatprep.subr.mxu0 0.0
        %6298 = vmatpush1.msra.mxu0 0.0
        %6299 = vmatprep.subr.mxu0 0.0
        %6300 = vmatpush1.msra.mxu0 0.0
        %6301 = vmatprep.subr.mxu0 0.0
        %6302 = vmatpush1.msra.mxu0 0.0
        %6303 = vmatprep.mubr.f32.mxu0 0.0
        %v6304 = vand.u32 %v3965, 4294901760
        %6305 = vmatmul.mubr.f32.gmra.mrb[0].mxu0 %v6304
        %v6306 = vpop.f32.mrb[0].mxu0
        %v6307 = vadd.f32 %v6216, %v6306
        %v6308 = vpop.f32.mrb[0].mxu0
        %6309 = vmatprep.mubr.f32.mxu0 0.0
        %v6310 = vand.u32 %v3968, 4294901760
        %6311 = vmatmul.mubr.f32.gmra.mrb[0].mxu0 %v6310
        %v6312 = vpop.f32.mrb[0].mxu0
        %v6313 = vadd.f32 %v6222, %v6312
        %v6314 = vpop.f32.mrb[0].mxu0
        %6315 = vmatprep.mubr.f32.mxu0 0.0
        %v6316 = vand.u32 %v3971, 4294901760
        %6317 = vmatmul.mubr.f32.gmra.mrb[0].mxu0 %v6316
        %v6318 = vpop.f32.mrb[0].mxu0
        %v6319 = vadd.f32 %v6228, %v6318
        %v6320 = vpop.f32.mrb[0].mxu0
        %6321 = vmatprep.mubr.f32.mxu0 0.0
        %v6322 = vand.u32 %v3974, 4294901760
        %6323 = vmatmul.mubr.f32.gmra.mrb[0].mxu0 %v6322
        %v6324 = vpop.f32.mrb[0].mxu0
        %v6325 = vadd.f32 %v6234, %v6324
        %v6326 = vpop.f32.mrb[0].mxu0
        %6327 = vdwg.mxu0
        %v6332 = vrot.slane %v5131, 7
        %vm6333 = vcmask 1041409
        %v6334 = vsel %vm6333, %v6332, %v4543
        %vm6335 = vcmask 1045509
        %v6336 = vsel %vm6335, %v6332, %v6334
        %v6337 = vrot.slane %v5719, 6
        %vm6338 = vcmask 1042434
        %v6339 = vsel %vm6338, %v6337, %v6336
        %vm6340 = vcmask 1046534
        %v6341 = vsel %vm6340, %v6337, %v6339
        %v6342 = vrot.slane %v6307, 5
        %vm6343 = vcmask 1043459
        %v6344 = vsel %vm6343, %v6342, %v6341
        %vm6345 = vcmask 1047559
        %v6346 = vsel %vm6345, %v6342, %v6344
        %vm6348 = vcmask 257024
        %6349 = vst.msk [vmem:[#allocation4] sm:$0xf] %vm6348, %v6346
        %v6350 = vrot.slane %v4543, 1
        %v6351 = vsel %vm6333, %v5131, %v6350
        %v6352 = vsel %vm6335, %v5131, %v6351
        %v6353 = vrot.slane %v5719, 7
        %v6354 = vsel %vm6338, %v6353, %v6352
        %v6355 = vsel %vm6340, %v6353, %v6354
        %v6356 = vrot.slane %v6307, 6
        %v6357 = vsel %vm6343, %v6356, %v6355
        %v6358 = vsel %vm6345, %v6356, %v6357
        %6359 = vrot.lane.b32.xlu0 %v6358, 32
        %v6360 = vpop.permute.xlu0 %6359
        %vm6362 = vcmask 519424
        %6363 = vst.msk [vmem:[#allocation4] sm:$0xf] %vm6362, %v6360
        %v6364 = vrot.slane %v4543, 2
        %v6365 = vrot.slane %v5131, 1
        %v6366 = vsel %vm6333, %v6365, %v6364
        %v6367 = vsel %vm6335, %v6365, %v6366
        %v6368 = vsel %vm6338, %v5719, %v6367
        %v6369 = vsel %vm6340, %v5719, %v6368
        %v6370 = vrot.slane %v6307, 7
        %v6371 = vsel %vm6343, %v6370, %v6369
        %v6372 = vsel %vm6345, %v6370, %v6371
        %6373 = vrot.lane.b32.xlu0 %v6372, 64
        %v6374 = vpop.permute.xlu0 %6373
        %vm6376 = vcmask 781824
        %6377 = vst.msk [vmem:[#allocation4] sm:$0xf] %vm6376, %v6374
        %v6378 = vrot.slane %v4543, 3
        %v6379 = vrot.slane %v5131, 2
        %v6380 = vsel %vm6333, %v6379, %v6378
        %v6381 = vsel %vm6335, %v6379, %v6380
        %v6382 = vrot.slane %v5719, 1
        %v6383 = vsel %vm6338, %v6382, %v6381
        %v6384 = vsel %vm6340, %v6382, %v6383
        %v6385 = vsel %vm6343, %v6307, %v6384
        %v6386 = vsel %vm6345, %v6307, %v6385
        %6387 = vrot.lane.b32.xlu0 %v6386, 96
        %v6388 = vpop.permute.xlu0 %6387
        %vm6390 = vcmask 1044224
        %6391 = vst.msk [vmem:[#allocation4] sm:$0xf] %vm6390, %v6388
        %v6392 = vcombine.high %v4543, %v4543
        %v6393 = vcombine.high %v5131, %v5131
        %v6394 = vcombine.high %v5719, %v5719
        %v6395 = vcombine.high %v6307, %v6307
        %v6396 = vrot.slane %v6393, 7
        %v6397 = vsel %vm6333, %v6396, %v6392
        %v6398 = vsel %vm6335, %v6396, %v6397
        %v6399 = vrot.slane %v6394, 6
        %v6400 = vsel %vm6338, %v6399, %v6398
        %v6401 = vsel %vm6340, %v6399, %v6400
        %v6402 = vrot.slane %v6395, 5
        %v6403 = vsel %vm6343, %v6402, %v6401
        %v6404 = vsel %vm6345, %v6402, %v6403
        %6406 = vst.msk [vmem:[#allocation4 + $0x4] sm:$0xf] %vm6348, %v6404
        %v6407 = vrot.slane %v6392, 1
        %v6408 = vsel %vm6333, %v6393, %v6407
        %v6409 = vsel %vm6335, %v6393, %v6408
        %v6410 = vrot.slane %v6394, 7
        %v6411 = vsel %vm6338, %v6410, %v6409
        %v6412 = vsel %vm6340, %v6410, %v6411
        %v6413 = vrot.slane %v6395, 6
        %v6414 = vsel %vm6343, %v6413, %v6412
        %v6415 = vsel %vm6345, %v6413, %v6414
        %6416 = vrot.lane.b32.xlu0 %v6415, 32
        %v6417 = vpop.permute.xlu0 %6416
        %6419 = vst.msk [vmem:[#allocation4 + $0x4] sm:$0xf] %vm6362, %v6417
        %v6420 = vrot.slane %v6392, 2
        %v6421 = vrot.slane %v6393, 1
        %v6422 = vsel %vm6333, %v6421, %v6420
        %v6423 = vsel %vm6335, %v6421, %v6422
        %v6424 = vsel %vm6338, %v6394, %v6423
        %v6425 = vsel %vm6340, %v6394, %v6424
        %v6426 = vrot.slane %v6395, 7
        %v6427 = vsel %vm6343, %v6426, %v6425
        %v6428 = vsel %vm6345, %v6426, %v6427
        %6429 = vrot.lane.b32.xlu0 %v6428, 64
        %v6430 = vpop.permute.xlu0 %6429
        %6432 = vst.msk [vmem:[#allocation4 + $0x4] sm:$0xf] %vm6376, %v6430
        %v6433 = vrot.slane %v6392, 3
        %v6434 = vrot.slane %v6393, 2
        %v6435 = vsel %vm6333, %v6434, %v6433
        %v6436 = vsel %vm6335, %v6434, %v6435
        %v6437 = vrot.slane %v6394, 1
        %v6438 = vsel %vm6338, %v6437, %v6436
        %v6439 = vsel %vm6340, %v6437, %v6438
        %v6440 = vsel %vm6343, %v6395, %v6439
        %v6441 = vsel %vm6345, %v6395, %v6440
        %6442 = vrot.lane.b32.xlu0 %v6441, 96
        %v6443 = vpop.permute.xlu0 %6442
        %6445 = vst.msk [vmem:[#allocation4 + $0x4] sm:$0xf] %vm6390, %v6443
        %v6450 = vrot.slane %v5137, 7
        %v6451 = vsel %vm6333, %v6450, %v4549
        %v6452 = vsel %vm6335, %v6450, %v6451
        %v6453 = vrot.slane %v5725, 6
        %v6454 = vsel %vm6338, %v6453, %v6452
        %v6455 = vsel %vm6340, %v6453, %v6454
        %v6456 = vrot.slane %v6313, 5
        %v6457 = vsel %vm6343, %v6456, %v6455
        %v6458 = vsel %vm6345, %v6456, %v6457
        %6460 = vst.msk [vmem:[#allocation4 + $0x8] sm:$0xf] %vm6348, %v6458
        %v6461 = vrot.slane %v4549, 1
        %v6462 = vsel %vm6333, %v5137, %v6461
        %v6463 = vsel %vm6335, %v5137, %v6462
        %v6464 = vrot.slane %v5725, 7
        %v6465 = vsel %vm6338, %v6464, %v6463
        %v6466 = vsel %vm6340, %v6464, %v6465
        %v6467 = vrot.slane %v6313, 6
        %v6468 = vsel %vm6343, %v6467, %v6466
        %v6469 = vsel %vm6345, %v6467, %v6468
        %6470 = vrot.lane.b32.xlu0 %v6469, 32
        %v6471 = vpop.permute.xlu0 %6470
        %6473 = vst.msk [vmem:[#allocation4 + $0x8] sm:$0xf] %vm6362, %v6471
        %v6474 = vrot.slane %v4549, 2
        %v6475 = vrot.slane %v5137, 1
        %v6476 = vsel %vm6333, %v6475, %v6474
        %v6477 = vsel %vm6335, %v6475, %v6476
        %v6478 = vsel %vm6338, %v5725, %v6477
        %v6479 = vsel %vm6340, %v5725, %v6478
        %v6480 = vrot.slane %v6313, 7
        %v6481 = vsel %vm6343, %v6480, %v6479
        %v6482 = vsel %vm6345, %v6480, %v6481
        %6483 = vrot.lane.b32.xlu0 %v6482, 64
        %v6484 = vpop.permute.xlu0 %6483
        %6486 = vst.msk [vmem:[#allocation4 + $0x8] sm:$0xf] %vm6376, %v6484
        %v6487 = vrot.slane %v4549, 3
        %v6488 = vrot.slane %v5137, 2
        %v6489 = vsel %vm6333, %v6488, %v6487
        %v6490 = vsel %vm6335, %v6488, %v6489
        %v6491 = vrot.slane %v5725, 1
        %v6492 = vsel %vm6338, %v6491, %v6490
        %v6493 = vsel %vm6340, %v6491, %v6492
        %v6494 = vsel %vm6343, %v6313, %v6493
        %v6495 = vsel %vm6345, %v6313, %v6494
        %6496 = vrot.lane.b32.xlu0 %v6495, 96
        %v6497 = vpop.permute.xlu0 %6496
        %6499 = vst.msk [vmem:[#allocation4 + $0x8] sm:$0xf] %vm6390, %v6497
        %v6500 = vcombine.high %v4549, %v4549
        %v6501 = vcombine.high %v5137, %v5137
        %v6502 = vcombine.high %v5725, %v5725
        %v6503 = vcombine.high %v6313, %v6313
        %v6504 = vrot.slane %v6501, 7
        %v6505 = vsel %vm6333, %v6504, %v6500
        %v6506 = vsel %vm6335, %v6504, %v6505
        %v6507 = vrot.slane %v6502, 6
        %v6508 = vsel %vm6338, %v6507, %v6506
        %v6509 = vsel %vm6340, %v6507, %v6508
        %v6510 = vrot.slane %v6503, 5
        %v6511 = vsel %vm6343, %v6510, %v6509
        %v6512 = vsel %vm6345, %v6510, %v6511
        %6514 = vst.msk [vmem:[#allocation4 + $0xc] sm:$0xf] %vm6348, %v6512
        %v6515 = vrot.slane %v6500, 1
        %v6516 = vsel %vm6333, %v6501, %v6515
        %v6517 = vsel %vm6335, %v6501, %v6516
        %v6518 = vrot.slane %v6502, 7
        %v6519 = vsel %vm6338, %v6518, %v6517
        %v6520 = vsel %vm6340, %v6518, %v6519
        %v6521 = vrot.slane %v6503, 6
        %v6522 = vsel %vm6343, %v6521, %v6520
        %v6523 = vsel %vm6345, %v6521, %v6522
        %6524 = vrot.lane.b32.xlu0 %v6523, 32
        %v6525 = vpop.permute.xlu0 %6524
        %6527 = vst.msk [vmem:[#allocation4 + $0xc] sm:$0xf] %vm6362, %v6525
        %v6528 = vrot.slane %v6500, 2
        %v6529 = vrot.slane %v6501, 1
        %v6530 = vsel %vm6333, %v6529, %v6528
        %v6531 = vsel %vm6335, %v6529, %v6530
        %v6532 = vsel %vm6338, %v6502, %v6531
        %v6533 = vsel %vm6340, %v6502, %v6532
        %v6534 = vrot.slane %v6503, 7
        %v6535 = vsel %vm6343, %v6534, %v6533
        %v6536 = vsel %vm6345, %v6534, %v6535
        %6537 = vrot.lane.b32.xlu0 %v6536, 64
        %v6538 = vpop.permute.xlu0 %6537
        %6540 = vst.msk [vmem:[#allocation4 + $0xc] sm:$0xf] %vm6376, %v6538
        %v6541 = vrot.slane %v6500, 3
        %v6542 = vrot.slane %v6501, 2
        %v6543 = vsel %vm6333, %v6542, %v6541
        %v6544 = vsel %vm6335, %v6542, %v6543
        %v6545 = vrot.slane %v6502, 1
        %v6546 = vsel %vm6338, %v6545, %v6544
        %v6547 = vsel %vm6340, %v6545, %v6546
        %v6548 = vsel %vm6343, %v6503, %v6547
        %v6549 = vsel %vm6345, %v6503, %v6548
        %6550 = vrot.lane.b32.xlu0 %v6549, 96
        %v6551 = vpop.permute.xlu0 %6550
        %6553 = vst.msk [vmem:[#allocation4 + $0xc] sm:$0xf] %vm6390, %v6551
        %v6558 = vrot.slane %v5143, 7
        %v6559 = vsel %vm6333, %v6558, %v4555
        %v6560 = vsel %vm6335, %v6558, %v6559
        %v6561 = vrot.slane %v5731, 6
        %v6562 = vsel %vm6338, %v6561, %v6560
        %v6563 = vsel %vm6340, %v6561, %v6562
        %v6564 = vrot.slane %v6319, 5
        %v6565 = vsel %vm6343, %v6564, %v6563
        %v6566 = vsel %vm6345, %v6564, %v6565
        %6568 = vst.msk [vmem:[#allocation4 + $0x10] sm:$0xf] %vm6348, %v6566
        %v6569 = vrot.slane %v4555, 1
        %v6570 = vsel %vm6333, %v5143, %v6569
        %v6571 = vsel %vm6335, %v5143, %v6570
        %v6572 = vrot.slane %v5731, 7
        %v6573 = vsel %vm6338, %v6572, %v6571
        %v6574 = vsel %vm6340, %v6572, %v6573
        %v6575 = vrot.slane %v6319, 6
        %v6576 = vsel %vm6343, %v6575, %v6574
        %v6577 = vsel %vm6345, %v6575, %v6576
        %6578 = vrot.lane.b32.xlu0 %v6577, 32
        %v6579 = vpop.permute.xlu0 %6578
        %6581 = vst.msk [vmem:[#allocation4 + $0x10] sm:$0xf] %vm6362, %v6579
        %v6582 = vrot.slane %v4555, 2
        %v6583 = vrot.slane %v5143, 1
        %v6584 = vsel %vm6333, %v6583, %v6582
        %v6585 = vsel %vm6335, %v6583, %v6584
        %v6586 = vsel %vm6338, %v5731, %v6585
        %v6587 = vsel %vm6340, %v5731, %v6586
        %v6588 = vrot.slane %v6319, 7
        %v6589 = vsel %vm6343, %v6588, %v6587
        %v6590 = vsel %vm6345, %v6588, %v6589
        %6591 = vrot.lane.b32.xlu0 %v6590, 64
        %v6592 = vpop.permute.xlu0 %6591
        %6594 = vst.msk [vmem:[#allocation4 + $0x10] sm:$0xf] %vm6376, %v6592
        %v6595 = vrot.slane %v4555, 3
        %v6596 = vrot.slane %v5143, 2
        %v6597 = vsel %vm6333, %v6596, %v6595
        %v6598 = vsel %vm6335, %v6596, %v6597
        %v6599 = vrot.slane %v5731, 1
        %v6600 = vsel %vm6338, %v6599, %v6598
        %v6601 = vsel %vm6340, %v6599, %v6600
        %v6602 = vsel %vm6343, %v6319, %v6601
        %v6603 = vsel %vm6345, %v6319, %v6602
        %6604 = vrot.lane.b32.xlu0 %v6603, 96
        %v6605 = vpop.permute.xlu0 %6604
        %6607 = vst.msk [vmem:[#allocation4 + $0x10] sm:$0xf] %vm6390, %v6605
        %v6608 = vcombine.high %v4555, %v4555
        %v6609 = vcombine.high %v5143, %v5143
        %v6610 = vcombine.high %v5731, %v5731
        %v6611 = vcombine.high %v6319, %v6319
        %v6612 = vrot.slane %v6609, 7
        %v6613 = vsel %vm6333, %v6612, %v6608
        %v6614 = vsel %vm6335, %v6612, %v6613
        %v6615 = vrot.slane %v6610, 6
        %v6616 = vsel %vm6338, %v6615, %v6614
        %v6617 = vsel %vm6340, %v6615, %v6616
        %v6618 = vrot.slane %v6611, 5
        %v6619 = vsel %vm6343, %v6618, %v6617
        %v6620 = vsel %vm6345, %v6618, %v6619
        %6622 = vst.msk [vmem:[#allocation4 + $0x14] sm:$0xf] %vm6348, %v6620
        %v6623 = vrot.slane %v6608, 1
        %v6624 = vsel %vm6333, %v6609, %v6623
        %v6625 = vsel %vm6335, %v6609, %v6624
        %v6626 = vrot.slane %v6610, 7
        %v6627 = vsel %vm6338, %v6626, %v6625
        %v6628 = vsel %vm6340, %v6626, %v6627
        %v6629 = vrot.slane %v6611, 6
        %v6630 = vsel %vm6343, %v6629, %v6628
        %v6631 = vsel %vm6345, %v6629, %v6630
        %6632 = vrot.lane.b32.xlu0 %v6631, 32
        %v6633 = vpop.permute.xlu0 %6632
        %6635 = vst.msk [vmem:[#allocation4 + $0x14] sm:$0xf] %vm6362, %v6633
        %v6636 = vrot.slane %v6608, 2
        %v6637 = vrot.slane %v6609, 1
        %v6638 = vsel %vm6333, %v6637, %v6636
        %v6639 = vsel %vm6335, %v6637, %v6638
        %v6640 = vsel %vm6338, %v6610, %v6639
        %v6641 = vsel %vm6340, %v6610, %v6640
        %v6642 = vrot.slane %v6611, 7
        %v6643 = vsel %vm6343, %v6642, %v6641
        %v6644 = vsel %vm6345, %v6642, %v6643
        %6645 = vrot.lane.b32.xlu0 %v6644, 64
        %v6646 = vpop.permute.xlu0 %6645
        %6648 = vst.msk [vmem:[#allocation4 + $0x14] sm:$0xf] %vm6376, %v6646
        %v6649 = vrot.slane %v6608, 3
        %v6650 = vrot.slane %v6609, 2
        %v6651 = vsel %vm6333, %v6650, %v6649
        %v6652 = vsel %vm6335, %v6650, %v6651
        %v6653 = vrot.slane %v6610, 1
        %v6654 = vsel %vm6338, %v6653, %v6652
        %v6655 = vsel %vm6340, %v6653, %v6654
        %v6656 = vsel %vm6343, %v6611, %v6655
        %v6657 = vsel %vm6345, %v6611, %v6656
        %6658 = vrot.lane.b32.xlu0 %v6657, 96
        %v6659 = vpop.permute.xlu0 %6658
        %6661 = vst.msk [vmem:[#allocation4 + $0x14] sm:$0xf] %vm6390, %v6659
        %v6666 = vrot.slane %v5149, 7
        %v6667 = vsel %vm6333, %v6666, %v4561
        %v6668 = vsel %vm6335, %v6666, %v6667
        %v6669 = vrot.slane %v5737, 6
        %v6670 = vsel %vm6338, %v6669, %v6668
        %v6671 = vsel %vm6340, %v6669, %v6670
        %v6672 = vrot.slane %v6325, 5
        %v6673 = vsel %vm6343, %v6672, %v6671
        %v6674 = vsel %vm6345, %v6672, %v6673
        %6676 = vst.msk [vmem:[#allocation4 + $0x18] sm:$0xf] %vm6348, %v6674
        %v6677 = vrot.slane %v4561, 1
        %v6678 = vsel %vm6333, %v5149, %v6677
        %v6679 = vsel %vm6335, %v5149, %v6678
        %v6680 = vrot.slane %v5737, 7
        %v6681 = vsel %vm6338, %v6680, %v6679
        %v6682 = vsel %vm6340, %v6680, %v6681
        %v6683 = vrot.slane %v6325, 6
        %v6684 = vsel %vm6343, %v6683, %v6682
        %v6685 = vsel %vm6345, %v6683, %v6684
        %6686 = vrot.lane.b32.xlu0 %v6685, 32
        %v6687 = vpop.permute.xlu0 %6686
        %6689 = vst.msk [vmem:[#allocation4 + $0x18] sm:$0xf] %vm6362, %v6687
        %v6690 = vrot.slane %v4561, 2
        %v6691 = vrot.slane %v5149, 1
        %v6692 = vsel %vm6333, %v6691, %v6690
        %v6693 = vsel %vm6335, %v6691, %v6692
        %v6694 = vsel %vm6338, %v5737, %v6693
        %v6695 = vsel %vm6340, %v5737, %v6694
        %v6696 = vrot.slane %v6325, 7
        %v6697 = vsel %vm6343, %v6696, %v6695
        %v6698 = vsel %vm6345, %v6696, %v6697
        %6699 = vrot.lane.b32.xlu0 %v6698, 64
        %v6700 = vpop.permute.xlu0 %6699
        %6702 = vst.msk [vmem:[#allocation4 + $0x18] sm:$0xf] %vm6376, %v6700
        %v6703 = vrot.slane %v4561, 3
        %v6704 = vrot.slane %v5149, 2
        %v6705 = vsel %vm6333, %v6704, %v6703
        %v6706 = vsel %vm6335, %v6704, %v6705
        %v6707 = vrot.slane %v5737, 1
        %v6708 = vsel %vm6338, %v6707, %v6706
        %v6709 = vsel %vm6340, %v6707, %v6708
        %v6710 = vsel %vm6343, %v6325, %v6709
        %v6711 = vsel %vm6345, %v6325, %v6710
        %6712 = vrot.lane.b32.xlu0 %v6711, 96
        %v6713 = vpop.permute.xlu0 %6712
        %6715 = vst.msk [vmem:[#allocation4 + $0x18] sm:$0xf] %vm6390, %v6713
        %v6716 = vcombine.high %v4561, %v4561
        %v6717 = vcombine.high %v5149, %v5149
        %v6718 = vcombine.high %v5737, %v5737
        %v6719 = vcombine.high %v6325, %v6325
        %v6720 = vrot.slane %v6717, 7
        %v6721 = vsel %vm6333, %v6720, %v6716
        %v6722 = vsel %vm6335, %v6720, %v6721
        %v6723 = vrot.slane %v6718, 6
        %v6724 = vsel %vm6338, %v6723, %v6722
        %v6725 = vsel %vm6340, %v6723, %v6724
        %v6726 = vrot.slane %v6719, 5
        %v6727 = vsel %vm6343, %v6726, %v6725
        %v6728 = vsel %vm6345, %v6726, %v6727
        %6730 = vst.msk [vmem:[#allocation4 + $0x1c] sm:$0xf] %vm6348, %v6728
        %v6731 = vrot.slane %v6716, 1
        %v6732 = vsel %vm6333, %v6717, %v6731
        %v6733 = vsel %vm6335, %v6717, %v6732
        %v6734 = vrot.slane %v6718, 7
        %v6735 = vsel %vm6338, %v6734, %v6733
        %v6736 = vsel %vm6340, %v6734, %v6735
        %v6737 = vrot.slane %v6719, 6
        %v6738 = vsel %vm6343, %v6737, %v6736
        %v6739 = vsel %vm6345, %v6737, %v6738
        %6740 = vrot.lane.b32.xlu0 %v6739, 32
        %v6741 = vpop.permute.xlu0 %6740
        %6743 = vst.msk [vmem:[#allocation4 + $0x1c] sm:$0xf] %vm6362, %v6741
        %v6744 = vrot.slane %v6716, 2
        %v6745 = vrot.slane %v6717, 1
        %v6746 = vsel %vm6333, %v6745, %v6744
        %v6747 = vsel %vm6335, %v6745, %v6746
        %v6748 = vsel %vm6338, %v6718, %v6747
        %v6749 = vsel %vm6340, %v6718, %v6748
        %v6750 = vrot.slane %v6719, 7
        %v6751 = vsel %vm6343, %v6750, %v6749
        %v6752 = vsel %vm6345, %v6750, %v6751
        %6753 = vrot.lane.b32.xlu0 %v6752, 64
        %v6754 = vpop.permute.xlu0 %6753
        %6756 = vst.msk [vmem:[#allocation4 + $0x1c] sm:$0xf] %vm6376, %v6754
        %v6757 = vrot.slane %v6716, 3
        %v6758 = vrot.slane %v6717, 2
        %v6759 = vsel %vm6333, %v6758, %v6757
        %v6760 = vsel %vm6335, %v6758, %v6759
        %v6761 = vrot.slane %v6718, 1
        %v6762 = vsel %vm6338, %v6761, %v6760
        %v6763 = vsel %vm6340, %v6761, %v6762
        %v6764 = vsel %vm6343, %v6719, %v6763
        %v6765 = vsel %vm6345, %v6719, %v6764
        %6766 = vrot.lane.b32.xlu0 %v6765, 96
        %v6767 = vpop.permute.xlu0 %6766
        %6769 = vst.msk [vmem:[#allocation4 + $0x1c] sm:$0xf] %vm6390, %v6767
        %v6770 = vld [vmem:[%s6] sm:$0xff]
        %v6771 = vld [vmem:[#allocation4] sm:$0xff]
        %v6772 = vld [vmem:[#allocation4 + $0x8] sm:$0xff]
        %v6773 = vld [vmem:[#allocation4 + $0x10] sm:$0xff]
        %v6774 = vld [vmem:[#allocation4 + $0x18] sm:$0xff]
        %v6775 = vld [vmem:[%s7] sm:$0xff]
        %6777 = vset.pattern.permute.xlu0 0
        %6778 = vperm.xlu0 %6777, %v6775
        %v6779 = vpop.permute.xlu0 %6778
        %v6785 = vcombine.high %v6771, %v6771
        %v6786 = vcombine.high %v6772, %v6772
        %v6787 = vcombine.high %v6773, %v6773
        %v6788 = vcombine.high %v6774, %v6774
        %vm6789 = vcmask 31744
        %v6791 = vsel %vm6789, %v6770, 0
        %vm6793 = vcmask 1043456
        %v6794 = vsel %vm6793, %v6771, 0
        %v6796 = vsel %vm6793, %v6785, 0
        %v6798 = vsel %vm6793, %v6772, 0
        %v6800 = vsel %vm6793, %v6786, 0
        %v6802 = vsel %vm6793, %v6773, 0
        %v6804 = vsel %vm6793, %v6787, 0
        %v6806 = vsel %vm6793, %v6774, 0
        %v6808 = vsel %vm6793, %v6788, 0
        %v6810 = vand.u32 %v6796, 4294901760
        %6811 = vmatprep.subr.mxu0 %v6810
        %v6812 = vand.u32 %v6794, 4294901760
        %6813 = vmatpush1.msra.mxu0 %v6812
        %6814 = vmatprep.subr.mxu0 0.0
        %6815 = vmatpush1.msra.mxu0 0.0
        %6816 = vmatprep.subr.mxu0 0.0
        %6817 = vmatpush1.msra.mxu0 0.0
        %6818 = vmatprep.subr.mxu0 0.0
        %6819 = vmatpush1.msra.mxu0 0.0
        %6820 = vmatprep.subr.mxu0 0.0
        %6821 = vmatpush1.msra.mxu0 0.0
        %6822 = vmatprep.subr.mxu0 0.0
        %6823 = vmatpush1.msra.mxu0 0.0
        %6824 = vmatprep.subr.mxu0 0.0
        %6825 = vmatpush1.msra.mxu0 0.0
        %6826 = vmatprep.subr.mxu0 0.0
        %6827 = vmatpush1.msra.mxu0 0.0
        %6828 = vmatprep.subr.mxu0 0.0
        %6829 = vmatpush1.msra.mxu0 0.0
        %6830 = vmatprep.subr.mxu0 0.0
        %6831 = vmatpush1.msra.mxu0 0.0
        %6832 = vmatprep.subr.mxu0 0.0
        %6833 = vmatpush1.msra.mxu0 0.0
        %6834 = vmatprep.subr.mxu0 0.0
        %6835 = vmatpush1.msra.mxu0 0.0
        %6836 = vmatprep.subr.mxu0 0.0
        %6837 = vmatpush1.msra.mxu0 0.0
        %6838 = vmatprep.subr.mxu0 0.0
        %6839 = vmatpush1.msra.mxu0 0.0
        %6840 = vmatprep.subr.mxu0 0.0
        %6841 = vmatpush1.msra.mxu0 0.0
        %6842 = vmatprep.subr.mxu0 0.0
        %6843 = vmatpush1.msra.mxu0 0.0
        %6844 = vmatprep.subr.mxu0 0.0
        %6845 = vmatpush1.msra.mxu0 0.0
        %6846 = vmatprep.subr.mxu0 0.0
        %6847 = vmatpush1.msra.mxu0 0.0
        %6848 = vmatprep.subr.mxu0 0.0
        %6849 = vmatpush1.msra.mxu0 0.0
        %6850 = vmatprep.subr.mxu0 0.0
        %6851 = vmatpush1.msra.mxu0 0.0
        %6852 = vmatprep.subr.mxu0 0.0
        %6853 = vmatpush1.msra.mxu0 0.0
        %6854 = vmatprep.subr.mxu0 0.0
        %6855 = vmatpush1.msra.mxu0 0.0
        %6856 = vmatprep.subr.mxu0 0.0
        %6857 = vmatpush1.msra.mxu0 0.0
        %6858 = vmatprep.subr.mxu0 0.0
        %6859 = vmatpush1.msra.mxu0 0.0
        %6860 = vmatprep.subr.mxu0 0.0
        %6861 = vmatpush1.msra.mxu0 0.0
        %6862 = vmatprep.subr.mxu0 0.0
        %6863 = vmatpush1.msra.mxu0 0.0
        %6864 = vmatprep.subr.mxu0 0.0
        %6865 = vmatpush1.msra.mxu0 0.0
        %6866 = vmatprep.subr.mxu0 0.0
        %6867 = vmatpush1.msra.mxu0 0.0
        %6868 = vmatprep.subr.mxu0 0.0
        %6869 = vmatpush1.msra.mxu0 0.0
        %6870 = vmatprep.subr.mxu0 0.0
        %6871 = vmatpush1.msra.mxu0 0.0
        %6872 = vmatprep.subr.mxu0 0.0
        %6873 = vmatpush1.msra.mxu0 0.0
        %6874 = vmatprep.subr.mxu0 0.0
        %6875 = vmatpush1.msra.mxu0 0.0
        %6876 = vmatprep.mubr.f32.mxu0 0.0
        %v6877 = vand.u32 %v6791, 4294901760
        %v6878 = vsub.f32 %v6791, %v6877
        %v6879 = vand.u32 %v6878, 4294901760
        %v6880 = vsub.f32 %v6878, %v6879
        %v6881 = vand.u32 %v6880, 4294901760
        %6882 = vmatmul.mubr.f32.gmra.mrb[0].mxu0 %v6881
        %v6883 = vpop.f32.mrb[0].mxu0
        %v6884 = vadd.f32 %v6779, %v6883
        %v6885 = vpop.f32.mrb[0].mxu0
        %v6886 = vadd.f32 %v6779, %v6885
        %6887 = vdwg.mxu0
        %v6888 = vand.u32 %v6796, 4294901760
        %v6889 = vsub.f32 %v6796, %v6888
        %v6890 = vand.u32 %v6889, 4294901760
        %v6891 = vsub.f32 %v6889, %v6890
        %v6892 = vand.u32 %v6891, 4294901760
        %6893 = vmatprep.subr.mxu0 %v6892
        %v6894 = vand.u32 %v6794, 4294901760
        %v6895 = vsub.f32 %v6794, %v6894
        %v6896 = vand.u32 %v6895, 4294901760
        %v6897 = vsub.f32 %v6895, %v6896
        %v6898 = vand.u32 %v6897, 4294901760
        %6899 = vmatpush1.msra.mxu0 %v6898
        %6900 = vmatprep.subr.mxu0 0.0
        %6901 = vmatpush1.msra.mxu0 0.0
        %6902 = vmatprep.subr.mxu0 0.0
        %6903 = vmatpush1.msra.mxu0 0.0
        %6904 = vmatprep.subr.mxu0 0.0
        %6905 = vmatpush1.msra.mxu0 0.0
        %6906 = vmatprep.subr.mxu0 0.0
        %6907 = vmatpush1.msra.mxu0 0.0
        %6908 = vmatprep.subr.mxu0 0.0
        %6909 = vmatpush1.msra.mxu0 0.0
        %6910 = vmatprep.subr.mxu0 0.0
        %6911 = vmatpush1.msra.mxu0 0.0
        %6912 = vmatprep.subr.mxu0 0.0
        %6913 = vmatpush1.msra.mxu0 0.0
        %6914 = vmatprep.subr.mxu0 0.0
        %6915 = vmatpush1.msra.mxu0 0.0
        %6916 = vmatprep.subr.mxu0 0.0
        %6917 = vmatpush1.msra.mxu0 0.0
        %6918 = vmatprep.subr.mxu0 0.0
        %6919 = vmatpush1.msra.mxu0 0.0
        %6920 = vmatprep.subr.mxu0 0.0
        %6921 = vmatpush1.msra.mxu0 0.0
        %6922 = vmatprep.subr.mxu0 0.0
        %6923 = vmatpush1.msra.mxu0 0.0
        %6924 = vmatprep.subr.mxu0 0.0
        %6925 = vmatpush1.msra.mxu0 0.0
        %6926 = vmatprep.subr.mxu0 0.0
        %6927 = vmatpush1.msra.mxu0 0.0
        %6928 = vmatprep.subr.mxu0 0.0
        %6929 = vmatpush1.msra.mxu0 0.0
        %6930 = vmatprep.subr.mxu0 0.0
        %6931 = vmatpush1.msra.mxu0 0.0
        %6932 = vmatprep.subr.mxu0 0.0
        %6933 = vmatpush1.msra.mxu0 0.0
        %6934 = vmatprep.subr.mxu0 0.0
        %6935 = vmatpush1.msra.mxu0 0.0
        %6936 = vmatprep.subr.mxu0 0.0
        %6937 = vmatpush1.msra.mxu0 0.0
        %6938 = vmatprep.subr.mxu0 0.0
        %6939 = vmatpush1.msra.mxu0 0.0
        %6940 = vmatprep.subr.mxu0 0.0
        %6941 = vmatpush1.msra.mxu0 0.0
        %6942 = vmatprep.subr.mxu0 0.0
        %6943 = vmatpush1.msra.mxu0 0.0
        %6944 = vmatprep.subr.mxu0 0.0
        %6945 = vmatpush1.msra.mxu0 0.0
        %6946 = vmatprep.subr.mxu0 0.0
        %6947 = vmatpush1.msra.mxu0 0.0
        %6948 = vmatprep.subr.mxu0 0.0
        %6949 = vmatpush1.msra.mxu0 0.0
        %6950 = vmatprep.subr.mxu0 0.0
        %6951 = vmatpush1.msra.mxu0 0.0
        %6952 = vmatprep.subr.mxu0 0.0
        %6953 = vmatpush1.msra.mxu0 0.0
        %6954 = vmatprep.subr.mxu0 0.0
        %6955 = vmatpush1.msra.mxu0 0.0
        %6956 = vmatprep.subr.mxu0 0.0
        %6957 = vmatpush1.msra.mxu0 0.0
        %6958 = vmatprep.subr.mxu0 0.0
        %6959 = vmatpush1.msra.mxu0 0.0
        %6960 = vmatprep.subr.mxu0 0.0
        %6961 = vmatpush1.msra.mxu0 0.0
        %6962 = vmatprep.mubr.f32.mxu0 0.0
        %v6963 = vand.u32 %v6791, 4294901760
        %6964 = vmatmul.mubr.f32.gmra.mrb[0].mxu0 %v6963
        %v6965 = vpop.f32.mrb[0].mxu0
        %v6966 = vadd.f32 %v6884, %v6965
        %v6967 = vpop.f32.mrb[0].mxu0
        %v6968 = vadd.f32 %v6886, %v6967
        %6969 = vdwg.mxu0
        %v6970 = vand.u32 %v6796, 4294901760
        %v6971 = vsub.f32 %v6796, %v6970
        %6972 = vmatprep.subr.mxu0 %v6971
        %v6973 = vand.u32 %v6794, 4294901760
        %v6974 = vsub.f32 %v6794, %v6973
        %6975 = vmatpush1.msra.mxu0 %v6974
        %6976 = vmatprep.subr.mxu0 0.0
        %6977 = vmatpush1.msra.mxu0 0.0
        %6978 = vmatprep.subr.mxu0 0.0
        %6979 = vmatpush1.msra.mxu0 0.0
        %6980 = vmatprep.subr.mxu0 0.0
        %6981 = vmatpush1.msra.mxu0 0.0
        %6982 = vmatprep.subr.mxu0 0.0
        %6983 = vmatpush1.msra.mxu0 0.0
        %6984 = vmatprep.subr.mxu0 0.0
        %6985 = vmatpush1.msra.mxu0 0.0
        %6986 = vmatprep.subr.mxu0 0.0
        %6987 = vmatpush1.msra.mxu0 0.0
        %6988 = vmatprep.subr.mxu0 0.0
        %6989 = vmatpush1.msra.mxu0 0.0
        %6990 = vmatprep.subr.mxu0 0.0
        %6991 = vmatpush1.msra.mxu0 0.0
        %6992 = vmatprep.subr.mxu0 0.0
        %6993 = vmatpush1.msra.mxu0 0.0
        %6994 = vmatprep.subr.mxu0 0.0
        %6995 = vmatpush1.msra.mxu0 0.0
        %6996 = vmatprep.subr.mxu0 0.0
        %6997 = vmatpush1.msra.mxu0 0.0
        %6998 = vmatprep.subr.mxu0 0.0
        %6999 = vmatpush1.msra.mxu0 0.0
        %7000 = vmatprep.subr.mxu0 0.0
        %7001 = vmatpush1.msra.mxu0 0.0
        %7002 = vmatprep.subr.mxu0 0.0
        %7003 = vmatpush1.msra.mxu0 0.0
        %7004 = vmatprep.subr.mxu0 0.0
        %7005 = vmatpush1.msra.mxu0 0.0
        %7006 = vmatprep.subr.mxu0 0.0
        %7007 = vmatpush1.msra.mxu0 0.0
        %7008 = vmatprep.subr.mxu0 0.0
        %7009 = vmatpush1.msra.mxu0 0.0
        %7010 = vmatprep.subr.mxu0 0.0
        %7011 = vmatpush1.msra.mxu0 0.0
        %7012 = vmatprep.subr.mxu0 0.0
        %7013 = vmatpush1.msra.mxu0 0.0
        %7014 = vmatprep.subr.mxu0 0.0
        %7015 = vmatpush1.msra.mxu0 0.0
        %7016 = vmatprep.subr.mxu0 0.0
        %7017 = vmatpush1.msra.mxu0 0.0
        %7018 = vmatprep.subr.mxu0 0.0
        %7019 = vmatpush1.msra.mxu0 0.0
        %7020 = vmatprep.subr.mxu0 0.0
        %7021 = vmatpush1.msra.mxu0 0.0
        %7022 = vmatprep.subr.mxu0 0.0
        %7023 = vmatpush1.msra.mxu0 0.0
        %7024 = vmatprep.subr.mxu0 0.0
        %7025 = vmatpush1.msra.mxu0 0.0
        %7026 = vmatprep.subr.mxu0 0.0
        %7027 = vmatpush1.msra.mxu0 0.0
        %7028 = vmatprep.subr.mxu0 0.0
        %7029 = vmatpush1.msra.mxu0 0.0
        %7030 = vmatprep.subr.mxu0 0.0
        %7031 = vmatpush1.msra.mxu0 0.0
        %7032 = vmatprep.subr.mxu0 0.0
        %7033 = vmatpush1.msra.mxu0 0.0
        %7034 = vmatprep.subr.mxu0 0.0
        %7035 = vmatpush1.msra.mxu0 0.0
        %7036 = vmatprep.subr.mxu0 0.0
        %7037 = vmatpush1.msra.mxu0 0.0
        %7038 = vmatprep.mubr.f32.mxu0 0.0
        %v7039 = vand.u32 %v6791, 4294901760
        %v7040 = vsub.f32 %v6791, %v7039
        %7041 = vmatmul.mubr.f32.gmra.mrb[0].mxu0 %v7040
        %v7042 = vpop.f32.mrb[0].mxu0
        %v7043 = vadd.f32 %v6966, %v7042
        %v7044 = vpop.f32.mrb[0].mxu0
        %v7045 = vadd.f32 %v6968, %v7044
        %7046 = vdwg.mxu0
        %v7047 = vand.u32 %v6796, 4294901760
        %7048 = vmatprep.subr.mxu0 %v7047
        %v7049 = vand.u32 %v6794, 4294901760
        %7050 = vmatpush1.msra.mxu0 %v7049
        %7051 = vmatprep.subr.mxu0 0.0
        %7052 = vmatpush1.msra.mxu0 0.0
        %7053 = vmatprep.subr.mxu0 0.0
        %7054 = vmatpush1.msra.mxu0 0.0
        %7055 = vmatprep.subr.mxu0 0.0
        %7056 = vmatpush1.msra.mxu0 0.0
        %7057 = vmatprep.subr.mxu0 0.0
        %7058 = vmatpush1.msra.mxu0 0.0
        %7059 = vmatprep.subr.mxu0 0.0
        %7060 = vmatpush1.msra.mxu0 0.0
        %7061 = vmatprep.subr.mxu0 0.0
        %7062 = vmatpush1.msra.mxu0 0.0
        %7063 = vmatprep.subr.mxu0 0.0
        %7064 = vmatpush1.msra.mxu0 0.0
        %7065 = vmatprep.subr.mxu0 0.0
        %7066 = vmatpush1.msra.mxu0 0.0
        %7067 = vmatprep.subr.mxu0 0.0
        %7068 = vmatpush1.msra.mxu0 0.0
        %7069 = vmatprep.subr.mxu0 0.0
        %7070 = vmatpush1.msra.mxu0 0.0
        %7071 = vmatprep.subr.mxu0 0.0
        %7072 = vmatpush1.msra.mxu0 0.0
        %7073 = vmatprep.subr.mxu0 0.0
        %7074 = vmatpush1.msra.mxu0 0.0
        %7075 = vmatprep.subr.mxu0 0.0
        %7076 = vmatpush1.msra.mxu0 0.0
        %7077 = vmatprep.subr.mxu0 0.0
        %7078 = vmatpush1.msra.mxu0 0.0
        %7079 = vmatprep.subr.mxu0 0.0
        %7080 = vmatpush1.msra.mxu0 0.0
        %7081 = vmatprep.subr.mxu0 0.0
        %7082 = vmatpush1.msra.mxu0 0.0
        %7083 = vmatprep.subr.mxu0 0.0
        %7084 = vmatpush1.msra.mxu0 0.0
        %7085 = vmatprep.subr.mxu0 0.0
        %7086 = vmatpush1.msra.mxu0 0.0
        %7087 = vmatprep.subr.mxu0 0.0
        %7088 = vmatpush1.msra.mxu0 0.0
        %7089 = vmatprep.subr.mxu0 0.0
        %7090 = vmatpush1.msra.mxu0 0.0
        %7091 = vmatprep.subr.mxu0 0.0
        %7092 = vmatpush1.msra.mxu0 0.0
        %7093 = vmatprep.subr.mxu0 0.0
        %7094 = vmatpush1.msra.mxu0 0.0
        %7095 = vmatprep.subr.mxu0 0.0
        %7096 = vmatpush1.msra.mxu0 0.0
        %7097 = vmatprep.subr.mxu0 0.0
        %7098 = vmatpush1.msra.mxu0 0.0
        %7099 = vmatprep.subr.mxu0 0.0
        %7100 = vmatpush1.msra.mxu0 0.0
        %7101 = vmatprep.subr.mxu0 0.0
        %7102 = vmatpush1.msra.mxu0 0.0
        %7103 = vmatprep.subr.mxu0 0.0
        %7104 = vmatpush1.msra.mxu0 0.0
        %7105 = vmatprep.subr.mxu0 0.0
        %7106 = vmatpush1.msra.mxu0 0.0
        %7107 = vmatprep.subr.mxu0 0.0
        %7108 = vmatpush1.msra.mxu0 0.0
        %7109 = vmatprep.subr.mxu0 0.0
        %7110 = vmatpush1.msra.mxu0 0.0
        %7111 = vmatprep.subr.mxu0 0.0
        %7112 = vmatpush1.msra.mxu0 0.0
        %7113 = vmatprep.mubr.f32.mxu0 0.0
        %v7114 = vand.u32 %v6791, 4294901760
        %v7115 = vsub.f32 %v6791, %v7114
        %v7116 = vand.u32 %v7115, 4294901760
        %7117 = vmatmul.mubr.f32.gmra.mrb[0].mxu0 %v7116
        %v7118 = vpop.f32.mrb[0].mxu0
        %v7119 = vadd.f32 %v7043, %v7118
        %v7120 = vpop.f32.mrb[0].mxu0
        %v7121 = vadd.f32 %v7045, %v7120
        %7122 = vdwg.mxu0
        %v7123 = vand.u32 %v6796, 4294901760
        %v7124 = vsub.f32 %v6796, %v7123
        %v7125 = vand.u32 %v7124, 4294901760
        %7126 = vmatprep.subr.mxu0 %v7125
        %v7127 = vand.u32 %v6794, 4294901760
        %v7128 = vsub.f32 %v6794, %v7127
        %v7129 = vand.u32 %v7128, 4294901760
        %7130 = vmatpush1.msra.mxu0 %v7129
        %7131 = vmatprep.subr.mxu0 0.0
        %7132 = vmatpush1.msra.mxu0 0.0
        %7133 = vmatprep.subr.mxu0 0.0
        %7134 = vmatpush1.msra.mxu0 0.0
        %7135 = vmatprep.subr.mxu0 0.0
        %7136 = vmatpush1.msra.mxu0 0.0
        %7137 = vmatprep.subr.mxu0 0.0
        %7138 = vmatpush1.msra.mxu0 0.0
        %7139 = vmatprep.subr.mxu0 0.0
        %7140 = vmatpush1.msra.mxu0 0.0
        %7141 = vmatprep.subr.mxu0 0.0
        %7142 = vmatpush1.msra.mxu0 0.0
        %7143 = vmatprep.subr.mxu0 0.0
        %7144 = vmatpush1.msra.mxu0 0.0
        %7145 = vmatprep.subr.mxu0 0.0
        %7146 = vmatpush1.msra.mxu0 0.0
        %7147 = vmatprep.subr.mxu0 0.0
        %7148 = vmatpush1.msra.mxu0 0.0
        %7149 = vmatprep.subr.mxu0 0.0
        %7150 = vmatpush1.msra.mxu0 0.0
        %7151 = vmatprep.subr.mxu0 0.0
        %7152 = vmatpush1.msra.mxu0 0.0
        %7153 = vmatprep.subr.mxu0 0.0
        %7154 = vmatpush1.msra.mxu0 0.0
        %7155 = vmatprep.subr.mxu0 0.0
        %7156 = vmatpush1.msra.mxu0 0.0
        %7157 = vmatprep.subr.mxu0 0.0
        %7158 = vmatpush1.msra.mxu0 0.0
        %7159 = vmatprep.subr.mxu0 0.0
        %7160 = vmatpush1.msra.mxu0 0.0
        %7161 = vmatprep.subr.mxu0 0.0
        %7162 = vmatpush1.msra.mxu0 0.0
        %7163 = vmatprep.subr.mxu0 0.0
        %7164 = vmatpush1.msra.mxu0 0.0
        %7165 = vmatprep.subr.mxu0 0.0
        %7166 = vmatpush1.msra.mxu0 0.0
        %7167 = vmatprep.subr.mxu0 0.0
        %7168 = vmatpush1.msra.mxu0 0.0
        %7169 = vmatprep.subr.mxu0 0.0
        %7170 = vmatpush1.msra.mxu0 0.0
        %7171 = vmatprep.subr.mxu0 0.0
        %7172 = vmatpush1.msra.mxu0 0.0
        %7173 = vmatprep.subr.mxu0 0.0
        %7174 = vmatpush1.msra.mxu0 0.0
        %7175 = vmatprep.subr.mxu0 0.0
        %7176 = vmatpush1.msra.mxu0 0.0
        %7177 = vmatprep.subr.mxu0 0.0
        %7178 = vmatpush1.msra.mxu0 0.0
        %7179 = vmatprep.subr.mxu0 0.0
        %7180 = vmatpush1.msra.mxu0 0.0
        %7181 = vmatprep.subr.mxu0 0.0
        %7182 = vmatpush1.msra.mxu0 0.0
        %7183 = vmatprep.subr.mxu0 0.0
        %7184 = vmatpush1.msra.mxu0 0.0
        %7185 = vmatprep.subr.mxu0 0.0
        %7186 = vmatpush1.msra.mxu0 0.0
        %7187 = vmatprep.subr.mxu0 0.0
        %7188 = vmatpush1.msra.mxu0 0.0
        %7189 = vmatprep.subr.mxu0 0.0
        %7190 = vmatpush1.msra.mxu0 0.0
        %7191 = vmatprep.subr.mxu0 0.0
        %7192 = vmatpush1.msra.mxu0 0.0
        %7193 = vmatprep.mubr.f32.mxu0 0.0
        %v7194 = vand.u32 %v6791, 4294901760
        %7195 = vmatmul.mubr.f32.gmra.mrb[0].mxu0 %v7194
        %v7196 = vpop.f32.mrb[0].mxu0
        %v7197 = vadd.f32 %v7119, %v7196
        %v7198 = vpop.f32.mrb[0].mxu0
        %v7199 = vadd.f32 %v7121, %v7198
        %7200 = vdwg.mxu0
        %v7201 = vand.u32 %v6796, 4294901760
        %7202 = vmatprep.subr.mxu0 %v7201
        %v7203 = vand.u32 %v6794, 4294901760
        %7204 = vmatpush1.msra.mxu0 %v7203
        %7205 = vmatprep.subr.mxu0 0.0
        %7206 = vmatpush1.msra.mxu0 0.0
        %7207 = vmatprep.subr.mxu0 0.0
        %7208 = vmatpush1.msra.mxu0 0.0
        %7209 = vmatprep.subr.mxu0 0.0
        %7210 = vmatpush1.msra.mxu0 0.0
        %7211 = vmatprep.subr.mxu0 0.0
        %7212 = vmatpush1.msra.mxu0 0.0
        %7213 = vmatprep.subr.mxu0 0.0
        %7214 = vmatpush1.msra.mxu0 0.0
        %7215 = vmatprep.subr.mxu0 0.0
        %7216 = vmatpush1.msra.mxu0 0.0
        %7217 = vmatprep.subr.mxu0 0.0
        %7218 = vmatpush1.msra.mxu0 0.0
        %7219 = vmatprep.subr.mxu0 0.0
        %7220 = vmatpush1.msra.mxu0 0.0
        %7221 = vmatprep.subr.mxu0 0.0
        %7222 = vmatpush1.msra.mxu0 0.0
        %7223 = vmatprep.subr.mxu0 0.0
        %7224 = vmatpush1.msra.mxu0 0.0
        %7225 = vmatprep.subr.mxu0 0.0
        %7226 = vmatpush1.msra.mxu0 0.0
        %7227 = vmatprep.subr.mxu0 0.0
        %7228 = vmatpush1.msra.mxu0 0.0
        %7229 = vmatprep.subr.mxu0 0.0
        %7230 = vmatpush1.msra.mxu0 0.0
        %7231 = vmatprep.subr.mxu0 0.0
        %7232 = vmatpush1.msra.mxu0 0.0
        %7233 = vmatprep.subr.mxu0 0.0
        %7234 = vmatpush1.msra.mxu0 0.0
        %7235 = vmatprep.subr.mxu0 0.0
        %7236 = vmatpush1.msra.mxu0 0.0
        %7237 = vmatprep.subr.mxu0 0.0
        %7238 = vmatpush1.msra.mxu0 0.0
        %7239 = vmatprep.subr.mxu0 0.0
        %7240 = vmatpush1.msra.mxu0 0.0
        %7241 = vmatprep.subr.mxu0 0.0
        %7242 = vmatpush1.msra.mxu0 0.0
        %7243 = vmatprep.subr.mxu0 0.0
        %7244 = vmatpush1.msra.mxu0 0.0
        %7245 = vmatprep.subr.mxu0 0.0
        %7246 = vmatpush1.msra.mxu0 0.0
        %7247 = vmatprep.subr.mxu0 0.0
        %7248 = vmatpush1.msra.mxu0 0.0
        %7249 = vmatprep.subr.mxu0 0.0
        %7250 = vmatpush1.msra.mxu0 0.0
        %7251 = vmatprep.subr.mxu0 0.0
        %7252 = vmatpush1.msra.mxu0 0.0
        %7253 = vmatprep.subr.mxu0 0.0
        %7254 = vmatpush1.msra.mxu0 0.0
        %7255 = vmatprep.subr.mxu0 0.0
        %7256 = vmatpush1.msra.mxu0 0.0
        %7257 = vmatprep.subr.mxu0 0.0
        %7258 = vmatpush1.msra.mxu0 0.0
        %7259 = vmatprep.subr.mxu0 0.0
        %7260 = vmatpush1.msra.mxu0 0.0
        %7261 = vmatprep.subr.mxu0 0.0
        %7262 = vmatpush1.msra.mxu0 0.0
        %7263 = vmatprep.subr.mxu0 0.0
        %7264 = vmatpush1.msra.mxu0 0.0
        %7265 = vmatprep.subr.mxu0 0.0
        %7266 = vmatpush1.msra.mxu0 0.0
        %7267 = vmatprep.mubr.f32.mxu0 0.0
        %v7268 = vand.u32 %v6791, 4294901760
        %7269 = vmatmul.mubr.f32.gmra.mrb[0].mxu0 %v7268
        %v7270 = vpop.f32.mrb[0].mxu0
        %v7271 = vadd.f32 %v7197, %v7270
        %v7272 = vpop.f32.mrb[0].mxu0
        %v7273 = vadd.f32 %v7199, %v7272
        %7274 = vdwg.mxu0
        %v7275 = vand.u32 %v6800, 4294901760
        %7276 = vmatprep.subr.mxu0 %v7275
        %v7277 = vand.u32 %v6798, 4294901760
        %7278 = vmatpush1.msra.mxu0 %v7277
        %7279 = vmatprep.subr.mxu0 0.0
        %7280 = vmatpush1.msra.mxu0 0.0
        %7281 = vmatprep.subr.mxu0 0.0
        %7282 = vmatpush1.msra.mxu0 0.0
        %7283 = vmatprep.subr.mxu0 0.0
        %7284 = vmatpush1.msra.mxu0 0.0
        %7285 = vmatprep.subr.mxu0 0.0
        %7286 = vmatpush1.msra.mxu0 0.0
        %7287 = vmatprep.subr.mxu0 0.0
        %7288 = vmatpush1.msra.mxu0 0.0
        %7289 = vmatprep.subr.mxu0 0.0
        %7290 = vmatpush1.msra.mxu0 0.0
        %7291 = vmatprep.subr.mxu0 0.0
        %7292 = vmatpush1.msra.mxu0 0.0
        %7293 = vmatprep.subr.mxu0 0.0
        %7294 = vmatpush1.msra.mxu0 0.0
        %7295 = vmatprep.subr.mxu0 0.0
        %7296 = vmatpush1.msra.mxu0 0.0
        %7297 = vmatprep.subr.mxu0 0.0
        %7298 = vmatpush1.msra.mxu0 0.0
        %7299 = vmatprep.subr.mxu0 0.0
        %7300 = vmatpush1.msra.mxu0 0.0
        %7301 = vmatprep.subr.mxu0 0.0
        %7302 = vmatpush1.msra.mxu0 0.0
        %7303 = vmatprep.subr.mxu0 0.0
        %7304 = vmatpush1.msra.mxu0 0.0
        %7305 = vmatprep.subr.mxu0 0.0
        %7306 = vmatpush1.msra.mxu0 0.0
        %7307 = vmatprep.subr.mxu0 0.0
        %7308 = vmatpush1.msra.mxu0 0.0
        %7309 = vmatprep.subr.mxu0 0.0
        %7310 = vmatpush1.msra.mxu0 0.0
        %7311 = vmatprep.subr.mxu0 0.0
        %7312 = vmatpush1.msra.mxu0 0.0
        %7313 = vmatprep.subr.mxu0 0.0
        %7314 = vmatpush1.msra.mxu0 0.0
        %7315 = vmatprep.subr.mxu0 0.0
        %7316 = vmatpush1.msra.mxu0 0.0
        %7317 = vmatprep.subr.mxu0 0.0
        %7318 = vmatpush1.msra.mxu0 0.0
        %7319 = vmatprep.subr.mxu0 0.0
        %7320 = vmatpush1.msra.mxu0 0.0
        %7321 = vmatprep.subr.mxu0 0.0
        %7322 = vmatpush1.msra.mxu0 0.0
        %7323 = vmatprep.subr.mxu0 0.0
        %7324 = vmatpush1.msra.mxu0 0.0
        %7325 = vmatprep.subr.mxu0 0.0
        %7326 = vmatpush1.msra.mxu0 0.0
        %7327 = vmatprep.subr.mxu0 0.0
        %7328 = vmatpush1.msra.mxu0 0.0
        %7329 = vmatprep.subr.mxu0 0.0
        %7330 = vmatpush1.msra.mxu0 0.0
        %7331 = vmatprep.subr.mxu0 0.0
        %7332 = vmatpush1.msra.mxu0 0.0
        %7333 = vmatprep.subr.mxu0 0.0
        %7334 = vmatpush1.msra.mxu0 0.0
        %7335 = vmatprep.subr.mxu0 0.0
        %7336 = vmatpush1.msra.mxu0 0.0
        %7337 = vmatprep.subr.mxu0 0.0
        %7338 = vmatpush1.msra.mxu0 0.0
        %7339 = vmatprep.subr.mxu0 0.0
        %7340 = vmatpush1.msra.mxu0 0.0
        %7341 = vmatprep.mubr.f32.mxu0 0.0
        %v7342 = vand.u32 %v6791, 4294901760
        %v7343 = vsub.f32 %v6791, %v7342
        %v7344 = vand.u32 %v7343, 4294901760
        %v7345 = vsub.f32 %v7343, %v7344
        %v7346 = vand.u32 %v7345, 4294901760
        %7347 = vmatmul.mubr.f32.gmra.mrb[0].mxu0 %v7346
        %v7348 = vpop.f32.mrb[0].mxu0
        %v7349 = vadd.f32 %v6779, %v7348
        %v7350 = vpop.f32.mrb[0].mxu0
        %v7351 = vadd.f32 %v6779, %v7350
        %7352 = vdwg.mxu0
        %v7353 = vand.u32 %v6800, 4294901760
        %v7354 = vsub.f32 %v6800, %v7353
        %v7355 = vand.u32 %v7354, 4294901760
        %v7356 = vsub.f32 %v7354, %v7355
        %v7357 = vand.u32 %v7356, 4294901760
        %7358 = vmatprep.subr.mxu0 %v7357
        %v7359 = vand.u32 %v6798, 4294901760
        %v7360 = vsub.f32 %v6798, %v7359
        %v7361 = vand.u32 %v7360, 4294901760
        %v7362 = vsub.f32 %v7360, %v7361
        %v7363 = vand.u32 %v7362, 4294901760
        %7364 = vmatpush1.msra.mxu0 %v7363
        %7365 = vmatprep.subr.mxu0 0.0
        %7366 = vmatpush1.msra.mxu0 0.0
        %7367 = vmatprep.subr.mxu0 0.0
        %7368 = vmatpush1.msra.mxu0 0.0
        %7369 = vmatprep.subr.mxu0 0.0
        %7370 = vmatpush1.msra.mxu0 0.0
        %7371 = vmatprep.subr.mxu0 0.0
        %7372 = vmatpush1.msra.mxu0 0.0
        %7373 = vmatprep.subr.mxu0 0.0
        %7374 = vmatpush1.msra.mxu0 0.0
        %7375 = vmatprep.subr.mxu0 0.0
        %7376 = vmatpush1.msra.mxu0 0.0
        %7377 = vmatprep.subr.mxu0 0.0
        %7378 = vmatpush1.msra.mxu0 0.0
        %7379 = vmatprep.subr.mxu0 0.0
        %7380 = vmatpush1.msra.mxu0 0.0
        %7381 = vmatprep.subr.mxu0 0.0
        %7382 = vmatpush1.msra.mxu0 0.0
        %7383 = vmatprep.subr.mxu0 0.0
        %7384 = vmatpush1.msra.mxu0 0.0
        %7385 = vmatprep.subr.mxu0 0.0
        %7386 = vmatpush1.msra.mxu0 0.0
        %7387 = vmatprep.subr.mxu0 0.0
        %7388 = vmatpush1.msra.mxu0 0.0
        %7389 = vmatprep.subr.mxu0 0.0
        %7390 = vmatpush1.msra.mxu0 0.0
        %7391 = vmatprep.subr.mxu0 0.0
        %7392 = vmatpush1.msra.mxu0 0.0
        %7393 = vmatprep.subr.mxu0 0.0
        %7394 = vmatpush1.msra.mxu0 0.0
        %7395 = vmatprep.subr.mxu0 0.0
        %7396 = vmatpush1.msra.mxu0 0.0
        %7397 = vmatprep.subr.mxu0 0.0
        %7398 = vmatpush1.msra.mxu0 0.0
        %7399 = vmatprep.subr.mxu0 0.0
        %7400 = vmatpush1.msra.mxu0 0.0
        %7401 = vmatprep.subr.mxu0 0.0
        %7402 = vmatpush1.msra.mxu0 0.0
        %7403 = vmatprep.subr.mxu0 0.0
        %7404 = vmatpush1.msra.mxu0 0.0
        %7405 = vmatprep.subr.mxu0 0.0
        %7406 = vmatpush1.msra.mxu0 0.0
        %7407 = vmatprep.subr.mxu0 0.0
        %7408 = vmatpush1.msra.mxu0 0.0
        %7409 = vmatprep.subr.mxu0 0.0
        %7410 = vmatpush1.msra.mxu0 0.0
        %7411 = vmatprep.subr.mxu0 0.0
        %7412 = vmatpush1.msra.mxu0 0.0
        %7413 = vmatprep.subr.mxu0 0.0
        %7414 = vmatpush1.msra.mxu0 0.0
        %7415 = vmatprep.subr.mxu0 0.0
        %7416 = vmatpush1.msra.mxu0 0.0
        %7417 = vmatprep.subr.mxu0 0.0
        %7418 = vmatpush1.msra.mxu0 0.0
        %7419 = vmatprep.subr.mxu0 0.0
        %7420 = vmatpush1.msra.mxu0 0.0
        %7421 = vmatprep.subr.mxu0 0.0
        %7422 = vmatpush1.msra.mxu0 0.0
        %7423 = vmatprep.subr.mxu0 0.0
        %7424 = vmatpush1.msra.mxu0 0.0
        %7425 = vmatprep.subr.mxu0 0.0
        %7426 = vmatpush1.msra.mxu0 0.0
        %7427 = vmatprep.mubr.f32.mxu0 0.0
        %v7428 = vand.u32 %v6791, 4294901760
        %7429 = vmatmul.mubr.f32.gmra.mrb[0].mxu0 %v7428
        %v7430 = vpop.f32.mrb[0].mxu0
        %v7431 = vadd.f32 %v7349, %v7430
        %v7432 = vpop.f32.mrb[0].mxu0
        %v7433 = vadd.f32 %v7351, %v7432
        %7434 = vdwg.mxu0
        %v7435 = vand.u32 %v6800, 4294901760
        %v7436 = vsub.f32 %v6800, %v7435
        %7437 = vmatprep.subr.mxu0 %v7436
        %v7438 = vand.u32 %v6798, 4294901760
        %v7439 = vsub.f32 %v6798, %v7438
        %7440 = vmatpush1.msra.mxu0 %v7439
        %7441 = vmatprep.subr.mxu0 0.0
        %7442 = vmatpush1.msra.mxu0 0.0
        %7443 = vmatprep.subr.mxu0 0.0
        %7444 = vmatpush1.msra.mxu0 0.0
        %7445 = vmatprep.subr.mxu0 0.0
        %7446 = vmatpush1.msra.mxu0 0.0
        %7447 = vmatprep.subr.mxu0 0.0
        %7448 = vmatpush1.msra.mxu0 0.0
        %7449 = vmatprep.subr.mxu0 0.0
        %7450 = vmatpush1.msra.mxu0 0.0
        %7451 = vmatprep.subr.mxu0 0.0
        %7452 = vmatpush1.msra.mxu0 0.0
        %7453 = vmatprep.subr.mxu0 0.0
        %7454 = vmatpush1.msra.mxu0 0.0
        %7455 = vmatprep.subr.mxu0 0.0
        %7456 = vmatpush1.msra.mxu0 0.0
        %7457 = vmatprep.subr.mxu0 0.0
        %7458 = vmatpush1.msra.mxu0 0.0
        %7459 = vmatprep.subr.mxu0 0.0
        %7460 = vmatpush1.msra.mxu0 0.0
        %7461 = vmatprep.subr.mxu0 0.0
        %7462 = vmatpush1.msra.mxu0 0.0
        %7463 = vmatprep.subr.mxu0 0.0
        %7464 = vmatpush1.msra.mxu0 0.0
        %7465 = vmatprep.subr.mxu0 0.0
        %7466 = vmatpush1.msra.mxu0 0.0
        %7467 = vmatprep.subr.mxu0 0.0
        %7468 = vmatpush1.msra.mxu0 0.0
        %7469 = vmatprep.subr.mxu0 0.0
        %7470 = vmatpush1.msra.mxu0 0.0
        %7471 = vmatprep.subr.mxu0 0.0
        %7472 = vmatpush1.msra.mxu0 0.0
        %7473 = vmatprep.subr.mxu0 0.0
        %7474 = vmatpush1.msra.mxu0 0.0
        %7475 = vmatprep.subr.mxu0 0.0
        %7476 = vmatpush1.msra.mxu0 0.0
        %7477 = vmatprep.subr.mxu0 0.0
        %7478 = vmatpush1.msra.mxu0 0.0
        %7479 = vmatprep.subr.mxu0 0.0
        %7480 = vmatpush1.msra.mxu0 0.0
        %7481 = vmatprep.subr.mxu0 0.0
        %7482 = vmatpush1.msra.mxu0 0.0
        %7483 = vmatprep.subr.mxu0 0.0
        %7484 = vmatpush1.msra.mxu0 0.0
        %7485 = vmatprep.subr.mxu0 0.0
        %7486 = vmatpush1.msra.mxu0 0.0
        %7487 = vmatprep.subr.mxu0 0.0
        %7488 = vmatpush1.msra.mxu0 0.0
        %7489 = vmatprep.subr.mxu0 0.0
        %7490 = vmatpush1.msra.mxu0 0.0
        %7491 = vmatprep.subr.mxu0 0.0
        %7492 = vmatpush1.msra.mxu0 0.0
        %7493 = vmatprep.subr.mxu0 0.0
        %7494 = vmatpush1.msra.mxu0 0.0
        %7495 = vmatprep.subr.mxu0 0.0
        %7496 = vmatpush1.msra.mxu0 0.0
        %7497 = vmatprep.subr.mxu0 0.0
        %7498 = vmatpush1.msra.mxu0 0.0
        %7499 = vmatprep.subr.mxu0 0.0
        %7500 = vmatpush1.msra.mxu0 0.0
        %7501 = vmatprep.subr.mxu0 0.0
        %7502 = vmatpush1.msra.mxu0 0.0
        %7503 = vmatprep.mubr.f32.mxu0 0.0
        %v7504 = vand.u32 %v6791, 4294901760
        %v7505 = vsub.f32 %v6791, %v7504
        %7506 = vmatmul.mubr.f32.gmra.mrb[0].mxu0 %v7505
        %v7507 = vpop.f32.mrb[0].mxu0
        %v7508 = vadd.f32 %v7431, %v7507
        %v7509 = vpop.f32.mrb[0].mxu0
        %v7510 = vadd.f32 %v7433, %v7509
        %7511 = vdwg.mxu0
        %v7512 = vand.u32 %v6800, 4294901760
        %7513 = vmatprep.subr.mxu0 %v7512
        %v7514 = vand.u32 %v6798, 4294901760
        %7515 = vmatpush1.msra.mxu0 %v7514
        %7516 = vmatprep.subr.mxu0 0.0
        %7517 = vmatpush1.msra.mxu0 0.0
        %7518 = vmatprep.subr.mxu0 0.0
        %7519 = vmatpush1.msra.mxu0 0.0
        %7520 = vmatprep.subr.mxu0 0.0
        %7521 = vmatpush1.msra.mxu0 0.0
        %7522 = vmatprep.subr.mxu0 0.0
        %7523 = vmatpush1.msra.mxu0 0.0
        %7524 = vmatprep.subr.mxu0 0.0
        %7525 = vmatpush1.msra.mxu0 0.0
        %7526 = vmatprep.subr.mxu0 0.0
        %7527 = vmatpush1.msra.mxu0 0.0
        %7528 = vmatprep.subr.mxu0 0.0
        %7529 = vmatpush1.msra.mxu0 0.0
        %7530 = vmatprep.subr.mxu0 0.0
        %7531 = vmatpush1.msra.mxu0 0.0
        %7532 = vmatprep.subr.mxu0 0.0
        %7533 = vmatpush1.msra.mxu0 0.0
        %7534 = vmatprep.subr.mxu0 0.0
        %7535 = vmatpush1.msra.mxu0 0.0
        %7536 = vmatprep.subr.mxu0 0.0
        %7537 = vmatpush1.msra.mxu0 0.0
        %7538 = vmatprep.subr.mxu0 0.0
        %7539 = vmatpush1.msra.mxu0 0.0
        %7540 = vmatprep.subr.mxu0 0.0
        %7541 = vmatpush1.msra.mxu0 0.0
        %7542 = vmatprep.subr.mxu0 0.0
        %7543 = vmatpush1.msra.mxu0 0.0
        %7544 = vmatprep.subr.mxu0 0.0
        %7545 = vmatpush1.msra.mxu0 0.0
        %7546 = vmatprep.subr.mxu0 0.0
        %7547 = vmatpush1.msra.mxu0 0.0
        %7548 = vmatprep.subr.mxu0 0.0
        %7549 = vmatpush1.msra.mxu0 0.0
        %7550 = vmatprep.subr.mxu0 0.0
        %7551 = vmatpush1.msra.mxu0 0.0
        %7552 = vmatprep.subr.mxu0 0.0
        %7553 = vmatpush1.msra.mxu0 0.0
        %7554 = vmatprep.subr.mxu0 0.0
        %7555 = vmatpush1.msra.mxu0 0.0
        %7556 = vmatprep.subr.mxu0 0.0
        %7557 = vmatpush1.msra.mxu0 0.0
        %7558 = vmatprep.subr.mxu0 0.0
        %7559 = vmatpush1.msra.mxu0 0.0
        %7560 = vmatprep.subr.mxu0 0.0
        %7561 = vmatpush1.msra.mxu0 0.0
        %7562 = vmatprep.subr.mxu0 0.0
        %7563 = vmatpush1.msra.mxu0 0.0
        %7564 = vmatprep.subr.mxu0 0.0
        %7565 = vmatpush1.msra.mxu0 0.0
        %7566 = vmatprep.subr.mxu0 0.0
        %7567 = vmatpush1.msra.mxu0 0.0
        %7568 = vmatprep.subr.mxu0 0.0
        %7569 = vmatpush1.msra.mxu0 0.0
        %7570 = vmatprep.subr.mxu0 0.0
        %7571 = vmatpush1.msra.mxu0 0.0
        %7572 = vmatprep.subr.mxu0 0.0
        %7573 = vmatpush1.msra.mxu0 0.0
        %7574 = vmatprep.subr.mxu0 0.0
        %7575 = vmatpush1.msra.mxu0 0.0
        %7576 = vmatprep.subr.mxu0 0.0
        %7577 = vmatpush1.msra.mxu0 0.0
        %7578 = vmatprep.mubr.f32.mxu0 0.0
        %v7579 = vand.u32 %v6791, 4294901760
        %v7580 = vsub.f32 %v6791, %v7579
        %v7581 = vand.u32 %v7580, 4294901760
        %7582 = vmatmul.mubr.f32.gmra.mrb[0].mxu0 %v7581
        %v7583 = vpop.f32.mrb[0].mxu0
        %v7584 = vadd.f32 %v7508, %v7583
        %v7585 = vpop.f32.mrb[0].mxu0
        %v7586 = vadd.f32 %v7510, %v7585
        %7587 = vdwg.mxu0
        %v7588 = vand.u32 %v6800, 4294901760
        %v7589 = vsub.f32 %v6800, %v7588
        %v7590 = vand.u32 %v7589, 4294901760
        %7591 = vmatprep.subr.mxu0 %v7590
        %v7592 = vand.u32 %v6798, 4294901760
        %v7593 = vsub.f32 %v6798, %v7592
        %v7594 = vand.u32 %v7593, 4294901760
        %7595 = vmatpush1.msra.mxu0 %v7594
        %7596 = vmatprep.subr.mxu0 0.0
        %7597 = vmatpush1.msra.mxu0 0.0
        %7598 = vmatprep.subr.mxu0 0.0
        %7599 = vmatpush1.msra.mxu0 0.0
        %7600 = vmatprep.subr.mxu0 0.0
        %7601 = vmatpush1.msra.mxu0 0.0
        %7602 = vmatprep.subr.mxu0 0.0
        %7603 = vmatpush1.msra.mxu0 0.0
        %7604 = vmatprep.subr.mxu0 0.0
        %7605 = vmatpush1.msra.mxu0 0.0
        %7606 = vmatprep.subr.mxu0 0.0
        %7607 = vmatpush1.msra.mxu0 0.0
        %7608 = vmatprep.subr.mxu0 0.0
        %7609 = vmatpush1.msra.mxu0 0.0
        %7610 = vmatprep.subr.mxu0 0.0
        %7611 = vmatpush1.msra.mxu0 0.0
        %7612 = vmatprep.subr.mxu0 0.0
        %7613 = vmatpush1.msra.mxu0 0.0
        %7614 = vmatprep.subr.mxu0 0.0
        %7615 = vmatpush1.msra.mxu0 0.0
        %7616 = vmatprep.subr.mxu0 0.0
        %7617 = vmatpush1.msra.mxu0 0.0
        %7618 = vmatprep.subr.mxu0 0.0
        %7619 = vmatpush1.msra.mxu0 0.0
        %7620 = vmatprep.subr.mxu0 0.0
        %7621 = vmatpush1.msra.mxu0 0.0
        %7622 = vmatprep.subr.mxu0 0.0
        %7623 = vmatpush1.msra.mxu0 0.0
        %7624 = vmatprep.subr.mxu0 0.0
        %7625 = vmatpush1.msra.mxu0 0.0
        %7626 = vmatprep.subr.mxu0 0.0
        %7627 = vmatpush1.msra.mxu0 0.0
        %7628 = vmatprep.subr.mxu0 0.0
        %7629 = vmatpush1.msra.mxu0 0.0
        %7630 = vmatprep.subr.mxu0 0.0
        %7631 = vmatpush1.msra.mxu0 0.0
        %7632 = vmatprep.subr.mxu0 0.0
        %7633 = vmatpush1.msra.mxu0 0.0
        %7634 = vmatprep.subr.mxu0 0.0
        %7635 = vmatpush1.msra.mxu0 0.0
        %7636 = vmatprep.subr.mxu0 0.0
        %7637 = vmatpush1.msra.mxu0 0.0
        %7638 = vmatprep.subr.mxu0 0.0
        %7639 = vmatpush1.msra.mxu0 0.0
        %7640 = vmatprep.subr.mxu0 0.0
        %7641 = vmatpush1.msra.mxu0 0.0
        %7642 = vmatprep.subr.mxu0 0.0
        %7643 = vmatpush1.msra.mxu0 0.0
        %7644 = vmatprep.subr.mxu0 0.0
        %7645 = vmatpush1.msra.mxu0 0.0
        %7646 = vmatprep.subr.mxu0 0.0
        %7647 = vmatpush1.msra.mxu0 0.0
        %7648 = vmatprep.subr.mxu0 0.0
        %7649 = vmatpush1.msra.mxu0 0.0
        %7650 = vmatprep.subr.mxu0 0.0
        %7651 = vmatpush1.msra.mxu0 0.0
        %7652 = vmatprep.subr.mxu0 0.0
        %7653 = vmatpush1.msra.mxu0 0.0
        %7654 = vmatprep.subr.mxu0 0.0
        %7655 = vmatpush1.msra.mxu0 0.0
        %7656 = vmatprep.subr.mxu0 0.0
        %7657 = vmatpush1.msra.mxu0 0.0
        %7658 = vmatprep.mubr.f32.mxu0 0.0
        %v7659 = vand.u32 %v6791, 4294901760
        %7660 = vmatmul.mubr.f32.gmra.mrb[0].mxu0 %v7659
        %v7661 = vpop.f32.mrb[0].mxu0
        %v7662 = vadd.f32 %v7584, %v7661
        %v7663 = vpop.f32.mrb[0].mxu0
        %v7664 = vadd.f32 %v7586, %v7663
        %7665 = vdwg.mxu0
        %v7666 = vand.u32 %v6800, 4294901760
        %7667 = vmatprep.subr.mxu0 %v7666
        %v7668 = vand.u32 %v6798, 4294901760
        %7669 = vmatpush1.msra.mxu0 %v7668
        %7670 = vmatprep.subr.mxu0 0.0
        %7671 = vmatpush1.msra.mxu0 0.0
        %7672 = vmatprep.subr.mxu0 0.0
        %7673 = vmatpush1.msra.mxu0 0.0
        %7674 = vmatprep.subr.mxu0 0.0
        %7675 = vmatpush1.msra.mxu0 0.0
        %7676 = vmatprep.subr.mxu0 0.0
        %7677 = vmatpush1.msra.mxu0 0.0
        %7678 = vmatprep.subr.mxu0 0.0
        %7679 = vmatpush1.msra.mxu0 0.0
        %7680 = vmatprep.subr.mxu0 0.0
        %7681 = vmatpush1.msra.mxu0 0.0
        %7682 = vmatprep.subr.mxu0 0.0
        %7683 = vmatpush1.msra.mxu0 0.0
        %7684 = vmatprep.subr.mxu0 0.0
        %7685 = vmatpush1.msra.mxu0 0.0
        %7686 = vmatprep.subr.mxu0 0.0
        %7687 = vmatpush1.msra.mxu0 0.0
        %7688 = vmatprep.subr.mxu0 0.0
        %7689 = vmatpush1.msra.mxu0 0.0
        %7690 = vmatprep.subr.mxu0 0.0
        %7691 = vmatpush1.msra.mxu0 0.0
        %7692 = vmatprep.subr.mxu0 0.0
        %7693 = vmatpush1.msra.mxu0 0.0
        %7694 = vmatprep.subr.mxu0 0.0
        %7695 = vmatpush1.msra.mxu0 0.0
        %7696 = vmatprep.subr.mxu0 0.0
        %7697 = vmatpush1.msra.mxu0 0.0
        %7698 = vmatprep.subr.mxu0 0.0
        %7699 = vmatpush1.msra.mxu0 0.0
        %7700 = vmatprep.subr.mxu0 0.0
        %7701 = vmatpush1.msra.mxu0 0.0
        %7702 = vmatprep.subr.mxu0 0.0
        %7703 = vmatpush1.msra.mxu0 0.0
        %7704 = vmatprep.subr.mxu0 0.0
        %7705 = vmatpush1.msra.mxu0 0.0
        %7706 = vmatprep.subr.mxu0 0.0
        %7707 = vmatpush1.msra.mxu0 0.0
        %7708 = vmatprep.subr.mxu0 0.0
        %7709 = vmatpush1.msra.mxu0 0.0
        %7710 = vmatprep.subr.mxu0 0.0
        %7711 = vmatpush1.msra.mxu0 0.0
        %7712 = vmatprep.subr.mxu0 0.0
        %7713 = vmatpush1.msra.mxu0 0.0
        %7714 = vmatprep.subr.mxu0 0.0
        %7715 = vmatpush1.msra.mxu0 0.0
        %7716 = vmatprep.subr.mxu0 0.0
        %7717 = vmatpush1.msra.mxu0 0.0
        %7718 = vmatprep.subr.mxu0 0.0
        %7719 = vmatpush1.msra.mxu0 0.0
        %7720 = vmatprep.subr.mxu0 0.0
        %7721 = vmatpush1.msra.mxu0 0.0
        %7722 = vmatprep.subr.mxu0 0.0
        %7723 = vmatpush1.msra.mxu0 0.0
        %7724 = vmatprep.subr.mxu0 0.0
        %7725 = vmatpush1.msra.mxu0 0.0
        %7726 = vmatprep.subr.mxu0 0.0
        %7727 = vmatpush1.msra.mxu0 0.0
        %7728 = vmatprep.subr.mxu0 0.0
        %7729 = vmatpush1.msra.mxu0 0.0
        %7730 = vmatprep.subr.mxu0 0.0
        %7731 = vmatpush1.msra.mxu0 0.0
        %7732 = vmatprep.mubr.f32.mxu0 0.0
        %v7733 = vand.u32 %v6791, 4294901760
        %7734 = vmatmul.mubr.f32.gmra.mrb[0].mxu0 %v7733
        %v7735 = vpop.f32.mrb[0].mxu0
        %v7736 = vadd.f32 %v7662, %v7735
        %v7737 = vpop.f32.mrb[0].mxu0
        %v7738 = vadd.f32 %v7664, %v7737
        %7739 = vdwg.mxu0
        %v7740 = vand.u32 %v6804, 4294901760
        %7741 = vmatprep.subr.mxu0 %v7740
        %v7742 = vand.u32 %v6802, 4294901760
        %7743 = vmatpush1.msra.mxu0 %v7742
        %7744 = vmatprep.subr.mxu0 0.0
        %7745 = vmatpush1.msra.mxu0 0.0
        %7746 = vmatprep.subr.mxu0 0.0
        %7747 = vmatpush1.msra.mxu0 0.0
        %7748 = vmatprep.subr.mxu0 0.0
        %7749 = vmatpush1.msra.mxu0 0.0
        %7750 = vmatprep.subr.mxu0 0.0
        %7751 = vmatpush1.msra.mxu0 0.0
        %7752 = vmatprep.subr.mxu0 0.0
        %7753 = vmatpush1.msra.mxu0 0.0
        %7754 = vmatprep.subr.mxu0 0.0
        %7755 = vmatpush1.msra.mxu0 0.0
        %7756 = vmatprep.subr.mxu0 0.0
        %7757 = vmatpush1.msra.mxu0 0.0
        %7758 = vmatprep.subr.mxu0 0.0
        %7759 = vmatpush1.msra.mxu0 0.0
        %7760 = vmatprep.subr.mxu0 0.0
        %7761 = vmatpush1.msra.mxu0 0.0
        %7762 = vmatprep.subr.mxu0 0.0
        %7763 = vmatpush1.msra.mxu0 0.0
        %7764 = vmatprep.subr.mxu0 0.0
        %7765 = vmatpush1.msra.mxu0 0.0
        %7766 = vmatprep.subr.mxu0 0.0
        %7767 = vmatpush1.msra.mxu0 0.0
        %7768 = vmatprep.subr.mxu0 0.0
        %7769 = vmatpush1.msra.mxu0 0.0
        %7770 = vmatprep.subr.mxu0 0.0
        %7771 = vmatpush1.msra.mxu0 0.0
        %7772 = vmatprep.subr.mxu0 0.0
        %7773 = vmatpush1.msra.mxu0 0.0
        %7774 = vmatprep.subr.mxu0 0.0
        %7775 = vmatpush1.msra.mxu0 0.0
        %7776 = vmatprep.subr.mxu0 0.0
        %7777 = vmatpush1.msra.mxu0 0.0
        %7778 = vmatprep.subr.mxu0 0.0
        %7779 = vmatpush1.msra.mxu0 0.0
        %7780 = vmatprep.subr.mxu0 0.0
        %7781 = vmatpush1.msra.mxu0 0.0
        %7782 = vmatprep.subr.mxu0 0.0
        %7783 = vmatpush1.msra.mxu0 0.0
        %7784 = vmatprep.subr.mxu0 0.0
        %7785 = vmatpush1.msra.mxu0 0.0
        %7786 = vmatprep.subr.mxu0 0.0
        %7787 = vmatpush1.msra.mxu0 0.0
        %7788 = vmatprep.subr.mxu0 0.0
        %7789 = vmatpush1.msra.mxu0 0.0
        %7790 = vmatprep.subr.mxu0 0.0
        %7791 = vmatpush1.msra.mxu0 0.0
        %7792 = vmatprep.subr.mxu0 0.0
        %7793 = vmatpush1.msra.mxu0 0.0
        %7794 = vmatprep.subr.mxu0 0.0
        %7795 = vmatpush1.msra.mxu0 0.0
        %7796 = vmatprep.subr.mxu0 0.0
        %7797 = vmatpush1.msra.mxu0 0.0
        %7798 = vmatprep.subr.mxu0 0.0
        %7799 = vmatpush1.msra.mxu0 0.0
        %7800 = vmatprep.subr.mxu0 0.0
        %7801 = vmatpush1.msra.mxu0 0.0
        %7802 = vmatprep.subr.mxu0 0.0
        %7803 = vmatpush1.msra.mxu0 0.0
        %7804 = vmatprep.subr.mxu0 0.0
        %7805 = vmatpush1.msra.mxu0 0.0
        %7806 = vmatprep.mubr.f32.mxu0 0.0
        %v7807 = vand.u32 %v6791, 4294901760
        %v7808 = vsub.f32 %v6791, %v7807
        %v7809 = vand.u32 %v7808, 4294901760
        %v7810 = vsub.f32 %v7808, %v7809
        %v7811 = vand.u32 %v7810, 4294901760
        %7812 = vmatmul.mubr.f32.gmra.mrb[0].mxu0 %v7811
        %v7813 = vpop.f32.mrb[0].mxu0
        %v7814 = vadd.f32 %v6779, %v7813
        %v7815 = vpop.f32.mrb[0].mxu0
        %v7816 = vadd.f32 %v6779, %v7815
        %7817 = vdwg.mxu0
        %v7818 = vand.u32 %v6804, 4294901760
        %v7819 = vsub.f32 %v6804, %v7818
        %v7820 = vand.u32 %v7819, 4294901760
        %v7821 = vsub.f32 %v7819, %v7820
        %v7822 = vand.u32 %v7821, 4294901760
        %7823 = vmatprep.subr.mxu0 %v7822
        %v7824 = vand.u32 %v6802, 4294901760
        %v7825 = vsub.f32 %v6802, %v7824
        %v7826 = vand.u32 %v7825, 4294901760
        %v7827 = vsub.f32 %v7825, %v7826
        %v7828 = vand.u32 %v7827, 4294901760
        %7829 = vmatpush1.msra.mxu0 %v7828
        %7830 = vmatprep.subr.mxu0 0.0
        %7831 = vmatpush1.msra.mxu0 0.0
        %7832 = vmatprep.subr.mxu0 0.0
        %7833 = vmatpush1.msra.mxu0 0.0
        %7834 = vmatprep.subr.mxu0 0.0
        %7835 = vmatpush1.msra.mxu0 0.0
        %7836 = vmatprep.subr.mxu0 0.0
        %7837 = vmatpush1.msra.mxu0 0.0
        %7838 = vmatprep.subr.mxu0 0.0
        %7839 = vmatpush1.msra.mxu0 0.0
        %7840 = vmatprep.subr.mxu0 0.0
        %7841 = vmatpush1.msra.mxu0 0.0
        %7842 = vmatprep.subr.mxu0 0.0
        %7843 = vmatpush1.msra.mxu0 0.0
        %7844 = vmatprep.subr.mxu0 0.0
        %7845 = vmatpush1.msra.mxu0 0.0
        %7846 = vmatprep.subr.mxu0 0.0
        %7847 = vmatpush1.msra.mxu0 0.0
        %7848 = vmatprep.subr.mxu0 0.0
        %7849 = vmatpush1.msra.mxu0 0.0
        %7850 = vmatprep.subr.mxu0 0.0
        %7851 = vmatpush1.msra.mxu0 0.0
        %7852 = vmatprep.subr.mxu0 0.0
        %7853 = vmatpush1.msra.mxu0 0.0
        %7854 = vmatprep.subr.mxu0 0.0
        %7855 = vmatpush1.msra.mxu0 0.0
        %7856 = vmatprep.subr.mxu0 0.0
        %7857 = vmatpush1.msra.mxu0 0.0
        %7858 = vmatprep.subr.mxu0 0.0
        %7859 = vmatpush1.msra.mxu0 0.0
        %7860 = vmatprep.subr.mxu0 0.0
        %7861 = vmatpush1.msra.mxu0 0.0
        %7862 = vmatprep.subr.mxu0 0.0
        %7863 = vmatpush1.msra.mxu0 0.0
        %7864 = vmatprep.subr.mxu0 0.0
        %7865 = vmatpush1.msra.mxu0 0.0
        %7866 = vmatprep.subr.mxu0 0.0
        %7867 = vmatpush1.msra.mxu0 0.0
        %7868 = vmatprep.subr.mxu0 0.0
        %7869 = vmatpush1.msra.mxu0 0.0
        %7870 = vmatprep.subr.mxu0 0.0
        %7871 = vmatpush1.msra.mxu0 0.0
        %7872 = vmatprep.subr.mxu0 0.0
        %7873 = vmatpush1.msra.mxu0 0.0
        %7874 = vmatprep.subr.mxu0 0.0
        %7875 = vmatpush1.msra.mxu0 0.0
        %7876 = vmatprep.subr.mxu0 0.0
        %7877 = vmatpush1.msra.mxu0 0.0
        %7878 = vmatprep.subr.mxu0 0.0
        %7879 = vmatpush1.msra.mxu0 0.0
        %7880 = vmatprep.subr.mxu0 0.0
        %7881 = vmatpush1.msra.mxu0 0.0
        %7882 = vmatprep.subr.mxu0 0.0
        %7883 = vmatpush1.msra.mxu0 0.0
        %7884 = vmatprep.subr.mxu0 0.0
        %7885 = vmatpush1.msra.mxu0 0.0
        %7886 = vmatprep.subr.mxu0 0.0
        %7887 = vmatpush1.msra.mxu0 0.0
        %7888 = vmatprep.subr.mxu0 0.0
        %7889 = vmatpush1.msra.mxu0 0.0
        %7890 = vmatprep.subr.mxu0 0.0
        %7891 = vmatpush1.msra.mxu0 0.0
        %7892 = vmatprep.mubr.f32.mxu0 0.0
        %v7893 = vand.u32 %v6791, 4294901760
        %7894 = vmatmul.mubr.f32.gmra.mrb[0].mxu0 %v7893
        %v7895 = vpop.f32.mrb[0].mxu0
        %v7896 = vadd.f32 %v7814, %v7895
        %v7897 = vpop.f32.mrb[0].mxu0
        %v7898 = vadd.f32 %v7816, %v7897
        %7899 = vdwg.mxu0
        %v7900 = vand.u32 %v6804, 4294901760
        %v7901 = vsub.f32 %v6804, %v7900
        %7902 = vmatprep.subr.mxu0 %v7901
        %v7903 = vand.u32 %v6802, 4294901760
        %v7904 = vsub.f32 %v6802, %v7903
        %7905 = vmatpush1.msra.mxu0 %v7904
        %7906 = vmatprep.subr.mxu0 0.0
        %7907 = vmatpush1.msra.mxu0 0.0
        %7908 = vmatprep.subr.mxu0 0.0
        %7909 = vmatpush1.msra.mxu0 0.0
        %7910 = vmatprep.subr.mxu0 0.0
        %7911 = vmatpush1.msra.mxu0 0.0
        %7912 = vmatprep.subr.mxu0 0.0
        %7913 = vmatpush1.msra.mxu0 0.0
        %7914 = vmatprep.subr.mxu0 0.0
        %7915 = vmatpush1.msra.mxu0 0.0
        %7916 = vmatprep.subr.mxu0 0.0
        %7917 = vmatpush1.msra.mxu0 0.0
        %7918 = vmatprep.subr.mxu0 0.0
        %7919 = vmatpush1.msra.mxu0 0.0
        %7920 = vmatprep.subr.mxu0 0.0
        %7921 = vmatpush1.msra.mxu0 0.0
        %7922 = vmatprep.subr.mxu0 0.0
        %7923 = vmatpush1.msra.mxu0 0.0
        %7924 = vmatprep.subr.mxu0 0.0
        %7925 = vmatpush1.msra.mxu0 0.0
        %7926 = vmatprep.subr.mxu0 0.0
        %7927 = vmatpush1.msra.mxu0 0.0
        %7928 = vmatprep.subr.mxu0 0.0
        %7929 = vmatpush1.msra.mxu0 0.0
        %7930 = vmatprep.subr.mxu0 0.0
        %7931 = vmatpush1.msra.mxu0 0.0
        %7932 = vmatprep.subr.mxu0 0.0
        %7933 = vmatpush1.msra.mxu0 0.0
        %7934 = vmatprep.subr.mxu0 0.0
        %7935 = vmatpush1.msra.mxu0 0.0
        %7936 = vmatprep.subr.mxu0 0.0
        %7937 = vmatpush1.msra.mxu0 0.0
        %7938 = vmatprep.subr.mxu0 0.0
        %7939 = vmatpush1.msra.mxu0 0.0
        %7940 = vmatprep.subr.mxu0 0.0
        %7941 = vmatpush1.msra.mxu0 0.0
        %7942 = vmatprep.subr.mxu0 0.0
        %7943 = vmatpush1.msra.mxu0 0.0
        %7944 = vmatprep.subr.mxu0 0.0
        %7945 = vmatpush1.msra.mxu0 0.0
        %7946 = vmatprep.subr.mxu0 0.0
        %7947 = vmatpush1.msra.mxu0 0.0
        %7948 = vmatprep.subr.mxu0 0.0
        %7949 = vmatpush1.msra.mxu0 0.0
        %7950 = vmatprep.subr.mxu0 0.0
        %7951 = vmatpush1.msra.mxu0 0.0
        %7952 = vmatprep.subr.mxu0 0.0
        %7953 = vmatpush1.msra.mxu0 0.0
        %7954 = vmatprep.subr.mxu0 0.0
        %7955 = vmatpush1.msra.mxu0 0.0
        %7956 = vmatprep.subr.mxu0 0.0
        %7957 = vmatpush1.msra.mxu0 0.0
        %7958 = vmatprep.subr.mxu0 0.0
        %7959 = vmatpush1.msra.mxu0 0.0
        %7960 = vmatprep.subr.mxu0 0.0
        %7961 = vmatpush1.msra.mxu0 0.0
        %7962 = vmatprep.subr.mxu0 0.0
        %7963 = vmatpush1.msra.mxu0 0.0
        %7964 = vmatprep.subr.mxu0 0.0
        %7965 = vmatpush1.msra.mxu0 0.0
        %7966 = vmatprep.subr.mxu0 0.0
        %7967 = vmatpush1.msra.mxu0 0.0
        %7968 = vmatprep.mubr.f32.mxu0 0.0
        %v7969 = vand.u32 %v6791, 4294901760
        %v7970 = vsub.f32 %v6791, %v7969
        %7971 = vmatmul.mubr.f32.gmra.mrb[0].mxu0 %v7970
        %v7972 = vpop.f32.mrb[0].mxu0
        %v7973 = vadd.f32 %v7896, %v7972
        %v7974 = vpop.f32.mrb[0].mxu0
        %v7975 = vadd.f32 %v7898, %v7974
        %7976 = vdwg.mxu0
        %v7977 = vand.u32 %v6804, 4294901760
        %7978 = vmatprep.subr.mxu0 %v7977
        %v7979 = vand.u32 %v6802, 4294901760
        %7980 = vmatpush1.msra.mxu0 %v7979
        %7981 = vmatprep.subr.mxu0 0.0
        %7982 = vmatpush1.msra.mxu0 0.0
        %7983 = vmatprep.subr.mxu0 0.0
        %7984 = vmatpush1.msra.mxu0 0.0
        %7985 = vmatprep.subr.mxu0 0.0
        %7986 = vmatpush1.msra.mxu0 0.0
        %7987 = vmatprep.subr.mxu0 0.0
        %7988 = vmatpush1.msra.mxu0 0.0
        %7989 = vmatprep.subr.mxu0 0.0
        %7990 = vmatpush1.msra.mxu0 0.0
        %7991 = vmatprep.subr.mxu0 0.0
        %7992 = vmatpush1.msra.mxu0 0.0
        %7993 = vmatprep.subr.mxu0 0.0
        %7994 = vmatpush1.msra.mxu0 0.0
        %7995 = vmatprep.subr.mxu0 0.0
        %7996 = vmatpush1.msra.mxu0 0.0
        %7997 = vmatprep.subr.mxu0 0.0
        %7998 = vmatpush1.msra.mxu0 0.0
        %7999 = vmatprep.subr.mxu0 0.0
        %8000 = vmatpush1.msra.mxu0 0.0
        %8001 = vmatprep.subr.mxu0 0.0
        %8002 = vmatpush1.msra.mxu0 0.0
        %8003 = vmatprep.subr.mxu0 0.0
        %8004 = vmatpush1.msra.mxu0 0.0
        %8005 = vmatprep.subr.mxu0 0.0
        %8006 = vmatpush1.msra.mxu0 0.0
        %8007 = vmatprep.subr.mxu0 0.0
        %8008 = vmatpush1.msra.mxu0 0.0
        %8009 = vmatprep.subr.mxu0 0.0
        %8010 = vmatpush1.msra.mxu0 0.0
        %8011 = vmatprep.subr.mxu0 0.0
        %8012 = vmatpush1.msra.mxu0 0.0
        %8013 = vmatprep.subr.mxu0 0.0
        %8014 = vmatpush1.msra.mxu0 0.0
        %8015 = vmatprep.subr.mxu0 0.0
        %8016 = vmatpush1.msra.mxu0 0.0
        %8017 = vmatprep.subr.mxu0 0.0
        %8018 = vmatpush1.msra.mxu0 0.0
        %8019 = vmatprep.subr.mxu0 0.0
        %8020 = vmatpush1.msra.mxu0 0.0
        %8021 = vmatprep.subr.mxu0 0.0
        %8022 = vmatpush1.msra.mxu0 0.0
        %8023 = vmatprep.subr.mxu0 0.0
        %8024 = vmatpush1.msra.mxu0 0.0
        %8025 = vmatprep.subr.mxu0 0.0
        %8026 = vmatpush1.msra.mxu0 0.0
        %8027 = vmatprep.subr.mxu0 0.0
        %8028 = vmatpush1.msra.mxu0 0.0
        %8029 = vmatprep.subr.mxu0 0.0
        %8030 = vmatpush1.msra.mxu0 0.0
        %8031 = vmatprep.subr.mxu0 0.0
        %8032 = vmatpush1.msra.mxu0 0.0
        %8033 = vmatprep.subr.mxu0 0.0
        %8034 = vmatpush1.msra.mxu0 0.0
        %8035 = vmatprep.subr.mxu0 0.0
        %8036 = vmatpush1.msra.mxu0 0.0
        %8037 = vmatprep.subr.mxu0 0.0
        %8038 = vmatpush1.msra.mxu0 0.0
        %8039 = vmatprep.subr.mxu0 0.0
        %8040 = vmatpush1.msra.mxu0 0.0
        %8041 = vmatprep.subr.mxu0 0.0
        %8042 = vmatpush1.msra.mxu0 0.0
        %8043 = vmatprep.mubr.f32.mxu0 0.0
        %v8044 = vand.u32 %v6791, 4294901760
        %v8045 = vsub.f32 %v6791, %v8044
        %v8046 = vand.u32 %v8045, 4294901760
        %8047 = vmatmul.mubr.f32.gmra.mrb[0].mxu0 %v8046
        %v8048 = vpop.f32.mrb[0].mxu0
        %v8049 = vadd.f32 %v7973, %v8048
        %v8050 = vpop.f32.mrb[0].mxu0
        %v8051 = vadd.f32 %v7975, %v8050
        %8052 = vdwg.mxu0
        %v8053 = vand.u32 %v6804, 4294901760
        %v8054 = vsub.f32 %v6804, %v8053
        %v8055 = vand.u32 %v8054, 4294901760
        %8056 = vmatprep.subr.mxu0 %v8055
        %v8057 = vand.u32 %v6802, 4294901760
        %v8058 = vsub.f32 %v6802, %v8057
        %v8059 = vand.u32 %v8058, 4294901760
        %8060 = vmatpush1.msra.mxu0 %v8059
        %8061 = vmatprep.subr.mxu0 0.0
        %8062 = vmatpush1.msra.mxu0 0.0
        %8063 = vmatprep.subr.mxu0 0.0
        %8064 = vmatpush1.msra.mxu0 0.0
        %8065 = vmatprep.subr.mxu0 0.0
        %8066 = vmatpush1.msra.mxu0 0.0
        %8067 = vmatprep.subr.mxu0 0.0
        %8068 = vmatpush1.msra.mxu0 0.0
        %8069 = vmatprep.subr.mxu0 0.0
        %8070 = vmatpush1.msra.mxu0 0.0
        %8071 = vmatprep.subr.mxu0 0.0
        %8072 = vmatpush1.msra.mxu0 0.0
        %8073 = vmatprep.subr.mxu0 0.0
        %8074 = vmatpush1.msra.mxu0 0.0
        %8075 = vmatprep.subr.mxu0 0.0
        %8076 = vmatpush1.msra.mxu0 0.0
        %8077 = vmatprep.subr.mxu0 0.0
        %8078 = vmatpush1.msra.mxu0 0.0
        %8079 = vmatprep.subr.mxu0 0.0
        %8080 = vmatpush1.msra.mxu0 0.0
        %8081 = vmatprep.subr.mxu0 0.0
        %8082 = vmatpush1.msra.mxu0 0.0
        %8083 = vmatprep.subr.mxu0 0.0
        %8084 = vmatpush1.msra.mxu0 0.0
        %8085 = vmatprep.subr.mxu0 0.0
        %8086 = vmatpush1.msra.mxu0 0.0
        %8087 = vmatprep.subr.mxu0 0.0
        %8088 = vmatpush1.msra.mxu0 0.0
        %8089 = vmatprep.subr.mxu0 0.0
        %8090 = vmatpush1.msra.mxu0 0.0
        %8091 = vmatprep.subr.mxu0 0.0
        %8092 = vmatpush1.msra.mxu0 0.0
        %8093 = vmatprep.subr.mxu0 0.0
        %8094 = vmatpush1.msra.mxu0 0.0
        %8095 = vmatprep.subr.mxu0 0.0
        %8096 = vmatpush1.msra.mxu0 0.0
        %8097 = vmatprep.subr.mxu0 0.0
        %8098 = vmatpush1.msra.mxu0 0.0
        %8099 = vmatprep.subr.mxu0 0.0
        %8100 = vmatpush1.msra.mxu0 0.0
        %8101 = vmatprep.subr.mxu0 0.0
        %8102 = vmatpush1.msra.mxu0 0.0
        %8103 = vmatprep.subr.mxu0 0.0
        %8104 = vmatpush1.msra.mxu0 0.0
        %8105 = vmatprep.subr.mxu0 0.0
        %8106 = vmatpush1.msra.mxu0 0.0
        %8107 = vmatprep.subr.mxu0 0.0
        %8108 = vmatpush1.msra.mxu0 0.0
        %8109 = vmatprep.subr.mxu0 0.0
        %8110 = vmatpush1.msra.mxu0 0.0
        %8111 = vmatprep.subr.mxu0 0.0
        %8112 = vmatpush1.msra.mxu0 0.0
        %8113 = vmatprep.subr.mxu0 0.0
        %8114 = vmatpush1.msra.mxu0 0.0
        %8115 = vmatprep.subr.mxu0 0.0
        %8116 = vmatpush1.msra.mxu0 0.0
        %8117 = vmatprep.subr.mxu0 0.0
        %8118 = vmatpush1.msra.mxu0 0.0
        %8119 = vmatprep.subr.mxu0 0.0
        %8120 = vmatpush1.msra.mxu0 0.0
        %8121 = vmatprep.subr.mxu0 0.0
        %8122 = vmatpush1.msra.mxu0 0.0
        %8123 = vmatprep.mubr.f32.mxu0 0.0
        %v8124 = vand.u32 %v6791, 4294901760
        %8125 = vmatmul.mubr.f32.gmra.mrb[0].mxu0 %v8124
        %v8126 = vpop.f32.mrb[0].mxu0
        %v8127 = vadd.f32 %v8049, %v8126
        %v8128 = vpop.f32.mrb[0].mxu0
        %v8129 = vadd.f32 %v8051, %v8128
        %8130 = vdwg.mxu0
        %v8131 = vand.u32 %v6804, 4294901760
        %8132 = vmatprep.subr.mxu0 %v8131
        %v8133 = vand.u32 %v6802, 4294901760
        %8134 = vmatpush1.msra.mxu0 %v8133
        %8135 = vmatprep.subr.mxu0 0.0
        %8136 = vmatpush1.msra.mxu0 0.0
        %8137 = vmatprep.subr.mxu0 0.0
        %8138 = vmatpush1.msra.mxu0 0.0
        %8139 = vmatprep.subr.mxu0 0.0
        %8140 = vmatpush1.msra.mxu0 0.0
        %8141 = vmatprep.subr.mxu0 0.0
        %8142 = vmatpush1.msra.mxu0 0.0
        %8143 = vmatprep.subr.mxu0 0.0
        %8144 = vmatpush1.msra.mxu0 0.0
        %8145 = vmatprep.subr.mxu0 0.0
        %8146 = vmatpush1.msra.mxu0 0.0
        %8147 = vmatprep.subr.mxu0 0.0
        %8148 = vmatpush1.msra.mxu0 0.0
        %8149 = vmatprep.subr.mxu0 0.0
        %8150 = vmatpush1.msra.mxu0 0.0
        %8151 = vmatprep.subr.mxu0 0.0
        %8152 = vmatpush1.msra.mxu0 0.0
        %8153 = vmatprep.subr.mxu0 0.0
        %8154 = vmatpush1.msra.mxu0 0.0
        %8155 = vmatprep.subr.mxu0 0.0
        %8156 = vmatpush1.msra.mxu0 0.0
        %8157 = vmatprep.subr.mxu0 0.0
        %8158 = vmatpush1.msra.mxu0 0.0
        %8159 = vmatprep.subr.mxu0 0.0
        %8160 = vmatpush1.msra.mxu0 0.0
        %8161 = vmatprep.subr.mxu0 0.0
        %8162 = vmatpush1.msra.mxu0 0.0
        %8163 = vmatprep.subr.mxu0 0.0
        %8164 = vmatpush1.msra.mxu0 0.0
        %8165 = vmatprep.subr.mxu0 0.0
        %8166 = vmatpush1.msra.mxu0 0.0
        %8167 = vmatprep.subr.mxu0 0.0
        %8168 = vmatpush1.msra.mxu0 0.0
        %8169 = vmatprep.subr.mxu0 0.0
        %8170 = vmatpush1.msra.mxu0 0.0
        %8171 = vmatprep.subr.mxu0 0.0
        %8172 = vmatpush1.msra.mxu0 0.0
        %8173 = vmatprep.subr.mxu0 0.0
        %8174 = vmatpush1.msra.mxu0 0.0
        %8175 = vmatprep.subr.mxu0 0.0
        %8176 = vmatpush1.msra.mxu0 0.0
        %8177 = vmatprep.subr.mxu0 0.0
        %8178 = vmatpush1.msra.mxu0 0.0
        %8179 = vmatprep.subr.mxu0 0.0
        %8180 = vmatpush1.msra.mxu0 0.0
        %8181 = vmatprep.subr.mxu0 0.0
        %8182 = vmatpush1.msra.mxu0 0.0
        %8183 = vmatprep.subr.mxu0 0.0
        %8184 = vmatpush1.msra.mxu0 0.0
        %8185 = vmatprep.subr.mxu0 0.0
        %8186 = vmatpush1.msra.mxu0 0.0
        %8187 = vmatprep.subr.mxu0 0.0
        %8188 = vmatpush1.msra.mxu0 0.0
        %8189 = vmatprep.subr.mxu0 0.0
        %8190 = vmatpush1.msra.mxu0 0.0
        %8191 = vmatprep.subr.mxu0 0.0
        %8192 = vmatpush1.msra.mxu0 0.0
        %8193 = vmatprep.subr.mxu0 0.0
        %8194 = vmatpush1.msra.mxu0 0.0
        %8195 = vmatprep.subr.mxu0 0.0
        %8196 = vmatpush1.msra.mxu0 0.0
        %8197 = vmatprep.mubr.f32.mxu0 0.0
        %v8198 = vand.u32 %v6791, 4294901760
        %8199 = vmatmul.mubr.f32.gmra.mrb[0].mxu0 %v8198
        %v8200 = vpop.f32.mrb[0].mxu0
        %v8201 = vadd.f32 %v8127, %v8200
        %v8202 = vpop.f32.mrb[0].mxu0
        %v8203 = vadd.f32 %v8129, %v8202
        %8204 = vdwg.mxu0
        %v8205 = vand.u32 %v6808, 4294901760
        %8206 = vmatprep.subr.mxu0 %v8205
        %v8207 = vand.u32 %v6806, 4294901760
        %8208 = vmatpush1.msra.mxu0 %v8207
        %8209 = vmatprep.subr.mxu0 0.0
        %8210 = vmatpush1.msra.mxu0 0.0
        %8211 = vmatprep.subr.mxu0 0.0
        %8212 = vmatpush1.msra.mxu0 0.0
        %8213 = vmatprep.subr.mxu0 0.0
        %8214 = vmatpush1.msra.mxu0 0.0
        %8215 = vmatprep.subr.mxu0 0.0
        %8216 = vmatpush1.msra.mxu0 0.0
        %8217 = vmatprep.subr.mxu0 0.0
        %8218 = vmatpush1.msra.mxu0 0.0
        %8219 = vmatprep.subr.mxu0 0.0
        %8220 = vmatpush1.msra.mxu0 0.0
        %8221 = vmatprep.subr.mxu0 0.0
        %8222 = vmatpush1.msra.mxu0 0.0
        %8223 = vmatprep.subr.mxu0 0.0
        %8224 = vmatpush1.msra.mxu0 0.0
        %8225 = vmatprep.subr.mxu0 0.0
        %8226 = vmatpush1.msra.mxu0 0.0
        %8227 = vmatprep.subr.mxu0 0.0
        %8228 = vmatpush1.msra.mxu0 0.0
        %8229 = vmatprep.subr.mxu0 0.0
        %8230 = vmatpush1.msra.mxu0 0.0
        %8231 = vmatprep.subr.mxu0 0.0
        %8232 = vmatpush1.msra.mxu0 0.0
        %8233 = vmatprep.subr.mxu0 0.0
        %8234 = vmatpush1.msra.mxu0 0.0
        %8235 = vmatprep.subr.mxu0 0.0
        %8236 = vmatpush1.msra.mxu0 0.0
        %8237 = vmatprep.subr.mxu0 0.0
        %8238 = vmatpush1.msra.mxu0 0.0
        %8239 = vmatprep.subr.mxu0 0.0
        %8240 = vmatpush1.msra.mxu0 0.0
        %8241 = vmatprep.subr.mxu0 0.0
        %8242 = vmatpush1.msra.mxu0 0.0
        %8243 = vmatprep.subr.mxu0 0.0
        %8244 = vmatpush1.msra.mxu0 0.0
        %8245 = vmatprep.subr.mxu0 0.0
        %8246 = vmatpush1.msra.mxu0 0.0
        %8247 = vmatprep.subr.mxu0 0.0
        %8248 = vmatpush1.msra.mxu0 0.0
        %8249 = vmatprep.subr.mxu0 0.0
        %8250 = vmatpush1.msra.mxu0 0.0
        %8251 = vmatprep.subr.mxu0 0.0
        %8252 = vmatpush1.msra.mxu0 0.0
        %8253 = vmatprep.subr.mxu0 0.0
        %8254 = vmatpush1.msra.mxu0 0.0
        %8255 = vmatprep.subr.mxu0 0.0
        %8256 = vmatpush1.msra.mxu0 0.0
        %8257 = vmatprep.subr.mxu0 0.0
        %8258 = vmatpush1.msra.mxu0 0.0
        %8259 = vmatprep.subr.mxu0 0.0
        %8260 = vmatpush1.msra.mxu0 0.0
        %8261 = vmatprep.subr.mxu0 0.0
        %8262 = vmatpush1.msra.mxu0 0.0
        %8263 = vmatprep.subr.mxu0 0.0
        %8264 = vmatpush1.msra.mxu0 0.0
        %8265 = vmatprep.subr.mxu0 0.0
        %8266 = vmatpush1.msra.mxu0 0.0
        %8267 = vmatprep.subr.mxu0 0.0
        %8268 = vmatpush1.msra.mxu0 0.0
        %8269 = vmatprep.subr.mxu0 0.0
        %8270 = vmatpush1.msra.mxu0 0.0
        %8271 = vmatprep.mubr.f32.mxu0 0.0
        %v8272 = vand.u32 %v6791, 4294901760
        %v8273 = vsub.f32 %v6791, %v8272
        %v8274 = vand.u32 %v8273, 4294901760
        %v8275 = vsub.f32 %v8273, %v8274
        %v8276 = vand.u32 %v8275, 4294901760
        %8277 = vmatmul.mubr.f32.gmra.mrb[0].mxu0 %v8276
        %v8278 = vpop.f32.mrb[0].mxu0
        %v8279 = vadd.f32 %v6779, %v8278
        %v8280 = vpop.f32.mrb[0].mxu0
        %v8281 = vadd.f32 %v6779, %v8280
        %8282 = vdwg.mxu0
        %v8283 = vand.u32 %v6808, 4294901760
        %v8284 = vsub.f32 %v6808, %v8283
        %v8285 = vand.u32 %v8284, 4294901760
        %v8286 = vsub.f32 %v8284, %v8285
        %v8287 = vand.u32 %v8286, 4294901760
        %8288 = vmatprep.subr.mxu0 %v8287
        %v8289 = vand.u32 %v6806, 4294901760
        %v8290 = vsub.f32 %v6806, %v8289
        %v8291 = vand.u32 %v8290, 4294901760
        %v8292 = vsub.f32 %v8290, %v8291
        %v8293 = vand.u32 %v8292, 4294901760
        %8294 = vmatpush1.msra.mxu0 %v8293
        %8295 = vmatprep.subr.mxu0 0.0
        %8296 = vmatpush1.msra.mxu0 0.0
        %8297 = vmatprep.subr.mxu0 0.0
        %8298 = vmatpush1.msra.mxu0 0.0
        %8299 = vmatprep.subr.mxu0 0.0
        %8300 = vmatpush1.msra.mxu0 0.0
        %8301 = vmatprep.subr.mxu0 0.0
        %8302 = vmatpush1.msra.mxu0 0.0
        %8303 = vmatprep.subr.mxu0 0.0
        %8304 = vmatpush1.msra.mxu0 0.0
        %8305 = vmatprep.subr.mxu0 0.0
        %8306 = vmatpush1.msra.mxu0 0.0
        %8307 = vmatprep.subr.mxu0 0.0
        %8308 = vmatpush1.msra.mxu0 0.0
        %8309 = vmatprep.subr.mxu0 0.0
        %8310 = vmatpush1.msra.mxu0 0.0
        %8311 = vmatprep.subr.mxu0 0.0
        %8312 = vmatpush1.msra.mxu0 0.0
        %8313 = vmatprep.subr.mxu0 0.0
        %8314 = vmatpush1.msra.mxu0 0.0
        %8315 = vmatprep.subr.mxu0 0.0
        %8316 = vmatpush1.msra.mxu0 0.0
        %8317 = vmatprep.subr.mxu0 0.0
        %8318 = vmatpush1.msra.mxu0 0.0
        %8319 = vmatprep.subr.mxu0 0.0
        %8320 = vmatpush1.msra.mxu0 0.0
        %8321 = vmatprep.subr.mxu0 0.0
        %8322 = vmatpush1.msra.mxu0 0.0
        %8323 = vmatprep.subr.mxu0 0.0
        %8324 = vmatpush1.msra.mxu0 0.0
        %8325 = vmatprep.subr.mxu0 0.0
        %8326 = vmatpush1.msra.mxu0 0.0
        %8327 = vmatprep.subr.mxu0 0.0
        %8328 = vmatpush1.msra.mxu0 0.0
        %8329 = vmatprep.subr.mxu0 0.0
        %8330 = vmatpush1.msra.mxu0 0.0
        %8331 = vmatprep.subr.mxu0 0.0
        %8332 = vmatpush1.msra.mxu0 0.0
        %8333 = vmatprep.subr.mxu0 0.0
        %8334 = vmatpush1.msra.mxu0 0.0
        %8335 = vmatprep.subr.mxu0 0.0
        %8336 = vmatpush1.msra.mxu0 0.0
        %8337 = vmatprep.subr.mxu0 0.0
        %8338 = vmatpush1.msra.mxu0 0.0
        %8339 = vmatprep.subr.mxu0 0.0
        %8340 = vmatpush1.msra.mxu0 0.0
        %8341 = vmatprep.subr.mxu0 0.0
        %8342 = vmatpush1.msra.mxu0 0.0
        %8343 = vmatprep.subr.mxu0 0.0
        %8344 = vmatpush1.msra.mxu0 0.0
        %8345 = vmatprep.subr.mxu0 0.0
        %8346 = vmatpush1.msra.mxu0 0.0
        %8347 = vmatprep.subr.mxu0 0.0
        %8348 = vmatpush1.msra.mxu0 0.0
        %8349 = vmatprep.subr.mxu0 0.0
        %8350 = vmatpush1.msra.mxu0 0.0
        %8351 = vmatprep.subr.mxu0 0.0
        %8352 = vmatpush1.msra.mxu0 0.0
        %8353 = vmatprep.subr.mxu0 0.0
        %8354 = vmatpush1.msra.mxu0 0.0
        %8355 = vmatprep.subr.mxu0 0.0
        %8356 = vmatpush1.msra.mxu0 0.0
        %8357 = vmatprep.mubr.f32.mxu0 0.0
        %v8358 = vand.u32 %v6791, 4294901760
        %8359 = vmatmul.mubr.f32.gmra.mrb[0].mxu0 %v8358
        %v8360 = vpop.f32.mrb[0].mxu0
        %v8361 = vadd.f32 %v8279, %v8360
        %v8362 = vpop.f32.mrb[0].mxu0
        %v8363 = vadd.f32 %v8281, %v8362
        %8364 = vdwg.mxu0
        %v8365 = vand.u32 %v6808, 4294901760
        %v8366 = vsub.f32 %v6808, %v8365
        %8367 = vmatprep.subr.mxu0 %v8366
        %v8368 = vand.u32 %v6806, 4294901760
        %v8369 = vsub.f32 %v6806, %v8368
        %8370 = vmatpush1.msra.mxu0 %v8369
        %8371 = vmatprep.subr.mxu0 0.0
        %8372 = vmatpush1.msra.mxu0 0.0
        %8373 = vmatprep.subr.mxu0 0.0
        %8374 = vmatpush1.msra.mxu0 0.0
        %8375 = vmatprep.subr.mxu0 0.0
        %8376 = vmatpush1.msra.mxu0 0.0
        %8377 = vmatprep.subr.mxu0 0.0
        %8378 = vmatpush1.msra.mxu0 0.0
        %8379 = vmatprep.subr.mxu0 0.0
        %8380 = vmatpush1.msra.mxu0 0.0
        %8381 = vmatprep.subr.mxu0 0.0
        %8382 = vmatpush1.msra.mxu0 0.0
        %8383 = vmatprep.subr.mxu0 0.0
        %8384 = vmatpush1.msra.mxu0 0.0
        %8385 = vmatprep.subr.mxu0 0.0
        %8386 = vmatpush1.msra.mxu0 0.0
        %8387 = vmatprep.subr.mxu0 0.0
        %8388 = vmatpush1.msra.mxu0 0.0
        %8389 = vmatprep.subr.mxu0 0.0
        %8390 = vmatpush1.msra.mxu0 0.0
        %8391 = vmatprep.subr.mxu0 0.0
        %8392 = vmatpush1.msra.mxu0 0.0
        %8393 = vmatprep.subr.mxu0 0.0
        %8394 = vmatpush1.msra.mxu0 0.0
        %8395 = vmatprep.subr.mxu0 0.0
        %8396 = vmatpush1.msra.mxu0 0.0
        %8397 = vmatprep.subr.mxu0 0.0
        %8398 = vmatpush1.msra.mxu0 0.0
        %8399 = vmatprep.subr.mxu0 0.0
        %8400 = vmatpush1.msra.mxu0 0.0
        %8401 = vmatprep.subr.mxu0 0.0
        %8402 = vmatpush1.msra.mxu0 0.0
        %8403 = vmatprep.subr.mxu0 0.0
        %8404 = vmatpush1.msra.mxu0 0.0
        %8405 = vmatprep.subr.mxu0 0.0
        %8406 = vmatpush1.msra.mxu0 0.0
        %8407 = vmatprep.subr.mxu0 0.0
        %8408 = vmatpush1.msra.mxu0 0.0
        %8409 = vmatprep.subr.mxu0 0.0
        %8410 = vmatpush1.msra.mxu0 0.0
        %8411 = vmatprep.subr.mxu0 0.0
        %8412 = vmatpush1.msra.mxu0 0.0
        %8413 = vmatprep.subr.mxu0 0.0
        %8414 = vmatpush1.msra.mxu0 0.0
        %8415 = vmatprep.subr.mxu0 0.0
        %8416 = vmatpush1.msra.mxu0 0.0
        %8417 = vmatprep.subr.mxu0 0.0
        %8418 = vmatpush1.msra.mxu0 0.0
        %8419 = vmatprep.subr.mxu0 0.0
        %8420 = vmatpush1.msra.mxu0 0.0
        %8421 = vmatprep.subr.mxu0 0.0
        %8422 = vmatpush1.msra.mxu0 0.0
        %8423 = vmatprep.subr.mxu0 0.0
        %8424 = vmatpush1.msra.mxu0 0.0
        %8425 = vmatprep.subr.mxu0 0.0
        %8426 = vmatpush1.msra.mxu0 0.0
        %8427 = vmatprep.subr.mxu0 0.0
        %8428 = vmatpush1.msra.mxu0 0.0
        %8429 = vmatprep.subr.mxu0 0.0
        %8430 = vmatpush1.msra.mxu0 0.0
        %8431 = vmatprep.subr.mxu0 0.0
        %8432 = vmatpush1.msra.mxu0 0.0
        %8433 = vmatprep.mubr.f32.mxu0 0.0
        %v8434 = vand.u32 %v6791, 4294901760
        %v8435 = vsub.f32 %v6791, %v8434
        %8436 = vmatmul.mubr.f32.gmra.mrb[0].mxu0 %v8435
        %v8437 = vpop.f32.mrb[0].mxu0
        %v8438 = vadd.f32 %v8361, %v8437
        %v8439 = vpop.f32.mrb[0].mxu0
        %v8440 = vadd.f32 %v8363, %v8439
        %8441 = vdwg.mxu0
        %v8442 = vand.u32 %v6808, 4294901760
        %8443 = vmatprep.subr.mxu0 %v8442
        %v8444 = vand.u32 %v6806, 4294901760
        %8445 = vmatpush1.msra.mxu0 %v8444
        %8446 = vmatprep.subr.mxu0 0.0
        %8447 = vmatpush1.msra.mxu0 0.0
        %8448 = vmatprep.subr.mxu0 0.0
        %8449 = vmatpush1.msra.mxu0 0.0
        %8450 = vmatprep.subr.mxu0 0.0
        %8451 = vmatpush1.msra.mxu0 0.0
        %8452 = vmatprep.subr.mxu0 0.0
        %8453 = vmatpush1.msra.mxu0 0.0
        %8454 = vmatprep.subr.mxu0 0.0
        %8455 = vmatpush1.msra.mxu0 0.0
        %8456 = vmatprep.subr.mxu0 0.0
        %8457 = vmatpush1.msra.mxu0 0.0
        %8458 = vmatprep.subr.mxu0 0.0
        %8459 = vmatpush1.msra.mxu0 0.0
        %8460 = vmatprep.subr.mxu0 0.0
        %8461 = vmatpush1.msra.mxu0 0.0
        %8462 = vmatprep.subr.mxu0 0.0
        %8463 = vmatpush1.msra.mxu0 0.0
        %8464 = vmatprep.subr.mxu0 0.0
        %8465 = vmatpush1.msra.mxu0 0.0
        %8466 = vmatprep.subr.mxu0 0.0
        %8467 = vmatpush1.msra.mxu0 0.0
        %8468 = vmatprep.subr.mxu0 0.0
        %8469 = vmatpush1.msra.mxu0 0.0
        %8470 = vmatprep.subr.mxu0 0.0
        %8471 = vmatpush1.msra.mxu0 0.0
        %8472 = vmatprep.subr.mxu0 0.0
        %8473 = vmatpush1.msra.mxu0 0.0
        %8474 = vmatprep.subr.mxu0 0.0
        %8475 = vmatpush1.msra.mxu0 0.0
        %8476 = vmatprep.subr.mxu0 0.0
        %8477 = vmatpush1.msra.mxu0 0.0
        %8478 = vmatprep.subr.mxu0 0.0
        %8479 = vmatpush1.msra.mxu0 0.0
        %8480 = vmatprep.subr.mxu0 0.0
        %8481 = vmatpush1.msra.mxu0 0.0
        %8482 = vmatprep.subr.mxu0 0.0
        %8483 = vmatpush1.msra.mxu0 0.0
        %8484 = vmatprep.subr.mxu0 0.0
        %8485 = vmatpush1.msra.mxu0 0.0
        %8486 = vmatprep.subr.mxu0 0.0
        %8487 = vmatpush1.msra.mxu0 0.0
        %8488 = vmatprep.subr.mxu0 0.0
        %8489 = vmatpush1.msra.mxu0 0.0
        %8490 = vmatprep.subr.mxu0 0.0
        %8491 = vmatpush1.msra.mxu0 0.0
        %8492 = vmatprep.subr.mxu0 0.0
        %8493 = vmatpush1.msra.mxu0 0.0
        %8494 = vmatprep.subr.mxu0 0.0
        %8495 = vmatpush1.msra.mxu0 0.0
        %8496 = vmatprep.subr.mxu0 0.0
        %8497 = vmatpush1.msra.mxu0 0.0
        %8498 = vmatprep.subr.mxu0 0.0
        %8499 = vmatpush1.msra.mxu0 0.0
        %8500 = vmatprep.subr.mxu0 0.0
        %8501 = vmatpush1.msra.mxu0 0.0
        %8502 = vmatprep.subr.mxu0 0.0
        %8503 = vmatpush1.msra.mxu0 0.0
        %8504 = vmatprep.subr.mxu0 0.0
        %8505 = vmatpush1.msra.mxu0 0.0
        %8506 = vmatprep.subr.mxu0 0.0
        %8507 = vmatpush1.msra.mxu0 0.0
        %8508 = vmatprep.mubr.f32.mxu0 0.0
        %v8509 = vand.u32 %v6791, 4294901760
        %v8510 = vsub.f32 %v6791, %v8509
        %v8511 = vand.u32 %v8510, 4294901760
        %8512 = vmatmul.mubr.f32.gmra.mrb[0].mxu0 %v8511
        %v8513 = vpop.f32.mrb[0].mxu0
        %v8514 = vadd.f32 %v8438, %v8513
        %v8515 = vpop.f32.mrb[0].mxu0
        %v8516 = vadd.f32 %v8440, %v8515
        %8517 = vdwg.mxu0
        %v8518 = vand.u32 %v6808, 4294901760
        %v8519 = vsub.f32 %v6808, %v8518
        %v8520 = vand.u32 %v8519, 4294901760
        %8521 = vmatprep.subr.mxu0 %v8520
        %v8522 = vand.u32 %v6806, 4294901760
        %v8523 = vsub.f32 %v6806, %v8522
        %v8524 = vand.u32 %v8523, 4294901760
        %8525 = vmatpush1.msra.mxu0 %v8524
        %8526 = vmatprep.subr.mxu0 0.0
        %8527 = vmatpush1.msra.mxu0 0.0
        %8528 = vmatprep.subr.mxu0 0.0
        %8529 = vmatpush1.msra.mxu0 0.0
        %8530 = vmatprep.subr.mxu0 0.0
        %8531 = vmatpush1.msra.mxu0 0.0
        %8532 = vmatprep.subr.mxu0 0.0
        %8533 = vmatpush1.msra.mxu0 0.0
        %8534 = vmatprep.subr.mxu0 0.0
        %8535 = vmatpush1.msra.mxu0 0.0
        %8536 = vmatprep.subr.mxu0 0.0
        %8537 = vmatpush1.msra.mxu0 0.0
        %8538 = vmatprep.subr.mxu0 0.0
        %8539 = vmatpush1.msra.mxu0 0.0
        %8540 = vmatprep.subr.mxu0 0.0
        %8541 = vmatpush1.msra.mxu0 0.0
        %8542 = vmatprep.subr.mxu0 0.0
        %8543 = vmatpush1.msra.mxu0 0.0
        %8544 = vmatprep.subr.mxu0 0.0
        %8545 = vmatpush1.msra.mxu0 0.0
        %8546 = vmatprep.subr.mxu0 0.0
        %8547 = vmatpush1.msra.mxu0 0.0
        %8548 = vmatprep.subr.mxu0 0.0
        %8549 = vmatpush1.msra.mxu0 0.0
        %8550 = vmatprep.subr.mxu0 0.0
        %8551 = vmatpush1.msra.mxu0 0.0
        %8552 = vmatprep.subr.mxu0 0.0
        %8553 = vmatpush1.msra.mxu0 0.0
        %8554 = vmatprep.subr.mxu0 0.0
        %8555 = vmatpush1.msra.mxu0 0.0
        %8556 = vmatprep.subr.mxu0 0.0
        %8557 = vmatpush1.msra.mxu0 0.0
        %8558 = vmatprep.subr.mxu0 0.0
        %8559 = vmatpush1.msra.mxu0 0.0
        %8560 = vmatprep.subr.mxu0 0.0
        %8561 = vmatpush1.msra.mxu0 0.0
        %8562 = vmatprep.subr.mxu0 0.0
        %8563 = vmatpush1.msra.mxu0 0.0
        %8564 = vmatprep.subr.mxu0 0.0
        %8565 = vmatpush1.msra.mxu0 0.0
        %8566 = vmatprep.subr.mxu0 0.0
        %8567 = vmatpush1.msra.mxu0 0.0
        %8568 = vmatprep.subr.mxu0 0.0
        %8569 = vmatpush1.msra.mxu0 0.0
        %8570 = vmatprep.subr.mxu0 0.0
        %8571 = vmatpush1.msra.mxu0 0.0
        %8572 = vmatprep.subr.mxu0 0.0
        %8573 = vmatpush1.msra.mxu0 0.0
        %8574 = vmatprep.subr.mxu0 0.0
        %8575 = vmatpush1.msra.mxu0 0.0
        %8576 = vmatprep.subr.mxu0 0.0
        %8577 = vmatpush1.msra.mxu0 0.0
        %8578 = vmatprep.subr.mxu0 0.0
        %8579 = vmatpush1.msra.mxu0 0.0
        %8580 = vmatprep.subr.mxu0 0.0
        %8581 = vmatpush1.msra.mxu0 0.0
        %8582 = vmatprep.subr.mxu0 0.0
        %8583 = vmatpush1.msra.mxu0 0.0
        %8584 = vmatprep.subr.mxu0 0.0
        %8585 = vmatpush1.msra.mxu0 0.0
        %8586 = vmatprep.subr.mxu0 0.0
        %8587 = vmatpush1.msra.mxu0 0.0
        %8588 = vmatprep.mubr.f32.mxu0 0.0
        %v8589 = vand.u32 %v6791, 4294901760
        %8590 = vmatmul.mubr.f32.gmra.mrb[0].mxu0 %v8589
        %v8591 = vpop.f32.mrb[0].mxu0
        %v8592 = vadd.f32 %v8514, %v8591
        %v8593 = vpop.f32.mrb[0].mxu0
        %v8594 = vadd.f32 %v8516, %v8593
        %8595 = vdwg.mxu0
        %v8596 = vand.u32 %v6808, 4294901760
        %8597 = vmatprep.subr.mxu0 %v8596
        %v8598 = vand.u32 %v6806, 4294901760
        %8599 = vmatpush1.msra.mxu0 %v8598
        %8600 = vmatprep.subr.mxu0 0.0
        %8601 = vmatpush1.msra.mxu0 0.0
        %8602 = vmatprep.subr.mxu0 0.0
        %8603 = vmatpush1.msra.mxu0 0.0
        %8604 = vmatprep.subr.mxu0 0.0
        %8605 = vmatpush1.msra.mxu0 0.0
        %8606 = vmatprep.subr.mxu0 0.0
        %8607 = vmatpush1.msra.mxu0 0.0
        %8608 = vmatprep.subr.mxu0 0.0
        %8609 = vmatpush1.msra.mxu0 0.0
        %8610 = vmatprep.subr.mxu0 0.0
        %8611 = vmatpush1.msra.mxu0 0.0
        %8612 = vmatprep.subr.mxu0 0.0
        %8613 = vmatpush1.msra.mxu0 0.0
        %8614 = vmatprep.subr.mxu0 0.0
        %8615 = vmatpush1.msra.mxu0 0.0
        %8616 = vmatprep.subr.mxu0 0.0
        %8617 = vmatpush1.msra.mxu0 0.0
        %8618 = vmatprep.subr.mxu0 0.0
        %8619 = vmatpush1.msra.mxu0 0.0
        %8620 = vmatprep.subr.mxu0 0.0
        %8621 = vmatpush1.msra.mxu0 0.0
        %8622 = vmatprep.subr.mxu0 0.0
        %8623 = vmatpush1.msra.mxu0 0.0
        %8624 = vmatprep.subr.mxu0 0.0
        %8625 = vmatpush1.msra.mxu0 0.0
        %8626 = vmatprep.subr.mxu0 0.0
        %8627 = vmatpush1.msra.mxu0 0.0
        %8628 = vmatprep.subr.mxu0 0.0
        %8629 = vmatpush1.msra.mxu0 0.0
        %8630 = vmatprep.subr.mxu0 0.0
        %8631 = vmatpush1.msra.mxu0 0.0
        %8632 = vmatprep.subr.mxu0 0.0
        %8633 = vmatpush1.msra.mxu0 0.0
        %8634 = vmatprep.subr.mxu0 0.0
        %8635 = vmatpush1.msra.mxu0 0.0
        %8636 = vmatprep.subr.mxu0 0.0
        %8637 = vmatpush1.msra.mxu0 0.0
        %8638 = vmatprep.subr.mxu0 0.0
        %8639 = vmatpush1.msra.mxu0 0.0
        %8640 = vmatprep.subr.mxu0 0.0
        %8641 = vmatpush1.msra.mxu0 0.0
        %8642 = vmatprep.subr.mxu0 0.0
        %8643 = vmatpush1.msra.mxu0 0.0
        %8644 = vmatprep.subr.mxu0 0.0
        %8645 = vmatpush1.msra.mxu0 0.0
        %8646 = vmatprep.subr.mxu0 0.0
        %8647 = vmatpush1.msra.mxu0 0.0
        %8648 = vmatprep.subr.mxu0 0.0
        %8649 = vmatpush1.msra.mxu0 0.0
        %8650 = vmatprep.subr.mxu0 0.0
        %8651 = vmatpush1.msra.mxu0 0.0
        %8652 = vmatprep.subr.mxu0 0.0
        %8653 = vmatpush1.msra.mxu0 0.0
        %8654 = vmatprep.subr.mxu0 0.0
        %8655 = vmatpush1.msra.mxu0 0.0
        %8656 = vmatprep.subr.mxu0 0.0
        %8657 = vmatpush1.msra.mxu0 0.0
        %8658 = vmatprep.subr.mxu0 0.0
        %8659 = vmatpush1.msra.mxu0 0.0
        %8660 = vmatprep.subr.mxu0 0.0
        %8661 = vmatpush1.msra.mxu0 0.0
        %8662 = vmatprep.mubr.f32.mxu0 0.0
        %v8663 = vand.u32 %v6791, 4294901760
        %8664 = vmatmul.mubr.f32.gmra.mrb[0].mxu0 %v8663
        %v8665 = vpop.f32.mrb[0].mxu0
        %v8666 = vadd.f32 %v8592, %v8665
        %v8667 = vpop.f32.mrb[0].mxu0
        %v8668 = vadd.f32 %v8594, %v8667
        %8669 = vdwg.mxu0
        %8670 = vst [vmem:[%s338] sm:$0xff] %v7271
        %8671 = vst [vmem:[%s338 + $0x8] sm:$0xff] %v7273
        %8672 = vst [vmem:[%s338 + $0x10] sm:$0xff] %v7736
        %8673 = vst [vmem:[%s338 + $0x18] sm:$0xff] %v7738
        %8674 = vst [vmem:[%s338 + $0x20] sm:$0xff] %v8201
        %8675 = vst [vmem:[%s338 + $0x28] sm:$0xff] %v8203
        %8676 = vst [vmem:[%s338 + $0x30] sm:$0xff] %v8666
        %8677 = vst [vmem:[%s338 + $0x38] sm:$0xff] %v8668
        %s8678 = sand.u32 %s205, 1
        %s8679 = scalar_lea.sflag [#allocation7], %s8678
        %s8680 = sand.u32 %s205, 1
        %s8681 = smul.addr %s8680, 64
        %s8682 = scalar_lea.vmem [#allocation11], %s8681
        // Predicated region
        $region65: #{tpu_custom_call.1} parent=51 // pred_check
          %p8683 = pneg %p215
        $region66: #{tpu_custom_call.1} parent=51 // pred_check_branch
          %8685 = sbr.rel (%p8683) target = $region68
        $region67: #{tpu_custom_call.1} parent=51 // pred_region
          %s8687 = ssub.s32 1024, 1024
          %8688 = vsyncadd %s8679, %s8687
          %s8689 = smul.addr %s24, 8
          %s8690 = smul.addr %s8689, 128
          %s8691 = scalar_lea.hbm %s8, %s8690
          %s8693 = sshll.u32 %s8682, 4
          %s8694 = int_to_ptr.vmem [resolvable:$true] %s8693
          %8696 = dma.vmem_to_hbm [thread:$0]  %s8694, 1024, %s8691, %s8679
        $region68: #{tpu_custom_call.1} parent=51 // pred_fallthru
          _
      $region52: #{tpu_custom_call.1} parent=5 // pred_fallthru
        _
      %p8697 = scmp.le.s32.totalorder 2, %s19
      // Predicated region
      $region69: #{tpu_custom_call.1} parent=5 // pred_check
        %p8698 = pneg %p8697
      $region70: #{tpu_custom_call.1} parent=5 // pred_check_branch
        %8700 = sbr.rel (%p8698) target = $region72
      $region71: #{tpu_custom_call.1} parent=5 // pred_region
        %s8701 = ssub.s32 %s19, 2
        // Predicated region
        $region73: #{tpu_custom_call.1} parent=71 // pred_check
          %p8702 = pneg %p221
        $region74: #{tpu_custom_call.1} parent=71 // pred_check_branch
          %8704 = sbr.rel (%p8702) target = $region76
        $region75: #{tpu_custom_call.1} parent=71 // pred_region
          %s8705 = sand.u32 %s206, 1
          %s8706 = scalar_lea.sflag [#allocation7], %s8705
          %s8707 = sand.u32 %s206, 1
          %s8708 = smul.addr %s8707, 64
          %s8709 = scalar_lea.vmem [#allocation11], %s8708
          %8710 = dma.done %s8706, 1024
        $region76: #{tpu_custom_call.1} parent=71 // pred_fallthru
          _
      $region72: #{tpu_custom_call.1} parent=5 // pred_fallthru
        _
    $region6: #{tpu_custom_call.1} parent=1 // loop_footer
      %s23 = sadd.s32 1, %s19
    $region7: #{tpu_custom_call.1} parent=1 // loop_footer_branch
      %18 = sbr.rel target = $region3
    $region8: #{tpu_custom_call.1} parent=1 // loop_exit
      _
    %8711 = vsyncpa [#allocation6], 1
    %s8712 = scalar_lea.sflag [#allocation6], 1
    %8713 = vsyncpa %s8712, 1
    %8714 = vsyncpa [#allocation9], 1
    %8715 = vsyncpa [#allocation7], 1
    %s8716 = scalar_lea.sflag [#allocation7], 1
    %8717 = vsyncpa %s8716, 1

</llo_original>
